<compile_context>
chip_gen: v7x
topology: tpu7x:2x2x1
jax: 0.10.0
libtpu: 0.0.40
codegen_flags: <defaults>
</compile_context>

<pallas_src>
import functools

import jax
import jax.numpy as jnp
from jax import lax
from jax.experimental import pallas as pl
from jax.experimental.pallas import tpu as pltpu

BN_EPS = 1e-5


# ---------------------------------------------------------------------------
# In-kernel helpers (trace-time Python, unrolled inside the single kernel)
# ---------------------------------------------------------------------------
def _conv_bn_relu(src_ref, w_ref, scale_ref, shift_ref, H, W):
    """3x3 SAME conv (K-packed single matmul) + folded BN + ReLU.

    src_ref : ((H+2)*(W+2)+2, Cin) f32 scratch; zero borders, activation value
              of padded coord (a, b) stored at flat row a*(W+2)+b.
    Returns y : (H*(W+2), Cout) f32; rows r = h*(W+2)+w are valid for w < W
    (the two halo columns per row are junk and never read again).
    """
    Wp = W + 2
    M = H * Wp
    # One contiguous row-slice per 3x3 tap, cast to bf16, lane-concatenated
    # into the (M, 9*Cin) patch matrix (im2col done fully in VMEM).
    slabs = [
        src_ref[pl.ds(kh * Wp + kw, M), :].astype(jnp.bfloat16)
        for kh in range(3) for kw in range(3)
    ]
    pat = jnp.concatenate(slabs, axis=1)                       # (M, 9*Cin) bf16
    y = jnp.dot(pat, w_ref[...], preferred_element_type=jnp.float32)
    return jnp.maximum(y * scale_ref[...] + shift_ref[...], 0.0)


def _maxpool_rows(y, H, W, pitch):
    """Yield ((i, j), (1, C)) 2x2 max-pooled rows of y (rows laid out with `pitch`)."""
    for i in range(H // 2):
        a = y[(2 * i) * pitch:(2 * i) * pitch + W]             # (W, C)
        b = y[(2 * i + 1) * pitch:(2 * i + 1) * pitch + W]     # (W, C)
        m = jnp.maximum(a, b)                                  # vertical max
        for j in range(W // 2):
            yield (i, j), jnp.maximum(m[2 * j:2 * j + 1], m[2 * j + 1:2 * j + 2])


def _pool_into_padded(y, H, W, pitch, dst_ref, dst_w):
    """2x2 maxpool y and scatter pooled rows into the next padded scratch buffer."""
    dst_ref[...] = jnp.zeros(dst_ref.shape, dst_ref.dtype)     # zero borders
    dwp = dst_w + 2
    for (i, j), v in _maxpool_rows(y, H, W, pitch):
        dst_ref[pl.ds((i + 1) * dwp + (j + 1), 1), :] = v


def _pool_gap(y, H, W, pitch):
    """2x2 maxpool followed by global average pool -> (1, C) f32."""
    acc = None
    for _, v in _maxpool_rows(y, H, W, pitch):
        acc = v if acc is None else acc + v
    return acc * (1.0 / float((H // 2) * (W // 2)))


# ---------------------------------------------------------------------------
# The single fused kernel: conv1..conv4 + BN + ReLU + pool + GAP + FC
# ---------------------------------------------------------------------------
def _cnn_kernel(x1p_ref,
                w1_ref, s1_ref, t1_ref,
                w2_ref, s2_ref, t2_ref,
                w3_ref, s3_ref, t3_ref,
                w4_ref, s4_ref, t4_ref,
                fcw_ref, fcb_ref,
                o_ref,
                pad2_ref, pad3_ref, pad4_ref,
                *, H, W):
    H1, W1 = H, W
    H2, W2 = H1 // 2, W1 // 2
    H3, W3 = H2 // 2, W2 // 2
    H4, W4 = H3 // 2, W3 // 2

    # -- block 1: patches come K-packed from the wrapper (K padded to 128) ----
    y = jnp.dot(x1p_ref[0], w1_ref[...], preferred_element_type=jnp.float32)
    y = jnp.maximum(y * s1_ref[...] + t1_ref[...], 0.0)        # (H*W, 128)
    _pool_into_padded(y, H1, W1, W1, pad2_ref, W2)

    # -- block 2 --------------------------------------------------------------
    y = _conv_bn_relu(pad2_ref, w2_ref, s2_ref, t2_ref, H2, W2)
    _pool_into_padded(y, H2, W2, W2 + 2, pad3_ref, W3)

    # -- block 3 --------------------------------------------------------------
    y = _conv_bn_relu(pad3_ref, w3_ref, s3_ref, t3_ref, H3, W3)
    _pool_into_padded(y, H3, W3, W3 + 2, pad4_ref, W4)

    # -- block 4 + GAP (dropout is eval-mode identity) + FC -------------------
    y = _conv_bn_relu(pad4_ref, w4_ref, s4_ref, t4_ref, H4, W4)
    feats = _pool_gap(y, H4, W4, W4 + 2)                       # (1, 512) f32
    logits = jnp.dot(feats, fcw_ref[...],
                     preferred_element_type=jnp.float32) + fcb_ref[...]
    o_ref[0] = logits.astype(o_ref.dtype)


# ---------------------------------------------------------------------------
# JAX wrapper
# ---------------------------------------------------------------------------
def _fold_bn_weights(w, b, gamma, beta, rmean, rvar, cin_pad=None, cout_pad=None):
    """Fold eval-mode BN into (scale, shift); weights -> (9*Cin, Cout) bf16."""
    cout, cin = int(w.shape[0]), int(w.shape[1])
    cin_pad = cin if cin_pad is None else cin_pad
    cout_pad = cout if cout_pad is None else cout_pad
    scale = gamma / jnp.sqrt(rvar + BN_EPS)
    shift = beta + (b - rmean) * scale
    wm = jnp.transpose(w, (2, 3, 1, 0))                        # (3,3,Cin,Cout)
    wm = jnp.pad(wm, ((0, 0), (0, 0), (0, cin_pad - cin), (0, cout_pad - cout)))
    scale = jnp.pad(scale, (0, cout_pad - cout))
    shift = jnp.pad(shift, (0, cout_pad - cout))
    return (wm.reshape(9 * cin_pad, cout_pad).astype(jnp.bfloat16),
            scale.reshape(1, cout_pad).astype(jnp.float32),
            shift.reshape(1, cout_pad).astype(jnp.float32))


def _im2col_3x3(x_nhwc):
    """(N,H,W,C) -> (N, H*W, 9*C) bf16 K-packed patches for a SAME 3x3 conv."""
    n, h, w, c = x_nhwc.shape
    xp = jnp.pad(x_nhwc, ((0, 0), (1, 1), (1, 1), (0, 0)))
    taps = [xp[:, kh:kh + h, kw:kw + w, :] for kh in range(3) for kw in range(3)]
    pat = jnp.concatenate(taps, axis=-1)                       # (N,H,W,9C)
    return pat.reshape(n, h * w, 9 * c).astype(jnp.bfloat16)


@jax.jit
def cnn_forward(x_nchw, params):
    # TODO(synk): eval-mode only — BatchNorm uses running stats and Dropout is
    #             identity; training-mode batch stats / RNG mask not implemented.
    x = jnp.transpose(x_nchw, (0, 2, 3, 1)).astype(jnp.float32)   # NCHW -> NHWC
    n, h, w, _ = x.shape
    assert h % 16 == 0 and w % 16 == 0, "4 maxpool stages need H, W % 16 == 0"

    blk1, blk2, blk3, blk4 = params["conv_blocks"]
    # Block-1 Cout (= block-2 Cin) is zero-padded 64 -> 128 so every in-kernel
    # lane concat / matmul contraction / row store is 128-lane aligned.
    w1m, s1, t1 = _fold_bn_weights(*blk1, cout_pad=128)
    w2m, s2, t2 = _fold_bn_weights(*blk2, cin_pad=128)
    w3m, s3, t3 = _fold_bn_weights(*blk3)
    w4m, s4, t4 = _fold_bn_weights(*blk4)

    # Layer-1 patches built once in the wrapper (tiny: ~64 KiB/image in bf16);
    # K padded 27 -> 128 with zeros so the contraction dim is MXU-aligned.
    x1p = _im2col_3x3(x)
    x1p = jnp.pad(x1p, ((0, 0), (0, 0), (0, 128 - x1p.shape[-1])))
    w1m = jnp.pad(w1m, ((0, 128 - w1m.shape[0]), (0, 0)))

    fcw = jnp.transpose(params["fc_w"]).astype(jnp.float32)       # (512, 10)
    fcb = params["fc_b"].reshape(1, -1).astype(jnp.float32)       # (1, 10)

    h2, w2 = h // 2, w // 2
    h3, w3 = h2 // 2, w2 // 2
    h4, w4 = h3 // 2, w3 // 2

    const2 = lambda i: (0, 0)
    wspec = lambda a: pl.BlockSpec(a.shape, const2)

    out = pl.pallas_call(
        functools.partial(_cnn_kernel, H=h, W=w),
        out_shape=jax.ShapeDtypeStruct((n, 1, 10), jnp.float32),
        grid=(n,),
        in_specs=[
            pl.BlockSpec((1, h * w, x1p.shape[-1]), lambda i: (i, 0, 0)),
            wspec(w1m), wspec(s1), wspec(t1),
            wspec(w2m), wspec(s2), wspec(t2),
            wspec(w3m), wspec(s3), wspec(t3),
            wspec(w4m), wspec(s4), wspec(t4),
            wspec(fcw), wspec(fcb),
        ],
        out_specs=pl.BlockSpec((1, 1, 10), lambda i: (i, 0, 0)),
        scratch_shapes=[  # padded, flattened activations (+2 guard rows)
            pltpu.VMEM(((h2 + 2) * (w2 + 2) + 2, w1m.shape[1]), jnp.float32),
            pltpu.VMEM(((h3 + 2) * (w3 + 2) + 2, w2m.shape[1]), jnp.float32),
            pltpu.VMEM(((h4 + 2) * (w4 + 2) + 2, w3m.shape[1]), jnp.float32),
        ],
        compiler_params=pltpu.CompilerParams(
            dimension_semantics=("parallel",)),
    )(x1p, w1m, s1, t1, w2m, s2, t2, w3m, s3, t3, w4m, s4, t4, fcw, fcb)
    return out.reshape(n, 10)


# ---------------------------------------------------------------------------
# Deterministic parameter init (mimics nn.Conv2d / nn.Linear / BatchNorm)
# ---------------------------------------------------------------------------
def init_params(key):
    channels = [(3, 64), (64, 128), (128, 256), (256, 512)]
    keys = jax.random.split(key, len(channels) * 6 + 2)
    conv_blocks = []
    k = 0
    for (cin, cout) in channels:
        bound = 1.0 / (cin * 9.0) ** 0.5
        w = jax.random.uniform(keys[k], (cout, cin, 3, 3), minval=-bound,
                               maxval=bound, dtype=jnp.float32); k += 1
        b = jax.random.uniform(keys[k], (cout,), minval=-bound, maxval=bound,
                               dtype=jnp.float32); k += 1
        gamma = jax.random.uniform(keys[k], (cout,), minval=0.5, maxval=1.5,
                                   dtype=jnp.float32); k += 1
        beta = 0.1 * jax.random.normal(keys[k], (cout,), dtype=jnp.float32); k += 1
        rmean = 0.1 * jax.random.normal(keys[k], (cout,), dtype=jnp.float32); k += 1
        rvar = jax.random.uniform(keys[k], (cout,), minval=0.5, maxval=1.5,
                                  dtype=jnp.float32); k += 1
        conv_blocks.append((w, b, gamma, beta, rmean, rvar))
    fb = 1.0 / 512.0 ** 0.5
    fc_w = jax.random.uniform(keys[-2], (10, 512), minval=-fb, maxval=fb,
                              dtype=jnp.float32)
    fc_b = jax.random.uniform(keys[-1], (10,), minval=-fb, maxval=fb,
                              dtype=jnp.float32)
    return {"conv_blocks": conv_blocks, "fc_w": fc_w, "fc_b": fc_b}


# ---------------------------------------------------------------------------
# Pure-JAX reference (matched bf16-input / f32-accumulate precision)
# ---------------------------------------------------------------------------
def reference_forward(x_nchw, params):
    def bf16_round(a):
        return a.astype(jnp.bfloat16).astype(jnp.float32)

    h = jnp.transpose(x_nchw, (0, 2, 3, 1)).astype(jnp.float32)
    for (w, b, gamma, beta, rmean, rvar) in params["conv_blocks"]:
        lhs = bf16_round(h)
        rhs = bf16_round(jnp.transpose(w, (2, 3, 1, 0)))
        y = lax.conv_general_dilated(
            lhs, rhs, (1, 1), "SAME",
            dimension_numbers=("NHWC", "HWIO", "NHWC"),
            preferred_element_type=jnp.float32,
            precision=lax.Precision.HIGHEST) + b
        y = (y - rmean) / jnp.sqrt(rvar + BN_EPS) * gamma + beta
        y = jnp.maximum(y, 0.0)
        h = lax.reduce_window(y, -jnp.inf, lax.max,
                              (1, 2, 2, 1), (1, 2, 2, 1), "VALID")
    feats = jnp.mean(h, axis=(1, 2))
    return jnp.dot(feats, params["fc_w"].T,
                   precision=lax.Precision.HIGHEST) + params["fc_b"]


if __name__ == "__main__":
    key = jax.random.PRNGKey(0)
    pkey, xkey = jax.random.split(key)
    params = init_params(pkey)
    x = jax.random.normal(xkey, (2, 3, 16, 16), dtype=jnp.float32)   # NCHW

    out = jax.block_until_ready(cnn_forward(x, params))
    ref = jax.block_until_ready(reference_forward(x, params))

    assert out.shape == (2, 10), out.shape
    err = jnp.max(jnp.abs(out - ref))
    assert jnp.allclose(out, ref, atol=1e-3, rtol=1e-3), f"max abs diff {err}"
    print("KERNEL_OK")
</pallas_src>

<mosaic_0001>
module attributes {stable_mosaic.version = 11 : i64} {
  func.func @_cnn_kernel(%arg0: i32, %arg1: memref<1x256x128xbf16, #tpu.memory_space<vmem>>, %arg2: memref<128x128xbf16, #tpu.memory_space<vmem>>, %arg3: memref<1x128xf32, #tpu.memory_space<vmem>>, %arg4: memref<1x128xf32, #tpu.memory_space<vmem>>, %arg5: memref<1152x128xbf16, #tpu.memory_space<vmem>>, %arg6: memref<1x128xf32, #tpu.memory_space<vmem>>, %arg7: memref<1x128xf32, #tpu.memory_space<vmem>>, %arg8: memref<1152x256xbf16, #tpu.memory_space<vmem>>, %arg9: memref<1x256xf32, #tpu.memory_space<vmem>>, %arg10: memref<1x256xf32, #tpu.memory_space<vmem>>, %arg11: memref<2304x512xbf16, #tpu.memory_space<vmem>>, %arg12: memref<1x512xf32, #tpu.memory_space<vmem>>, %arg13: memref<1x512xf32, #tpu.memory_space<vmem>>, %arg14: memref<512x10xf32, #tpu.memory_space<vmem>>, %arg15: memref<1x10xf32, #tpu.memory_space<vmem>>, %arg16: memref<1x1x10xf32, #tpu.memory_space<vmem>>, %arg17: memref<102x128xf32, #tpu.memory_space<vmem>>, %arg18: memref<38x128xf32, #tpu.memory_space<vmem>>, %arg19: memref<18x256xf32, #tpu.memory_space<vmem>>) attributes {dimension_semantics = [#tpu.dimension_semantics<parallel>], iteration_bounds = array<i64: 2>, scalar_prefetch = 0 : i64, scratch_operands = 3 : i64, tpu.core_type = #tpu.core_type<tc>, window_params = [{transform_indices = @transform_0, window_bounds = array<i64: 1, 256, 128>}, {pipeline_mode = #tpu.pipeline_mode<synchronous>, transform_indices = @transform_1, window_bounds = array<i64: 128, 128>}, {pipeline_mode = #tpu.pipeline_mode<synchronous>, transform_indices = @transform_2, window_bounds = array<i64: 1, 128>}, {pipeline_mode = #tpu.pipeline_mode<synchronous>, transform_indices = @transform_3, window_bounds = array<i64: 1, 128>}, {pipeline_mode = #tpu.pipeline_mode<synchronous>, transform_indices = @transform_4, window_bounds = array<i64: 1152, 128>}, {pipeline_mode = #tpu.pipeline_mode<synchronous>, transform_indices = @transform_5, window_bounds = array<i64: 1, 128>}, {pipeline_mode = #tpu.pipeline_mode<synchronous>, transform_indices = @transform_6, window_bounds = array<i64: 1, 128>}, {pipeline_mode = #tpu.pipeline_mode<synchronous>, transform_indices = @transform_7, window_bounds = array<i64: 1152, 256>}, {pipeline_mode = #tpu.pipeline_mode<synchronous>, transform_indices = @transform_8, window_bounds = array<i64: 1, 256>}, {pipeline_mode = #tpu.pipeline_mode<synchronous>, transform_indices = @transform_9, window_bounds = array<i64: 1, 256>}, {pipeline_mode = #tpu.pipeline_mode<synchronous>, transform_indices = @transform_10, window_bounds = array<i64: 2304, 512>}, {pipeline_mode = #tpu.pipeline_mode<synchronous>, transform_indices = @transform_11, window_bounds = array<i64: 1, 512>}, {pipeline_mode = #tpu.pipeline_mode<synchronous>, transform_indices = @transform_12, window_bounds = array<i64: 1, 512>}, {pipeline_mode = #tpu.pipeline_mode<synchronous>, transform_indices = @transform_13, window_bounds = array<i64: 512, 10>}, {pipeline_mode = #tpu.pipeline_mode<synchronous>, transform_indices = @transform_14, window_bounds = array<i64: 1, 10>}, {transform_indices = @transform_15, window_bounds = array<i64: 1, 1, 10>}]} {
    %c0 = arith.constant 0 : index
    %c0_0 = arith.constant 0 : index
    %c0_1 = arith.constant 0 : index
    %0 = vector.load %arg1[%c0, %c0_0, %c0_1] : memref<1x256x128xbf16, #tpu.memory_space<vmem>>, vector<1x256x128xbf16>
    %1 = vector.shape_cast %0 : vector<1x256x128xbf16> to vector<256x128xbf16>
    %c0_2 = arith.constant 0 : index
    %c0_3 = arith.constant 0 : index
    %2 = vector.load %arg2[%c0_2, %c0_3] : memref<128x128xbf16, #tpu.memory_space<vmem>>, vector<128x128xbf16>
    %cst = arith.constant dense<0.000000e+00> : vector<256x128xf32>
    %3 = tpu.matmul %1, %2, %cst {dimension_numbers = #tpu.dot_dimension_numbers<[1], [0], [0], [1], [0, 0, 1, 1], [], []>} : vector<256x128xbf16>, vector<128x128xbf16>, vector<256x128xf32> -> vector<256x128xf32>
    %c0_4 = arith.constant 0 : index
    %c0_5 = arith.constant 0 : index
    %4 = vector.load %arg3[%c0_4, %c0_5] : memref<1x128xf32, #tpu.memory_space<vmem>>, vector<1x128xf32>
    %5 = vector.broadcast %4 : vector<1x128xf32> to vector<256x128xf32>
    %6 = arith.mulf %3, %5 : vector<256x128xf32>
    %c0_6 = arith.constant 0 : index
    %c0_7 = arith.constant 0 : index
    %7 = vector.load %arg4[%c0_6, %c0_7] : memref<1x128xf32, #tpu.memory_space<vmem>>, vector<1x128xf32>
    %8 = vector.broadcast %7 : vector<1x128xf32> to vector<256x128xf32>
    %9 = arith.addf %6, %8 : vector<256x128xf32>
    %cst_8 = arith.constant 0.000000e+00 : f32
    %10 = vector.broadcast %cst_8 : f32 to vector<256x128xf32>
    %11 = arith.maximumf %9, %10 : vector<256x128xf32>
    %cst_9 = arith.constant 0.000000e+00 : f32
    %12 = vector.broadcast %cst_9 : f32 to vector<102x128xf32>
    %c0_10 = arith.constant 0 : index
    %c0_11 = arith.constant 0 : index
    %13 = vector.load %arg17[%c0_10, %c0_11] : memref<102x128xf32, #tpu.memory_space<vmem>>, vector<102x128xf32>
    tpu.vector_store %arg17[%c0_10, %c0_11], %12 {strides = array<i32>} : memref<102x128xf32, #tpu.memory_space<vmem>>, vector<102x128xf32>,
    %14 = vector.extract_strided_slice %11 {offsets = [0, 0], sizes = [16, 128], strides = [1, 1]} : vector<256x128xf32> to vector<16x128xf32>
    %15 = vector.extract_strided_slice %11 {offsets = [16, 0], sizes = [16, 128], strides = [1, 1]} : vector<256x128xf32> to vector<16x128xf32>
    %16 = arith.maximumf %14, %15 : vector<16x128xf32>
    %17 = vector.extract_strided_slice %16 {offsets = [0, 0], sizes = [1, 128], strides = [1, 1]} : vector<16x128xf32> to vector<1x128xf32>
    %18 = vector.extract_strided_slice %16 {offsets = [1, 0], sizes = [1, 128], strides = [1, 1]} : vector<16x128xf32> to vector<1x128xf32>
    %19 = arith.maximumf %17, %18 : vector<1x128xf32>
    %c11 = arith.constant 11 : index
    %c0_12 = arith.constant 0 : index
    %20 = vector.load %arg17[%c11, %c0_12] : memref<102x128xf32, #tpu.memory_space<vmem>>, vector<1x128xf32>
    tpu.vector_store %arg17[%c11, %c0_12], %19 {strides = array<i32>} : memref<102x128xf32, #tpu.memory_space<vmem>>, vector<1x128xf32>,
    %21 = vector.extract_strided_slice %16 {offsets = [2, 0], sizes = [1, 128], strides = [1, 1]} : vector<16x128xf32> to vector<1x128xf32>
    %22 = vector.extract_strided_slice %16 {offsets = [3, 0], sizes = [1, 128], strides = [1, 1]} : vector<16x128xf32> to vector<1x128xf32>
    %23 = arith.maximumf %21, %22 : vector<1x128xf32>
    %c12 = arith.constant 12 : index
    %c0_13 = arith.constant 0 : index
    %24 = vector.load %arg17[%c12, %c0_13] : memref<102x128xf32, #tpu.memory_space<vmem>>, vector<1x128xf32>
    tpu.vector_store %arg17[%c12, %c0_13], %23 {strides = array<i32>} : memref<102x128xf32, #tpu.memory_space<vmem>>, vector<1x128xf32>,
    %25 = vector.extract_strided_slice %16 {offsets = [4, 0], sizes = [1, 128], strides = [1, 1]} : vector<16x128xf32> to vector<1x128xf32>
    %26 = vector.extract_strided_slice %16 {offsets = [5, 0], sizes = [1, 128], strides = [1, 1]} : vector<16x128xf32> to vector<1x128xf32>
    %27 = arith.maximumf %25, %26 : vector<1x128xf32>
    %c13 = arith.constant 13 : index
    %c0_14 = arith.constant 0 : index
    %28 = vector.load %arg17[%c13, %c0_14] : memref<102x128xf32, #tpu.memory_space<vmem>>, vector<1x128xf32>
    tpu.vector_store %arg17[%c13, %c0_14], %27 {strides = array<i32>} : memref<102x128xf32, #tpu.memory_space<vmem>>, vector<1x128xf32>,
    %29 = vector.extract_strided_slice %16 {offsets = [6, 0], sizes = [1, 128], strides = [1, 1]} : vector<16x128xf32> to vector<1x128xf32>
    %30 = vector.extract_strided_slice %16 {offsets = [7, 0], sizes = [1, 128], strides = [1, 1]} : vector<16x128xf32> to vector<1x128xf32>
    %31 = arith.maximumf %29, %30 : vector<1x128xf32>
    %c14 = arith.constant 14 : index
    %c0_15 = arith.constant 0 : index
    %32 = vector.load %arg17[%c14, %c0_15] : memref<102x128xf32, #tpu.memory_space<vmem>>, vector<1x128xf32>
    tpu.vector_store %arg17[%c14, %c0_15], %31 {strides = array<i32>} : memref<102x128xf32, #tpu.memory_space<vmem>>, vector<1x128xf32>,
    %33 = vector.extract_strided_slice %16 {offsets = [8, 0], sizes = [1, 128], strides = [1, 1]} : vector<16x128xf32> to vector<1x128xf32>
    %34 = vector.extract_strided_slice %16 {offsets = [9, 0], sizes = [1, 128], strides = [1, 1]} : vector<16x128xf32> to vector<1x128xf32>
    %35 = arith.maximumf %33, %34 : vector<1x128xf32>
    %c15 = arith.constant 15 : index
    %c0_16 = arith.constant 0 : index
    %36 = vector.load %arg17[%c15, %c0_16] : memref<102x128xf32, #tpu.memory_space<vmem>>, vector<1x128xf32>
    tpu.vector_store %arg17[%c15, %c0_16], %35 {strides = array<i32>} : memref<102x128xf32, #tpu.memory_space<vmem>>, vector<1x128xf32>,
    %37 = vector.extract_strided_slice %16 {offsets = [10, 0], sizes = [1, 128], strides = [1, 1]} : vector<16x128xf32> to vector<1x128xf32>
    %38 = vector.extract_strided_slice %16 {offsets = [11, 0], sizes = [1, 128], strides = [1, 1]} : vector<16x128xf32> to vector<1x128xf32>
    %39 = arith.maximumf %37, %38 : vector<1x128xf32>
    %c16 = arith.constant 16 : index
    %c0_17 = arith.constant 0 : index
    %40 = vector.load %arg17[%c16, %c0_17] : memref<102x128xf32, #tpu.memory_space<vmem>>, vector<1x128xf32>
    tpu.vector_store %arg17[%c16, %c0_17], %39 {strides = array<i32>} : memref<102x128xf32, #tpu.memory_space<vmem>>, vector<1x128xf32>,
    %41 = vector.extract_strided_slice %16 {offsets = [12, 0], sizes = [1, 128], strides = [1, 1]} : vector<16x128xf32> to vector<1x128xf32>
    %42 = vector.extract_strided_slice %16 {offsets = [13, 0], sizes = [1, 128], strides = [1, 1]} : vector<16x128xf32> to vector<1x128xf32>
    %43 = arith.maximumf %41, %42 : vector<1x128xf32>
    %c17 = arith.constant 17 : index
    %c0_18 = arith.constant 0 : index
    %44 = vector.load %arg17[%c17, %c0_18] : memref<102x128xf32, #tpu.memory_space<vmem>>, vector<1x128xf32>
    tpu.vector_store %arg17[%c17, %c0_18], %43 {strides = array<i32>} : memref<102x128xf32, #tpu.memory_space<vmem>>, vector<1x128xf32>,
    %45 = vector.extract_strided_slice %16 {offsets = [14, 0], sizes = [1, 128], strides = [1, 1]} : vector<16x128xf32> to vector<1x128xf32>
    %46 = vector.extract_strided_slice %16 {offsets = [15, 0], sizes = [1, 128], strides = [1, 1]} : vector<16x128xf32> to vector<1x128xf32>
    %47 = arith.maximumf %45, %46 : vector<1x128xf32>
    %c18 = arith.constant 18 : index
    %c0_19 = arith.constant 0 : index
    %48 = vector.load %arg17[%c18, %c0_19] : memref<102x128xf32, #tpu.memory_space<vmem>>, vector<1x128xf32>
    tpu.vector_store %arg17[%c18, %c0_19], %47 {strides = array<i32>} : memref<102x128xf32, #tpu.memory_space<vmem>>, vector<1x128xf32>,
    %49 = vector.extract_strided_slice %11 {offsets = [32, 0], sizes = [16, 128], strides = [1, 1]} : vector<256x128xf32> to vector<16x128xf32>
    %50 = vector.extract_strided_slice %11 {offsets = [48, 0], sizes = [16, 128], strides = [1, 1]} : vector<256x128xf32> to vector<16x128xf32>
    %51 = arith.maximumf %49, %50 : vector<16x128xf32>
    %52 = vector.extract_strided_slice %51 {offsets = [0, 0], sizes = [1, 128], strides = [1, 1]} : vector<16x128xf32> to vector<1x128xf32>
    %53 = vector.extract_strided_slice %51 {offsets = [1, 0], sizes = [1, 128], strides = [1, 1]} : vector<16x128xf32> to vector<1x128xf32>
    %54 = arith.maximumf %52, %53 : vector<1x128xf32>
    %c21 = arith.constant 21 : index
    %c0_20 = arith.constant 0 : index
    %55 = vector.load %arg17[%c21, %c0_20] : memref<102x128xf32, #tpu.memory_space<vmem>>, vector<1x128xf32>
    tpu.vector_store %arg17[%c21, %c0_20], %54 {strides = array<i32>} : memref<102x128xf32, #tpu.memory_space<vmem>>, vector<1x128xf32>,
    %56 = vector.extract_strided_slice %51 {offsets = [2, 0], sizes = [1, 128], strides = [1, 1]} : vector<16x128xf32> to vector<1x128xf32>
    %57 = vector.extract_strided_slice %51 {offsets = [3, 0], sizes = [1, 128], strides = [1, 1]} : vector<16x128xf32> to vector<1x128xf32>
    %58 = arith.maximumf %56, %57 : vector<1x128xf32>
    %c22 = arith.constant 22 : index
    %c0_21 = arith.constant 0 : index
    %59 = vector.load %arg17[%c22, %c0_21] : memref<102x128xf32, #tpu.memory_space<vmem>>, vector<1x128xf32>
    tpu.vector_store %arg17[%c22, %c0_21], %58 {strides = array<i32>} : memref<102x128xf32, #tpu.memory_space<vmem>>, vector<1x128xf32>,
    %60 = vector.extract_strided_slice %51 {offsets = [4, 0], sizes = [1, 128], strides = [1, 1]} : vector<16x128xf32> to vector<1x128xf32>
    %61 = vector.extract_strided_slice %51 {offsets = [5, 0], sizes = [1, 128], strides = [1, 1]} : vector<16x128xf32> to vector<1x128xf32>
    %62 = arith.maximumf %60, %61 : vector<1x128xf32>
    %c23 = arith.constant 23 : index
    %c0_22 = arith.constant 0 : index
    %63 = vector.load %arg17[%c23, %c0_22] : memref<102x128xf32, #tpu.memory_space<vmem>>, vector<1x128xf32>
    tpu.vector_store %arg17[%c23, %c0_22], %62 {strides = array<i32>} : memref<102x128xf32, #tpu.memory_space<vmem>>, vector<1x128xf32>,
    %64 = vector.extract_strided_slice %51 {offsets = [6, 0], sizes = [1, 128], strides = [1, 1]} : vector<16x128xf32> to vector<1x128xf32>
    %65 = vector.extract_strided_slice %51 {offsets = [7, 0], sizes = [1, 128], strides = [1, 1]} : vector<16x128xf32> to vector<1x128xf32>
    %66 = arith.maximumf %64, %65 : vector<1x128xf32>
    %c24 = arith.constant 24 : index
    %c0_23 = arith.constant 0 : index
    %67 = vector.load %arg17[%c24, %c0_23] : memref<102x128xf32, #tpu.memory_space<vmem>>, vector<1x128xf32>
    tpu.vector_store %arg17[%c24, %c0_23], %66 {strides = array<i32>} : memref<102x128xf32, #tpu.memory_space<vmem>>, vector<1x128xf32>,
    %68 = vector.extract_strided_slice %51 {offsets = [8, 0], sizes = [1, 128], strides = [1, 1]} : vector<16x128xf32> to vector<1x128xf32>
    %69 = vector.extract_strided_slice %51 {offsets = [9, 0], sizes = [1, 128], strides = [1, 1]} : vector<16x128xf32> to vector<1x128xf32>
    %70 = arith.maximumf %68, %69 : vector<1x128xf32>
    %c25 = arith.constant 25 : index
    %c0_24 = arith.constant 0 : index
    %71 = vector.load %arg17[%c25, %c0_24] : memref<102x128xf32, #tpu.memory_space<vmem>>, vector<1x128xf32>
    tpu.vector_store %arg17[%c25, %c0_24], %70 {strides = array<i32>} : memref<102x128xf32, #tpu.memory_space<vmem>>, vector<1x128xf32>,
    %72 = vector.extract_strided_slice %51 {offsets = [10, 0], sizes = [1, 128], strides = [1, 1]} : vector<16x128xf32> to vector<1x128xf32>
    %73 = vector.extract_strided_slice %51 {offsets = [11, 0], sizes = [1, 128], strides = [1, 1]} : vector<16x128xf32> to vector<1x128xf32>
    %74 = arith.maximumf %72, %73 : vector<1x128xf32>
    %c26 = arith.constant 26 : index
    %c0_25 = arith.constant 0 : index
    %75 = vector.load %arg17[%c26, %c0_25] : memref<102x128xf32, #tpu.memory_space<vmem>>, vector<1x128xf32>
    tpu.vector_store %arg17[%c26, %c0_25], %74 {strides = array<i32>} : memref<102x128xf32, #tpu.memory_space<vmem>>, vector<1x128xf32>,
    %76 = vector.extract_strided_slice %51 {offsets = [12, 0], sizes = [1, 128], strides = [1, 1]} : vector<16x128xf32> to vector<1x128xf32>
    %77 = vector.extract_strided_slice %51 {offsets = [13, 0], sizes = [1, 128], strides = [1, 1]} : vector<16x128xf32> to vector<1x128xf32>
    %78 = arith.maximumf %76, %77 : vector<1x128xf32>
    %c27 = arith.constant 27 : index
    %c0_26 = arith.constant 0 : index
    %79 = vector.load %arg17[%c27, %c0_26] : memref<102x128xf32, #tpu.memory_space<vmem>>, vector<1x128xf32>
    tpu.vector_store %arg17[%c27, %c0_26], %78 {strides = array<i32>} : memref<102x128xf32, #tpu.memory_space<vmem>>, vector<1x128xf32>,
    %80 = vector.extract_strided_slice %51 {offsets = [14, 0], sizes = [1, 128], strides = [1, 1]} : vector<16x128xf32> to vector<1x128xf32>
    %81 = vector.extract_strided_slice %51 {offsets = [15, 0], sizes = [1, 128], strides = [1, 1]} : vector<16x128xf32> to vector<1x128xf32>
    %82 = arith.maximumf %80, %81 : vector<1x128xf32>
    %c28 = arith.constant 28 : index
    %c0_27 = arith.constant 0 : index
    %83 = vector.load %arg17[%c28, %c0_27] : memref<102x128xf32, #tpu.memory_space<vmem>>, vector<1x128xf32>
    tpu.vector_store %arg17[%c28, %c0_27], %82 {strides = array<i32>} : memref<102x128xf32, #tpu.memory_space<vmem>>, vector<1x128xf32>,
    %84 = vector.extract_strided_slice %11 {offsets = [64, 0], sizes = [16, 128], strides = [1, 1]} : vector<256x128xf32> to vector<16x128xf32>
    %85 = vector.extract_strided_slice %11 {offsets = [80, 0], sizes = [16, 128], strides = [1, 1]} : vector<256x128xf32> to vector<16x128xf32>
    %86 = arith.maximumf %84, %85 : vector<16x128xf32>
    %87 = vector.extract_strided_slice %86 {offsets = [0, 0], sizes = [1, 128], strides = [1, 1]} : vector<16x128xf32> to vector<1x128xf32>
    %88 = vector.extract_strided_slice %86 {offsets = [1, 0], sizes = [1, 128], strides = [1, 1]} : vector<16x128xf32> to vector<1x128xf32>
    %89 = arith.maximumf %87, %88 : vector<1x128xf32>
    %c31 = arith.constant 31 : index
    %c0_28 = arith.constant 0 : index
    %90 = vector.load %arg17[%c31, %c0_28] : memref<102x128xf32, #tpu.memory_space<vmem>>, vector<1x128xf32>
    tpu.vector_store %arg17[%c31, %c0_28], %89 {strides = array<i32>} : memref<102x128xf32, #tpu.memory_space<vmem>>, vector<1x128xf32>,
    %91 = vector.extract_strided_slice %86 {offsets = [2, 0], sizes = [1, 128], strides = [1, 1]} : vector<16x128xf32> to vector<1x128xf32>
    %92 = vector.extract_strided_slice %86 {offsets = [3, 0], sizes = [1, 128], strides = [1, 1]} : vector<16x128xf32> to vector<1x128xf32>
    %93 = arith.maximumf %91, %92 : vector<1x128xf32>
    %c32 = arith.constant 32 : index
    %c0_29 = arith.constant 0 : index
    %94 = vector.load %arg17[%c32, %c0_29] : memref<102x128xf32, #tpu.memory_space<vmem>>, vector<1x128xf32>
    tpu.vector_store %arg17[%c32, %c0_29], %93 {strides = array<i32>} : memref<102x128xf32, #tpu.memory_space<vmem>>, vector<1x128xf32>,
    %95 = vector.extract_strided_slice %86 {offsets = [4, 0], sizes = [1, 128], strides = [1, 1]} : vector<16x128xf32> to vector<1x128xf32>
    %96 = vector.extract_strided_slice %86 {offsets = [5, 0], sizes = [1, 128], strides = [1, 1]} : vector<16x128xf32> to vector<1x128xf32>
    %97 = arith.maximumf %95, %96 : vector<1x128xf32>
    %c33 = arith.constant 33 : index
    %c0_30 = arith.constant 0 : index
    %98 = vector.load %arg17[%c33, %c0_30] : memref<102x128xf32, #tpu.memory_space<vmem>>, vector<1x128xf32>
    tpu.vector_store %arg17[%c33, %c0_30], %97 {strides = array<i32>} : memref<102x128xf32, #tpu.memory_space<vmem>>, vector<1x128xf32>,
    %99 = vector.extract_strided_slice %86 {offsets = [6, 0], sizes = [1, 128], strides = [1, 1]} : vector<16x128xf32> to vector<1x128xf32>
    %100 = vector.extract_strided_slice %86 {offsets = [7, 0], sizes = [1, 128], strides = [1, 1]} : vector<16x128xf32> to vector<1x128xf32>
    %101 = arith.maximumf %99, %100 : vector<1x128xf32>
    %c34 = arith.constant 34 : index
    %c0_31 = arith.constant 0 : index
    %102 = vector.load %arg17[%c34, %c0_31] : memref<102x128xf32, #tpu.memory_space<vmem>>, vector<1x128xf32>
    tpu.vector_store %arg17[%c34, %c0_31], %101 {strides = array<i32>} : memref<102x128xf32, #tpu.memory_space<vmem>>, vector<1x128xf32>,
    %103 = vector.extract_strided_slice %86 {offsets = [8, 0], sizes = [1, 128], strides = [1, 1]} : vector<16x128xf32> to vector<1x128xf32>
    %104 = vector.extract_strided_slice %86 {offsets = [9, 0], sizes = [1, 128], strides = [1, 1]} : vector<16x128xf32> to vector<1x128xf32>
    %105 = arith.maximumf %103, %104 : vector<1x128xf32>
    %c35 = arith.constant 35 : index
    %c0_32 = arith.constant 0 : index
    %106 = vector.load %arg17[%c35, %c0_32] : memref<102x128xf32, #tpu.memory_space<vmem>>, vector<1x128xf32>
    tpu.vector_store %arg17[%c35, %c0_32], %105 {strides = array<i32>} : memref<102x128xf32, #tpu.memory_space<vmem>>, vector<1x128xf32>,
    %107 = vector.extract_strided_slice %86 {offsets = [10, 0], sizes = [1, 128], strides = [1, 1]} : vector<16x128xf32> to vector<1x128xf32>
    %108 = vector.extract_strided_slice %86 {offsets = [11, 0], sizes = [1, 128], strides = [1, 1]} : vector<16x128xf32> to vector<1x128xf32>
    %109 = arith.maximumf %107, %108 : vector<1x128xf32>
    %c36 = arith.constant 36 : index
    %c0_33 = arith.constant 0 : index
    %110 = vector.load %arg17[%c36, %c0_33] : memref<102x128xf32, #tpu.memory_space<vmem>>, vector<1x128xf32>
    tpu.vector_store %arg17[%c36, %c0_33], %109 {strides = array<i32>} : memref<102x128xf32, #tpu.memory_space<vmem>>, vector<1x128xf32>,
    %111 = vector.extract_strided_slice %86 {offsets = [12, 0], sizes = [1, 128], strides = [1, 1]} : vector<16x128xf32> to vector<1x128xf32>
    %112 = vector.extract_strided_slice %86 {offsets = [13, 0], sizes = [1, 128], strides = [1, 1]} : vector<16x128xf32> to vector<1x128xf32>
    %113 = arith.maximumf %111, %112 : vector<1x128xf32>
    %c37 = arith.constant 37 : index
    %c0_34 = arith.constant 0 : index
    %114 = vector.load %arg17[%c37, %c0_34] : memref<102x128xf32, #tpu.memory_space<vmem>>, vector<1x128xf32>
    tpu.vector_store %arg17[%c37, %c0_34], %113 {strides = array<i32>} : memref<102x128xf32, #tpu.memory_space<vmem>>, vector<1x128xf32>,
    %115 = vector.extract_strided_slice %86 {offsets = [14, 0], sizes = [1, 128], strides = [1, 1]} : vector<16x128xf32> to vector<1x128xf32>
    %116 = vector.extract_strided_slice %86 {offsets = [15, 0], sizes = [1, 128], strides = [1, 1]} : vector<16x128xf32> to vector<1x128xf32>
    %117 = arith.maximumf %115, %116 : vector<1x128xf32>
    %c38 = arith.constant 38 : index
    %c0_35 = arith.constant 0 : index
    %118 = vector.load %arg17[%c38, %c0_35] : memref<102x128xf32, #tpu.memory_space<vmem>>, vector<1x128xf32>
    tpu.vector_store %arg17[%c38, %c0_35], %117 {strides = array<i32>} : memref<102x128xf32, #tpu.memory_space<vmem>>, vector<1x128xf32>,
    %119 = vector.extract_strided_slice %11 {offsets = [96, 0], sizes = [16, 128], strides = [1, 1]} : vector<256x128xf32> to vector<16x128xf32>
    %120 = vector.extract_strided_slice %11 {offsets = [112, 0], sizes = [16, 128], strides = [1, 1]} : vector<256x128xf32> to vector<16x128xf32>
    %121 = arith.maximumf %119, %120 : vector<16x128xf32>
    %122 = vector.extract_strided_slice %121 {offsets = [0, 0], sizes = [1, 128], strides = [1, 1]} : vector<16x128xf32> to vector<1x128xf32>
    %123 = vector.extract_strided_slice %121 {offsets = [1, 0], sizes = [1, 128], strides = [1, 1]} : vector<16x128xf32> to vector<1x128xf32>
    %124 = arith.maximumf %122, %123 : vector<1x128xf32>
    %c41 = arith.constant 41 : index
    %c0_36 = arith.constant 0 : index
    %125 = vector.load %arg17[%c41, %c0_36] : memref<102x128xf32, #tpu.memory_space<vmem>>, vector<1x128xf32>
    tpu.vector_store %arg17[%c41, %c0_36], %124 {strides = array<i32>} : memref<102x128xf32, #tpu.memory_space<vmem>>, vector<1x128xf32>,
    %126 = vector.extract_strided_slice %121 {offsets = [2, 0], sizes = [1, 128], strides = [1, 1]} : vector<16x128xf32> to vector<1x128xf32>
    %127 = vector.extract_strided_slice %121 {offsets = [3, 0], sizes = [1, 128], strides = [1, 1]} : vector<16x128xf32> to vector<1x128xf32>
    %128 = arith.maximumf %126, %127 : vector<1x128xf32>
    %c42 = arith.constant 42 : index
    %c0_37 = arith.constant 0 : index
    %129 = vector.load %arg17[%c42, %c0_37] : memref<102x128xf32, #tpu.memory_space<vmem>>, vector<1x128xf32>
    tpu.vector_store %arg17[%c42, %c0_37], %128 {strides = array<i32>} : memref<102x128xf32, #tpu.memory_space<vmem>>, vector<1x128xf32>,
    %130 = vector.extract_strided_slice %121 {offsets = [4, 0], sizes = [1, 128], strides = [1, 1]} : vector<16x128xf32> to vector<1x128xf32>
    %131 = vector.extract_strided_slice %121 {offsets = [5, 0], sizes = [1, 128], strides = [1, 1]} : vector<16x128xf32> to vector<1x128xf32>
    %132 = arith.maximumf %130, %131 : vector<1x128xf32>
    %c43 = arith.constant 43 : index
    %c0_38 = arith.constant 0 : index
    %133 = vector.load %arg17[%c43, %c0_38] : memref<102x128xf32, #tpu.memory_space<vmem>>, vector<1x128xf32>
    tpu.vector_store %arg17[%c43, %c0_38], %132 {strides = array<i32>} : memref<102x128xf32, #tpu.memory_space<vmem>>, vector<1x128xf32>,
    %134 = vector.extract_strided_slice %121 {offsets = [6, 0], sizes = [1, 128], strides = [1, 1]} : vector<16x128xf32> to vector<1x128xf32>
    %135 = vector.extract_strided_slice %121 {offsets = [7, 0], sizes = [1, 128], strides = [1, 1]} : vector<16x128xf32> to vector<1x128xf32>
    %136 = arith.maximumf %134, %135 : vector<1x128xf32>
    %c44 = arith.constant 44 : index
    %c0_39 = arith.constant 0 : index
    %137 = vector.load %arg17[%c44, %c0_39] : memref<102x128xf32, #tpu.memory_space<vmem>>, vector<1x128xf32>
    tpu.vector_store %arg17[%c44, %c0_39], %136 {strides = array<i32>} : memref<102x128xf32, #tpu.memory_space<vmem>>, vector<1x128xf32>,
    %138 = vector.extract_strided_slice %121 {offsets = [8, 0], sizes = [1, 128], strides = [1, 1]} : vector<16x128xf32> to vector<1x128xf32>
    %139 = vector.extract_strided_slice %121 {offsets = [9, 0], sizes = [1, 128], strides = [1, 1]} : vector<16x128xf32> to vector<1x128xf32>
    %140 = arith.maximumf %138, %139 : vector<1x128xf32>
    %c45 = arith.constant 45 : index
    %c0_40 = arith.constant 0 : index
    %141 = vector.load %arg17[%c45, %c0_40] : memref<102x128xf32, #tpu.memory_space<vmem>>, vector<1x128xf32>
    tpu.vector_store %arg17[%c45, %c0_40], %140 {strides = array<i32>} : memref<102x128xf32, #tpu.memory_space<vmem>>, vector<1x128xf32>,
    %142 = vector.extract_strided_slice %121 {offsets = [10, 0], sizes = [1, 128], strides = [1, 1]} : vector<16x128xf32> to vector<1x128xf32>
    %143 = vector.extract_strided_slice %121 {offsets = [11, 0], sizes = [1, 128], strides = [1, 1]} : vector<16x128xf32> to vector<1x128xf32>
    %144 = arith.maximumf %142, %143 : vector<1x128xf32>
    %c46 = arith.constant 46 : index
    %c0_41 = arith.constant 0 : index
    %145 = vector.load %arg17[%c46, %c0_41] : memref<102x128xf32, #tpu.memory_space<vmem>>, vector<1x128xf32>
    tpu.vector_store %arg17[%c46, %c0_41], %144 {strides = array<i32>} : memref<102x128xf32, #tpu.memory_space<vmem>>, vector<1x128xf32>,
    %146 = vector.extract_strided_slice %121 {offsets = [12, 0], sizes = [1, 128], strides = [1, 1]} : vector<16x128xf32> to vector<1x128xf32>
    %147 = vector.extract_strided_slice %121 {offsets = [13, 0], sizes = [1, 128], strides = [1, 1]} : vector<16x128xf32> to vector<1x128xf32>
    %148 = arith.maximumf %146, %147 : vector<1x128xf32>
    %c47 = arith.constant 47 : index
    %c0_42 = arith.constant 0 : index
    %149 = vector.load %arg17[%c47, %c0_42] : memref<102x128xf32, #tpu.memory_space<vmem>>, vector<1x128xf32>
    tpu.vector_store %arg17[%c47, %c0_42], %148 {strides = array<i32>} : memref<102x128xf32, #tpu.memory_space<vmem>>, vector<1x128xf32>,
    %150 = vector.extract_strided_slice %121 {offsets = [14, 0], sizes = [1, 128], strides = [1, 1]} : vector<16x128xf32> to vector<1x128xf32>
    %151 = vector.extract_strided_slice %121 {offsets = [15, 0], sizes = [1, 128], strides = [1, 1]} : vector<16x128xf32> to vector<1x128xf32>
    %152 = arith.maximumf %150, %151 : vector<1x128xf32>
    %c48 = arith.constant 48 : index
    %c0_43 = arith.constant 0 : index
    %153 = vector.load %arg17[%c48, %c0_43] : memref<102x128xf32, #tpu.memory_space<vmem>>, vector<1x128xf32>
    tpu.vector_store %arg17[%c48, %c0_43], %152 {strides = array<i32>} : memref<102x128xf32, #tpu.memory_space<vmem>>, vector<1x128xf32>,
    %154 = vector.extract_strided_slice %11 {offsets = [128, 0], sizes = [16, 128], strides = [1, 1]} : vector<256x128xf32> to vector<16x128xf32>
    %155 = vector.extract_strided_slice %11 {offsets = [144, 0], sizes = [16, 128], strides = [1, 1]} : vector<256x128xf32> to vector<16x128xf32>
    %156 = arith.maximumf %154, %155 : vector<16x128xf32>
    %157 = vector.extract_strided_slice %156 {offsets = [0, 0], sizes = [1, 128], strides = [1, 1]} : vector<16x128xf32> to vector<1x128xf32>
    %158 = vector.extract_strided_slice %156 {offsets = [1, 0], sizes = [1, 128], strides = [1, 1]} : vector<16x128xf32> to vector<1x128xf32>
    %159 = arith.maximumf %157, %158 : vector<1x128xf32>
    %c51 = arith.constant 51 : index
    %c0_44 = arith.constant 0 : index
    %160 = vector.load %arg17[%c51, %c0_44] : memref<102x128xf32, #tpu.memory_space<vmem>>, vector<1x128xf32>
    tpu.vector_store %arg17[%c51, %c0_44], %159 {strides = array<i32>} : memref<102x128xf32, #tpu.memory_space<vmem>>, vector<1x128xf32>,
    %161 = vector.extract_strided_slice %156 {offsets = [2, 0], sizes = [1, 128], strides = [1, 1]} : vector<16x128xf32> to vector<1x128xf32>
    %162 = vector.extract_strided_slice %156 {offsets = [3, 0], sizes = [1, 128], strides = [1, 1]} : vector<16x128xf32> to vector<1x128xf32>
    %163 = arith.maximumf %161, %162 : vector<1x128xf32>
    %c52 = arith.constant 52 : index
    %c0_45 = arith.constant 0 : index
    %164 = vector.load %arg17[%c52, %c0_45] : memref<102x128xf32, #tpu.memory_space<vmem>>, vector<1x128xf32>
    tpu.vector_store %arg17[%c52, %c0_45], %163 {strides = array<i32>} : memref<102x128xf32, #tpu.memory_space<vmem>>, vector<1x128xf32>,
    %165 = vector.extract_strided_slice %156 {offsets = [4, 0], sizes = [1, 128], strides = [1, 1]} : vector<16x128xf32> to vector<1x128xf32>
    %166 = vector.extract_strided_slice %156 {offsets = [5, 0], sizes = [1, 128], strides = [1, 1]} : vector<16x128xf32> to vector<1x128xf32>
    %167 = arith.maximumf %165, %166 : vector<1x128xf32>
    %c53 = arith.constant 53 : index
    %c0_46 = arith.constant 0 : index
    %168 = vector.load %arg17[%c53, %c0_46] : memref<102x128xf32, #tpu.memory_space<vmem>>, vector<1x128xf32>
    tpu.vector_store %arg17[%c53, %c0_46], %167 {strides = array<i32>} : memref<102x128xf32, #tpu.memory_space<vmem>>, vector<1x128xf32>,
    %169 = vector.extract_strided_slice %156 {offsets = [6, 0], sizes = [1, 128], strides = [1, 1]} : vector<16x128xf32> to vector<1x128xf32>
    %170 = vector.extract_strided_slice %156 {offsets = [7, 0], sizes = [1, 128], strides = [1, 1]} : vector<16x128xf32> to vector<1x128xf32>
    %171 = arith.maximumf %169, %170 : vector<1x128xf32>
    %c54 = arith.constant 54 : index
    %c0_47 = arith.constant 0 : index
    %172 = vector.load %arg17[%c54, %c0_47] : memref<102x128xf32, #tpu.memory_space<vmem>>, vector<1x128xf32>
    tpu.vector_store %arg17[%c54, %c0_47], %171 {strides = array<i32>} : memref<102x128xf32, #tpu.memory_space<vmem>>, vector<1x128xf32>,
    %173 = vector.extract_strided_slice %156 {offsets = [8, 0], sizes = [1, 128], strides = [1, 1]} : vector<16x128xf32> to vector<1x128xf32>
    %174 = vector.extract_strided_slice %156 {offsets = [9, 0], sizes = [1, 128], strides = [1, 1]} : vector<16x128xf32> to vector<1x128xf32>
    %175 = arith.maximumf %173, %174 : vector<1x128xf32>
    %c55 = arith.constant 55 : index
    %c0_48 = arith.constant 0 : index
    %176 = vector.load %arg17[%c55, %c0_48] : memref<102x128xf32, #tpu.memory_space<vmem>>, vector<1x128xf32>
    tpu.vector_store %arg17[%c55, %c0_48], %175 {strides = array<i32>} : memref<102x128xf32, #tpu.memory_space<vmem>>, vector<1x128xf32>,
    %177 = vector.extract_strided_slice %156 {offsets = [10, 0], sizes = [1, 128], strides = [1, 1]} : vector<16x128xf32> to vector<1x128xf32>
    %178 = vector.extract_strided_slice %156 {offsets = [11, 0], sizes = [1, 128], strides = [1, 1]} : vector<16x128xf32> to vector<1x128xf32>
    %179 = arith.maximumf %177, %178 : vector<1x128xf32>
    %c56 = arith.constant 56 : index
    %c0_49 = arith.constant 0 : index
    %180 = vector.load %arg17[%c56, %c0_49] : memref<102x128xf32, #tpu.memory_space<vmem>>, vector<1x128xf32>
    tpu.vector_store %arg17[%c56, %c0_49], %179 {strides = array<i32>} : memref<102x128xf32, #tpu.memory_space<vmem>>, vector<1x128xf32>,
    %181 = vector.extract_strided_slice %156 {offsets = [12, 0], sizes = [1, 128], strides = [1, 1]} : vector<16x128xf32> to vector<1x128xf32>
    %182 = vector.extract_strided_slice %156 {offsets = [13, 0], sizes = [1, 128], strides = [1, 1]} : vector<16x128xf32> to vector<1x128xf32>
    %183 = arith.maximumf %181, %182 : vector<1x128xf32>
    %c57 = arith.constant 57 : index
    %c0_50 = arith.constant 0 : index
    %184 = vector.load %arg17[%c57, %c0_50] : memref<102x128xf32, #tpu.memory_space<vmem>>, vector<1x128xf32>
    tpu.vector_store %arg17[%c57, %c0_50], %183 {strides = array<i32>} : memref<102x128xf32, #tpu.memory_space<vmem>>, vector<1x128xf32>,
    %185 = vector.extract_strided_slice %156 {offsets = [14, 0], sizes = [1, 128], strides = [1, 1]} : vector<16x128xf32> to vector<1x128xf32>
    %186 = vector.extract_strided_slice %156 {offsets = [15, 0], sizes = [1, 128], strides = [1, 1]} : vector<16x128xf32> to vector<1x128xf32>
    %187 = arith.maximumf %185, %186 : vector<1x128xf32>
    %c58 = arith.constant 58 : index
    %c0_51 = arith.constant 0 : index
    %188 = vector.load %arg17[%c58, %c0_51] : memref<102x128xf32, #tpu.memory_space<vmem>>, vector<1x128xf32>
    tpu.vector_store %arg17[%c58, %c0_51], %187 {strides = array<i32>} : memref<102x128xf32, #tpu.memory_space<vmem>>, vector<1x128xf32>,
    %189 = vector.extract_strided_slice %11 {offsets = [160, 0], sizes = [16, 128], strides = [1, 1]} : vector<256x128xf32> to vector<16x128xf32>
    %190 = vector.extract_strided_slice %11 {offsets = [176, 0], sizes = [16, 128], strides = [1, 1]} : vector<256x128xf32> to vector<16x128xf32>
    %191 = arith.maximumf %189, %190 : vector<16x128xf32>
    %192 = vector.extract_strided_slice %191 {offsets = [0, 0], sizes = [1, 128], strides = [1, 1]} : vector<16x128xf32> to vector<1x128xf32>
    %193 = vector.extract_strided_slice %191 {offsets = [1, 0], sizes = [1, 128], strides = [1, 1]} : vector<16x128xf32> to vector<1x128xf32>
    %194 = arith.maximumf %192, %193 : vector<1x128xf32>
    %c61 = arith.constant 61 : index
    %c0_52 = arith.constant 0 : index
    %195 = vector.load %arg17[%c61, %c0_52] : memref<102x128xf32, #tpu.memory_space<vmem>>, vector<1x128xf32>
    tpu.vector_store %arg17[%c61, %c0_52], %194 {strides = array<i32>} : memref<102x128xf32, #tpu.memory_space<vmem>>, vector<1x128xf32>,
    %196 = vector.extract_strided_slice %191 {offsets = [2, 0], sizes = [1, 128], strides = [1, 1]} : vector<16x128xf32> to vector<1x128xf32>
    %197 = vector.extract_strided_slice %191 {offsets = [3, 0], sizes = [1, 128], strides = [1, 1]} : vector<16x128xf32> to vector<1x128xf32>
    %198 = arith.maximumf %196, %197 : vector<1x128xf32>
    %c62 = arith.constant 62 : index
    %c0_53 = arith.constant 0 : index
    %199 = vector.load %arg17[%c62, %c0_53] : memref<102x128xf32, #tpu.memory_space<vmem>>, vector<1x128xf32>
    tpu.vector_store %arg17[%c62, %c0_53], %198 {strides = array<i32>} : memref<102x128xf32, #tpu.memory_space<vmem>>, vector<1x128xf32>,
    %200 = vector.extract_strided_slice %191 {offsets = [4, 0], sizes = [1, 128], strides = [1, 1]} : vector<16x128xf32> to vector<1x128xf32>
    %201 = vector.extract_strided_slice %191 {offsets = [5, 0], sizes = [1, 128], strides = [1, 1]} : vector<16x128xf32> to vector<1x128xf32>
    %202 = arith.maximumf %200, %201 : vector<1x128xf32>
    %c63 = arith.constant 63 : index
    %c0_54 = arith.constant 0 : index
    %203 = vector.load %arg17[%c63, %c0_54] : memref<102x128xf32, #tpu.memory_space<vmem>>, vector<1x128xf32>
    tpu.vector_store %arg17[%c63, %c0_54], %202 {strides = array<i32>} : memref<102x128xf32, #tpu.memory_space<vmem>>, vector<1x128xf32>,
    %204 = vector.extract_strided_slice %191 {offsets = [6, 0], sizes = [1, 128], strides = [1, 1]} : vector<16x128xf32> to vector<1x128xf32>
    %205 = vector.extract_strided_slice %191 {offsets = [7, 0], sizes = [1, 128], strides = [1, 1]} : vector<16x128xf32> to vector<1x128xf32>
    %206 = arith.maximumf %204, %205 : vector<1x128xf32>
    %c64 = arith.constant 64 : index
    %c0_55 = arith.constant 0 : index
    %207 = vector.load %arg17[%c64, %c0_55] : memref<102x128xf32, #tpu.memory_space<vmem>>, vector<1x128xf32>
    tpu.vector_store %arg17[%c64, %c0_55], %206 {strides = array<i32>} : memref<102x128xf32, #tpu.memory_space<vmem>>, vector<1x128xf32>,
    %208 = vector.extract_strided_slice %191 {offsets = [8, 0], sizes = [1, 128], strides = [1, 1]} : vector<16x128xf32> to vector<1x128xf32>
    %209 = vector.extract_strided_slice %191 {offsets = [9, 0], sizes = [1, 128], strides = [1, 1]} : vector<16x128xf32> to vector<1x128xf32>
    %210 = arith.maximumf %208, %209 : vector<1x128xf32>
    %c65 = arith.constant 65 : index
    %c0_56 = arith.constant 0 : index
    %211 = vector.load %arg17[%c65, %c0_56] : memref<102x128xf32, #tpu.memory_space<vmem>>, vector<1x128xf32>
    tpu.vector_store %arg17[%c65, %c0_56], %210 {strides = array<i32>} : memref<102x128xf32, #tpu.memory_space<vmem>>, vector<1x128xf32>,
    %212 = vector.extract_strided_slice %191 {offsets = [10, 0], sizes = [1, 128], strides = [1, 1]} : vector<16x128xf32> to vector<1x128xf32>
    %213 = vector.extract_strided_slice %191 {offsets = [11, 0], sizes = [1, 128], strides = [1, 1]} : vector<16x128xf32> to vector<1x128xf32>
    %214 = arith.maximumf %212, %213 : vector<1x128xf32>
    %c66 = arith.constant 66 : index
    %c0_57 = arith.constant 0 : index
    %215 = vector.load %arg17[%c66, %c0_57] : memref<102x128xf32, #tpu.memory_space<vmem>>, vector<1x128xf32>
    tpu.vector_store %arg17[%c66, %c0_57], %214 {strides = array<i32>} : memref<102x128xf32, #tpu.memory_space<vmem>>, vector<1x128xf32>,
    %216 = vector.extract_strided_slice %191 {offsets = [12, 0], sizes = [1, 128], strides = [1, 1]} : vector<16x128xf32> to vector<1x128xf32>
    %217 = vector.extract_strided_slice %191 {offsets = [13, 0], sizes = [1, 128], strides = [1, 1]} : vector<16x128xf32> to vector<1x128xf32>
    %218 = arith.maximumf %216, %217 : vector<1x128xf32>
    %c67 = arith.constant 67 : index
    %c0_58 = arith.constant 0 : index
    %219 = vector.load %arg17[%c67, %c0_58] : memref<102x128xf32, #tpu.memory_space<vmem>>, vector<1x128xf32>
    tpu.vector_store %arg17[%c67, %c0_58], %218 {strides = array<i32>} : memref<102x128xf32, #tpu.memory_space<vmem>>, vector<1x128xf32>,
    %220 = vector.extract_strided_slice %191 {offsets = [14, 0], sizes = [1, 128], strides = [1, 1]} : vector<16x128xf32> to vector<1x128xf32>
    %221 = vector.extract_strided_slice %191 {offsets = [15, 0], sizes = [1, 128], strides = [1, 1]} : vector<16x128xf32> to vector<1x128xf32>
    %222 = arith.maximumf %220, %221 : vector<1x128xf32>
    %c68 = arith.constant 68 : index
    %c0_59 = arith.constant 0 : index
    %223 = vector.load %arg17[%c68, %c0_59] : memref<102x128xf32, #tpu.memory_space<vmem>>, vector<1x128xf32>
    tpu.vector_store %arg17[%c68, %c0_59], %222 {strides = array<i32>} : memref<102x128xf32, #tpu.memory_space<vmem>>, vector<1x128xf32>,
    %224 = vector.extract_strided_slice %11 {offsets = [192, 0], sizes = [16, 128], strides = [1, 1]} : vector<256x128xf32> to vector<16x128xf32>
    %225 = vector.extract_strided_slice %11 {offsets = [208, 0], sizes = [16, 128], strides = [1, 1]} : vector<256x128xf32> to vector<16x128xf32>
    %226 = arith.maximumf %224, %225 : vector<16x128xf32>
    %227 = vector.extract_strided_slice %226 {offsets = [0, 0], sizes = [1, 128], strides = [1, 1]} : vector<16x128xf32> to vector<1x128xf32>
    %228 = vector.extract_strided_slice %226 {offsets = [1, 0], sizes = [1, 128], strides = [1, 1]} : vector<16x128xf32> to vector<1x128xf32>
    %229 = arith.maximumf %227, %228 : vector<1x128xf32>
    %c71 = arith.constant 71 : index
    %c0_60 = arith.constant 0 : index
    %230 = vector.load %arg17[%c71, %c0_60] : memref<102x128xf32, #tpu.memory_space<vmem>>, vector<1x128xf32>
    tpu.vector_store %arg17[%c71, %c0_60], %229 {strides = array<i32>} : memref<102x128xf32, #tpu.memory_space<vmem>>, vector<1x128xf32>,
    %231 = vector.extract_strided_slice %226 {offsets = [2, 0], sizes = [1, 128], strides = [1, 1]} : vector<16x128xf32> to vector<1x128xf32>
    %232 = vector.extract_strided_slice %226 {offsets = [3, 0], sizes = [1, 128], strides = [1, 1]} : vector<16x128xf32> to vector<1x128xf32>
    %233 = arith.maximumf %231, %232 : vector<1x128xf32>
    %c72 = arith.constant 72 : index
    %c0_61 = arith.constant 0 : index
    %234 = vector.load %arg17[%c72, %c0_61] : memref<102x128xf32, #tpu.memory_space<vmem>>, vector<1x128xf32>
    tpu.vector_store %arg17[%c72, %c0_61], %233 {strides = array<i32>} : memref<102x128xf32, #tpu.memory_space<vmem>>, vector<1x128xf32>,
    %235 = vector.extract_strided_slice %226 {offsets = [4, 0], sizes = [1, 128], strides = [1, 1]} : vector<16x128xf32> to vector<1x128xf32>
    %236 = vector.extract_strided_slice %226 {offsets = [5, 0], sizes = [1, 128], strides = [1, 1]} : vector<16x128xf32> to vector<1x128xf32>
    %237 = arith.maximumf %235, %236 : vector<1x128xf32>
    %c73 = arith.constant 73 : index
    %c0_62 = arith.constant 0 : index
    %238 = vector.load %arg17[%c73, %c0_62] : memref<102x128xf32, #tpu.memory_space<vmem>>, vector<1x128xf32>
    tpu.vector_store %arg17[%c73, %c0_62], %237 {strides = array<i32>} : memref<102x128xf32, #tpu.memory_space<vmem>>, vector<1x128xf32>,
    %239 = vector.extract_strided_slice %226 {offsets = [6, 0], sizes = [1, 128], strides = [1, 1]} : vector<16x128xf32> to vector<1x128xf32>
    %240 = vector.extract_strided_slice %226 {offsets = [7, 0], sizes = [1, 128], strides = [1, 1]} : vector<16x128xf32> to vector<1x128xf32>
    %241 = arith.maximumf %239, %240 : vector<1x128xf32>
    %c74 = arith.constant 74 : index
    %c0_63 = arith.constant 0 : index
    %242 = vector.load %arg17[%c74, %c0_63] : memref<102x128xf32, #tpu.memory_space<vmem>>, vector<1x128xf32>
    tpu.vector_store %arg17[%c74, %c0_63], %241 {strides = array<i32>} : memref<102x128xf32, #tpu.memory_space<vmem>>, vector<1x128xf32>,
    %243 = vector.extract_strided_slice %226 {offsets = [8, 0], sizes = [1, 128], strides = [1, 1]} : vector<16x128xf32> to vector<1x128xf32>
    %244 = vector.extract_strided_slice %226 {offsets = [9, 0], sizes = [1, 128], strides = [1, 1]} : vector<16x128xf32> to vector<1x128xf32>
    %245 = arith.maximumf %243, %244 : vector<1x128xf32>
    %c75 = arith.constant 75 : index
    %c0_64 = arith.constant 0 : index
    %246 = vector.load %arg17[%c75, %c0_64] : memref<102x128xf32, #tpu.memory_space<vmem>>, vector<1x128xf32>
    tpu.vector_store %arg17[%c75, %c0_64], %245 {strides = array<i32>} : memref<102x128xf32, #tpu.memory_space<vmem>>, vector<1x128xf32>,
    %247 = vector.extract_strided_slice %226 {offsets = [10, 0], sizes = [1, 128], strides = [1, 1]} : vector<16x128xf32> to vector<1x128xf32>
    %248 = vector.extract_strided_slice %226 {offsets = [11, 0], sizes = [1, 128], strides = [1, 1]} : vector<16x128xf32> to vector<1x128xf32>
    %249 = arith.maximumf %247, %248 : vector<1x128xf32>
    %c76 = arith.constant 76 : index
    %c0_65 = arith.constant 0 : index
    %250 = vector.load %arg17[%c76, %c0_65] : memref<102x128xf32, #tpu.memory_space<vmem>>, vector<1x128xf32>
    tpu.vector_store %arg17[%c76, %c0_65], %249 {strides = array<i32>} : memref<102x128xf32, #tpu.memory_space<vmem>>, vector<1x128xf32>,
    %251 = vector.extract_strided_slice %226 {offsets = [12, 0], sizes = [1, 128], strides = [1, 1]} : vector<16x128xf32> to vector<1x128xf32>
    %252 = vector.extract_strided_slice %226 {offsets = [13, 0], sizes = [1, 128], strides = [1, 1]} : vector<16x128xf32> to vector<1x128xf32>
    %253 = arith.maximumf %251, %252 : vector<1x128xf32>
    %c77 = arith.constant 77 : index
    %c0_66 = arith.constant 0 : index
    %254 = vector.load %arg17[%c77, %c0_66] : memref<102x128xf32, #tpu.memory_space<vmem>>, vector<1x128xf32>
    tpu.vector_store %arg17[%c77, %c0_66], %253 {strides = array<i32>} : memref<102x128xf32, #tpu.memory_space<vmem>>, vector<1x128xf32>,
    %255 = vector.extract_strided_slice %226 {offsets = [14, 0], sizes = [1, 128], strides = [1, 1]} : vector<16x128xf32> to vector<1x128xf32>
    %256 = vector.extract_strided_slice %226 {offsets = [15, 0], sizes = [1, 128], strides = [1, 1]} : vector<16x128xf32> to vector<1x128xf32>
    %257 = arith.maximumf %255, %256 : vector<1x128xf32>
    %c78 = arith.constant 78 : index
    %c0_67 = arith.constant 0 : index
    %258 = vector.load %arg17[%c78, %c0_67] : memref<102x128xf32, #tpu.memory_space<vmem>>, vector<1x128xf32>
    tpu.vector_store %arg17[%c78, %c0_67], %257 {strides = array<i32>} : memref<102x128xf32, #tpu.memory_space<vmem>>, vector<1x128xf32>,
    %259 = vector.extract_strided_slice %11 {offsets = [224, 0], sizes = [16, 128], strides = [1, 1]} : vector<256x128xf32> to vector<16x128xf32>
    %260 = vector.extract_strided_slice %11 {offsets = [240, 0], sizes = [16, 128], strides = [1, 1]} : vector<256x128xf32> to vector<16x128xf32>
    %261 = arith.maximumf %259, %260 : vector<16x128xf32>
    %262 = vector.extract_strided_slice %261 {offsets = [0, 0], sizes = [1, 128], strides = [1, 1]} : vector<16x128xf32> to vector<1x128xf32>
    %263 = vector.extract_strided_slice %261 {offsets = [1, 0], sizes = [1, 128], strides = [1, 1]} : vector<16x128xf32> to vector<1x128xf32>
    %264 = arith.maximumf %262, %263 : vector<1x128xf32>
    %c81 = arith.constant 81 : index
    %c0_68 = arith.constant 0 : index
    %265 = vector.load %arg17[%c81, %c0_68] : memref<102x128xf32, #tpu.memory_space<vmem>>, vector<1x128xf32>
    tpu.vector_store %arg17[%c81, %c0_68], %264 {strides = array<i32>} : memref<102x128xf32, #tpu.memory_space<vmem>>, vector<1x128xf32>,
    %266 = vector.extract_strided_slice %261 {offsets = [2, 0], sizes = [1, 128], strides = [1, 1]} : vector<16x128xf32> to vector<1x128xf32>
    %267 = vector.extract_strided_slice %261 {offsets = [3, 0], sizes = [1, 128], strides = [1, 1]} : vector<16x128xf32> to vector<1x128xf32>
    %268 = arith.maximumf %266, %267 : vector<1x128xf32>
    %c82 = arith.constant 82 : index
    %c0_69 = arith.constant 0 : index
    %269 = vector.load %arg17[%c82, %c0_69] : memref<102x128xf32, #tpu.memory_space<vmem>>, vector<1x128xf32>
    tpu.vector_store %arg17[%c82, %c0_69], %268 {strides = array<i32>} : memref<102x128xf32, #tpu.memory_space<vmem>>, vector<1x128xf32>,
    %270 = vector.extract_strided_slice %261 {offsets = [4, 0], sizes = [1, 128], strides = [1, 1]} : vector<16x128xf32> to vector<1x128xf32>
    %271 = vector.extract_strided_slice %261 {offsets = [5, 0], sizes = [1, 128], strides = [1, 1]} : vector<16x128xf32> to vector<1x128xf32>
    %272 = arith.maximumf %270, %271 : vector<1x128xf32>
    %c83 = arith.constant 83 : index
    %c0_70 = arith.constant 0 : index
    %273 = vector.load %arg17[%c83, %c0_70] : memref<102x128xf32, #tpu.memory_space<vmem>>, vector<1x128xf32>
    tpu.vector_store %arg17[%c83, %c0_70], %272 {strides = array<i32>} : memref<102x128xf32, #tpu.memory_space<vmem>>, vector<1x128xf32>,
    %274 = vector.extract_strided_slice %261 {offsets = [6, 0], sizes = [1, 128], strides = [1, 1]} : vector<16x128xf32> to vector<1x128xf32>
    %275 = vector.extract_strided_slice %261 {offsets = [7, 0], sizes = [1, 128], strides = [1, 1]} : vector<16x128xf32> to vector<1x128xf32>
    %276 = arith.maximumf %274, %275 : vector<1x128xf32>
    %c84 = arith.constant 84 : index
    %c0_71 = arith.constant 0 : index
    %277 = vector.load %arg17[%c84, %c0_71] : memref<102x128xf32, #tpu.memory_space<vmem>>, vector<1x128xf32>
    tpu.vector_store %arg17[%c84, %c0_71], %276 {strides = array<i32>} : memref<102x128xf32, #tpu.memory_space<vmem>>, vector<1x128xf32>,
    %278 = vector.extract_strided_slice %261 {offsets = [8, 0], sizes = [1, 128], strides = [1, 1]} : vector<16x128xf32> to vector<1x128xf32>
    %279 = vector.extract_strided_slice %261 {offsets = [9, 0], sizes = [1, 128], strides = [1, 1]} : vector<16x128xf32> to vector<1x128xf32>
    %280 = arith.maximumf %278, %279 : vector<1x128xf32>
    %c85 = arith.constant 85 : index
    %c0_72 = arith.constant 0 : index
    %281 = vector.load %arg17[%c85, %c0_72] : memref<102x128xf32, #tpu.memory_space<vmem>>, vector<1x128xf32>
    tpu.vector_store %arg17[%c85, %c0_72], %280 {strides = array<i32>} : memref<102x128xf32, #tpu.memory_space<vmem>>, vector<1x128xf32>,
    %282 = vector.extract_strided_slice %261 {offsets = [10, 0], sizes = [1, 128], strides = [1, 1]} : vector<16x128xf32> to vector<1x128xf32>
    %283 = vector.extract_strided_slice %261 {offsets = [11, 0], sizes = [1, 128], strides = [1, 1]} : vector<16x128xf32> to vector<1x128xf32>
    %284 = arith.maximumf %282, %283 : vector<1x128xf32>
    %c86 = arith.constant 86 : index
    %c0_73 = arith.constant 0 : index
    %285 = vector.load %arg17[%c86, %c0_73] : memref<102x128xf32, #tpu.memory_space<vmem>>, vector<1x128xf32>
    tpu.vector_store %arg17[%c86, %c0_73], %284 {strides = array<i32>} : memref<102x128xf32, #tpu.memory_space<vmem>>, vector<1x128xf32>,
    %286 = vector.extract_strided_slice %261 {offsets = [12, 0], sizes = [1, 128], strides = [1, 1]} : vector<16x128xf32> to vector<1x128xf32>
    %287 = vector.extract_strided_slice %261 {offsets = [13, 0], sizes = [1, 128], strides = [1, 1]} : vector<16x128xf32> to vector<1x128xf32>
    %288 = arith.maximumf %286, %287 : vector<1x128xf32>
    %c87 = arith.constant 87 : index
    %c0_74 = arith.constant 0 : index
    %289 = vector.load %arg17[%c87, %c0_74] : memref<102x128xf32, #tpu.memory_space<vmem>>, vector<1x128xf32>
    tpu.vector_store %arg17[%c87, %c0_74], %288 {strides = array<i32>} : memref<102x128xf32, #tpu.memory_space<vmem>>, vector<1x128xf32>,
    %290 = vector.extract_strided_slice %261 {offsets = [14, 0], sizes = [1, 128], strides = [1, 1]} : vector<16x128xf32> to vector<1x128xf32>
    %291 = vector.extract_strided_slice %261 {offsets = [15, 0], sizes = [1, 128], strides = [1, 1]} : vector<16x128xf32> to vector<1x128xf32>
    %292 = arith.maximumf %290, %291 : vector<1x128xf32>
    %c88 = arith.constant 88 : index
    %c0_75 = arith.constant 0 : index
    %293 = vector.load %arg17[%c88, %c0_75] : memref<102x128xf32, #tpu.memory_space<vmem>>, vector<1x128xf32>
    tpu.vector_store %arg17[%c88, %c0_75], %292 {strides = array<i32>} : memref<102x128xf32, #tpu.memory_space<vmem>>, vector<1x128xf32>,
    %c0_76 = arith.constant 0 : index
    %c0_77 = arith.constant 0 : index
    %294 = vector.load %arg17[%c0_76, %c0_77] : memref<102x128xf32, #tpu.memory_space<vmem>>, vector<80x128xf32>
    %295 = arith.truncf %294 : vector<80x128xf32> to vector<80x128xbf16>
    %c1 = arith.constant 1 : index
    %c0_78 = arith.constant 0 : index
    %296 = vector.load %arg17[%c1, %c0_78] : memref<102x128xf32, #tpu.memory_space<vmem>>, vector<80x128xf32>
    %297 = arith.truncf %296 : vector<80x128xf32> to vector<80x128xbf16>
    %c2 = arith.constant 2 : index
    %c0_79 = arith.constant 0 : index
    %298 = vector.load %arg17[%c2, %c0_79] : memref<102x128xf32, #tpu.memory_space<vmem>>, vector<80x128xf32>
    %299 = arith.truncf %298 : vector<80x128xf32> to vector<80x128xbf16>
    %c10 = arith.constant 10 : index
    %c0_80 = arith.constant 0 : index
    %300 = vector.load %arg17[%c10, %c0_80] : memref<102x128xf32, #tpu.memory_space<vmem>>, vector<80x128xf32>
    %301 = arith.truncf %300 : vector<80x128xf32> to vector<80x128xbf16>
    %c11_81 = arith.constant 11 : index
    %c0_82 = arith.constant 0 : index
    %302 = vector.load %arg17[%c11_81, %c0_82] : memref<102x128xf32, #tpu.memory_space<vmem>>, vector<80x128xf32>
    %303 = arith.truncf %302 : vector<80x128xf32> to vector<80x128xbf16>
    %c12_83 = arith.constant 12 : index
    %c0_84 = arith.constant 0 : index
    %304 = vector.load %arg17[%c12_83, %c0_84] : memref<102x128xf32, #tpu.memory_space<vmem>>, vector<80x128xf32>
    %305 = arith.truncf %304 : vector<80x128xf32> to vector<80x128xbf16>
    %c20 = arith.constant 20 : index
    %c0_85 = arith.constant 0 : index
    %306 = vector.load %arg17[%c20, %c0_85] : memref<102x128xf32, #tpu.memory_space<vmem>>, vector<80x128xf32>
    %307 = arith.truncf %306 : vector<80x128xf32> to vector<80x128xbf16>
    %c21_86 = arith.constant 21 : index
    %c0_87 = arith.constant 0 : index
    %308 = vector.load %arg17[%c21_86, %c0_87] : memref<102x128xf32, #tpu.memory_space<vmem>>, vector<80x128xf32>
    %309 = arith.truncf %308 : vector<80x128xf32> to vector<80x128xbf16>
    %c22_88 = arith.constant 22 : index
    %c0_89 = arith.constant 0 : index
    %310 = vector.load %arg17[%c22_88, %c0_89] : memref<102x128xf32, #tpu.memory_space<vmem>>, vector<80x128xf32>
    %311 = arith.truncf %310 : vector<80x128xf32> to vector<80x128xbf16>
    %312 = tpu.concatenate %295, %297, %299, %301, %303, %305, %307, %309, %311 in 1 : vector<80x128xbf16>, vector<80x128xbf16>, vector<80x128xbf16>, vector<80x128xbf16>, vector<80x128xbf16>, vector<80x128xbf16>, vector<80x128xbf16>, vector<80x128xbf16>, vector<80x128xbf16> -> vector<80x1152xbf16>
    %c0_90 = arith.constant 0 : index
    %c0_91 = arith.constant 0 : index
    %313 = vector.load %arg5[%c0_90, %c0_91] : memref<1152x128xbf16, #tpu.memory_space<vmem>>, vector<1152x128xbf16>
    %cst_92 = arith.constant dense<0.000000e+00> : vector<80x128xf32>
    %314 = tpu.matmul %312, %313, %cst_92 {dimension_numbers = #tpu.dot_dimension_numbers<[1], [0], [0], [1], [0, 0, 1, 1], [], []>} : vector<80x1152xbf16>, vector<1152x128xbf16>, vector<80x128xf32> -> vector<80x128xf32>
    %c0_93 = arith.constant 0 : index
    %c0_94 = arith.constant 0 : index
    %315 = vector.load %arg6[%c0_93, %c0_94] : memref<1x128xf32, #tpu.memory_space<vmem>>, vector<1x128xf32>
    %316 = vector.broadcast %315 : vector<1x128xf32> to vector<80x128xf32>
    %317 = arith.mulf %314, %316 : vector<80x128xf32>
    %c0_95 = arith.constant 0 : index
    %c0_96 = arith.constant 0 : index
    %318 = vector.load %arg7[%c0_95, %c0_96] : memref<1x128xf32, #tpu.memory_space<vmem>>, vector<1x128xf32>
    %319 = vector.broadcast %318 : vector<1x128xf32> to vector<80x128xf32>
    %320 = arith.addf %317, %319 : vector<80x128xf32>
    %cst_97 = arith.constant 0.000000e+00 : f32
    %321 = vector.broadcast %cst_97 : f32 to vector<80x128xf32>
    %322 = arith.maximumf %320, %321 : vector<80x128xf32>
    %cst_98 = arith.constant 0.000000e+00 : f32
    %323 = vector.broadcast %cst_98 : f32 to vector<38x128xf32>
    %c0_99 = arith.constant 0 : index
    %c0_100 = arith.constant 0 : index
    %324 = vector.load %arg18[%c0_99, %c0_100] : memref<38x128xf32, #tpu.memory_space<vmem>>, vector<38x128xf32>
    tpu.vector_store %arg18[%c0_99, %c0_100], %323 {strides = array<i32>} : memref<38x128xf32, #tpu.memory_space<vmem>>, vector<38x128xf32>,
    %325 = vector.extract_strided_slice %322 {offsets = [0, 0], sizes = [8, 128], strides = [1, 1]} : vector<80x128xf32> to vector<8x128xf32>
    %326 = vector.extract_strided_slice %322 {offsets = [10, 0], sizes = [8, 128], strides = [1, 1]} : vector<80x128xf32> to vector<8x128xf32>
    %327 = arith.maximumf %325, %326 : vector<8x128xf32>
    %328 = vector.extract_strided_slice %327 {offsets = [0, 0], sizes = [1, 128], strides = [1, 1]} : vector<8x128xf32> to vector<1x128xf32>
    %329 = vector.extract_strided_slice %327 {offsets = [1, 0], sizes = [1, 128], strides = [1, 1]} : vector<8x128xf32> to vector<1x128xf32>
    %330 = arith.maximumf %328, %329 : vector<1x128xf32>
    %c7 = arith.constant 7 : index
    %c0_101 = arith.constant 0 : index
    %331 = vector.load %arg18[%c7, %c0_101] : memref<38x128xf32, #tpu.memory_space<vmem>>, vector<1x128xf32>
    tpu.vector_store %arg18[%c7, %c0_101], %330 {strides = array<i32>} : memref<38x128xf32, #tpu.memory_space<vmem>>, vector<1x128xf32>,
    %332 = vector.extract_strided_slice %327 {offsets = [2, 0], sizes = [1, 128], strides = [1, 1]} : vector<8x128xf32> to vector<1x128xf32>
    %333 = vector.extract_strided_slice %327 {offsets = [3, 0], sizes = [1, 128], strides = [1, 1]} : vector<8x128xf32> to vector<1x128xf32>
    %334 = arith.maximumf %332, %333 : vector<1x128xf32>
    %c8 = arith.constant 8 : index
    %c0_102 = arith.constant 0 : index
    %335 = vector.load %arg18[%c8, %c0_102] : memref<38x128xf32, #tpu.memory_space<vmem>>, vector<1x128xf32>
    tpu.vector_store %arg18[%c8, %c0_102], %334 {strides = array<i32>} : memref<38x128xf32, #tpu.memory_space<vmem>>, vector<1x128xf32>,
    %336 = vector.extract_strided_slice %327 {offsets = [4, 0], sizes = [1, 128], strides = [1, 1]} : vector<8x128xf32> to vector<1x128xf32>
    %337 = vector.extract_strided_slice %327 {offsets = [5, 0], sizes = [1, 128], strides = [1, 1]} : vector<8x128xf32> to vector<1x128xf32>
    %338 = arith.maximumf %336, %337 : vector<1x128xf32>
    %c9 = arith.constant 9 : index
    %c0_103 = arith.constant 0 : index
    %339 = vector.load %arg18[%c9, %c0_103] : memref<38x128xf32, #tpu.memory_space<vmem>>, vector<1x128xf32>
    tpu.vector_store %arg18[%c9, %c0_103], %338 {strides = array<i32>} : memref<38x128xf32, #tpu.memory_space<vmem>>, vector<1x128xf32>,
    %340 = vector.extract_strided_slice %327 {offsets = [6, 0], sizes = [1, 128], strides = [1, 1]} : vector<8x128xf32> to vector<1x128xf32>
    %341 = vector.extract_strided_slice %327 {offsets = [7, 0], sizes = [1, 128], strides = [1, 1]} : vector<8x128xf32> to vector<1x128xf32>
    %342 = arith.maximumf %340, %341 : vector<1x128xf32>
    %c10_104 = arith.constant 10 : index
    %c0_105 = arith.constant 0 : index
    %343 = vector.load %arg18[%c10_104, %c0_105] : memref<38x128xf32, #tpu.memory_space<vmem>>, vector<1x128xf32>
    tpu.vector_store %arg18[%c10_104, %c0_105], %342 {strides = array<i32>} : memref<38x128xf32, #tpu.memory_space<vmem>>, vector<1x128xf32>,
    %344 = vector.extract_strided_slice %322 {offsets = [20, 0], sizes = [8, 128], strides = [1, 1]} : vector<80x128xf32> to vector<8x128xf32>
    %345 = vector.extract_strided_slice %322 {offsets = [30, 0], sizes = [8, 128], strides = [1, 1]} : vector<80x128xf32> to vector<8x128xf32>
    %346 = arith.maximumf %344, %345 : vector<8x128xf32>
    %347 = vector.extract_strided_slice %346 {offsets = [0, 0], sizes = [1, 128], strides = [1, 1]} : vector<8x128xf32> to vector<1x128xf32>
    %348 = vector.extract_strided_slice %346 {offsets = [1, 0], sizes = [1, 128], strides = [1, 1]} : vector<8x128xf32> to vector<1x128xf32>
    %349 = arith.maximumf %347, %348 : vector<1x128xf32>
    %c13_106 = arith.constant 13 : index
    %c0_107 = arith.constant 0 : index
    %350 = vector.load %arg18[%c13_106, %c0_107] : memref<38x128xf32, #tpu.memory_space<vmem>>, vector<1x128xf32>
    tpu.vector_store %arg18[%c13_106, %c0_107], %349 {strides = array<i32>} : memref<38x128xf32, #tpu.memory_space<vmem>>, vector<1x128xf32>,
    %351 = vector.extract_strided_slice %346 {offsets = [2, 0], sizes = [1, 128], strides = [1, 1]} : vector<8x128xf32> to vector<1x128xf32>
    %352 = vector.extract_strided_slice %346 {offsets = [3, 0], sizes = [1, 128], strides = [1, 1]} : vector<8x128xf32> to vector<1x128xf32>
    %353 = arith.maximumf %351, %352 : vector<1x128xf32>
    %c14_108 = arith.constant 14 : index
    %c0_109 = arith.constant 0 : index
    %354 = vector.load %arg18[%c14_108, %c0_109] : memref<38x128xf32, #tpu.memory_space<vmem>>, vector<1x128xf32>
    tpu.vector_store %arg18[%c14_108, %c0_109], %353 {strides = array<i32>} : memref<38x128xf32, #tpu.memory_space<vmem>>, vector<1x128xf32>,
    %355 = vector.extract_strided_slice %346 {offsets = [4, 0], sizes = [1, 128], strides = [1, 1]} : vector<8x128xf32> to vector<1x128xf32>
    %356 = vector.extract_strided_slice %346 {offsets = [5, 0], sizes = [1, 128], strides = [1, 1]} : vector<8x128xf32> to vector<1x128xf32>
    %357 = arith.maximumf %355, %356 : vector<1x128xf32>
    %c15_110 = arith.constant 15 : index
    %c0_111 = arith.constant 0 : index
    %358 = vector.load %arg18[%c15_110, %c0_111] : memref<38x128xf32, #tpu.memory_space<vmem>>, vector<1x128xf32>
    tpu.vector_store %arg18[%c15_110, %c0_111], %357 {strides = array<i32>} : memref<38x128xf32, #tpu.memory_space<vmem>>, vector<1x128xf32>,
    %359 = vector.extract_strided_slice %346 {offsets = [6, 0], sizes = [1, 128], strides = [1, 1]} : vector<8x128xf32> to vector<1x128xf32>
    %360 = vector.extract_strided_slice %346 {offsets = [7, 0], sizes = [1, 128], strides = [1, 1]} : vector<8x128xf32> to vector<1x128xf32>
    %361 = arith.maximumf %359, %360 : vector<1x128xf32>
    %c16_112 = arith.constant 16 : index
    %c0_113 = arith.constant 0 : index
    %362 = vector.load %arg18[%c16_112, %c0_113] : memref<38x128xf32, #tpu.memory_space<vmem>>, vector<1x128xf32>
    tpu.vector_store %arg18[%c16_112, %c0_113], %361 {strides = array<i32>} : memref<38x128xf32, #tpu.memory_space<vmem>>, vector<1x128xf32>,
    %363 = vector.extract_strided_slice %322 {offsets = [40, 0], sizes = [8, 128], strides = [1, 1]} : vector<80x128xf32> to vector<8x128xf32>
    %364 = vector.extract_strided_slice %322 {offsets = [50, 0], sizes = [8, 128], strides = [1, 1]} : vector<80x128xf32> to vector<8x128xf32>
    %365 = arith.maximumf %363, %364 : vector<8x128xf32>
    %366 = vector.extract_strided_slice %365 {offsets = [0, 0], sizes = [1, 128], strides = [1, 1]} : vector<8x128xf32> to vector<1x128xf32>
    %367 = vector.extract_strided_slice %365 {offsets = [1, 0], sizes = [1, 128], strides = [1, 1]} : vector<8x128xf32> to vector<1x128xf32>
    %368 = arith.maximumf %366, %367 : vector<1x128xf32>
    %c19 = arith.constant 19 : index
    %c0_114 = arith.constant 0 : index
    %369 = vector.load %arg18[%c19, %c0_114] : memref<38x128xf32, #tpu.memory_space<vmem>>, vector<1x128xf32>
    tpu.vector_store %arg18[%c19, %c0_114], %368 {strides = array<i32>} : memref<38x128xf32, #tpu.memory_space<vmem>>, vector<1x128xf32>,
    %370 = vector.extract_strided_slice %365 {offsets = [2, 0], sizes = [1, 128], strides = [1, 1]} : vector<8x128xf32> to vector<1x128xf32>
    %371 = vector.extract_strided_slice %365 {offsets = [3, 0], sizes = [1, 128], strides = [1, 1]} : vector<8x128xf32> to vector<1x128xf32>
    %372 = arith.maximumf %370, %371 : vector<1x128xf32>
    %c20_115 = arith.constant 20 : index
    %c0_116 = arith.constant 0 : index
    %373 = vector.load %arg18[%c20_115, %c0_116] : memref<38x128xf32, #tpu.memory_space<vmem>>, vector<1x128xf32>
    tpu.vector_store %arg18[%c20_115, %c0_116], %372 {strides = array<i32>} : memref<38x128xf32, #tpu.memory_space<vmem>>, vector<1x128xf32>,
    %374 = vector.extract_strided_slice %365 {offsets = [4, 0], sizes = [1, 128], strides = [1, 1]} : vector<8x128xf32> to vector<1x128xf32>
    %375 = vector.extract_strided_slice %365 {offsets = [5, 0], sizes = [1, 128], strides = [1, 1]} : vector<8x128xf32> to vector<1x128xf32>
    %376 = arith.maximumf %374, %375 : vector<1x128xf32>
    %c21_117 = arith.constant 21 : index
    %c0_118 = arith.constant 0 : index
    %377 = vector.load %arg18[%c21_117, %c0_118] : memref<38x128xf32, #tpu.memory_space<vmem>>, vector<1x128xf32>
    tpu.vector_store %arg18[%c21_117, %c0_118], %376 {strides = array<i32>} : memref<38x128xf32, #tpu.memory_space<vmem>>, vector<1x128xf32>,
    %378 = vector.extract_strided_slice %365 {offsets = [6, 0], sizes = [1, 128], strides = [1, 1]} : vector<8x128xf32> to vector<1x128xf32>
    %379 = vector.extract_strided_slice %365 {offsets = [7, 0], sizes = [1, 128], strides = [1, 1]} : vector<8x128xf32> to vector<1x128xf32>
    %380 = arith.maximumf %378, %379 : vector<1x128xf32>
    %c22_119 = arith.constant 22 : index
    %c0_120 = arith.constant 0 : index
    %381 = vector.load %arg18[%c22_119, %c0_120] : memref<38x128xf32, #tpu.memory_space<vmem>>, vector<1x128xf32>
    tpu.vector_store %arg18[%c22_119, %c0_120], %380 {strides = array<i32>} : memref<38x128xf32, #tpu.memory_space<vmem>>, vector<1x128xf32>,
    %382 = vector.extract_strided_slice %322 {offsets = [60, 0], sizes = [8, 128], strides = [1, 1]} : vector<80x128xf32> to vector<8x128xf32>
    %383 = vector.extract_strided_slice %322 {offsets = [70, 0], sizes = [8, 128], strides = [1, 1]} : vector<80x128xf32> to vector<8x128xf32>
    %384 = arith.maximumf %382, %383 : vector<8x128xf32>
    %385 = vector.extract_strided_slice %384 {offsets = [0, 0], sizes = [1, 128], strides = [1, 1]} : vector<8x128xf32> to vector<1x128xf32>
    %386 = vector.extract_strided_slice %384 {offsets = [1, 0], sizes = [1, 128], strides = [1, 1]} : vector<8x128xf32> to vector<1x128xf32>
    %387 = arith.maximumf %385, %386 : vector<1x128xf32>
    %c25_121 = arith.constant 25 : index
    %c0_122 = arith.constant 0 : index
    %388 = vector.load %arg18[%c25_121, %c0_122] : memref<38x128xf32, #tpu.memory_space<vmem>>, vector<1x128xf32>
    tpu.vector_store %arg18[%c25_121, %c0_122], %387 {strides = array<i32>} : memref<38x128xf32, #tpu.memory_space<vmem>>, vector<1x128xf32>,
    %389 = vector.extract_strided_slice %384 {offsets = [2, 0], sizes = [1, 128], strides = [1, 1]} : vector<8x128xf32> to vector<1x128xf32>
    %390 = vector.extract_strided_slice %384 {offsets = [3, 0], sizes = [1, 128], strides = [1, 1]} : vector<8x128xf32> to vector<1x128xf32>
    %391 = arith.maximumf %389, %390 : vector<1x128xf32>
    %c26_123 = arith.constant 26 : index
    %c0_124 = arith.constant 0 : index
    %392 = vector.load %arg18[%c26_123, %c0_124] : memref<38x128xf32, #tpu.memory_space<vmem>>, vector<1x128xf32>
    tpu.vector_store %arg18[%c26_123, %c0_124], %391 {strides = array<i32>} : memref<38x128xf32, #tpu.memory_space<vmem>>, vector<1x128xf32>,
    %393 = vector.extract_strided_slice %384 {offsets = [4, 0], sizes = [1, 128], strides = [1, 1]} : vector<8x128xf32> to vector<1x128xf32>
    %394 = vector.extract_strided_slice %384 {offsets = [5, 0], sizes = [1, 128], strides = [1, 1]} : vector<8x128xf32> to vector<1x128xf32>
    %395 = arith.maximumf %393, %394 : vector<1x128xf32>
    %c27_125 = arith.constant 27 : index
    %c0_126 = arith.constant 0 : index
    %396 = vector.load %arg18[%c27_125, %c0_126] : memref<38x128xf32, #tpu.memory_space<vmem>>, vector<1x128xf32>
    tpu.vector_store %arg18[%c27_125, %c0_126], %395 {strides = array<i32>} : memref<38x128xf32, #tpu.memory_space<vmem>>, vector<1x128xf32>,
    %397 = vector.extract_strided_slice %384 {offsets = [6, 0], sizes = [1, 128], strides = [1, 1]} : vector<8x128xf32> to vector<1x128xf32>
    %398 = vector.extract_strided_slice %384 {offsets = [7, 0], sizes = [1, 128], strides = [1, 1]} : vector<8x128xf32> to vector<1x128xf32>
    %399 = arith.maximumf %397, %398 : vector<1x128xf32>
    %c28_127 = arith.constant 28 : index
    %c0_128 = arith.constant 0 : index
    %400 = vector.load %arg18[%c28_127, %c0_128] : memref<38x128xf32, #tpu.memory_space<vmem>>, vector<1x128xf32>
    tpu.vector_store %arg18[%c28_127, %c0_128], %399 {strides = array<i32>} : memref<38x128xf32, #tpu.memory_space<vmem>>, vector<1x128xf32>,
    %c0_129 = arith.constant 0 : index
    %c0_130 = arith.constant 0 : index
    %401 = vector.load %arg18[%c0_129, %c0_130] : memref<38x128xf32, #tpu.memory_space<vmem>>, vector<24x128xf32>
    %402 = arith.truncf %401 : vector<24x128xf32> to vector<24x128xbf16>
    %c1_131 = arith.constant 1 : index
    %c0_132 = arith.constant 0 : index
    %403 = vector.load %arg18[%c1_131, %c0_132] : memref<38x128xf32, #tpu.memory_space<vmem>>, vector<24x128xf32>
    %404 = arith.truncf %403 : vector<24x128xf32> to vector<24x128xbf16>
    %c2_133 = arith.constant 2 : index
    %c0_134 = arith.constant 0 : index
    %405 = vector.load %arg18[%c2_133, %c0_134] : memref<38x128xf32, #tpu.memory_space<vmem>>, vector<24x128xf32>
    %406 = arith.truncf %405 : vector<24x128xf32> to vector<24x128xbf16>
    %c6 = arith.constant 6 : index
    %c0_135 = arith.constant 0 : index
    %407 = vector.load %arg18[%c6, %c0_135] : memref<38x128xf32, #tpu.memory_space<vmem>>, vector<24x128xf32>
    %408 = arith.truncf %407 : vector<24x128xf32> to vector<24x128xbf16>
    %c7_136 = arith.constant 7 : index
    %c0_137 = arith.constant 0 : index
    %409 = vector.load %arg18[%c7_136, %c0_137] : memref<38x128xf32, #tpu.memory_space<vmem>>, vector<24x128xf32>
    %410 = arith.truncf %409 : vector<24x128xf32> to vector<24x128xbf16>
    %c8_138 = arith.constant 8 : index
    %c0_139 = arith.constant 0 : index
    %411 = vector.load %arg18[%c8_138, %c0_139] : memref<38x128xf32, #tpu.memory_space<vmem>>, vector<24x128xf32>
    %412 = arith.truncf %411 : vector<24x128xf32> to vector<24x128xbf16>
    %c12_140 = arith.constant 12 : index
    %c0_141 = arith.constant 0 : index
    %413 = vector.load %arg18[%c12_140, %c0_141] : memref<38x128xf32, #tpu.memory_space<vmem>>, vector<24x128xf32>
    %414 = arith.truncf %413 : vector<24x128xf32> to vector<24x128xbf16>
    %c13_142 = arith.constant 13 : index
    %c0_143 = arith.constant 0 : index
    %415 = vector.load %arg18[%c13_142, %c0_143] : memref<38x128xf32, #tpu.memory_space<vmem>>, vector<24x128xf32>
    %416 = arith.truncf %415 : vector<24x128xf32> to vector<24x128xbf16>
    %c14_144 = arith.constant 14 : index
    %c0_145 = arith.constant 0 : index
    %417 = vector.load %arg18[%c14_144, %c0_145] : memref<38x128xf32, #tpu.memory_space<vmem>>, vector<24x128xf32>
    %418 = arith.truncf %417 : vector<24x128xf32> to vector<24x128xbf16>
    %419 = tpu.concatenate %402, %404, %406, %408, %410, %412, %414, %416, %418 in 1 : vector<24x128xbf16>, vector<24x128xbf16>, vector<24x128xbf16>, vector<24x128xbf16>, vector<24x128xbf16>, vector<24x128xbf16>, vector<24x128xbf16>, vector<24x128xbf16>, vector<24x128xbf16> -> vector<24x1152xbf16>
    %c0_146 = arith.constant 0 : index
    %c0_147 = arith.constant 0 : index
    %420 = vector.load %arg8[%c0_146, %c0_147] : memref<1152x256xbf16, #tpu.memory_space<vmem>>, vector<1152x256xbf16>
    %cst_148 = arith.constant dense<0.000000e+00> : vector<24x256xf32>
    %421 = tpu.matmul %419, %420, %cst_148 {dimension_numbers = #tpu.dot_dimension_numbers<[1], [0], [0], [1], [0, 0, 1, 1], [], []>} : vector<24x1152xbf16>, vector<1152x256xbf16>, vector<24x256xf32> -> vector<24x256xf32>
    %c0_149 = arith.constant 0 : index
    %c0_150 = arith.constant 0 : index
    %422 = vector.load %arg9[%c0_149, %c0_150] : memref<1x256xf32, #tpu.memory_space<vmem>>, vector<1x256xf32>
    %423 = vector.broadcast %422 : vector<1x256xf32> to vector<24x256xf32>
    %424 = arith.mulf %421, %423 : vector<24x256xf32>
    %c0_151 = arith.constant 0 : index
    %c0_152 = arith.constant 0 : index
    %425 = vector.load %arg10[%c0_151, %c0_152] : memref<1x256xf32, #tpu.memory_space<vmem>>, vector<1x256xf32>
    %426 = vector.broadcast %425 : vector<1x256xf32> to vector<24x256xf32>
    %427 = arith.addf %424, %426 : vector<24x256xf32>
    %cst_153 = arith.constant 0.000000e+00 : f32
    %428 = vector.broadcast %cst_153 : f32 to vector<24x256xf32>
    %429 = arith.maximumf %427, %428 : vector<24x256xf32>
    %cst_154 = arith.constant 0.000000e+00 : f32
    %430 = vector.broadcast %cst_154 : f32 to vector<18x256xf32>
    %c0_155 = arith.constant 0 : index
    %c0_156 = arith.constant 0 : index
    %431 = vector.load %arg19[%c0_155, %c0_156] : memref<18x256xf32, #tpu.memory_space<vmem>>, vector<18x256xf32>
    tpu.vector_store %arg19[%c0_155, %c0_156], %430 {strides = array<i32>} : memref<18x256xf32, #tpu.memory_space<vmem>>, vector<18x256xf32>,
    %432 = vector.extract_strided_slice %429 {offsets = [0, 0], sizes = [4, 256], strides = [1, 1]} : vector<24x256xf32> to vector<4x256xf32>
    %433 = vector.extract_strided_slice %429 {offsets = [6, 0], sizes = [4, 256], strides = [1, 1]} : vector<24x256xf32> to vector<4x256xf32>
    %434 = arith.maximumf %432, %433 : vector<4x256xf32>
    %435 = vector.extract_strided_slice %434 {offsets = [0, 0], sizes = [1, 256], strides = [1, 1]} : vector<4x256xf32> to vector<1x256xf32>
    %436 = vector.extract_strided_slice %434 {offsets = [1, 0], sizes = [1, 256], strides = [1, 1]} : vector<4x256xf32> to vector<1x256xf32>
    %437 = arith.maximumf %435, %436 : vector<1x256xf32>
    %c5 = arith.constant 5 : index
    %c0_157 = arith.constant 0 : index
    %438 = vector.load %arg19[%c5, %c0_157] : memref<18x256xf32, #tpu.memory_space<vmem>>, vector<1x256xf32>
    tpu.vector_store %arg19[%c5, %c0_157], %437 {strides = array<i32>} : memref<18x256xf32, #tpu.memory_space<vmem>>, vector<1x256xf32>,
    %439 = vector.extract_strided_slice %434 {offsets = [2, 0], sizes = [1, 256], strides = [1, 1]} : vector<4x256xf32> to vector<1x256xf32>
    %440 = vector.extract_strided_slice %434 {offsets = [3, 0], sizes = [1, 256], strides = [1, 1]} : vector<4x256xf32> to vector<1x256xf32>
    %441 = arith.maximumf %439, %440 : vector<1x256xf32>
    %c6_158 = arith.constant 6 : index
    %c0_159 = arith.constant 0 : index
    %442 = vector.load %arg19[%c6_158, %c0_159] : memref<18x256xf32, #tpu.memory_space<vmem>>, vector<1x256xf32>
    tpu.vector_store %arg19[%c6_158, %c0_159], %441 {strides = array<i32>} : memref<18x256xf32, #tpu.memory_space<vmem>>, vector<1x256xf32>,
    %443 = vector.extract_strided_slice %429 {offsets = [12, 0], sizes = [4, 256], strides = [1, 1]} : vector<24x256xf32> to vector<4x256xf32>
    %444 = vector.extract_strided_slice %429 {offsets = [18, 0], sizes = [4, 256], strides = [1, 1]} : vector<24x256xf32> to vector<4x256xf32>
    %445 = arith.maximumf %443, %444 : vector<4x256xf32>
    %446 = vector.extract_strided_slice %445 {offsets = [0, 0], sizes = [1, 256], strides = [1, 1]} : vector<4x256xf32> to vector<1x256xf32>
    %447 = vector.extract_strided_slice %445 {offsets = [1, 0], sizes = [1, 256], strides = [1, 1]} : vector<4x256xf32> to vector<1x256xf32>
    %448 = arith.maximumf %446, %447 : vector<1x256xf32>
    %c9_160 = arith.constant 9 : index
    %c0_161 = arith.constant 0 : index
    %449 = vector.load %arg19[%c9_160, %c0_161] : memref<18x256xf32, #tpu.memory_space<vmem>>, vector<1x256xf32>
    tpu.vector_store %arg19[%c9_160, %c0_161], %448 {strides = array<i32>} : memref<18x256xf32, #tpu.memory_space<vmem>>, vector<1x256xf32>,
    %450 = vector.extract_strided_slice %445 {offsets = [2, 0], sizes = [1, 256], strides = [1, 1]} : vector<4x256xf32> to vector<1x256xf32>
    %451 = vector.extract_strided_slice %445 {offsets = [3, 0], sizes = [1, 256], strides = [1, 1]} : vector<4x256xf32> to vector<1x256xf32>
    %452 = arith.maximumf %450, %451 : vector<1x256xf32>
    %c10_162 = arith.constant 10 : index
    %c0_163 = arith.constant 0 : index
    %453 = vector.load %arg19[%c10_162, %c0_163] : memref<18x256xf32, #tpu.memory_space<vmem>>, vector<1x256xf32>
    tpu.vector_store %arg19[%c10_162, %c0_163], %452 {strides = array<i32>} : memref<18x256xf32, #tpu.memory_space<vmem>>, vector<1x256xf32>,
    %c0_164 = arith.constant 0 : index
    %c0_165 = arith.constant 0 : index
    %454 = vector.load %arg19[%c0_164, %c0_165] : memref<18x256xf32, #tpu.memory_space<vmem>>, vector<8x256xf32>
    %455 = arith.truncf %454 : vector<8x256xf32> to vector<8x256xbf16>
    %c1_166 = arith.constant 1 : index
    %c0_167 = arith.constant 0 : index
    %456 = vector.load %arg19[%c1_166, %c0_167] : memref<18x256xf32, #tpu.memory_space<vmem>>, vector<8x256xf32>
    %457 = arith.truncf %456 : vector<8x256xf32> to vector<8x256xbf16>
    %c2_168 = arith.constant 2 : index
    %c0_169 = arith.constant 0 : index
    %458 = vector.load %arg19[%c2_168, %c0_169] : memref<18x256xf32, #tpu.memory_space<vmem>>, vector<8x256xf32>
    %459 = arith.truncf %458 : vector<8x256xf32> to vector<8x256xbf16>
    %c4 = arith.constant 4 : index
    %c0_170 = arith.constant 0 : index
    %460 = vector.load %arg19[%c4, %c0_170] : memref<18x256xf32, #tpu.memory_space<vmem>>, vector<8x256xf32>
    %461 = arith.truncf %460 : vector<8x256xf32> to vector<8x256xbf16>
    %c5_171 = arith.constant 5 : index
    %c0_172 = arith.constant 0 : index
    %462 = vector.load %arg19[%c5_171, %c0_172] : memref<18x256xf32, #tpu.memory_space<vmem>>, vector<8x256xf32>
    %463 = arith.truncf %462 : vector<8x256xf32> to vector<8x256xbf16>
    %c6_173 = arith.constant 6 : index
    %c0_174 = arith.constant 0 : index
    %464 = vector.load %arg19[%c6_173, %c0_174] : memref<18x256xf32, #tpu.memory_space<vmem>>, vector<8x256xf32>
    %465 = arith.truncf %464 : vector<8x256xf32> to vector<8x256xbf16>
    %c8_175 = arith.constant 8 : index
    %c0_176 = arith.constant 0 : index
    %466 = vector.load %arg19[%c8_175, %c0_176] : memref<18x256xf32, #tpu.memory_space<vmem>>, vector<8x256xf32>
    %467 = arith.truncf %466 : vector<8x256xf32> to vector<8x256xbf16>
    %c9_177 = arith.constant 9 : index
    %c0_178 = arith.constant 0 : index
    %468 = vector.load %arg19[%c9_177, %c0_178] : memref<18x256xf32, #tpu.memory_space<vmem>>, vector<8x256xf32>
    %469 = arith.truncf %468 : vector<8x256xf32> to vector<8x256xbf16>
    %c10_179 = arith.constant 10 : index
    %c0_180 = arith.constant 0 : index
    %470 = vector.load %arg19[%c10_179, %c0_180] : memref<18x256xf32, #tpu.memory_space<vmem>>, vector<8x256xf32>
    %471 = arith.truncf %470 : vector<8x256xf32> to vector<8x256xbf16>
    %472 = tpu.concatenate %455, %457, %459, %461, %463, %465, %467, %469, %471 in 1 : vector<8x256xbf16>, vector<8x256xbf16>, vector<8x256xbf16>, vector<8x256xbf16>, vector<8x256xbf16>, vector<8x256xbf16>, vector<8x256xbf16>, vector<8x256xbf16>, vector<8x256xbf16> -> vector<8x2304xbf16>
    %c0_181 = arith.constant 0 : index
    %c0_182 = arith.constant 0 : index
    %473 = vector.load %arg11[%c0_181, %c0_182] : memref<2304x512xbf16, #tpu.memory_space<vmem>>, vector<2304x512xbf16>
    %cst_183 = arith.constant dense<0.000000e+00> : vector<8x512xf32>
    %474 = tpu.matmul %472, %473, %cst_183 {dimension_numbers = #tpu.dot_dimension_numbers<[1], [0], [0], [1], [0, 0, 1, 1], [], []>} : vector<8x2304xbf16>, vector<2304x512xbf16>, vector<8x512xf32> -> vector<8x512xf32>
    %c0_184 = arith.constant 0 : index
    %c0_185 = arith.constant 0 : index
    %475 = vector.load %arg12[%c0_184, %c0_185] : memref<1x512xf32, #tpu.memory_space<vmem>>, vector<1x512xf32>
    %476 = vector.broadcast %475 : vector<1x512xf32> to vector<8x512xf32>
    %477 = arith.mulf %474, %476 : vector<8x512xf32>
    %c0_186 = arith.constant 0 : index
    %c0_187 = arith.constant 0 : index
    %478 = vector.load %arg13[%c0_186, %c0_187] : memref<1x512xf32, #tpu.memory_space<vmem>>, vector<1x512xf32>
    %479 = vector.broadcast %478 : vector<1x512xf32> to vector<8x512xf32>
    %480 = arith.addf %477, %479 : vector<8x512xf32>
    %cst_188 = arith.constant 0.000000e+00 : f32
    %481 = vector.broadcast %cst_188 : f32 to vector<8x512xf32>
    %482 = arith.maximumf %480, %481 : vector<8x512xf32>
    %483 = vector.extract_strided_slice %482 {offsets = [0, 0], sizes = [2, 512], strides = [1, 1]} : vector<8x512xf32> to vector<2x512xf32>
    %484 = vector.extract_strided_slice %482 {offsets = [4, 0], sizes = [2, 512], strides = [1, 1]} : vector<8x512xf32> to vector<2x512xf32>
    %485 = arith.maximumf %483, %484 : vector<2x512xf32>
    %486 = vector.extract_strided_slice %485 {offsets = [0, 0], sizes = [1, 512], strides = [1, 1]} : vector<2x512xf32> to vector<1x512xf32>
    %487 = vector.extract_strided_slice %485 {offsets = [1, 0], sizes = [1, 512], strides = [1, 1]} : vector<2x512xf32> to vector<1x512xf32>
    %488 = arith.maximumf %486, %487 : vector<1x512xf32>
    %cst_189 = arith.constant 1.000000e+00 : f32
    %489 = vector.broadcast %cst_189 : f32 to vector<1x512xf32>
    %490 = arith.mulf %488, %489 : vector<1x512xf32>
    %c0_190 = arith.constant 0 : index
    %c0_191 = arith.constant 0 : index
    %491 = vector.load %arg14[%c0_190, %c0_191] : memref<512x10xf32, #tpu.memory_space<vmem>>, vector<512x10xf32>
    %cst_192 = arith.constant dense<0.000000e+00> : vector<1x10xf32>
    %492 = tpu.matmul %490, %491, %cst_192 {dimension_numbers = #tpu.dot_dimension_numbers<[1], [0], [0], [1], [0, 0, 1, 1], [], []>} : vector<1x512xf32>, vector<512x10xf32>, vector<1x10xf32> -> vector<1x10xf32>
    %c0_193 = arith.constant 0 : index
    %c0_194 = arith.constant 0 : index
    %493 = vector.load %arg15[%c0_193, %c0_194] : memref<1x10xf32, #tpu.memory_space<vmem>>, vector<1x10xf32>
    %494 = arith.addf %492, %493 : vector<1x10xf32>
    %c0_195 = arith.constant 0 : index
    %c0_196 = arith.constant 0 : index
    %c0_197 = arith.constant 0 : index
    %495 = vector.load %arg16[%c0_195, %c0_196, %c0_197] : memref<1x1x10xf32, #tpu.memory_space<vmem>>, vector<1x1x10xf32>
    %496 = vector.shape_cast %495 : vector<1x1x10xf32> to vector<1x10xf32>
    %497 = vector.shape_cast %494 : vector<1x10xf32> to vector<1x1x10xf32>
    tpu.vector_store %arg16[%c0_195, %c0_196, %c0_197], %497 {strides = array<i32>} : memref<1x1x10xf32, #tpu.memory_space<vmem>>, vector<1x1x10xf32>,
    return
  }
  func.func @transform_0(%arg0: i32) -> (i32, i32, i32) {
    %c0_i32 = arith.constant 0 : i32
    %c0_i32_0 = arith.constant 0 : i32
    %c0_i32_1 = arith.constant 0 : i32
    return %arg0, %c0_i32, %c0_i32_0 : i32, i32, i32
  }
  func.func @transform_1(%arg0: i32) -> (i32, i32) {
    %c0_i32 = arith.constant 0 : i32
    %c0_i32_0 = arith.constant 0 : i32
    %c0_i32_1 = arith.constant 0 : i32
    return %c0_i32, %c0_i32_0 : i32, i32
  }
  func.func @transform_2(%arg0: i32) -> (i32, i32) {
    %c0_i32 = arith.constant 0 : i32
    %c0_i32_0 = arith.constant 0 : i32
    %c0_i32_1 = arith.constant 0 : i32
    return %c0_i32, %c0_i32_0 : i32, i32
  }
  func.func @transform_3(%arg0: i32) -> (i32, i32) {
    %c0_i32 = arith.constant 0 : i32
    %c0_i32_0 = arith.constant 0 : i32
    %c0_i32_1 = arith.constant 0 : i32
    return %c0_i32, %c0_i32_0 : i32, i32
  }
  func.func @transform_4(%arg0: i32) -> (i32, i32) {
    %c0_i32 = arith.constant 0 : i32
    %c0_i32_0 = arith.constant 0 : i32
    %c0_i32_1 = arith.constant 0 : i32
    return %c0_i32, %c0_i32_0 : i32, i32
  }
  func.func @transform_5(%arg0: i32) -> (i32, i32) {
    %c0_i32 = arith.constant 0 : i32
    %c0_i32_0 = arith.constant 0 : i32
    %c0_i32_1 = arith.constant 0 : i32
    return %c0_i32, %c0_i32_0 : i32, i32
  }
  func.func @transform_6(%arg0: i32) -> (i32, i32) {
    %c0_i32 = arith.constant 0 : i32
    %c0_i32_0 = arith.constant 0 : i32
    %c0_i32_1 = arith.constant 0 : i32
    return %c0_i32, %c0_i32_0 : i32, i32
  }
  func.func @transform_7(%arg0: i32) -> (i32, i32) {
    %c0_i32 = arith.constant 0 : i32
    %c0_i32_0 = arith.constant 0 : i32
    %c0_i32_1 = arith.constant 0 : i32
    return %c0_i32, %c0_i32_0 : i32, i32
  }
  func.func @transform_8(%arg0: i32) -> (i32, i32) {
    %c0_i32 = arith.constant 0 : i32
    %c0_i32_0 = arith.constant 0 : i32
    %c0_i32_1 = arith.constant 0 : i32
    return %c0_i32, %c0_i32_0 : i32, i32
  }
  func.func @transform_9(%arg0: i32) -> (i32, i32) {
    %c0_i32 = arith.constant 0 : i32
    %c0_i32_0 = arith.constant 0 : i32
    %c0_i32_1 = arith.constant 0 : i32
    return %c0_i32, %c0_i32_0 : i32, i32
  }
  func.func @transform_10(%arg0: i32) -> (i32, i32) {
    %c0_i32 = arith.constant 0 : i32
    %c0_i32_0 = arith.constant 0 : i32
    %c0_i32_1 = arith.constant 0 : i32
    return %c0_i32, %c0_i32_0 : i32, i32
  }
  func.func @transform_11(%arg0: i32) -> (i32, i32) {
    %c0_i32 = arith.constant 0 : i32
    %c0_i32_0 = arith.constant 0 : i32
    %c0_i32_1 = arith.constant 0 : i32
    return %c0_i32, %c0_i32_0 : i32, i32
  }
  func.func @transform_12(%arg0: i32) -> (i32, i32) {
    %c0_i32 = arith.constant 0 : i32
    %c0_i32_0 = arith.constant 0 : i32
    %c0_i32_1 = arith.constant 0 : i32
    return %c0_i32, %c0_i32_0 : i32, i32
  }
  func.func @transform_13(%arg0: i32) -> (i32, i32) {
    %c0_i32 = arith.constant 0 : i32
    %c0_i32_0 = arith.constant 0 : i32
    %c0_i32_1 = arith.constant 0 : i32
    return %c0_i32, %c0_i32_0 : i32, i32
  }
  func.func @transform_14(%arg0: i32) -> (i32, i32) {
    %c0_i32 = arith.constant 0 : i32
    %c0_i32_0 = arith.constant 0 : i32
    %c0_i32_1 = arith.constant 0 : i32
    return %c0_i32, %c0_i32_0 : i32, i32
  }
  func.func @transform_15(%arg0: i32) -> (i32, i32, i32) {
    %c0_i32 = arith.constant 0 : i32
    %c0_i32_0 = arith.constant 0 : i32
    %c0_i32_1 = arith.constant 0 : i32
    return %arg0, %c0_i32, %c0_i32_0 : i32, i32, i32
  }
}

</mosaic_0001>

<llo_original>
// kernel: cnn_forward.1
$region0: #{cnn_forward.1}
  #allocation0 [shape = 'u32[]', space=smem, size = 0x4, offset = 0x4, fixed_abs, tag = 'smem constant byte address 0x4 - core index']
  #allocation1 [shape = 'u32[144,128]{1,0:T(1,128)}', space=vmem, size = 0x12000, scoped, tag = 'internal scratch']
  #allocation2 [shape = 'f32[102,128]{1,0:T(8,128)}', space=vmem, size = 0xd000, scoped, tag = 'scratch operand']
  #allocation3 [shape = 'f32[38,128]{1,0:T(8,128)}', space=vmem, size = 0x5000, scoped, tag = 'scratch operand']
  #allocation4 [shape = 'f32[18,256]{1,0:T(8,128)}', space=vmem, size = 0x6000, scoped, tag = 'scratch operand']
  %s0 = inlined_call_operand.vmem [shape: bf16[2,256,128], index: 0, kind: input, shape index: {}]
  %s1 = inlined_call_operand.vmem [shape: bf16[128,128], index: 1, kind: input, shape index: {}]
  %s2 = inlined_call_operand.vmem [shape: f32[1,128], index: 2, kind: input, shape index: {}]
  %s3 = inlined_call_operand.vmem [shape: f32[1,128], index: 3, kind: input, shape index: {}]
  %s4 = inlined_call_operand.vmem [shape: bf16[1152,128], index: 4, kind: input, shape index: {}]
  %s5 = inlined_call_operand.vmem [shape: f32[1,128], index: 5, kind: input, shape index: {}]
  %s6 = inlined_call_operand.vmem [shape: f32[1,128], index: 6, kind: input, shape index: {}]
  %s7 = inlined_call_operand.vmem [shape: bf16[1152,256], index: 7, kind: input, shape index: {}]
  %s8 = inlined_call_operand.vmem [shape: f32[1,256], index: 8, kind: input, shape index: {}]
  %s9 = inlined_call_operand.vmem [shape: f32[1,256], index: 9, kind: input, shape index: {}]
  %s10 = inlined_call_operand.vmem [shape: bf16[2304,512], index: 10, kind: input, shape index: {}]
  %s11 = inlined_call_operand.vmem [shape: f32[1,512], index: 11, kind: input, shape index: {}]
  %s12 = inlined_call_operand.vmem [shape: f32[1,512], index: 12, kind: input, shape index: {}]
  %s13 = inlined_call_operand.vmem [shape: f32[512,10], index: 13, kind: input, shape index: {}]
  %s14 = inlined_call_operand.vmem [shape: f32[1,10], index: 14, kind: input, shape index: {}]
  %s15 = inlined_call_operand.hbm [shape: f32[2,1,10], index: 15, kind: output, shape index: {}]
  %s16 = sld [smem:[#allocation0]]
  $region93: #{cnn_forward.1} parent=0
    _
  %s18 = ssub.s32 1, %s16
  %s19 = scalar_select 0, %s18, %s16
  $region1: #{cnn_forward.1} parent=0
    #allocation5 [shape = 'u8[1024]{0}', space=vmem, size = 0x400, scoped, tag = 'output window, operand 0']
    #allocation6 [shape = 's32[2]{0}', space=sflag, size = 0x8, scoped, tag = 'scoped memory for cnn_forward.1']
    %20 = vsyncpa [#allocation6], 0
    %s21 = scalar_lea.sflag [#allocation6], 1
    %22 = vsyncpa %s21, 0
    loop: start=0, step=1, limit=4
    $region2: #{cnn_forward.1} parent=1 // loop_pre_header
      _
    $region3: #{cnn_forward.1} parent=1 // loop_header
      %s24 = sphi 0, %s28
      %p25 = scmp.ge.s32.totalorder %s24, 4
      %s34 = sphi 0, %s36
      %s37 = sphi 0, %s34
      %s38 = sphi 0, %s37
      %s54 = sphi 0, %s38
      %s58 = sphi 0, %s58
      %s60 = sphi 0, %s58
      %s61 = sphi 0, %s60
      %s75 = sphi 0, %s61
      %s79 = sphi 0, %s79
      %s81 = sphi 0, %s79
      %s82 = sphi 0, %s81
      %s96 = sphi 0, %s82
      %s100 = sphi 0, %s100
      %s102 = sphi 0, %s100
      %s103 = sphi 0, %s102
      %s117 = sphi 0, %s103
      %s121 = sphi 0, %s121
      %s123 = sphi 0, %s121
      %s124 = sphi 0, %s123
      %s138 = sphi 0, %s124
      %s142 = sphi 0, %s142
      %s144 = sphi 0, %s142
      %s145 = sphi 0, %s144
      %s159 = sphi 0, %s145
      %s163 = sphi 0, %s163
      %s165 = sphi 0, %s163
      %s166 = sphi 0, %s165
      %s180 = sphi 0, %s166
      %s184 = sphi 0, %s184
      %s186 = sphi 0, %s184
      %s187 = sphi 0, %s186
      %s201 = sphi 0, %s187
      %s205 = sphi 0, %s205
      %s207 = sphi 0, %s205
      %s208 = sphi 0, %s207
      %s222 = sphi 0, %s208
      %s226 = sphi 0, %s226
      %s228 = sphi 0, %s226
      %s229 = sphi 0, %s228
      %s243 = sphi 0, %s229
      %s247 = sphi 0, %s247
      %s249 = sphi 0, %s247
      %s250 = sphi 0, %s249
      %s264 = sphi 0, %s250
      %s268 = sphi 0, %s268
      %s270 = sphi 0, %s268
      %s271 = sphi 0, %s270
      %s285 = sphi 0, %s271
      %s289 = sphi 0, %s289
      %s291 = sphi 0, %s289
      %s292 = sphi 0, %s291
      %s306 = sphi 0, %s292
      %s310 = sphi 0, %s310
      %s312 = sphi 0, %s310
      %s313 = sphi 0, %s312
      %s327 = sphi 0, %s313
      %s331 = sphi 0, %s331
      %s333 = sphi 0, %s331
      %s334 = sphi 0, %s333
      %s348 = sphi 0, %s334
      %s354 = sphi 0, %s356
      %s357 = sphi 0, %s354
      %s358 = sphi 0, %s357
      %s374 = sphi 0, %s358
    $region4: #{cnn_forward.1} parent=1 // loop_header_branch
      %27 = sbr.rel (%p25) target = $region8
    $region5: #{cnn_forward.1} parent=1 // loop_body
      %s29 = ssub.s32 %s24, 1
      %s30 = ssub.s32 %s24, 2
      %s31 = sadd.s32 %s24, 1
      %s32 = ssub.s32 %s24, %s31
      %p33 = scmp.eq.s32.totalorder %s32, 0
      %s35 = sadd.s32 %s34, 1
      %s36 = scalar_select %p33, %s34, %s35
      %p39 = pneg %p33
      %p40 = scmp.eq.s32.totalorder %s24, 1
      %p41 = por %p39, %p40
      %p42 = scmp.ne.s32.totalorder %s34, %s37
      %p43 = scmp.eq.s32.totalorder %s24, 0
      %p44 = por %p42, %p43
      %p45 = scmp.ne.s32.totalorder %s34, %s37
      %p46 = scmp.eq.s32.totalorder %s29, 1
      %p47 = por %p45, %p46
      %p48 = scmp.ne.s32.totalorder %s37, %s38
      %p49 = scmp.eq.s32.totalorder %s29, 0
      %p50 = por %p48, %p49
      %p51 = scmp.ne.s32.totalorder %s37, %s38
      %p52 = scmp.eq.s32.totalorder %s30, 1
      %p53 = por %p51, %p52
      %p55 = scmp.ne.s32.totalorder %s38, %s54
      %p56 = scmp.eq.s32.totalorder %s30, 0
      %p57 = por %p55, %p56
      %s59 = sadd.s32 %s58, 1
      %p62 = scmp.eq.s32.totalorder %s24, 1
      %p63 = scmp.ne.s32.totalorder %s58, %s60
      %p64 = scmp.eq.s32.totalorder %s24, 0
      %p65 = por %p63, %p64
      %p66 = scmp.ne.s32.totalorder %s58, %s60
      %p67 = scmp.eq.s32.totalorder %s29, 1
      %p68 = por %p66, %p67
      %p69 = scmp.ne.s32.totalorder %s60, %s61
      %p70 = scmp.eq.s32.totalorder %s29, 0
      %p71 = por %p69, %p70
      %p72 = scmp.ne.s32.totalorder %s60, %s61
      %p73 = scmp.eq.s32.totalorder %s30, 1
      %p74 = por %p72, %p73
      %p76 = scmp.ne.s32.totalorder %s61, %s75
      %p77 = scmp.eq.s32.totalorder %s30, 0
      %p78 = por %p76, %p77
      %s80 = sadd.s32 %s79, 1
      %p83 = scmp.eq.s32.totalorder %s24, 1
      %p84 = scmp.ne.s32.totalorder %s79, %s81
      %p85 = scmp.eq.s32.totalorder %s24, 0
      %p86 = por %p84, %p85
      %p87 = scmp.ne.s32.totalorder %s79, %s81
      %p88 = scmp.eq.s32.totalorder %s29, 1
      %p89 = por %p87, %p88
      %p90 = scmp.ne.s32.totalorder %s81, %s82
      %p91 = scmp.eq.s32.totalorder %s29, 0
      %p92 = por %p90, %p91
      %p93 = scmp.ne.s32.totalorder %s81, %s82
      %p94 = scmp.eq.s32.totalorder %s30, 1
      %p95 = por %p93, %p94
      %p97 = scmp.ne.s32.totalorder %s82, %s96
      %p98 = scmp.eq.s32.totalorder %s30, 0
      %p99 = por %p97, %p98
      %s101 = sadd.s32 %s100, 1
      %p104 = scmp.eq.s32.totalorder %s24, 1
      %p105 = scmp.ne.s32.totalorder %s100, %s102
      %p106 = scmp.eq.s32.totalorder %s24, 0
      %p107 = por %p105, %p106
      %p108 = scmp.ne.s32.totalorder %s100, %s102
      %p109 = scmp.eq.s32.totalorder %s29, 1
      %p110 = por %p108, %p109
      %p111 = scmp.ne.s32.totalorder %s102, %s103
      %p112 = scmp.eq.s32.totalorder %s29, 0
      %p113 = por %p111, %p112
      %p114 = scmp.ne.s32.totalorder %s102, %s103
      %p115 = scmp.eq.s32.totalorder %s30, 1
      %p116 = por %p114, %p115
      %p118 = scmp.ne.s32.totalorder %s103, %s117
      %p119 = scmp.eq.s32.totalorder %s30, 0
      %p120 = por %p118, %p119
      %s122 = sadd.s32 %s121, 1
      %p125 = scmp.eq.s32.totalorder %s24, 1
      %p126 = scmp.ne.s32.totalorder %s121, %s123
      %p127 = scmp.eq.s32.totalorder %s24, 0
      %p128 = por %p126, %p127
      %p129 = scmp.ne.s32.totalorder %s121, %s123
      %p130 = scmp.eq.s32.totalorder %s29, 1
      %p131 = por %p129, %p130
      %p132 = scmp.ne.s32.totalorder %s123, %s124
      %p133 = scmp.eq.s32.totalorder %s29, 0
      %p134 = por %p132, %p133
      %p135 = scmp.ne.s32.totalorder %s123, %s124
      %p136 = scmp.eq.s32.totalorder %s30, 1
      %p137 = por %p135, %p136
      %p139 = scmp.ne.s32.totalorder %s124, %s138
      %p140 = scmp.eq.s32.totalorder %s30, 0
      %p141 = por %p139, %p140
      %s143 = sadd.s32 %s142, 1
      %p146 = scmp.eq.s32.totalorder %s24, 1
      %p147 = scmp.ne.s32.totalorder %s142, %s144
      %p148 = scmp.eq.s32.totalorder %s24, 0
      %p149 = por %p147, %p148
      %p150 = scmp.ne.s32.totalorder %s142, %s144
      %p151 = scmp.eq.s32.totalorder %s29, 1
      %p152 = por %p150, %p151
      %p153 = scmp.ne.s32.totalorder %s144, %s145
      %p154 = scmp.eq.s32.totalorder %s29, 0
      %p155 = por %p153, %p154
      %p156 = scmp.ne.s32.totalorder %s144, %s145
      %p157 = scmp.eq.s32.totalorder %s30, 1
      %p158 = por %p156, %p157
      %p160 = scmp.ne.s32.totalorder %s145, %s159
      %p161 = scmp.eq.s32.totalorder %s30, 0
      %p162 = por %p160, %p161
      %s164 = sadd.s32 %s163, 1
      %p167 = scmp.eq.s32.totalorder %s24, 1
      %p168 = scmp.ne.s32.totalorder %s163, %s165
      %p169 = scmp.eq.s32.totalorder %s24, 0
      %p170 = por %p168, %p169
      %p171 = scmp.ne.s32.totalorder %s163, %s165
      %p172 = scmp.eq.s32.totalorder %s29, 1
      %p173 = por %p171, %p172
      %p174 = scmp.ne.s32.totalorder %s165, %s166
      %p175 = scmp.eq.s32.totalorder %s29, 0
      %p176 = por %p174, %p175
      %p177 = scmp.ne.s32.totalorder %s165, %s166
      %p178 = scmp.eq.s32.totalorder %s30, 1
      %p179 = por %p177, %p178
      %p181 = scmp.ne.s32.totalorder %s166, %s180
      %p182 = scmp.eq.s32.totalorder %s30, 0
      %p183 = por %p181, %p182
      %s185 = sadd.s32 %s184, 1
      %p188 = scmp.eq.s32.totalorder %s24, 1
      %p189 = scmp.ne.s32.totalorder %s184, %s186
      %p190 = scmp.eq.s32.totalorder %s24, 0
      %p191 = por %p189, %p190
      %p192 = scmp.ne.s32.totalorder %s184, %s186
      %p193 = scmp.eq.s32.totalorder %s29, 1
      %p194 = por %p192, %p193
      %p195 = scmp.ne.s32.totalorder %s186, %s187
      %p196 = scmp.eq.s32.totalorder %s29, 0
      %p197 = por %p195, %p196
      %p198 = scmp.ne.s32.totalorder %s186, %s187
      %p199 = scmp.eq.s32.totalorder %s30, 1
      %p200 = por %p198, %p199
      %p202 = scmp.ne.s32.totalorder %s187, %s201
      %p203 = scmp.eq.s32.totalorder %s30, 0
      %p204 = por %p202, %p203
      %s206 = sadd.s32 %s205, 1
      %p209 = scmp.eq.s32.totalorder %s24, 1
      %p210 = scmp.ne.s32.totalorder %s205, %s207
      %p211 = scmp.eq.s32.totalorder %s24, 0
      %p212 = por %p210, %p211
      %p213 = scmp.ne.s32.totalorder %s205, %s207
      %p214 = scmp.eq.s32.totalorder %s29, 1
      %p215 = por %p213, %p214
      %p216 = scmp.ne.s32.totalorder %s207, %s208
      %p217 = scmp.eq.s32.totalorder %s29, 0
      %p218 = por %p216, %p217
      %p219 = scmp.ne.s32.totalorder %s207, %s208
      %p220 = scmp.eq.s32.totalorder %s30, 1
      %p221 = por %p219, %p220
      %p223 = scmp.ne.s32.totalorder %s208, %s222
      %p224 = scmp.eq.s32.totalorder %s30, 0
      %p225 = por %p223, %p224
      %s227 = sadd.s32 %s226, 1
      %p230 = scmp.eq.s32.totalorder %s24, 1
      %p231 = scmp.ne.s32.totalorder %s226, %s228
      %p232 = scmp.eq.s32.totalorder %s24, 0
      %p233 = por %p231, %p232
      %p234 = scmp.ne.s32.totalorder %s226, %s228
      %p235 = scmp.eq.s32.totalorder %s29, 1
      %p236 = por %p234, %p235
      %p237 = scmp.ne.s32.totalorder %s228, %s229
      %p238 = scmp.eq.s32.totalorder %s29, 0
      %p239 = por %p237, %p238
      %p240 = scmp.ne.s32.totalorder %s228, %s229
      %p241 = scmp.eq.s32.totalorder %s30, 1
      %p242 = por %p240, %p241
      %p244 = scmp.ne.s32.totalorder %s229, %s243
      %p245 = scmp.eq.s32.totalorder %s30, 0
      %p246 = por %p244, %p245
      %s248 = sadd.s32 %s247, 1
      %p251 = scmp.eq.s32.totalorder %s24, 1
      %p252 = scmp.ne.s32.totalorder %s247, %s249
      %p253 = scmp.eq.s32.totalorder %s24, 0
      %p254 = por %p252, %p253
      %p255 = scmp.ne.s32.totalorder %s247, %s249
      %p256 = scmp.eq.s32.totalorder %s29, 1
      %p257 = por %p255, %p256
      %p258 = scmp.ne.s32.totalorder %s249, %s250
      %p259 = scmp.eq.s32.totalorder %s29, 0
      %p260 = por %p258, %p259
      %p261 = scmp.ne.s32.totalorder %s249, %s250
      %p262 = scmp.eq.s32.totalorder %s30, 1
      %p263 = por %p261, %p262
      %p265 = scmp.ne.s32.totalorder %s250, %s264
      %p266 = scmp.eq.s32.totalorder %s30, 0
      %p267 = por %p265, %p266
      %s269 = sadd.s32 %s268, 1
      %p272 = scmp.eq.s32.totalorder %s24, 1
      %p273 = scmp.ne.s32.totalorder %s268, %s270
      %p274 = scmp.eq.s32.totalorder %s24, 0
      %p275 = por %p273, %p274
      %p276 = scmp.ne.s32.totalorder %s268, %s270
      %p277 = scmp.eq.s32.totalorder %s29, 1
      %p278 = por %p276, %p277
      %p279 = scmp.ne.s32.totalorder %s270, %s271
      %p280 = scmp.eq.s32.totalorder %s29, 0
      %p281 = por %p279, %p280
      %p282 = scmp.ne.s32.totalorder %s270, %s271
      %p283 = scmp.eq.s32.totalorder %s30, 1
      %p284 = por %p282, %p283
      %p286 = scmp.ne.s32.totalorder %s271, %s285
      %p287 = scmp.eq.s32.totalorder %s30, 0
      %p288 = por %p286, %p287
      %s290 = sadd.s32 %s289, 1
      %p293 = scmp.eq.s32.totalorder %s24, 1
      %p294 = scmp.ne.s32.totalorder %s289, %s291
      %p295 = scmp.eq.s32.totalorder %s24, 0
      %p296 = por %p294, %p295
      %p297 = scmp.ne.s32.totalorder %s289, %s291
      %p298 = scmp.eq.s32.totalorder %s29, 1
      %p299 = por %p297, %p298
      %p300 = scmp.ne.s32.totalorder %s291, %s292
      %p301 = scmp.eq.s32.totalorder %s29, 0
      %p302 = por %p300, %p301
      %p303 = scmp.ne.s32.totalorder %s291, %s292
      %p304 = scmp.eq.s32.totalorder %s30, 1
      %p305 = por %p303, %p304
      %p307 = scmp.ne.s32.totalorder %s292, %s306
      %p308 = scmp.eq.s32.totalorder %s30, 0
      %p309 = por %p307, %p308
      %s311 = sadd.s32 %s310, 1
      %p314 = scmp.eq.s32.totalorder %s24, 1
      %p315 = scmp.ne.s32.totalorder %s310, %s312
      %p316 = scmp.eq.s32.totalorder %s24, 0
      %p317 = por %p315, %p316
      %p318 = scmp.ne.s32.totalorder %s310, %s312
      %p319 = scmp.eq.s32.totalorder %s29, 1
      %p320 = por %p318, %p319
      %p321 = scmp.ne.s32.totalorder %s312, %s313
      %p322 = scmp.eq.s32.totalorder %s29, 0
      %p323 = por %p321, %p322
      %p324 = scmp.ne.s32.totalorder %s312, %s313
      %p325 = scmp.eq.s32.totalorder %s30, 1
      %p326 = por %p324, %p325
      %p328 = scmp.ne.s32.totalorder %s313, %s327
      %p329 = scmp.eq.s32.totalorder %s30, 0
      %p330 = por %p328, %p329
      %s332 = sadd.s32 %s331, 1
      %p335 = scmp.eq.s32.totalorder %s24, 1
      %p336 = scmp.ne.s32.totalorder %s331, %s333
      %p337 = scmp.eq.s32.totalorder %s24, 0
      %p338 = por %p336, %p337
      %p339 = scmp.ne.s32.totalorder %s331, %s333
      %p340 = scmp.eq.s32.totalorder %s29, 1
      %p341 = por %p339, %p340
      %p342 = scmp.ne.s32.totalorder %s333, %s334
      %p343 = scmp.eq.s32.totalorder %s29, 0
      %p344 = por %p342, %p343
      %p345 = scmp.ne.s32.totalorder %s333, %s334
      %p346 = scmp.eq.s32.totalorder %s30, 1
      %p347 = por %p345, %p346
      %p349 = scmp.ne.s32.totalorder %s334, %s348
      %p350 = scmp.eq.s32.totalorder %s30, 0
      %p351 = por %p349, %p350
      %s352 = ssub.s32 %s24, %s31
      %p353 = scmp.eq.s32.totalorder %s352, 0
      %s355 = sadd.s32 %s354, 1
      %s356 = scalar_select %p353, %s354, %s355
      %p359 = pneg %p353
      %p360 = scmp.eq.s32.totalorder %s24, 1
      %p361 = por %p359, %p360
      %p362 = scmp.ne.s32.totalorder %s354, %s357
      %p363 = scmp.eq.s32.totalorder %s24, 0
      %p364 = por %p362, %p363
      %p365 = scmp.ne.s32.totalorder %s354, %s357
      %p366 = scmp.eq.s32.totalorder %s29, 1
      %p367 = por %p365, %p366
      %p368 = scmp.ne.s32.totalorder %s357, %s358
      %p369 = scmp.eq.s32.totalorder %s29, 0
      %p370 = por %p368, %p369
      %p371 = scmp.ne.s32.totalorder %s357, %s358
      %p372 = scmp.eq.s32.totalorder %s30, 1
      %p373 = por %p371, %p372
      %p375 = scmp.ne.s32.totalorder %s358, %s374
      %p376 = scmp.eq.s32.totalorder %s30, 0
      %p377 = por %p375, %p376
      %p378 = scmp.le.s32.totalorder 1, %s24
      %p379 = scmp.lt.s32.totalorder %s24, 3
      %p380 = pnand %p378, %p379
      %p381 = pneg %p380
      // Predicated region
      $region9: #{cnn_forward.1} parent=5 // pred_check
        _
      $region10: #{cnn_forward.1} parent=5 // pred_check_branch
        %383 = sbr.rel (%p380) target = $region12
      $region11: #{cnn_forward.1} parent=5 // pred_region
        %s384 = ssub.s32 %s24, 1
        // Predicated region
        $region13: #{cnn_forward.1} parent=11 // pred_check
          %p385 = pneg %p71
        $region14: #{cnn_forward.1} parent=11 // pred_check_branch
          %387 = sbr.rel (%p385) target = $region16
        $region15: #{cnn_forward.1} parent=11 // pred_region
          _
        $region16: #{cnn_forward.1} parent=11 // pred_fallthru
          _
        // Predicated region
        $region17: #{cnn_forward.1} parent=11 // pred_check
          %p388 = pneg %p92
        $region18: #{cnn_forward.1} parent=11 // pred_check_branch
          %390 = sbr.rel (%p388) target = $region20
        $region19: #{cnn_forward.1} parent=11 // pred_region
          _
        $region20: #{cnn_forward.1} parent=11 // pred_fallthru
          _
        // Predicated region
        $region21: #{cnn_forward.1} parent=11 // pred_check
          %p391 = pneg %p113
        $region22: #{cnn_forward.1} parent=11 // pred_check_branch
          %393 = sbr.rel (%p391) target = $region24
        $region23: #{cnn_forward.1} parent=11 // pred_region
          _
        $region24: #{cnn_forward.1} parent=11 // pred_fallthru
          _
        // Predicated region
        $region25: #{cnn_forward.1} parent=11 // pred_check
          %p394 = pneg %p134
        $region26: #{cnn_forward.1} parent=11 // pred_check_branch
          %396 = sbr.rel (%p394) target = $region28
        $region27: #{cnn_forward.1} parent=11 // pred_region
          _
        $region28: #{cnn_forward.1} parent=11 // pred_fallthru
          _
        // Predicated region
        $region29: #{cnn_forward.1} parent=11 // pred_check
          %p397 = pneg %p155
        $region30: #{cnn_forward.1} parent=11 // pred_check_branch
          %399 = sbr.rel (%p397) target = $region32
        $region31: #{cnn_forward.1} parent=11 // pred_region
          _
        $region32: #{cnn_forward.1} parent=11 // pred_fallthru
          _
        // Predicated region
        $region33: #{cnn_forward.1} parent=11 // pred_check
          %p400 = pneg %p176
        $region34: #{cnn_forward.1} parent=11 // pred_check_branch
          %402 = sbr.rel (%p400) target = $region36
        $region35: #{cnn_forward.1} parent=11 // pred_region
          _
        $region36: #{cnn_forward.1} parent=11 // pred_fallthru
          _
        // Predicated region
        $region37: #{cnn_forward.1} parent=11 // pred_check
          %p403 = pneg %p197
        $region38: #{cnn_forward.1} parent=11 // pred_check_branch
          %405 = sbr.rel (%p403) target = $region40
        $region39: #{cnn_forward.1} parent=11 // pred_region
          _
        $region40: #{cnn_forward.1} parent=11 // pred_fallthru
          _
        // Predicated region
        $region41: #{cnn_forward.1} parent=11 // pred_check
          %p406 = pneg %p218
        $region42: #{cnn_forward.1} parent=11 // pred_check_branch
          %408 = sbr.rel (%p406) target = $region44
        $region43: #{cnn_forward.1} parent=11 // pred_region
          _
        $region44: #{cnn_forward.1} parent=11 // pred_fallthru
          _
        // Predicated region
        $region45: #{cnn_forward.1} parent=11 // pred_check
          %p409 = pneg %p239
        $region46: #{cnn_forward.1} parent=11 // pred_check_branch
          %411 = sbr.rel (%p409) target = $region48
        $region47: #{cnn_forward.1} parent=11 // pred_region
          _
        $region48: #{cnn_forward.1} parent=11 // pred_fallthru
          _
        // Predicated region
        $region49: #{cnn_forward.1} parent=11 // pred_check
          %p412 = pneg %p260
        $region50: #{cnn_forward.1} parent=11 // pred_check_branch
          %414 = sbr.rel (%p412) target = $region52
        $region51: #{cnn_forward.1} parent=11 // pred_region
          _
        $region52: #{cnn_forward.1} parent=11 // pred_fallthru
          _
        // Predicated region
        $region53: #{cnn_forward.1} parent=11 // pred_check
          %p415 = pneg %p281
        $region54: #{cnn_forward.1} parent=11 // pred_check_branch
          %417 = sbr.rel (%p415) target = $region56
        $region55: #{cnn_forward.1} parent=11 // pred_region
          _
        $region56: #{cnn_forward.1} parent=11 // pred_fallthru
          _
        // Predicated region
        $region57: #{cnn_forward.1} parent=11 // pred_check
          %p418 = pneg %p302
        $region58: #{cnn_forward.1} parent=11 // pred_check_branch
          %420 = sbr.rel (%p418) target = $region60
        $region59: #{cnn_forward.1} parent=11 // pred_region
          _
        $region60: #{cnn_forward.1} parent=11 // pred_fallthru
          _
        // Predicated region
        $region61: #{cnn_forward.1} parent=11 // pred_check
          %p421 = pneg %p323
        $region62: #{cnn_forward.1} parent=11 // pred_check_branch
          %423 = sbr.rel (%p421) target = $region64
        $region63: #{cnn_forward.1} parent=11 // pred_region
          _
        $region64: #{cnn_forward.1} parent=11 // pred_fallthru
          _
        // Predicated region
        $region65: #{cnn_forward.1} parent=11 // pred_check
          %p424 = pneg %p344
        $region66: #{cnn_forward.1} parent=11 // pred_check_branch
          %426 = sbr.rel (%p424) target = $region68
        $region67: #{cnn_forward.1} parent=11 // pred_region
          _
        $region68: #{cnn_forward.1} parent=11 // pred_fallthru
          _
      $region12: #{cnn_forward.1} parent=5 // pred_fallthru
        _
      %p427 = scmp.lt.s32.totalorder %s24, 2
      // Predicated region
      $region69: #{cnn_forward.1} parent=5 // pred_check
        %p428 = pneg %p427
      $region70: #{cnn_forward.1} parent=5 // pred_check_branch
        %430 = sbr.rel (%p428) target = $region72
      $region71: #{cnn_forward.1} parent=5 // pred_region
        // Predicated region
        $region73: #{cnn_forward.1} parent=71 // pred_check
          %p431 = pneg %p44
        $region74: #{cnn_forward.1} parent=71 // pred_check_branch
          %433 = sbr.rel (%p431) target = $region76
        $region75: #{cnn_forward.1} parent=71 // pred_region
          %p434 = scmp.lt.s32.totalorder %s24, 1
          %s435 = scalar_select %p434, %s24, 1
          %s436 = smul.addr %s435, 32
          %s437 = smul.addr %s436, 4
          %s438 = scalar_lea.vmem %s0, %s437
        $region76: #{cnn_forward.1} parent=71 // pred_fallthru
          _
      $region72: #{cnn_forward.1} parent=5 // pred_fallthru
        _
      %p439 = scmp.le.s32.totalorder 1, %s24
      %p440 = scmp.lt.s32.totalorder %s24, 3
      %p441 = pnand %p439, %p440
      %p442 = pneg %p441
      // Predicated region
      $region77: #{cnn_forward.1} parent=5 // pred_check
        _
      $region78: #{cnn_forward.1} parent=5 // pred_check_branch
        %444 = sbr.rel (%p441) target = $region80
      $region79: #{cnn_forward.1} parent=5 // pred_region
        %s445 = ssub.s32 %s24, 1
        %p446 = scmp.lt.s32.totalorder %s29, 1
        %s447 = scalar_select %p446, %s29, 1
        %s448 = smul.addr %s447, 32
        %s449 = smul.addr %s448, 4
        %s450 = scalar_lea.vmem %s0, %s449
        %p451 = pneg %p50
        %p452 = pneg %p47
        %p453 = pneg %p71
        %p454 = pneg %p68
        %p455 = pneg %p92
        %p456 = pneg %p89
        %p457 = pneg %p113
        %p458 = pneg %p110
        %p459 = pneg %p134
        %p460 = pneg %p131
        %p461 = pneg %p155
        %p462 = pneg %p152
        %p463 = pneg %p176
        %p464 = pneg %p173
        %p465 = pneg %p197
        %p466 = pneg %p194
        %p467 = pneg %p218
        %p468 = pneg %p215
        %p469 = pneg %p239
        %p470 = pneg %p236
        %p471 = pneg %p260
        %p472 = pneg %p257
        %p473 = pneg %p281
        %p474 = pneg %p278
        %p475 = pneg %p302
        %p476 = pneg %p299
        %p477 = pneg %p323
        %p478 = pneg %p320
        %p479 = pneg %p344
        %p480 = pneg %p341
        %p481 = pneg %p370
        %p482 = pneg %p367
        %s483 = sand.u32 %s357, 1
        %s484 = scalar_lea.sflag [#allocation6], %s483
        %s485 = sand.u32 %s357, 1
        %s486 = scalar_lea.vmem [#allocation5], %s485
        %p487 = scmp.lt.s32.totalorder %s29, 1
        %s488 = scalar_select %p487, %s29, 1
        %s489 = smul.addr %s488, 32
        %s490 = smul.addr %s489, 4
        %s491 = scalar_lea.vmem %s0, %s490
        %v493 = vld [vmem:[%s491] sm:$0xf]
        %v494 = vld [vmem:[%s491 + $0x4] sm:$0xf]
        %v495 = vld [vmem:[%s491 + $0x8] sm:$0xf]
        %v496 = vld [vmem:[%s491 + $0xc] sm:$0xf]
        %v497 = vld [vmem:[%s491 + $0x10] sm:$0xf]
        %v498 = vld [vmem:[%s491 + $0x14] sm:$0xf]
        %v499 = vld [vmem:[%s491 + $0x18] sm:$0xf]
        %v500 = vld [vmem:[%s491 + $0x1c] sm:$0xf]
        %v501 = vld [vmem:[%s491 + $0x20] sm:$0xf]
        %v502 = vld [vmem:[%s491 + $0x24] sm:$0xf]
        %v503 = vld [vmem:[%s491 + $0x28] sm:$0xf]
        %v504 = vld [vmem:[%s491 + $0x2c] sm:$0xf]
        %v505 = vld [vmem:[%s491 + $0x30] sm:$0xf]
        %v506 = vld [vmem:[%s491 + $0x34] sm:$0xf]
        %v507 = vld [vmem:[%s491 + $0x38] sm:$0xf]
        %v508 = vld [vmem:[%s491 + $0x3c] sm:$0xf]
        %v509 = vld [vmem:[%s491 + $0x40] sm:$0xf]
        %v510 = vld [vmem:[%s491 + $0x44] sm:$0xf]
        %v511 = vld [vmem:[%s491 + $0x48] sm:$0xf]
        %v512 = vld [vmem:[%s491 + $0x4c] sm:$0xf]
        %v513 = vld [vmem:[%s491 + $0x50] sm:$0xf]
        %v514 = vld [vmem:[%s491 + $0x54] sm:$0xf]
        %v515 = vld [vmem:[%s491 + $0x58] sm:$0xf]
        %v516 = vld [vmem:[%s491 + $0x5c] sm:$0xf]
        %v517 = vld [vmem:[%s491 + $0x60] sm:$0xf]
        %v518 = vld [vmem:[%s491 + $0x64] sm:$0xf]
        %v519 = vld [vmem:[%s491 + $0x68] sm:$0xf]
        %v520 = vld [vmem:[%s491 + $0x6c] sm:$0xf]
        %v521 = vld [vmem:[%s491 + $0x70] sm:$0xf]
        %v522 = vld [vmem:[%s491 + $0x74] sm:$0xf]
        %v523 = vld [vmem:[%s491 + $0x78] sm:$0xf]
        %v524 = vld [vmem:[%s491 + $0x7c] sm:$0xf]
        %v525 = vld [vmem:[%s1] sm:$0xf]
        %v526 = vld [vmem:[%s1 + $0x4] sm:$0xf]
        %v527 = vld [vmem:[%s1 + $0x8] sm:$0xf]
        %v528 = vld [vmem:[%s1 + $0xc] sm:$0xf]
        %v529 = vld [vmem:[%s1 + $0x10] sm:$0xf]
        %v530 = vld [vmem:[%s1 + $0x14] sm:$0xf]
        %v531 = vld [vmem:[%s1 + $0x18] sm:$0xf]
        %v532 = vld [vmem:[%s1 + $0x1c] sm:$0xf]
        %v533 = vld [vmem:[%s1 + $0x20] sm:$0xf]
        %v534 = vld [vmem:[%s1 + $0x24] sm:$0xf]
        %v535 = vld [vmem:[%s1 + $0x28] sm:$0xf]
        %v536 = vld [vmem:[%s1 + $0x2c] sm:$0xf]
        %v537 = vld [vmem:[%s1 + $0x30] sm:$0xf]
        %v538 = vld [vmem:[%s1 + $0x34] sm:$0xf]
        %v539 = vld [vmem:[%s1 + $0x38] sm:$0xf]
        %v540 = vld [vmem:[%s1 + $0x3c] sm:$0xf]
        %v573 = vunpack.c.l.b16 %v493
        %v574 = vunpack.c.l.b16 %v494
        %v575 = vunpack.c.l.b16 %v495
        %v576 = vunpack.c.l.b16 %v496
        %v577 = vunpack.c.l.b16 %v497
        %v578 = vunpack.c.l.b16 %v498
        %v579 = vunpack.c.l.b16 %v499
        %v580 = vunpack.c.l.b16 %v500
        %v581 = vunpack.c.l.b16 %v501
        %v582 = vunpack.c.l.b16 %v502
        %v583 = vunpack.c.l.b16 %v503
        %v584 = vunpack.c.l.b16 %v504
        %v585 = vunpack.c.l.b16 %v505
        %v586 = vunpack.c.l.b16 %v506
        %v587 = vunpack.c.l.b16 %v507
        %v588 = vunpack.c.l.b16 %v508
        %v589 = vunpack.c.l.b16 %v509
        %v590 = vunpack.c.l.b16 %v510
        %v591 = vunpack.c.l.b16 %v511
        %v592 = vunpack.c.l.b16 %v512
        %v593 = vunpack.c.l.b16 %v513
        %v594 = vunpack.c.l.b16 %v514
        %v595 = vunpack.c.l.b16 %v515
        %v596 = vunpack.c.l.b16 %v516
        %v597 = vunpack.c.l.b16 %v517
        %v598 = vunpack.c.l.b16 %v518
        %v599 = vunpack.c.l.b16 %v519
        %v600 = vunpack.c.l.b16 %v520
        %v601 = vunpack.c.l.b16 %v521
        %v602 = vunpack.c.l.b16 %v522
        %v603 = vunpack.c.l.b16 %v523
        %v604 = vunpack.c.l.b16 %v524
        %v605 = vpack.c.b16 %v574, %v573
        %v606 = vpack.c.b16 %v576, %v575
        %v607 = vpack.c.b16 %v578, %v577
        %v608 = vpack.c.b16 %v580, %v579
        %v609 = vpack.c.b16 %v582, %v581
        %v610 = vpack.c.b16 %v584, %v583
        %v611 = vpack.c.b16 %v586, %v585
        %v612 = vpack.c.b16 %v588, %v587
        %v613 = vpack.c.b16 %v590, %v589
        %v614 = vpack.c.b16 %v592, %v591
        %v615 = vpack.c.b16 %v594, %v593
        %v616 = vpack.c.b16 %v596, %v595
        %v617 = vpack.c.b16 %v598, %v597
        %v618 = vpack.c.b16 %v600, %v599
        %v619 = vpack.c.b16 %v602, %v601
        %v620 = vpack.c.b16 %v604, %v603
        %v653 = vunpack.c.l.b16 %v525
        %v654 = vunpack.c.l.b16 %v526
        %v655 = vunpack.c.l.b16 %v527
        %v656 = vunpack.c.l.b16 %v528
        %v657 = vunpack.c.l.b16 %v529
        %v658 = vunpack.c.l.b16 %v530
        %v659 = vunpack.c.l.b16 %v531
        %v660 = vunpack.c.l.b16 %v532
        %v661 = vunpack.c.l.b16 %v533
        %v662 = vunpack.c.l.b16 %v534
        %v663 = vunpack.c.l.b16 %v535
        %v664 = vunpack.c.l.b16 %v536
        %v665 = vunpack.c.l.b16 %v537
        %v666 = vunpack.c.l.b16 %v538
        %v667 = vunpack.c.l.b16 %v539
        %v668 = vunpack.c.l.b16 %v540
        %v669 = vpack.c.b16 %v654, %v653
        %v670 = vpack.c.b16 %v656, %v655
        %v671 = vpack.c.b16 %v658, %v657
        %v672 = vpack.c.b16 %v660, %v659
        %v673 = vpack.c.b16 %v662, %v661
        %v674 = vpack.c.b16 %v664, %v663
        %v675 = vpack.c.b16 %v666, %v665
        %v676 = vpack.c.b16 %v668, %v667
        %685 = vmatprep.subr.bf16.mxu0 0
        %686 = vmatpush1.bf16.msra.mxu0 %v669
        %687 = vmatprep.subr.bf16.mxu0 0
        %688 = vmatpush1.bf16.msra.mxu0 %v670
        %689 = vmatprep.subr.bf16.mxu0 0
        %690 = vmatpush1.bf16.msra.mxu0 %v671
        %691 = vmatprep.subr.bf16.mxu0 0
        %692 = vmatpush1.bf16.msra.mxu0 %v672
        %693 = vmatprep.subr.bf16.mxu0 0
        %694 = vmatpush1.bf16.msra.mxu0 %v673
        %695 = vmatprep.subr.bf16.mxu0 0
        %696 = vmatpush1.bf16.msra.mxu0 %v674
        %697 = vmatprep.subr.bf16.mxu0 0
        %698 = vmatpush1.bf16.msra.mxu0 %v675
        %699 = vmatprep.subr.bf16.mxu0 0
        %700 = vmatpush1.bf16.msra.mxu0 %v676
        %701 = vmatprep.subr.bf16.mxu0 0
        %702 = vmatpush1.bf16.msra.mxu0 0
        %703 = vmatprep.subr.bf16.mxu0 0
        %704 = vmatpush1.bf16.msra.mxu0 0
        %705 = vmatprep.subr.bf16.mxu0 0
        %706 = vmatpush1.bf16.msra.mxu0 0
        %707 = vmatprep.subr.bf16.mxu0 0
        %708 = vmatpush1.bf16.msra.mxu0 0
        %709 = vmatprep.subr.bf16.mxu0 0
        %710 = vmatpush1.bf16.msra.mxu0 0
        %711 = vmatprep.subr.bf16.mxu0 0
        %712 = vmatpush1.bf16.msra.mxu0 0
        %713 = vmatprep.subr.bf16.mxu0 0
        %714 = vmatpush1.bf16.msra.mxu0 0
        %715 = vmatprep.subr.bf16.mxu0 0
        %716 = vmatpush1.bf16.msra.mxu0 0
        %717 = vmatprep.mubr.bf16.mxu0 0
        %718 = vmatmul.mubr.bf16.gmra.mrb[0].mxu0 %v605
        %v719 = vpop.f32.mrb[0].mxu0
        %v720 = vadd.f32 0.0, %v719
        %v721 = vpop.f32.mrb[0].mxu0
        %v722 = vpop.f32.mrb[0].mxu0
        %v723 = vadd.f32 0.0, %v722
        %v724 = vpop.f32.mrb[0].mxu0
        %725 = vmatprep.mubr.bf16.mxu0 0
        %726 = vmatmul.mubr.bf16.gmra.mrb[0].mxu0 %v606
        %v727 = vpop.f32.mrb[0].mxu0
        %v728 = vadd.f32 0.0, %v727
        %v729 = vpop.f32.mrb[0].mxu0
        %v730 = vpop.f32.mrb[0].mxu0
        %v731 = vadd.f32 0.0, %v730
        %v732 = vpop.f32.mrb[0].mxu0
        %733 = vmatprep.mubr.bf16.mxu0 0
        %734 = vmatmul.mubr.bf16.gmra.mrb[0].mxu0 %v607
        %v735 = vpop.f32.mrb[0].mxu0
        %v736 = vadd.f32 0.0, %v735
        %v737 = vpop.f32.mrb[0].mxu0
        %v738 = vpop.f32.mrb[0].mxu0
        %v739 = vadd.f32 0.0, %v738
        %v740 = vpop.f32.mrb[0].mxu0
        %741 = vmatprep.mubr.bf16.mxu0 0
        %742 = vmatmul.mubr.bf16.gmra.mrb[0].mxu0 %v608
        %v743 = vpop.f32.mrb[0].mxu0
        %v744 = vadd.f32 0.0, %v743
        %v745 = vpop.f32.mrb[0].mxu0
        %v746 = vpop.f32.mrb[0].mxu0
        %v747 = vadd.f32 0.0, %v746
        %v748 = vpop.f32.mrb[0].mxu0
        %749 = vmatprep.mubr.bf16.mxu0 0
        %750 = vmatmul.mubr.bf16.gmra.mrb[0].mxu0 %v609
        %v751 = vpop.f32.mrb[0].mxu0
        %v752 = vadd.f32 0.0, %v751
        %v753 = vpop.f32.mrb[0].mxu0
        %v754 = vpop.f32.mrb[0].mxu0
        %v755 = vadd.f32 0.0, %v754
        %v756 = vpop.f32.mrb[0].mxu0
        %757 = vmatprep.mubr.bf16.mxu0 0
        %758 = vmatmul.mubr.bf16.gmra.mrb[0].mxu0 %v610
        %v759 = vpop.f32.mrb[0].mxu0
        %v760 = vadd.f32 0.0, %v759
        %v761 = vpop.f32.mrb[0].mxu0
        %v762 = vpop.f32.mrb[0].mxu0
        %v763 = vadd.f32 0.0, %v762
        %v764 = vpop.f32.mrb[0].mxu0
        %765 = vmatprep.mubr.bf16.mxu0 0
        %766 = vmatmul.mubr.bf16.gmra.mrb[0].mxu0 %v611
        %v767 = vpop.f32.mrb[0].mxu0
        %v768 = vadd.f32 0.0, %v767
        %v769 = vpop.f32.mrb[0].mxu0
        %v770 = vpop.f32.mrb[0].mxu0
        %v771 = vadd.f32 0.0, %v770
        %v772 = vpop.f32.mrb[0].mxu0
        %773 = vmatprep.mubr.bf16.mxu0 0
        %774 = vmatmul.mubr.bf16.gmra.mrb[0].mxu0 %v612
        %v775 = vpop.f32.mrb[0].mxu0
        %v776 = vadd.f32 0.0, %v775
        %v777 = vpop.f32.mrb[0].mxu0
        %v778 = vpop.f32.mrb[0].mxu0
        %v779 = vadd.f32 0.0, %v778
        %v780 = vpop.f32.mrb[0].mxu0
        %781 = vmatprep.mubr.bf16.mxu0 0
        %782 = vmatmul.mubr.bf16.gmra.mrb[0].mxu0 %v613
        %v783 = vpop.f32.mrb[0].mxu0
        %v784 = vadd.f32 0.0, %v783
        %v785 = vpop.f32.mrb[0].mxu0
        %v786 = vpop.f32.mrb[0].mxu0
        %v787 = vadd.f32 0.0, %v786
        %v788 = vpop.f32.mrb[0].mxu0
        %789 = vmatprep.mubr.bf16.mxu0 0
        %790 = vmatmul.mubr.bf16.gmra.mrb[0].mxu0 %v614
        %v791 = vpop.f32.mrb[0].mxu0
        %v792 = vadd.f32 0.0, %v791
        %v793 = vpop.f32.mrb[0].mxu0
        %v794 = vpop.f32.mrb[0].mxu0
        %v795 = vadd.f32 0.0, %v794
        %v796 = vpop.f32.mrb[0].mxu0
        %797 = vmatprep.mubr.bf16.mxu0 0
        %798 = vmatmul.mubr.bf16.gmra.mrb[0].mxu0 %v615
        %v799 = vpop.f32.mrb[0].mxu0
        %v800 = vadd.f32 0.0, %v799
        %v801 = vpop.f32.mrb[0].mxu0
        %v802 = vpop.f32.mrb[0].mxu0
        %v803 = vadd.f32 0.0, %v802
        %v804 = vpop.f32.mrb[0].mxu0
        %805 = vmatprep.mubr.bf16.mxu0 0
        %806 = vmatmul.mubr.bf16.gmra.mrb[0].mxu0 %v616
        %v807 = vpop.f32.mrb[0].mxu0
        %v808 = vadd.f32 0.0, %v807
        %v809 = vpop.f32.mrb[0].mxu0
        %v810 = vpop.f32.mrb[0].mxu0
        %v811 = vadd.f32 0.0, %v810
        %v812 = vpop.f32.mrb[0].mxu0
        %813 = vmatprep.mubr.bf16.mxu0 0
        %814 = vmatmul.mubr.bf16.gmra.mrb[0].mxu0 %v617
        %v815 = vpop.f32.mrb[0].mxu0
        %v816 = vadd.f32 0.0, %v815
        %v817 = vpop.f32.mrb[0].mxu0
        %v818 = vpop.f32.mrb[0].mxu0
        %v819 = vadd.f32 0.0, %v818
        %v820 = vpop.f32.mrb[0].mxu0
        %821 = vmatprep.mubr.bf16.mxu0 0
        %822 = vmatmul.mubr.bf16.gmra.mrb[0].mxu0 %v618
        %v823 = vpop.f32.mrb[0].mxu0
        %v824 = vadd.f32 0.0, %v823
        %v825 = vpop.f32.mrb[0].mxu0
        %v826 = vpop.f32.mrb[0].mxu0
        %v827 = vadd.f32 0.0, %v826
        %v828 = vpop.f32.mrb[0].mxu0
        %829 = vmatprep.mubr.bf16.mxu0 0
        %830 = vmatmul.mubr.bf16.gmra.mrb[0].mxu0 %v619
        %v831 = vpop.f32.mrb[0].mxu0
        %v832 = vadd.f32 0.0, %v831
        %v833 = vpop.f32.mrb[0].mxu0
        %v834 = vpop.f32.mrb[0].mxu0
        %v835 = vadd.f32 0.0, %v834
        %v836 = vpop.f32.mrb[0].mxu0
        %837 = vmatprep.mubr.bf16.mxu0 0
        %838 = vmatmul.mubr.bf16.gmra.mrb[0].mxu0 %v620
        %v839 = vpop.f32.mrb[0].mxu0
        %v840 = vadd.f32 0.0, %v839
        %v841 = vpop.f32.mrb[0].mxu0
        %v842 = vpop.f32.mrb[0].mxu0
        %v843 = vadd.f32 0.0, %v842
        %v844 = vpop.f32.mrb[0].mxu0
        %845 = vdwg.mxu0
        %v846 = vld [vmem:[%s2] sm:$0x1]
        %v848 = vlaneseq
        %v849 = vshrl.u32 %v848, 7
        %v850 = vsub.s32 0, %v849
        %v851 = vrot.slane %v846, %v850
        %v853 = vmul.f32 %v720, %v851
        %v854 = vmul.f32 %v723, %v851
        %v855 = vmul.f32 %v728, %v851
        %v856 = vmul.f32 %v731, %v851
        %v857 = vmul.f32 %v736, %v851
        %v858 = vmul.f32 %v739, %v851
        %v859 = vmul.f32 %v744, %v851
        %v860 = vmul.f32 %v747, %v851
        %v861 = vmul.f32 %v752, %v851
        %v862 = vmul.f32 %v755, %v851
        %v863 = vmul.f32 %v760, %v851
        %v864 = vmul.f32 %v763, %v851
        %v865 = vmul.f32 %v768, %v851
        %v866 = vmul.f32 %v771, %v851
        %v867 = vmul.f32 %v776, %v851
        %v868 = vmul.f32 %v779, %v851
        %v869 = vmul.f32 %v784, %v851
        %v870 = vmul.f32 %v787, %v851
        %v871 = vmul.f32 %v792, %v851
        %v872 = vmul.f32 %v795, %v851
        %v873 = vmul.f32 %v800, %v851
        %v874 = vmul.f32 %v803, %v851
        %v875 = vmul.f32 %v808, %v851
        %v876 = vmul.f32 %v811, %v851
        %v877 = vmul.f32 %v816, %v851
        %v878 = vmul.f32 %v819, %v851
        %v879 = vmul.f32 %v824, %v851
        %v880 = vmul.f32 %v827, %v851
        %v881 = vmul.f32 %v832, %v851
        %v882 = vmul.f32 %v835, %v851
        %v883 = vmul.f32 %v840, %v851
        %v884 = vmul.f32 %v843, %v851
        %v885 = vld [vmem:[%s3] sm:$0x1]
        %v887 = vlaneseq
        %v888 = vshrl.u32 %v887, 7
        %v889 = vsub.s32 0, %v888
        %v890 = vrot.slane %v885, %v889
        %v892 = vadd.f32 %v853, %v890
        %v893 = vadd.f32 %v854, %v890
        %v894 = vadd.f32 %v855, %v890
        %v895 = vadd.f32 %v856, %v890
        %v896 = vadd.f32 %v857, %v890
        %v897 = vadd.f32 %v858, %v890
        %v898 = vadd.f32 %v859, %v890
        %v899 = vadd.f32 %v860, %v890
        %v900 = vadd.f32 %v861, %v890
        %v901 = vadd.f32 %v862, %v890
        %v902 = vadd.f32 %v863, %v890
        %v903 = vadd.f32 %v864, %v890
        %v904 = vadd.f32 %v865, %v890
        %v905 = vadd.f32 %v866, %v890
        %v906 = vadd.f32 %v867, %v890
        %v907 = vadd.f32 %v868, %v890
        %v908 = vadd.f32 %v869, %v890
        %v909 = vadd.f32 %v870, %v890
        %v910 = vadd.f32 %v871, %v890
        %v911 = vadd.f32 %v872, %v890
        %v912 = vadd.f32 %v873, %v890
        %v913 = vadd.f32 %v874, %v890
        %v914 = vadd.f32 %v875, %v890
        %v915 = vadd.f32 %v876, %v890
        %v916 = vadd.f32 %v877, %v890
        %v917 = vadd.f32 %v878, %v890
        %v918 = vadd.f32 %v879, %v890
        %v919 = vadd.f32 %v880, %v890
        %v920 = vadd.f32 %v881, %v890
        %v921 = vadd.f32 %v882, %v890
        %v922 = vadd.f32 %v883, %v890
        %v923 = vadd.f32 %v884, %v890
        %v924 = vmax.f32 %v892, 0.0
        %v925 = vmax.f32 %v893, 0.0
        %v926 = vmax.f32 %v894, 0.0
        %v927 = vmax.f32 %v895, 0.0
        %v928 = vmax.f32 %v896, 0.0
        %v929 = vmax.f32 %v897, 0.0
        %v930 = vmax.f32 %v898, 0.0
        %v931 = vmax.f32 %v899, 0.0
        %v932 = vmax.f32 %v900, 0.0
        %v933 = vmax.f32 %v901, 0.0
        %v934 = vmax.f32 %v902, 0.0
        %v935 = vmax.f32 %v903, 0.0
        %v936 = vmax.f32 %v904, 0.0
        %v937 = vmax.f32 %v905, 0.0
        %v938 = vmax.f32 %v906, 0.0
        %v939 = vmax.f32 %v907, 0.0
        %v940 = vmax.f32 %v908, 0.0
        %v941 = vmax.f32 %v909, 0.0
        %v942 = vmax.f32 %v910, 0.0
        %v943 = vmax.f32 %v911, 0.0
        %v944 = vmax.f32 %v912, 0.0
        %v945 = vmax.f32 %v913, 0.0
        %v946 = vmax.f32 %v914, 0.0
        %v947 = vmax.f32 %v915, 0.0
        %v948 = vmax.f32 %v916, 0.0
        %v949 = vmax.f32 %v917, 0.0
        %v950 = vmax.f32 %v918, 0.0
        %v951 = vmax.f32 %v919, 0.0
        %v952 = vmax.f32 %v920, 0.0
        %v953 = vmax.f32 %v921, 0.0
        %v954 = vmax.f32 %v922, 0.0
        %v955 = vmax.f32 %v923, 0.0
        %956 = vst [vmem:[#allocation2] sm:$0xff] 0.0
        %957 = vst [vmem:[#allocation2 + $0x8] sm:$0xff] 0.0
        %958 = vst [vmem:[#allocation2 + $0x10] sm:$0xff] 0.0
        %959 = vst [vmem:[#allocation2 + $0x18] sm:$0xff] 0.0
        %960 = vst [vmem:[#allocation2 + $0x20] sm:$0xff] 0.0
        %961 = vst [vmem:[#allocation2 + $0x28] sm:$0xff] 0.0
        %962 = vst [vmem:[#allocation2 + $0x30] sm:$0xff] 0.0
        %963 = vst [vmem:[#allocation2 + $0x38] sm:$0xff] 0.0
        %964 = vst [vmem:[#allocation2 + $0x40] sm:$0xff] 0.0
        %965 = vst [vmem:[#allocation2 + $0x48] sm:$0xff] 0.0
        %966 = vst [vmem:[#allocation2 + $0x50] sm:$0xff] 0.0
        %967 = vst [vmem:[#allocation2 + $0x58] sm:$0xff] 0.0
        %968 = vst [vmem:[#allocation2 + $0x60] sm:$0x3f] 0.0
        %v969 = vmax.f32 %v924, %v926
        %v970 = vmax.f32 %v925, %v927
        %v972 = vrot.slane %v969, 1
        %v974 = vmax.f32 %v969, %v972
        %975 = vst [vmem:[#allocation2 + $0xb] sm:$0x1] %v974
        %976 = vst [vmem:[#allocation2 + $0xa] sm:$0x4] %v974
        %977 = vst [vmem:[#allocation2 + $0x9] sm:$0x10] %v974
        %978 = vst [vmem:[#allocation2 + $0x8] sm:$0x40] %v974
        %v980 = vrot.slane %v970, 1
        %v982 = vmax.f32 %v970, %v980
        %983 = vst [vmem:[#allocation2 + $0xf] sm:$0x1] %v982
        %984 = vst [vmem:[#allocation2 + $0xe] sm:$0x4] %v982
        %985 = vst [vmem:[#allocation2 + $0xd] sm:$0x10] %v982
        %986 = vst [vmem:[#allocation2 + $0xc] sm:$0x40] %v982
        %v987 = vmax.f32 %v928, %v930
        %v988 = vmax.f32 %v929, %v931
        %v990 = vrot.slane %v987, 1
        %v992 = vmax.f32 %v987, %v990
        %993 = vst [vmem:[#allocation2 + $0x15] sm:$0x1] %v992
        %994 = vst [vmem:[#allocation2 + $0x14] sm:$0x4] %v992
        %995 = vst [vmem:[#allocation2 + $0x13] sm:$0x10] %v992
        %996 = vst [vmem:[#allocation2 + $0x12] sm:$0x40] %v992
        %v998 = vrot.slane %v988, 1
        %v1000 = vmax.f32 %v988, %v998
        %1001 = vst [vmem:[#allocation2 + $0x19] sm:$0x1] %v1000
        %1002 = vst [vmem:[#allocation2 + $0x18] sm:$0x4] %v1000
        %1003 = vst [vmem:[#allocation2 + $0x17] sm:$0x10] %v1000
        %1004 = vst [vmem:[#allocation2 + $0x16] sm:$0x40] %v1000
        %v1005 = vmax.f32 %v932, %v934
        %v1006 = vmax.f32 %v933, %v935
        %v1008 = vrot.slane %v1005, 1
        %v1010 = vmax.f32 %v1005, %v1008
        %1011 = vst [vmem:[#allocation2 + $0x1f] sm:$0x1] %v1010
        %1012 = vst [vmem:[#allocation2 + $0x1e] sm:$0x4] %v1010
        %1013 = vst [vmem:[#allocation2 + $0x1d] sm:$0x10] %v1010
        %1014 = vst [vmem:[#allocation2 + $0x1c] sm:$0x40] %v1010
        %v1016 = vrot.slane %v1006, 1
        %v1018 = vmax.f32 %v1006, %v1016
        %1019 = vst [vmem:[#allocation2 + $0x23] sm:$0x1] %v1018
        %1020 = vst [vmem:[#allocation2 + $0x22] sm:$0x4] %v1018
        %1021 = vst [vmem:[#allocation2 + $0x21] sm:$0x10] %v1018
        %1022 = vst [vmem:[#allocation2 + $0x20] sm:$0x40] %v1018
        %v1023 = vmax.f32 %v936, %v938
        %v1024 = vmax.f32 %v937, %v939
        %v1026 = vrot.slane %v1023, 1
        %v1028 = vmax.f32 %v1023, %v1026
        %1029 = vst [vmem:[#allocation2 + $0x29] sm:$0x1] %v1028
        %1030 = vst [vmem:[#allocation2 + $0x28] sm:$0x4] %v1028
        %1031 = vst [vmem:[#allocation2 + $0x27] sm:$0x10] %v1028
        %1032 = vst [vmem:[#allocation2 + $0x26] sm:$0x40] %v1028
        %v1034 = vrot.slane %v1024, 1
        %v1036 = vmax.f32 %v1024, %v1034
        %1037 = vst [vmem:[#allocation2 + $0x2d] sm:$0x1] %v1036
        %1038 = vst [vmem:[#allocation2 + $0x2c] sm:$0x4] %v1036
        %1039 = vst [vmem:[#allocation2 + $0x2b] sm:$0x10] %v1036
        %1040 = vst [vmem:[#allocation2 + $0x2a] sm:$0x40] %v1036
        %v1041 = vmax.f32 %v940, %v942
        %v1042 = vmax.f32 %v941, %v943
        %v1044 = vrot.slane %v1041, 1
        %v1046 = vmax.f32 %v1041, %v1044
        %1047 = vst [vmem:[#allocation2 + $0x33] sm:$0x1] %v1046
        %1048 = vst [vmem:[#allocation2 + $0x32] sm:$0x4] %v1046
        %1049 = vst [vmem:[#allocation2 + $0x31] sm:$0x10] %v1046
        %1050 = vst [vmem:[#allocation2 + $0x30] sm:$0x40] %v1046
        %v1052 = vrot.slane %v1042, 1
        %v1054 = vmax.f32 %v1042, %v1052
        %1055 = vst [vmem:[#allocation2 + $0x37] sm:$0x1] %v1054
        %1056 = vst [vmem:[#allocation2 + $0x36] sm:$0x4] %v1054
        %1057 = vst [vmem:[#allocation2 + $0x35] sm:$0x10] %v1054
        %1058 = vst [vmem:[#allocation2 + $0x34] sm:$0x40] %v1054
        %v1059 = vmax.f32 %v944, %v946
        %v1060 = vmax.f32 %v945, %v947
        %v1062 = vrot.slane %v1059, 1
        %v1064 = vmax.f32 %v1059, %v1062
        %1065 = vst [vmem:[#allocation2 + $0x3d] sm:$0x1] %v1064
        %1066 = vst [vmem:[#allocation2 + $0x3c] sm:$0x4] %v1064
        %1067 = vst [vmem:[#allocation2 + $0x3b] sm:$0x10] %v1064
        %1068 = vst [vmem:[#allocation2 + $0x3a] sm:$0x40] %v1064
        %v1070 = vrot.slane %v1060, 1
        %v1072 = vmax.f32 %v1060, %v1070
        %1073 = vst [vmem:[#allocation2 + $0x41] sm:$0x1] %v1072
        %1074 = vst [vmem:[#allocation2 + $0x40] sm:$0x4] %v1072
        %1075 = vst [vmem:[#allocation2 + $0x3f] sm:$0x10] %v1072
        %1076 = vst [vmem:[#allocation2 + $0x3e] sm:$0x40] %v1072
        %v1077 = vmax.f32 %v948, %v950
        %v1078 = vmax.f32 %v949, %v951
        %v1080 = vrot.slane %v1077, 1
        %v1082 = vmax.f32 %v1077, %v1080
        %1083 = vst [vmem:[#allocation2 + $0x47] sm:$0x1] %v1082
        %1084 = vst [vmem:[#allocation2 + $0x46] sm:$0x4] %v1082
        %1085 = vst [vmem:[#allocation2 + $0x45] sm:$0x10] %v1082
        %1086 = vst [vmem:[#allocation2 + $0x44] sm:$0x40] %v1082
        %v1088 = vrot.slane %v1078, 1
        %v1090 = vmax.f32 %v1078, %v1088
        %1091 = vst [vmem:[#allocation2 + $0x4b] sm:$0x1] %v1090
        %1092 = vst [vmem:[#allocation2 + $0x4a] sm:$0x4] %v1090
        %1093 = vst [vmem:[#allocation2 + $0x49] sm:$0x10] %v1090
        %1094 = vst [vmem:[#allocation2 + $0x48] sm:$0x40] %v1090
        %v1095 = vmax.f32 %v952, %v954
        %v1096 = vmax.f32 %v953, %v955
        %v1098 = vrot.slane %v1095, 1
        %v1100 = vmax.f32 %v1095, %v1098
        %1101 = vst [vmem:[#allocation2 + $0x51] sm:$0x1] %v1100
        %1102 = vst [vmem:[#allocation2 + $0x50] sm:$0x4] %v1100
        %1103 = vst [vmem:[#allocation2 + $0x4f] sm:$0x10] %v1100
        %1104 = vst [vmem:[#allocation2 + $0x4e] sm:$0x40] %v1100
        %v1106 = vrot.slane %v1096, 1
        %v1108 = vmax.f32 %v1096, %v1106
        %1109 = vst [vmem:[#allocation2 + $0x55] sm:$0x1] %v1108
        %1110 = vst [vmem:[#allocation2 + $0x54] sm:$0x4] %v1108
        %1111 = vst [vmem:[#allocation2 + $0x53] sm:$0x10] %v1108
        %1112 = vst [vmem:[#allocation2 + $0x52] sm:$0x40] %v1108
        %v1113 = vld [vmem:[#allocation2] sm:$0xff]
        %v1114 = vld [vmem:[#allocation2 + $0x8] sm:$0xff]
        %v1115 = vld [vmem:[#allocation2 + $0x10] sm:$0xff]
        %v1116 = vld [vmem:[#allocation2 + $0x18] sm:$0xff]
        %v1117 = vld [vmem:[#allocation2 + $0x20] sm:$0xff]
        %v1118 = vld [vmem:[#allocation2 + $0x28] sm:$0xff]
        %v1119 = vld [vmem:[#allocation2 + $0x30] sm:$0xff]
        %v1120 = vld [vmem:[#allocation2 + $0x38] sm:$0xff]
        %v1121 = vld [vmem:[#allocation2 + $0x40] sm:$0xff]
        %v1122 = vld [vmem:[#allocation2 + $0x48] sm:$0xff]
        %v1123 = vpack.c.bf16 %v1114, %v1113
        %v1124 = vpack.c.bf16 %v1116, %v1115
        %v1125 = vpack.c.bf16 %v1118, %v1117
        %v1126 = vpack.c.bf16 %v1120, %v1119
        %v1127 = vpack.c.bf16 %v1122, %v1121
        %v1128 = vld [vmem:[#allocation2 + $0x1] sm:$0xff]
        %v1129 = vld [vmem:[#allocation2 + $0x9] sm:$0xff]
        %v1130 = vld [vmem:[#allocation2 + $0x11] sm:$0xff]
        %v1131 = vld [vmem:[#allocation2 + $0x19] sm:$0xff]
        %v1132 = vld [vmem:[#allocation2 + $0x21] sm:$0xff]
        %v1133 = vld [vmem:[#allocation2 + $0x29] sm:$0xff]
        %v1134 = vld [vmem:[#allocation2 + $0x31] sm:$0xff]
        %v1135 = vld [vmem:[#allocation2 + $0x39] sm:$0xff]
        %v1136 = vld [vmem:[#allocation2 + $0x41] sm:$0xff]
        %v1137 = vld [vmem:[#allocation2 + $0x49] sm:$0xff]
        %v1138 = vpack.c.bf16 %v1129, %v1128
        %v1139 = vpack.c.bf16 %v1131, %v1130
        %v1140 = vpack.c.bf16 %v1133, %v1132
        %v1141 = vpack.c.bf16 %v1135, %v1134
        %v1142 = vpack.c.bf16 %v1137, %v1136
        %v1143 = vld [vmem:[#allocation2 + $0x2] sm:$0xff]
        %v1144 = vld [vmem:[#allocation2 + $0xa] sm:$0xff]
        %v1145 = vld [vmem:[#allocation2 + $0x12] sm:$0xff]
        %v1146 = vld [vmem:[#allocation2 + $0x1a] sm:$0xff]
        %v1147 = vld [vmem:[#allocation2 + $0x22] sm:$0xff]
        %v1148 = vld [vmem:[#allocation2 + $0x2a] sm:$0xff]
        %v1149 = vld [vmem:[#allocation2 + $0x32] sm:$0xff]
        %v1150 = vld [vmem:[#allocation2 + $0x3a] sm:$0xff]
        %v1151 = vld [vmem:[#allocation2 + $0x42] sm:$0xff]
        %v1152 = vld [vmem:[#allocation2 + $0x4a] sm:$0xff]
        %v1153 = vpack.c.bf16 %v1144, %v1143
        %v1154 = vpack.c.bf16 %v1146, %v1145
        %v1155 = vpack.c.bf16 %v1148, %v1147
        %v1156 = vpack.c.bf16 %v1150, %v1149
        %v1157 = vpack.c.bf16 %v1152, %v1151
        %v1158 = vld [vmem:[#allocation2 + $0x52] sm:$0xff]
        %v1159 = vpack.c.bf16 %v1145, %v1144
        %v1160 = vpack.c.bf16 %v1147, %v1146
        %v1161 = vpack.c.bf16 %v1149, %v1148
        %v1162 = vpack.c.bf16 %v1151, %v1150
        %v1163 = vpack.c.bf16 %v1158, %v1152
        %v1164 = vld [vmem:[#allocation2 + $0xb] sm:$0xff]
        %v1165 = vld [vmem:[#allocation2 + $0x13] sm:$0xff]
        %v1166 = vld [vmem:[#allocation2 + $0x1b] sm:$0xff]
        %v1167 = vld [vmem:[#allocation2 + $0x23] sm:$0xff]
        %v1168 = vld [vmem:[#allocation2 + $0x2b] sm:$0xff]
        %v1169 = vld [vmem:[#allocation2 + $0x33] sm:$0xff]
        %v1170 = vld [vmem:[#allocation2 + $0x3b] sm:$0xff]
        %v1171 = vld [vmem:[#allocation2 + $0x43] sm:$0xff]
        %v1172 = vld [vmem:[#allocation2 + $0x4b] sm:$0xff]
        %v1173 = vld [vmem:[#allocation2 + $0x53] sm:$0xff]
        %v1174 = vpack.c.bf16 %v1165, %v1164
        %v1175 = vpack.c.bf16 %v1167, %v1166
        %v1176 = vpack.c.bf16 %v1169, %v1168
        %v1177 = vpack.c.bf16 %v1171, %v1170
        %v1178 = vpack.c.bf16 %v1173, %v1172
        %v1179 = vld [vmem:[#allocation2 + $0xc] sm:$0xff]
        %v1180 = vld [vmem:[#allocation2 + $0x14] sm:$0xff]
        %v1181 = vld [vmem:[#allocation2 + $0x1c] sm:$0xff]
        %v1182 = vld [vmem:[#allocation2 + $0x24] sm:$0xff]
        %v1183 = vld [vmem:[#allocation2 + $0x2c] sm:$0xff]
        %v1184 = vld [vmem:[#allocation2 + $0x34] sm:$0xff]
        %v1185 = vld [vmem:[#allocation2 + $0x3c] sm:$0xff]
        %v1186 = vld [vmem:[#allocation2 + $0x44] sm:$0xff]
        %v1187 = vld [vmem:[#allocation2 + $0x4c] sm:$0xff]
        %v1188 = vld [vmem:[#allocation2 + $0x54] sm:$0xff]
        %v1189 = vpack.c.bf16 %v1180, %v1179
        %v1190 = vpack.c.bf16 %v1182, %v1181
        %v1191 = vpack.c.bf16 %v1184, %v1183
        %v1192 = vpack.c.bf16 %v1186, %v1185
        %v1193 = vpack.c.bf16 %v1188, %v1187
        %v1194 = vld [vmem:[#allocation2 + $0x5c] sm:$0xff]
        %v1195 = vpack.c.bf16 %v1181, %v1180
        %v1196 = vpack.c.bf16 %v1183, %v1182
        %v1197 = vpack.c.bf16 %v1185, %v1184
        %v1198 = vpack.c.bf16 %v1187, %v1186
        %v1199 = vpack.c.bf16 %v1194, %v1188
        %v1200 = vld [vmem:[#allocation2 + $0x15] sm:$0xff]
        %v1201 = vld [vmem:[#allocation2 + $0x1d] sm:$0xff]
        %v1202 = vld [vmem:[#allocation2 + $0x25] sm:$0xff]
        %v1203 = vld [vmem:[#allocation2 + $0x2d] sm:$0xff]
        %v1204 = vld [vmem:[#allocation2 + $0x35] sm:$0xff]
        %v1205 = vld [vmem:[#allocation2 + $0x3d] sm:$0xff]
        %v1206 = vld [vmem:[#allocation2 + $0x45] sm:$0xff]
        %v1207 = vld [vmem:[#allocation2 + $0x4d] sm:$0xff]
        %v1208 = vld [vmem:[#allocation2 + $0x55] sm:$0xff]
        %v1209 = vld [vmem:[#allocation2 + $0x5d] sm:$0xff]
        %v1210 = vpack.c.bf16 %v1201, %v1200
        %v1211 = vpack.c.bf16 %v1203, %v1202
        %v1212 = vpack.c.bf16 %v1205, %v1204
        %v1213 = vpack.c.bf16 %v1207, %v1206
        %v1214 = vpack.c.bf16 %v1209, %v1208
        %v1215 = vld [vmem:[#allocation2 + $0x16] sm:$0xff]
        %v1216 = vld [vmem:[#allocation2 + $0x1e] sm:$0xff]
        %v1217 = vld [vmem:[#allocation2 + $0x26] sm:$0xff]
        %v1218 = vld [vmem:[#allocation2 + $0x2e] sm:$0xff]
        %v1219 = vld [vmem:[#allocation2 + $0x36] sm:$0xff]
        %v1220 = vld [vmem:[#allocation2 + $0x3e] sm:$0xff]
        %v1221 = vld [vmem:[#allocation2 + $0x46] sm:$0xff]
        %v1222 = vld [vmem:[#allocation2 + $0x4e] sm:$0xff]
        %v1223 = vld [vmem:[#allocation2 + $0x56] sm:$0xff]
        %v1224 = vld [vmem:[#allocation2 + $0x5e] sm:$0xff]
        %v1225 = vpack.c.bf16 %v1216, %v1215
        %v1226 = vpack.c.bf16 %v1218, %v1217
        %v1227 = vpack.c.bf16 %v1220, %v1219
        %v1228 = vpack.c.bf16 %v1222, %v1221
        %v1229 = vpack.c.bf16 %v1224, %v1223
        %v1230 = vld [vmem:[%s4] sm:$0xf]
        %v1231 = vld [vmem:[%s4 + $0x4] sm:$0xf]
        %v1232 = vld [vmem:[%s4 + $0x8] sm:$0xf]
        %v1233 = vld [vmem:[%s4 + $0xc] sm:$0xf]
        %v1234 = vld [vmem:[%s4 + $0x10] sm:$0xf]
        %v1235 = vld [vmem:[%s4 + $0x14] sm:$0xf]
        %v1236 = vld [vmem:[%s4 + $0x18] sm:$0xf]
        %v1237 = vld [vmem:[%s4 + $0x1c] sm:$0xf]
        %v1238 = vld [vmem:[%s4 + $0x20] sm:$0xf]
        %v1239 = vld [vmem:[%s4 + $0x24] sm:$0xf]
        %v1240 = vld [vmem:[%s4 + $0x28] sm:$0xf]
        %v1241 = vld [vmem:[%s4 + $0x2c] sm:$0xf]
        %v1242 = vld [vmem:[%s4 + $0x30] sm:$0xf]
        %v1243 = vld [vmem:[%s4 + $0x34] sm:$0xf]
        %v1244 = vld [vmem:[%s4 + $0x38] sm:$0xf]
        %v1245 = vld [vmem:[%s4 + $0x3c] sm:$0xf]
        %v1246 = vld [vmem:[%s4 + $0x40] sm:$0xf]
        %v1247 = vld [vmem:[%s4 + $0x44] sm:$0xf]
        %v1248 = vld [vmem:[%s4 + $0x48] sm:$0xf]
        %v1249 = vld [vmem:[%s4 + $0x4c] sm:$0xf]
        %v1250 = vld [vmem:[%s4 + $0x50] sm:$0xf]
        %v1251 = vld [vmem:[%s4 + $0x54] sm:$0xf]
        %v1252 = vld [vmem:[%s4 + $0x58] sm:$0xf]
        %v1253 = vld [vmem:[%s4 + $0x5c] sm:$0xf]
        %v1254 = vld [vmem:[%s4 + $0x60] sm:$0xf]
        %v1255 = vld [vmem:[%s4 + $0x64] sm:$0xf]
        %v1256 = vld [vmem:[%s4 + $0x68] sm:$0xf]
        %v1257 = vld [vmem:[%s4 + $0x6c] sm:$0xf]
        %v1258 = vld [vmem:[%s4 + $0x70] sm:$0xf]
        %v1259 = vld [vmem:[%s4 + $0x74] sm:$0xf]
        %v1260 = vld [vmem:[%s4 + $0x78] sm:$0xf]
        %v1261 = vld [vmem:[%s4 + $0x7c] sm:$0xf]
        %v1262 = vld [vmem:[%s4 + $0x80] sm:$0xf]
        %v1263 = vld [vmem:[%s4 + $0x84] sm:$0xf]
        %v1264 = vld [vmem:[%s4 + $0x88] sm:$0xf]
        %v1265 = vld [vmem:[%s4 + $0x8c] sm:$0xf]
        %v1266 = vld [vmem:[%s4 + $0x90] sm:$0xf]
        %v1267 = vld [vmem:[%s4 + $0x94] sm:$0xf]
        %v1268 = vld [vmem:[%s4 + $0x98] sm:$0xf]
        %v1269 = vld [vmem:[%s4 + $0x9c] sm:$0xf]
        %v1270 = vld [vmem:[%s4 + $0xa0] sm:$0xf]
        %v1271 = vld [vmem:[%s4 + $0xa4] sm:$0xf]
        %v1272 = vld [vmem:[%s4 + $0xa8] sm:$0xf]
        %v1273 = vld [vmem:[%s4 + $0xac] sm:$0xf]
        %v1274 = vld [vmem:[%s4 + $0xb0] sm:$0xf]
        %v1275 = vld [vmem:[%s4 + $0xb4] sm:$0xf]
        %v1276 = vld [vmem:[%s4 + $0xb8] sm:$0xf]
        %v1277 = vld [vmem:[%s4 + $0xbc] sm:$0xf]
        %v1278 = vld [vmem:[%s4 + $0xc0] sm:$0xf]
        %v1279 = vld [vmem:[%s4 + $0xc4] sm:$0xf]
        %v1280 = vld [vmem:[%s4 + $0xc8] sm:$0xf]
        %v1281 = vld [vmem:[%s4 + $0xcc] sm:$0xf]
        %v1282 = vld [vmem:[%s4 + $0xd0] sm:$0xf]
        %v1283 = vld [vmem:[%s4 + $0xd4] sm:$0xf]
        %v1284 = vld [vmem:[%s4 + $0xd8] sm:$0xf]
        %v1285 = vld [vmem:[%s4 + $0xdc] sm:$0xf]
        %v1286 = vld [vmem:[%s4 + $0xe0] sm:$0xf]
        %v1287 = vld [vmem:[%s4 + $0xe4] sm:$0xf]
        %v1288 = vld [vmem:[%s4 + $0xe8] sm:$0xf]
        %v1289 = vld [vmem:[%s4 + $0xec] sm:$0xf]
        %v1290 = vld [vmem:[%s4 + $0xf0] sm:$0xf]
        %v1291 = vld [vmem:[%s4 + $0xf4] sm:$0xf]
        %v1292 = vld [vmem:[%s4 + $0xf8] sm:$0xf]
        %v1293 = vld [vmem:[%s4 + $0xfc] sm:$0xf]
        %v1294 = vld [vmem:[%s4 + $0x100] sm:$0xf]
        %v1295 = vld [vmem:[%s4 + $0x104] sm:$0xf]
        %v1296 = vld [vmem:[%s4 + $0x108] sm:$0xf]
        %v1297 = vld [vmem:[%s4 + $0x10c] sm:$0xf]
        %v1298 = vld [vmem:[%s4 + $0x110] sm:$0xf]
        %v1299 = vld [vmem:[%s4 + $0x114] sm:$0xf]
        %v1300 = vld [vmem:[%s4 + $0x118] sm:$0xf]
        %v1301 = vld [vmem:[%s4 + $0x11c] sm:$0xf]
        %v1302 = vld [vmem:[%s4 + $0x120] sm:$0xf]
        %v1303 = vld [vmem:[%s4 + $0x124] sm:$0xf]
        %v1304 = vld [vmem:[%s4 + $0x128] sm:$0xf]
        %v1305 = vld [vmem:[%s4 + $0x12c] sm:$0xf]
        %v1306 = vld [vmem:[%s4 + $0x130] sm:$0xf]
        %v1307 = vld [vmem:[%s4 + $0x134] sm:$0xf]
        %v1308 = vld [vmem:[%s4 + $0x138] sm:$0xf]
        %v1309 = vld [vmem:[%s4 + $0x13c] sm:$0xf]
        %v1310 = vld [vmem:[%s4 + $0x140] sm:$0xf]
        %v1311 = vld [vmem:[%s4 + $0x144] sm:$0xf]
        %v1312 = vld [vmem:[%s4 + $0x148] sm:$0xf]
        %v1313 = vld [vmem:[%s4 + $0x14c] sm:$0xf]
        %v1314 = vld [vmem:[%s4 + $0x150] sm:$0xf]
        %v1315 = vld [vmem:[%s4 + $0x154] sm:$0xf]
        %v1316 = vld [vmem:[%s4 + $0x158] sm:$0xf]
        %v1317 = vld [vmem:[%s4 + $0x15c] sm:$0xf]
        %v1318 = vld [vmem:[%s4 + $0x160] sm:$0xf]
        %v1319 = vld [vmem:[%s4 + $0x164] sm:$0xf]
        %v1320 = vld [vmem:[%s4 + $0x168] sm:$0xf]
        %v1321 = vld [vmem:[%s4 + $0x16c] sm:$0xf]
        %v1322 = vld [vmem:[%s4 + $0x170] sm:$0xf]
        %v1323 = vld [vmem:[%s4 + $0x174] sm:$0xf]
        %v1324 = vld [vmem:[%s4 + $0x178] sm:$0xf]
        %v1325 = vld [vmem:[%s4 + $0x17c] sm:$0xf]
        %v1326 = vld [vmem:[%s4 + $0x180] sm:$0xf]
        %v1327 = vld [vmem:[%s4 + $0x184] sm:$0xf]
        %v1328 = vld [vmem:[%s4 + $0x188] sm:$0xf]
        %v1329 = vld [vmem:[%s4 + $0x18c] sm:$0xf]
        %v1330 = vld [vmem:[%s4 + $0x190] sm:$0xf]
        %v1331 = vld [vmem:[%s4 + $0x194] sm:$0xf]
        %v1332 = vld [vmem:[%s4 + $0x198] sm:$0xf]
        %v1333 = vld [vmem:[%s4 + $0x19c] sm:$0xf]
        %v1334 = vld [vmem:[%s4 + $0x1a0] sm:$0xf]
        %v1335 = vld [vmem:[%s4 + $0x1a4] sm:$0xf]
        %v1336 = vld [vmem:[%s4 + $0x1a8] sm:$0xf]
        %v1337 = vld [vmem:[%s4 + $0x1ac] sm:$0xf]
        %v1338 = vld [vmem:[%s4 + $0x1b0] sm:$0xf]
        %v1339 = vld [vmem:[%s4 + $0x1b4] sm:$0xf]
        %v1340 = vld [vmem:[%s4 + $0x1b8] sm:$0xf]
        %v1341 = vld [vmem:[%s4 + $0x1bc] sm:$0xf]
        %v1342 = vld [vmem:[%s4 + $0x1c0] sm:$0xf]
        %v1343 = vld [vmem:[%s4 + $0x1c4] sm:$0xf]
        %v1344 = vld [vmem:[%s4 + $0x1c8] sm:$0xf]
        %v1345 = vld [vmem:[%s4 + $0x1cc] sm:$0xf]
        %v1346 = vld [vmem:[%s4 + $0x1d0] sm:$0xf]
        %v1347 = vld [vmem:[%s4 + $0x1d4] sm:$0xf]
        %v1348 = vld [vmem:[%s4 + $0x1d8] sm:$0xf]
        %v1349 = vld [vmem:[%s4 + $0x1dc] sm:$0xf]
        %v1350 = vld [vmem:[%s4 + $0x1e0] sm:$0xf]
        %v1351 = vld [vmem:[%s4 + $0x1e4] sm:$0xf]
        %v1352 = vld [vmem:[%s4 + $0x1e8] sm:$0xf]
        %v1353 = vld [vmem:[%s4 + $0x1ec] sm:$0xf]
        %v1354 = vld [vmem:[%s4 + $0x1f0] sm:$0xf]
        %v1355 = vld [vmem:[%s4 + $0x1f4] sm:$0xf]
        %v1356 = vld [vmem:[%s4 + $0x1f8] sm:$0xf]
        %v1357 = vld [vmem:[%s4 + $0x1fc] sm:$0xf]
        %v1358 = vld [vmem:[%s4 + $0x200] sm:$0xf]
        %v1359 = vld [vmem:[%s4 + $0x204] sm:$0xf]
        %v1360 = vld [vmem:[%s4 + $0x208] sm:$0xf]
        %v1361 = vld [vmem:[%s4 + $0x20c] sm:$0xf]
        %v1362 = vld [vmem:[%s4 + $0x210] sm:$0xf]
        %v1363 = vld [vmem:[%s4 + $0x214] sm:$0xf]
        %v1364 = vld [vmem:[%s4 + $0x218] sm:$0xf]
        %v1365 = vld [vmem:[%s4 + $0x21c] sm:$0xf]
        %v1366 = vld [vmem:[%s4 + $0x220] sm:$0xf]
        %v1367 = vld [vmem:[%s4 + $0x224] sm:$0xf]
        %v1368 = vld [vmem:[%s4 + $0x228] sm:$0xf]
        %v1369 = vld [vmem:[%s4 + $0x22c] sm:$0xf]
        %v1370 = vld [vmem:[%s4 + $0x230] sm:$0xf]
        %v1371 = vld [vmem:[%s4 + $0x234] sm:$0xf]
        %v1372 = vld [vmem:[%s4 + $0x238] sm:$0xf]
        %v1373 = vld [vmem:[%s4 + $0x23c] sm:$0xf]
        %v1518 = vunpack.c.l.b16 %v1230
        %v1519 = vunpack.c.l.b16 %v1231
        %v1520 = vunpack.c.l.b16 %v1232
        %v1521 = vunpack.c.l.b16 %v1233
        %v1522 = vunpack.c.l.b16 %v1234
        %v1523 = vunpack.c.l.b16 %v1235
        %v1524 = vunpack.c.l.b16 %v1236
        %v1525 = vunpack.c.l.b16 %v1237
        %v1526 = vunpack.c.l.b16 %v1238
        %v1527 = vunpack.c.l.b16 %v1239
        %v1528 = vunpack.c.l.b16 %v1240
        %v1529 = vunpack.c.l.b16 %v1241
        %v1530 = vunpack.c.l.b16 %v1242
        %v1531 = vunpack.c.l.b16 %v1243
        %v1532 = vunpack.c.l.b16 %v1244
        %v1533 = vunpack.c.l.b16 %v1245
        %v1534 = vunpack.c.l.b16 %v1246
        %v1535 = vunpack.c.l.b16 %v1247
        %v1536 = vunpack.c.l.b16 %v1248
        %v1537 = vunpack.c.l.b16 %v1249
        %v1538 = vunpack.c.l.b16 %v1250
        %v1539 = vunpack.c.l.b16 %v1251
        %v1540 = vunpack.c.l.b16 %v1252
        %v1541 = vunpack.c.l.b16 %v1253
        %v1542 = vunpack.c.l.b16 %v1254
        %v1543 = vunpack.c.l.b16 %v1255
        %v1544 = vunpack.c.l.b16 %v1256
        %v1545 = vunpack.c.l.b16 %v1257
        %v1546 = vunpack.c.l.b16 %v1258
        %v1547 = vunpack.c.l.b16 %v1259
        %v1548 = vunpack.c.l.b16 %v1260
        %v1549 = vunpack.c.l.b16 %v1261
        %v1550 = vunpack.c.l.b16 %v1262
        %v1551 = vunpack.c.l.b16 %v1263
        %v1552 = vunpack.c.l.b16 %v1264
        %v1553 = vunpack.c.l.b16 %v1265
        %v1554 = vunpack.c.l.b16 %v1266
        %v1555 = vunpack.c.l.b16 %v1267
        %v1556 = vunpack.c.l.b16 %v1268
        %v1557 = vunpack.c.l.b16 %v1269
        %v1558 = vunpack.c.l.b16 %v1270
        %v1559 = vunpack.c.l.b16 %v1271
        %v1560 = vunpack.c.l.b16 %v1272
        %v1561 = vunpack.c.l.b16 %v1273
        %v1562 = vunpack.c.l.b16 %v1274
        %v1563 = vunpack.c.l.b16 %v1275
        %v1564 = vunpack.c.l.b16 %v1276
        %v1565 = vunpack.c.l.b16 %v1277
        %v1566 = vunpack.c.l.b16 %v1278
        %v1567 = vunpack.c.l.b16 %v1279
        %v1568 = vunpack.c.l.b16 %v1280
        %v1569 = vunpack.c.l.b16 %v1281
        %v1570 = vunpack.c.l.b16 %v1282
        %v1571 = vunpack.c.l.b16 %v1283
        %v1572 = vunpack.c.l.b16 %v1284
        %v1573 = vunpack.c.l.b16 %v1285
        %v1574 = vunpack.c.l.b16 %v1286
        %v1575 = vunpack.c.l.b16 %v1287
        %v1576 = vunpack.c.l.b16 %v1288
        %v1577 = vunpack.c.l.b16 %v1289
        %v1578 = vunpack.c.l.b16 %v1290
        %v1579 = vunpack.c.l.b16 %v1291
        %v1580 = vunpack.c.l.b16 %v1292
        %v1581 = vunpack.c.l.b16 %v1293
        %v1582 = vunpack.c.l.b16 %v1294
        %v1583 = vunpack.c.l.b16 %v1295
        %v1584 = vunpack.c.l.b16 %v1296
        %v1585 = vunpack.c.l.b16 %v1297
        %v1586 = vunpack.c.l.b16 %v1298
        %v1587 = vunpack.c.l.b16 %v1299
        %v1588 = vunpack.c.l.b16 %v1300
        %v1589 = vunpack.c.l.b16 %v1301
        %v1590 = vunpack.c.l.b16 %v1302
        %v1591 = vunpack.c.l.b16 %v1303
        %v1592 = vunpack.c.l.b16 %v1304
        %v1593 = vunpack.c.l.b16 %v1305
        %v1594 = vunpack.c.l.b16 %v1306
        %v1595 = vunpack.c.l.b16 %v1307
        %v1596 = vunpack.c.l.b16 %v1308
        %v1597 = vunpack.c.l.b16 %v1309
        %v1598 = vunpack.c.l.b16 %v1310
        %v1599 = vunpack.c.l.b16 %v1311
        %v1600 = vunpack.c.l.b16 %v1312
        %v1601 = vunpack.c.l.b16 %v1313
        %v1602 = vunpack.c.l.b16 %v1314
        %v1603 = vunpack.c.l.b16 %v1315
        %v1604 = vunpack.c.l.b16 %v1316
        %v1605 = vunpack.c.l.b16 %v1317
        %v1606 = vunpack.c.l.b16 %v1318
        %v1607 = vunpack.c.l.b16 %v1319
        %v1608 = vunpack.c.l.b16 %v1320
        %v1609 = vunpack.c.l.b16 %v1321
        %v1610 = vunpack.c.l.b16 %v1322
        %v1611 = vunpack.c.l.b16 %v1323
        %v1612 = vunpack.c.l.b16 %v1324
        %v1613 = vunpack.c.l.b16 %v1325
        %v1614 = vunpack.c.l.b16 %v1326
        %v1615 = vunpack.c.l.b16 %v1327
        %v1616 = vunpack.c.l.b16 %v1328
        %v1617 = vunpack.c.l.b16 %v1329
        %v1618 = vunpack.c.l.b16 %v1330
        %v1619 = vunpack.c.l.b16 %v1331
        %v1620 = vunpack.c.l.b16 %v1332
        %v1621 = vunpack.c.l.b16 %v1333
        %v1622 = vunpack.c.l.b16 %v1334
        %v1623 = vunpack.c.l.b16 %v1335
        %v1624 = vunpack.c.l.b16 %v1336
        %v1625 = vunpack.c.l.b16 %v1337
        %v1626 = vunpack.c.l.b16 %v1338
        %v1627 = vunpack.c.l.b16 %v1339
        %v1628 = vunpack.c.l.b16 %v1340
        %v1629 = vunpack.c.l.b16 %v1341
        %v1630 = vunpack.c.l.b16 %v1342
        %v1631 = vunpack.c.l.b16 %v1343
        %v1632 = vunpack.c.l.b16 %v1344
        %v1633 = vunpack.c.l.b16 %v1345
        %v1634 = vunpack.c.l.b16 %v1346
        %v1635 = vunpack.c.l.b16 %v1347
        %v1636 = vunpack.c.l.b16 %v1348
        %v1637 = vunpack.c.l.b16 %v1349
        %v1638 = vunpack.c.l.b16 %v1350
        %v1639 = vunpack.c.l.b16 %v1351
        %v1640 = vunpack.c.l.b16 %v1352
        %v1641 = vunpack.c.l.b16 %v1353
        %v1642 = vunpack.c.l.b16 %v1354
        %v1643 = vunpack.c.l.b16 %v1355
        %v1644 = vunpack.c.l.b16 %v1356
        %v1645 = vunpack.c.l.b16 %v1357
        %v1646 = vunpack.c.l.b16 %v1358
        %v1647 = vunpack.c.l.b16 %v1359
        %v1648 = vunpack.c.l.b16 %v1360
        %v1649 = vunpack.c.l.b16 %v1361
        %v1650 = vunpack.c.l.b16 %v1362
        %v1651 = vunpack.c.l.b16 %v1363
        %v1652 = vunpack.c.l.b16 %v1364
        %v1653 = vunpack.c.l.b16 %v1365
        %v1654 = vunpack.c.l.b16 %v1366
        %v1655 = vunpack.c.l.b16 %v1367
        %v1656 = vunpack.c.l.b16 %v1368
        %v1657 = vunpack.c.l.b16 %v1369
        %v1658 = vunpack.c.l.b16 %v1370
        %v1659 = vunpack.c.l.b16 %v1371
        %v1660 = vunpack.c.l.b16 %v1372
        %v1661 = vunpack.c.l.b16 %v1373
        %v1662 = vpack.c.b16 %v1519, %v1518
        %v1663 = vpack.c.b16 %v1521, %v1520
        %v1664 = vpack.c.b16 %v1523, %v1522
        %v1665 = vpack.c.b16 %v1525, %v1524
        %v1666 = vpack.c.b16 %v1527, %v1526
        %v1667 = vpack.c.b16 %v1529, %v1528
        %v1668 = vpack.c.b16 %v1531, %v1530
        %v1669 = vpack.c.b16 %v1533, %v1532
        %v1670 = vpack.c.b16 %v1535, %v1534
        %v1671 = vpack.c.b16 %v1537, %v1536
        %v1672 = vpack.c.b16 %v1539, %v1538
        %v1673 = vpack.c.b16 %v1541, %v1540
        %v1674 = vpack.c.b16 %v1543, %v1542
        %v1675 = vpack.c.b16 %v1545, %v1544
        %v1676 = vpack.c.b16 %v1547, %v1546
        %v1677 = vpack.c.b16 %v1549, %v1548
        %v1678 = vpack.c.b16 %v1551, %v1550
        %v1679 = vpack.c.b16 %v1553, %v1552
        %v1680 = vpack.c.b16 %v1555, %v1554
        %v1681 = vpack.c.b16 %v1557, %v1556
        %v1682 = vpack.c.b16 %v1559, %v1558
        %v1683 = vpack.c.b16 %v1561, %v1560
        %v1684 = vpack.c.b16 %v1563, %v1562
        %v1685 = vpack.c.b16 %v1565, %v1564
        %v1686 = vpack.c.b16 %v1567, %v1566
        %v1687 = vpack.c.b16 %v1569, %v1568
        %v1688 = vpack.c.b16 %v1571, %v1570
        %v1689 = vpack.c.b16 %v1573, %v1572
        %v1690 = vpack.c.b16 %v1575, %v1574
        %v1691 = vpack.c.b16 %v1577, %v1576
        %v1692 = vpack.c.b16 %v1579, %v1578
        %v1693 = vpack.c.b16 %v1581, %v1580
        %v1694 = vpack.c.b16 %v1583, %v1582
        %v1695 = vpack.c.b16 %v1585, %v1584
        %v1696 = vpack.c.b16 %v1587, %v1586
        %v1697 = vpack.c.b16 %v1589, %v1588
        %v1698 = vpack.c.b16 %v1591, %v1590
        %v1699 = vpack.c.b16 %v1593, %v1592
        %v1700 = vpack.c.b16 %v1595, %v1594
        %v1701 = vpack.c.b16 %v1597, %v1596
        %v1702 = vpack.c.b16 %v1599, %v1598
        %v1703 = vpack.c.b16 %v1601, %v1600
        %v1704 = vpack.c.b16 %v1603, %v1602
        %v1705 = vpack.c.b16 %v1605, %v1604
        %v1706 = vpack.c.b16 %v1607, %v1606
        %v1707 = vpack.c.b16 %v1609, %v1608
        %v1708 = vpack.c.b16 %v1611, %v1610
        %v1709 = vpack.c.b16 %v1613, %v1612
        %v1710 = vpack.c.b16 %v1615, %v1614
        %v1711 = vpack.c.b16 %v1617, %v1616
        %v1712 = vpack.c.b16 %v1619, %v1618
        %v1713 = vpack.c.b16 %v1621, %v1620
        %v1714 = vpack.c.b16 %v1623, %v1622
        %v1715 = vpack.c.b16 %v1625, %v1624
        %v1716 = vpack.c.b16 %v1627, %v1626
        %v1717 = vpack.c.b16 %v1629, %v1628
        %v1718 = vpack.c.b16 %v1631, %v1630
        %v1719 = vpack.c.b16 %v1633, %v1632
        %v1720 = vpack.c.b16 %v1635, %v1634
        %v1721 = vpack.c.b16 %v1637, %v1636
        %v1722 = vpack.c.b16 %v1639, %v1638
        %v1723 = vpack.c.b16 %v1641, %v1640
        %v1724 = vpack.c.b16 %v1643, %v1642
        %v1725 = vpack.c.b16 %v1645, %v1644
        %v1726 = vpack.c.b16 %v1647, %v1646
        %v1727 = vpack.c.b16 %v1649, %v1648
        %v1728 = vpack.c.b16 %v1651, %v1650
        %v1729 = vpack.c.b16 %v1653, %v1652
        %v1730 = vpack.c.b16 %v1655, %v1654
        %v1731 = vpack.c.b16 %v1657, %v1656
        %v1732 = vpack.c.b16 %v1659, %v1658
        %v1733 = vpack.c.b16 %v1661, %v1660
        %1806 = vmatprep.subr.bf16.mxu0 0
        %1807 = vmatpush1.bf16.msra.mxu0 %v1662
        %1808 = vmatprep.subr.bf16.mxu0 0
        %1809 = vmatpush1.bf16.msra.mxu0 %v1663
        %1810 = vmatprep.subr.bf16.mxu0 0
        %1811 = vmatpush1.bf16.msra.mxu0 %v1664
        %1812 = vmatprep.subr.bf16.mxu0 0
        %1813 = vmatpush1.bf16.msra.mxu0 %v1665
        %1814 = vmatprep.subr.bf16.mxu0 0
        %1815 = vmatpush1.bf16.msra.mxu0 %v1666
        %1816 = vmatprep.subr.bf16.mxu0 0
        %1817 = vmatpush1.bf16.msra.mxu0 %v1667
        %1818 = vmatprep.subr.bf16.mxu0 0
        %1819 = vmatpush1.bf16.msra.mxu0 %v1668
        %1820 = vmatprep.subr.bf16.mxu0 0
        %1821 = vmatpush1.bf16.msra.mxu0 %v1669
        %1822 = vmatprep.subr.bf16.mxu0 0
        %1823 = vmatpush1.bf16.msra.mxu0 %v1670
        %1824 = vmatprep.subr.bf16.mxu0 0
        %1825 = vmatpush1.bf16.msra.mxu0 %v1671
        %1826 = vmatprep.subr.bf16.mxu0 0
        %1827 = vmatpush1.bf16.msra.mxu0 %v1672
        %1828 = vmatprep.subr.bf16.mxu0 0
        %1829 = vmatpush1.bf16.msra.mxu0 %v1673
        %1830 = vmatprep.subr.bf16.mxu0 0
        %1831 = vmatpush1.bf16.msra.mxu0 %v1674
        %1832 = vmatprep.subr.bf16.mxu0 0
        %1833 = vmatpush1.bf16.msra.mxu0 %v1675
        %1834 = vmatprep.subr.bf16.mxu0 0
        %1835 = vmatpush1.bf16.msra.mxu0 %v1676
        %1836 = vmatprep.subr.bf16.mxu0 0
        %1837 = vmatpush1.bf16.msra.mxu0 %v1677
        %1838 = vmatprep.mubr.bf16.mxu0 %v1138
        %1839 = vmatmul.mubr.bf16.gmra.mrb[0].mxu0 %v1123
        %v1840 = vpop.f32.mrb[0].mxu0
        %v1841 = vadd.f32 0.0, %v1840
        %v1842 = vpop.f32.mrb[0].mxu0
        %v1843 = vpop.f32.mrb[0].mxu0
        %v1844 = vadd.f32 0.0, %v1843
        %v1845 = vpop.f32.mrb[0].mxu0
        %1846 = vmatprep.mubr.bf16.mxu0 %v1139
        %1847 = vmatmul.mubr.bf16.gmra.mrb[0].mxu0 %v1124
        %v1848 = vpop.f32.mrb[0].mxu0
        %v1849 = vadd.f32 0.0, %v1848
        %v1850 = vpop.f32.mrb[0].mxu0
        %v1851 = vpop.f32.mrb[0].mxu0
        %v1852 = vadd.f32 0.0, %v1851
        %v1853 = vpop.f32.mrb[0].mxu0
        %1854 = vmatprep.mubr.bf16.mxu0 %v1140
        %1855 = vmatmul.mubr.bf16.gmra.mrb[0].mxu0 %v1125
        %v1856 = vpop.f32.mrb[0].mxu0
        %v1857 = vadd.f32 0.0, %v1856
        %v1858 = vpop.f32.mrb[0].mxu0
        %v1859 = vpop.f32.mrb[0].mxu0
        %v1860 = vadd.f32 0.0, %v1859
        %v1861 = vpop.f32.mrb[0].mxu0
        %1862 = vmatprep.mubr.bf16.mxu0 %v1141
        %1863 = vmatmul.mubr.bf16.gmra.mrb[0].mxu0 %v1126
        %v1864 = vpop.f32.mrb[0].mxu0
        %v1865 = vadd.f32 0.0, %v1864
        %v1866 = vpop.f32.mrb[0].mxu0
        %v1867 = vpop.f32.mrb[0].mxu0
        %v1868 = vadd.f32 0.0, %v1867
        %v1869 = vpop.f32.mrb[0].mxu0
        %1870 = vmatprep.mubr.bf16.mxu0 %v1142
        %1871 = vmatmul.mubr.bf16.gmra.mrb[0].mxu0 %v1127
        %v1872 = vpop.f32.mrb[0].mxu0
        %v1873 = vadd.f32 0.0, %v1872
        %v1874 = vpop.f32.mrb[0].mxu0
        %v1875 = vpop.f32.mrb[0].mxu0
        %v1876 = vadd.f32 0.0, %v1875
        %v1877 = vpop.f32.mrb[0].mxu0
        %1878 = vdwg.mxu0
        %1879 = vmatprep.subr.bf16.mxu0 0
        %1880 = vmatpush1.bf16.msra.mxu0 %v1678
        %1881 = vmatprep.subr.bf16.mxu0 0
        %1882 = vmatpush1.bf16.msra.mxu0 %v1679
        %1883 = vmatprep.subr.bf16.mxu0 0
        %1884 = vmatpush1.bf16.msra.mxu0 %v1680
        %1885 = vmatprep.subr.bf16.mxu0 0
        %1886 = vmatpush1.bf16.msra.mxu0 %v1681
        %1887 = vmatprep.subr.bf16.mxu0 0
        %1888 = vmatpush1.bf16.msra.mxu0 %v1682
        %1889 = vmatprep.subr.bf16.mxu0 0
        %1890 = vmatpush1.bf16.msra.mxu0 %v1683
        %1891 = vmatprep.subr.bf16.mxu0 0
        %1892 = vmatpush1.bf16.msra.mxu0 %v1684
        %1893 = vmatprep.subr.bf16.mxu0 0
        %1894 = vmatpush1.bf16.msra.mxu0 %v1685
        %1895 = vmatprep.subr.bf16.mxu0 0
        %1896 = vmatpush1.bf16.msra.mxu0 %v1686
        %1897 = vmatprep.subr.bf16.mxu0 0
        %1898 = vmatpush1.bf16.msra.mxu0 %v1687
        %1899 = vmatprep.subr.bf16.mxu0 0
        %1900 = vmatpush1.bf16.msra.mxu0 %v1688
        %1901 = vmatprep.subr.bf16.mxu0 0
        %1902 = vmatpush1.bf16.msra.mxu0 %v1689
        %1903 = vmatprep.subr.bf16.mxu0 0
        %1904 = vmatpush1.bf16.msra.mxu0 %v1690
        %1905 = vmatprep.subr.bf16.mxu0 0
        %1906 = vmatpush1.bf16.msra.mxu0 %v1691
        %1907 = vmatprep.subr.bf16.mxu0 0
        %1908 = vmatpush1.bf16.msra.mxu0 %v1692
        %1909 = vmatprep.subr.bf16.mxu0 0
        %1910 = vmatpush1.bf16.msra.mxu0 %v1693
        %1911 = vmatprep.mubr.bf16.mxu0 %v1159
        %1912 = vmatmul.mubr.bf16.gmra.mrb[0].mxu0 %v1153
        %v1913 = vpop.f32.mrb[0].mxu0
        %v1914 = vadd.f32 %v1841, %v1913
        %v1915 = vpop.f32.mrb[0].mxu0
        %v1916 = vpop.f32.mrb[0].mxu0
        %v1917 = vadd.f32 %v1844, %v1916
        %v1918 = vpop.f32.mrb[0].mxu0
        %1919 = vmatprep.mubr.bf16.mxu0 %v1160
        %1920 = vmatmul.mubr.bf16.gmra.mrb[0].mxu0 %v1154
        %v1921 = vpop.f32.mrb[0].mxu0
        %v1922 = vadd.f32 %v1849, %v1921
        %v1923 = vpop.f32.mrb[0].mxu0
        %v1924 = vpop.f32.mrb[0].mxu0
        %v1925 = vadd.f32 %v1852, %v1924
        %v1926 = vpop.f32.mrb[0].mxu0
        %1927 = vmatprep.mubr.bf16.mxu0 %v1161
        %1928 = vmatmul.mubr.bf16.gmra.mrb[0].mxu0 %v1155
        %v1929 = vpop.f32.mrb[0].mxu0
        %v1930 = vadd.f32 %v1857, %v1929
        %v1931 = vpop.f32.mrb[0].mxu0
        %v1932 = vpop.f32.mrb[0].mxu0
        %v1933 = vadd.f32 %v1860, %v1932
        %v1934 = vpop.f32.mrb[0].mxu0
        %1935 = vmatprep.mubr.bf16.mxu0 %v1162
        %1936 = vmatmul.mubr.bf16.gmra.mrb[0].mxu0 %v1156
        %v1937 = vpop.f32.mrb[0].mxu0
        %v1938 = vadd.f32 %v1865, %v1937
        %v1939 = vpop.f32.mrb[0].mxu0
        %v1940 = vpop.f32.mrb[0].mxu0
        %v1941 = vadd.f32 %v1868, %v1940
        %v1942 = vpop.f32.mrb[0].mxu0
        %1943 = vmatprep.mubr.bf16.mxu0 %v1163
        %1944 = vmatmul.mubr.bf16.gmra.mrb[0].mxu0 %v1157
        %v1945 = vpop.f32.mrb[0].mxu0
        %v1946 = vadd.f32 %v1873, %v1945
        %v1947 = vpop.f32.mrb[0].mxu0
        %v1948 = vpop.f32.mrb[0].mxu0
        %v1949 = vadd.f32 %v1876, %v1948
        %v1950 = vpop.f32.mrb[0].mxu0
        %1951 = vdwg.mxu0
        %1952 = vmatprep.subr.bf16.mxu0 0
        %1953 = vmatpush1.bf16.msra.mxu0 %v1694
        %1954 = vmatprep.subr.bf16.mxu0 0
        %1955 = vmatpush1.bf16.msra.mxu0 %v1695
        %1956 = vmatprep.subr.bf16.mxu0 0
        %1957 = vmatpush1.bf16.msra.mxu0 %v1696
        %1958 = vmatprep.subr.bf16.mxu0 0
        %1959 = vmatpush1.bf16.msra.mxu0 %v1697
        %1960 = vmatprep.subr.bf16.mxu0 0
        %1961 = vmatpush1.bf16.msra.mxu0 %v1698
        %1962 = vmatprep.subr.bf16.mxu0 0
        %1963 = vmatpush1.bf16.msra.mxu0 %v1699
        %1964 = vmatprep.subr.bf16.mxu0 0
        %1965 = vmatpush1.bf16.msra.mxu0 %v1700
        %1966 = vmatprep.subr.bf16.mxu0 0
        %1967 = vmatpush1.bf16.msra.mxu0 %v1701
        %1968 = vmatprep.subr.bf16.mxu0 0
        %1969 = vmatpush1.bf16.msra.mxu0 %v1702
        %1970 = vmatprep.subr.bf16.mxu0 0
        %1971 = vmatpush1.bf16.msra.mxu0 %v1703
        %1972 = vmatprep.subr.bf16.mxu0 0
        %1973 = vmatpush1.bf16.msra.mxu0 %v1704
        %1974 = vmatprep.subr.bf16.mxu0 0
        %1975 = vmatpush1.bf16.msra.mxu0 %v1705
        %1976 = vmatprep.subr.bf16.mxu0 0
        %1977 = vmatpush1.bf16.msra.mxu0 %v1706
        %1978 = vmatprep.subr.bf16.mxu0 0
        %1979 = vmatpush1.bf16.msra.mxu0 %v1707
        %1980 = vmatprep.subr.bf16.mxu0 0
        %1981 = vmatpush1.bf16.msra.mxu0 %v1708
        %1982 = vmatprep.subr.bf16.mxu0 0
        %1983 = vmatpush1.bf16.msra.mxu0 %v1709
        %1984 = vmatprep.mubr.bf16.mxu0 %v1189
        %1985 = vmatmul.mubr.bf16.gmra.mrb[0].mxu0 %v1174
        %v1986 = vpop.f32.mrb[0].mxu0
        %v1987 = vadd.f32 %v1914, %v1986
        %v1988 = vpop.f32.mrb[0].mxu0
        %v1989 = vpop.f32.mrb[0].mxu0
        %v1990 = vadd.f32 %v1917, %v1989
        %v1991 = vpop.f32.mrb[0].mxu0
        %1992 = vmatprep.mubr.bf16.mxu0 %v1190
        %1993 = vmatmul.mubr.bf16.gmra.mrb[0].mxu0 %v1175
        %v1994 = vpop.f32.mrb[0].mxu0
        %v1995 = vadd.f32 %v1922, %v1994
        %v1996 = vpop.f32.mrb[0].mxu0
        %v1997 = vpop.f32.mrb[0].mxu0
        %v1998 = vadd.f32 %v1925, %v1997
        %v1999 = vpop.f32.mrb[0].mxu0
        %2000 = vmatprep.mubr.bf16.mxu0 %v1191
        %2001 = vmatmul.mubr.bf16.gmra.mrb[0].mxu0 %v1176
        %v2002 = vpop.f32.mrb[0].mxu0
        %v2003 = vadd.f32 %v1930, %v2002
        %v2004 = vpop.f32.mrb[0].mxu0
        %v2005 = vpop.f32.mrb[0].mxu0
        %v2006 = vadd.f32 %v1933, %v2005
        %v2007 = vpop.f32.mrb[0].mxu0
        %2008 = vmatprep.mubr.bf16.mxu0 %v1192
        %2009 = vmatmul.mubr.bf16.gmra.mrb[0].mxu0 %v1177
        %v2010 = vpop.f32.mrb[0].mxu0
        %v2011 = vadd.f32 %v1938, %v2010
        %v2012 = vpop.f32.mrb[0].mxu0
        %v2013 = vpop.f32.mrb[0].mxu0
        %v2014 = vadd.f32 %v1941, %v2013
        %v2015 = vpop.f32.mrb[0].mxu0
        %2016 = vmatprep.mubr.bf16.mxu0 %v1193
        %2017 = vmatmul.mubr.bf16.gmra.mrb[0].mxu0 %v1178
        %v2018 = vpop.f32.mrb[0].mxu0
        %v2019 = vadd.f32 %v1946, %v2018
        %v2020 = vpop.f32.mrb[0].mxu0
        %v2021 = vpop.f32.mrb[0].mxu0
        %v2022 = vadd.f32 %v1949, %v2021
        %v2023 = vpop.f32.mrb[0].mxu0
        %2024 = vdwg.mxu0
        %2025 = vmatprep.subr.bf16.mxu0 0
        %2026 = vmatpush1.bf16.msra.mxu0 %v1710
        %2027 = vmatprep.subr.bf16.mxu0 0
        %2028 = vmatpush1.bf16.msra.mxu0 %v1711
        %2029 = vmatprep.subr.bf16.mxu0 0
        %2030 = vmatpush1.bf16.msra.mxu0 %v1712
        %2031 = vmatprep.subr.bf16.mxu0 0
        %2032 = vmatpush1.bf16.msra.mxu0 %v1713
        %2033 = vmatprep.subr.bf16.mxu0 0
        %2034 = vmatpush1.bf16.msra.mxu0 %v1714
        %2035 = vmatprep.subr.bf16.mxu0 0
        %2036 = vmatpush1.bf16.msra.mxu0 %v1715
        %2037 = vmatprep.subr.bf16.mxu0 0
        %2038 = vmatpush1.bf16.msra.mxu0 %v1716
        %2039 = vmatprep.subr.bf16.mxu0 0
        %2040 = vmatpush1.bf16.msra.mxu0 %v1717
        %2041 = vmatprep.subr.bf16.mxu0 0
        %2042 = vmatpush1.bf16.msra.mxu0 %v1718
        %2043 = vmatprep.subr.bf16.mxu0 0
        %2044 = vmatpush1.bf16.msra.mxu0 %v1719
        %2045 = vmatprep.subr.bf16.mxu0 0
        %2046 = vmatpush1.bf16.msra.mxu0 %v1720
        %2047 = vmatprep.subr.bf16.mxu0 0
        %2048 = vmatpush1.bf16.msra.mxu0 %v1721
        %2049 = vmatprep.subr.bf16.mxu0 0
        %2050 = vmatpush1.bf16.msra.mxu0 %v1722
        %2051 = vmatprep.subr.bf16.mxu0 0
        %2052 = vmatpush1.bf16.msra.mxu0 %v1723
        %2053 = vmatprep.subr.bf16.mxu0 0
        %2054 = vmatpush1.bf16.msra.mxu0 %v1724
        %2055 = vmatprep.subr.bf16.mxu0 0
        %2056 = vmatpush1.bf16.msra.mxu0 %v1725
        %2057 = vmatprep.mubr.bf16.mxu0 %v1210
        %2058 = vmatmul.mubr.bf16.gmra.mrb[0].mxu0 %v1195
        %v2059 = vpop.f32.mrb[0].mxu0
        %v2060 = vadd.f32 %v1987, %v2059
        %v2061 = vpop.f32.mrb[0].mxu0
        %v2062 = vpop.f32.mrb[0].mxu0
        %v2063 = vadd.f32 %v1990, %v2062
        %v2064 = vpop.f32.mrb[0].mxu0
        %2065 = vmatprep.mubr.bf16.mxu0 %v1211
        %2066 = vmatmul.mubr.bf16.gmra.mrb[0].mxu0 %v1196
        %v2067 = vpop.f32.mrb[0].mxu0
        %v2068 = vadd.f32 %v1995, %v2067
        %v2069 = vpop.f32.mrb[0].mxu0
        %v2070 = vpop.f32.mrb[0].mxu0
        %v2071 = vadd.f32 %v1998, %v2070
        %v2072 = vpop.f32.mrb[0].mxu0
        %2073 = vmatprep.mubr.bf16.mxu0 %v1212
        %2074 = vmatmul.mubr.bf16.gmra.mrb[0].mxu0 %v1197
        %v2075 = vpop.f32.mrb[0].mxu0
        %v2076 = vadd.f32 %v2003, %v2075
        %v2077 = vpop.f32.mrb[0].mxu0
        %v2078 = vpop.f32.mrb[0].mxu0
        %v2079 = vadd.f32 %v2006, %v2078
        %v2080 = vpop.f32.mrb[0].mxu0
        %2081 = vmatprep.mubr.bf16.mxu0 %v1213
        %2082 = vmatmul.mubr.bf16.gmra.mrb[0].mxu0 %v1198
        %v2083 = vpop.f32.mrb[0].mxu0
        %v2084 = vadd.f32 %v2011, %v2083
        %v2085 = vpop.f32.mrb[0].mxu0
        %v2086 = vpop.f32.mrb[0].mxu0
        %v2087 = vadd.f32 %v2014, %v2086
        %v2088 = vpop.f32.mrb[0].mxu0
        %2089 = vmatprep.mubr.bf16.mxu0 %v1214
        %2090 = vmatmul.mubr.bf16.gmra.mrb[0].mxu0 %v1199
        %v2091 = vpop.f32.mrb[0].mxu0
        %v2092 = vadd.f32 %v2019, %v2091
        %v2093 = vpop.f32.mrb[0].mxu0
        %v2094 = vpop.f32.mrb[0].mxu0
        %v2095 = vadd.f32 %v2022, %v2094
        %v2096 = vpop.f32.mrb[0].mxu0
        %2097 = vdwg.mxu0
        %2098 = vmatprep.subr.bf16.mxu0 0
        %2099 = vmatpush1.bf16.msra.mxu0 %v1726
        %2100 = vmatprep.subr.bf16.mxu0 0
        %2101 = vmatpush1.bf16.msra.mxu0 %v1727
        %2102 = vmatprep.subr.bf16.mxu0 0
        %2103 = vmatpush1.bf16.msra.mxu0 %v1728
        %2104 = vmatprep.subr.bf16.mxu0 0
        %2105 = vmatpush1.bf16.msra.mxu0 %v1729
        %2106 = vmatprep.subr.bf16.mxu0 0
        %2107 = vmatpush1.bf16.msra.mxu0 %v1730
        %2108 = vmatprep.subr.bf16.mxu0 0
        %2109 = vmatpush1.bf16.msra.mxu0 %v1731
        %2110 = vmatprep.subr.bf16.mxu0 0
        %2111 = vmatpush1.bf16.msra.mxu0 %v1732
        %2112 = vmatprep.subr.bf16.mxu0 0
        %2113 = vmatpush1.bf16.msra.mxu0 %v1733
        %2114 = vmatprep.subr.bf16.mxu0 0
        %2115 = vmatpush1.bf16.msra.mxu0 0
        %2116 = vmatprep.subr.bf16.mxu0 0
        %2117 = vmatpush1.bf16.msra.mxu0 0
        %2118 = vmatprep.subr.bf16.mxu0 0
        %2119 = vmatpush1.bf16.msra.mxu0 0
        %2120 = vmatprep.subr.bf16.mxu0 0
        %2121 = vmatpush1.bf16.msra.mxu0 0
        %2122 = vmatprep.subr.bf16.mxu0 0
        %2123 = vmatpush1.bf16.msra.mxu0 0
        %2124 = vmatprep.subr.bf16.mxu0 0
        %2125 = vmatpush1.bf16.msra.mxu0 0
        %2126 = vmatprep.subr.bf16.mxu0 0
        %2127 = vmatpush1.bf16.msra.mxu0 0
        %2128 = vmatprep.subr.bf16.mxu0 0
        %2129 = vmatpush1.bf16.msra.mxu0 0
        %2130 = vmatprep.mubr.bf16.mxu0 0
        %2131 = vmatmul.mubr.bf16.gmra.mrb[0].mxu0 %v1225
        %v2132 = vpop.f32.mrb[0].mxu0
        %v2133 = vadd.f32 %v2060, %v2132
        %v2134 = vpop.f32.mrb[0].mxu0
        %v2135 = vpop.f32.mrb[0].mxu0
        %v2136 = vadd.f32 %v2063, %v2135
        %v2137 = vpop.f32.mrb[0].mxu0
        %2138 = vmatprep.mubr.bf16.mxu0 0
        %2139 = vmatmul.mubr.bf16.gmra.mrb[0].mxu0 %v1226
        %v2140 = vpop.f32.mrb[0].mxu0
        %v2141 = vadd.f32 %v2068, %v2140
        %v2142 = vpop.f32.mrb[0].mxu0
        %v2143 = vpop.f32.mrb[0].mxu0
        %v2144 = vadd.f32 %v2071, %v2143
        %v2145 = vpop.f32.mrb[0].mxu0
        %2146 = vmatprep.mubr.bf16.mxu0 0
        %2147 = vmatmul.mubr.bf16.gmra.mrb[0].mxu0 %v1227
        %v2148 = vpop.f32.mrb[0].mxu0
        %v2149 = vadd.f32 %v2076, %v2148
        %v2150 = vpop.f32.mrb[0].mxu0
        %v2151 = vpop.f32.mrb[0].mxu0
        %v2152 = vadd.f32 %v2079, %v2151
        %v2153 = vpop.f32.mrb[0].mxu0
        %2154 = vmatprep.mubr.bf16.mxu0 0
        %2155 = vmatmul.mubr.bf16.gmra.mrb[0].mxu0 %v1228
        %v2156 = vpop.f32.mrb[0].mxu0
        %v2157 = vadd.f32 %v2084, %v2156
        %v2158 = vpop.f32.mrb[0].mxu0
        %v2159 = vpop.f32.mrb[0].mxu0
        %v2160 = vadd.f32 %v2087, %v2159
        %v2161 = vpop.f32.mrb[0].mxu0
        %2162 = vmatprep.mubr.bf16.mxu0 0
        %2163 = vmatmul.mubr.bf16.gmra.mrb[0].mxu0 %v1229
        %v2164 = vpop.f32.mrb[0].mxu0
        %v2165 = vadd.f32 %v2092, %v2164
        %v2166 = vpop.f32.mrb[0].mxu0
        %v2167 = vpop.f32.mrb[0].mxu0
        %v2168 = vadd.f32 %v2095, %v2167
        %v2169 = vpop.f32.mrb[0].mxu0
        %2170 = vdwg.mxu0
        %v2171 = vld [vmem:[%s5] sm:$0x1]
        %v2173 = vlaneseq
        %v2174 = vshrl.u32 %v2173, 7
        %v2175 = vsub.s32 0, %v2174
        %v2176 = vrot.slane %v2171, %v2175
        %v2178 = vmul.f32 %v2133, %v2176
        %v2179 = vmul.f32 %v2136, %v2176
        %v2180 = vmul.f32 %v2141, %v2176
        %v2181 = vmul.f32 %v2144, %v2176
        %v2182 = vmul.f32 %v2149, %v2176
        %v2183 = vmul.f32 %v2152, %v2176
        %v2184 = vmul.f32 %v2157, %v2176
        %v2185 = vmul.f32 %v2160, %v2176
        %v2186 = vmul.f32 %v2165, %v2176
        %v2187 = vmul.f32 %v2168, %v2176
        %v2188 = vld [vmem:[%s6] sm:$0x1]
        %v2190 = vlaneseq
        %v2191 = vshrl.u32 %v2190, 7
        %v2192 = vsub.s32 0, %v2191
        %v2193 = vrot.slane %v2188, %v2192
        %v2195 = vadd.f32 %v2178, %v2193
        %v2196 = vadd.f32 %v2179, %v2193
        %v2197 = vadd.f32 %v2180, %v2193
        %v2198 = vadd.f32 %v2181, %v2193
        %v2199 = vadd.f32 %v2182, %v2193
        %v2200 = vadd.f32 %v2183, %v2193
        %v2201 = vadd.f32 %v2184, %v2193
        %v2202 = vadd.f32 %v2185, %v2193
        %v2203 = vadd.f32 %v2186, %v2193
        %v2204 = vadd.f32 %v2187, %v2193
        %v2205 = vmax.f32 %v2195, 0.0
        %v2206 = vmax.f32 %v2196, 0.0
        %v2207 = vmax.f32 %v2197, 0.0
        %v2208 = vmax.f32 %v2198, 0.0
        %v2209 = vmax.f32 %v2199, 0.0
        %v2210 = vmax.f32 %v2200, 0.0
        %v2211 = vmax.f32 %v2201, 0.0
        %v2212 = vmax.f32 %v2202, 0.0
        %v2213 = vmax.f32 %v2203, 0.0
        %v2214 = vmax.f32 %v2204, 0.0
        %2215 = vst [vmem:[#allocation3] sm:$0xff] 0.0
        %2216 = vst [vmem:[#allocation3 + $0x8] sm:$0xff] 0.0
        %2217 = vst [vmem:[#allocation3 + $0x10] sm:$0xff] 0.0
        %2218 = vst [vmem:[#allocation3 + $0x18] sm:$0xff] 0.0
        %2219 = vst [vmem:[#allocation3 + $0x20] sm:$0x3f] 0.0
        %vm2222 = vcmask 1045504
        %v2223 = vrot.slane %v2206, 2
        %v2224 = vrot.slane %v2207, 2
        %v2225 = vsel %vm2222, %v2223, %v2224
        %v2227 = vmax.f32 %v2205, %v2225
        %v2229 = vrot.slane %v2227, 1
        %v2231 = vmax.f32 %v2227, %v2229
        %2232 = vst [vmem:[#allocation3 + $0x7] sm:$0x1] %v2231
        %2233 = vst [vmem:[#allocation3 + $0x6] sm:$0x4] %v2231
        %2234 = vst [vmem:[#allocation3 + $0x5] sm:$0x10] %v2231
        %2235 = vst [vmem:[#allocation3 + $0x4] sm:$0x40] %v2231
        %v2238 = vrot.slane %v2208, 2
        %v2239 = vrot.slane %v2209, 2
        %v2240 = vsel %vm2222, %v2238, %v2239
        %v2243 = vmax.f32 %v2207, %v2240
        %v2244 = vmax.f32 %v2208, %v2239
        %v2246 = vrot.slane %v2243, 1
        %v2248 = vmax.f32 %v2243, %v2246
        %2249 = vst [vmem:[#allocation3 + $0x9] sm:$0x10] %v2248
        %2250 = vst [vmem:[#allocation3 + $0x8] sm:$0x40] %v2248
        %v2252 = vrot.slane %v2244, 1
        %v2254 = vmax.f32 %v2244, %v2252
        %2255 = vst [vmem:[#allocation3 + $0xf] sm:$0x1] %v2254
        %2256 = vst [vmem:[#allocation3 + $0xe] sm:$0x4] %v2254
        %v2259 = vrot.slane %v2211, 2
        %v2260 = vrot.slane %v2212, 2
        %v2261 = vsel %vm2222, %v2259, %v2260
        %v2263 = vmax.f32 %v2210, %v2261
        %v2265 = vrot.slane %v2263, 1
        %v2267 = vmax.f32 %v2263, %v2265
        %2268 = vst [vmem:[#allocation3 + $0x13] sm:$0x1] %v2267
        %2269 = vst [vmem:[#allocation3 + $0x12] sm:$0x4] %v2267
        %2270 = vst [vmem:[#allocation3 + $0x11] sm:$0x10] %v2267
        %2271 = vst [vmem:[#allocation3 + $0x10] sm:$0x40] %v2267
        %v2274 = vrot.slane %v2213, 2
        %v2275 = vrot.slane %v2214, 2
        %v2276 = vsel %vm2222, %v2274, %v2275
        %v2279 = vmax.f32 %v2212, %v2276
        %v2280 = vmax.f32 %v2213, %v2275
        %v2282 = vrot.slane %v2279, 1
        %v2284 = vmax.f32 %v2279, %v2282
        %2285 = vst [vmem:[#allocation3 + $0x15] sm:$0x10] %v2284
        %2286 = vst [vmem:[#allocation3 + $0x14] sm:$0x40] %v2284
        %v2288 = vrot.slane %v2280, 1
        %v2290 = vmax.f32 %v2280, %v2288
        %2291 = vst [vmem:[#allocation3 + $0x1b] sm:$0x1] %v2290
        %2292 = vst [vmem:[#allocation3 + $0x1a] sm:$0x4] %v2290
        %v2293 = vld [vmem:[#allocation3] sm:$0xff]
        %v2294 = vld [vmem:[#allocation3 + $0x8] sm:$0xff]
        %v2295 = vld [vmem:[#allocation3 + $0x10] sm:$0xff]
        %v2296 = vpack.c.bf16 %v2294, %v2293
        %v2297 = vpack.c.bf16 %v2295, %v2295
        %v2298 = vld [vmem:[#allocation3 + $0x1] sm:$0xff]
        %v2299 = vld [vmem:[#allocation3 + $0x9] sm:$0xff]
        %v2300 = vld [vmem:[#allocation3 + $0x11] sm:$0xff]
        %v2301 = vpack.c.bf16 %v2299, %v2298
        %v2302 = vpack.c.bf16 %v2300, %v2300
        %v2303 = vld [vmem:[#allocation3 + $0x2] sm:$0xff]
        %v2304 = vld [vmem:[#allocation3 + $0xa] sm:$0xff]
        %v2305 = vld [vmem:[#allocation3 + $0x12] sm:$0xff]
        %v2306 = vpack.c.bf16 %v2304, %v2303
        %v2307 = vpack.c.bf16 %v2305, %v2305
        %v2308 = vld [vmem:[#allocation3 + $0x6] sm:$0xff]
        %v2309 = vld [vmem:[#allocation3 + $0xe] sm:$0xff]
        %v2310 = vld [vmem:[#allocation3 + $0x16] sm:$0xff]
        %v2311 = vpack.c.bf16 %v2309, %v2308
        %v2312 = vpack.c.bf16 %v2310, %v2310
        %v2313 = vld [vmem:[#allocation3 + $0x7] sm:$0xff]
        %v2314 = vld [vmem:[#allocation3 + $0xf] sm:$0xff]
        %v2315 = vld [vmem:[#allocation3 + $0x17] sm:$0xff]
        %v2316 = vpack.c.bf16 %v2314, %v2313
        %v2317 = vpack.c.bf16 %v2315, %v2315
        %v2318 = vld [vmem:[#allocation3 + $0x18] sm:$0xff]
        %v2319 = vpack.c.bf16 %v2295, %v2294
        %v2320 = vpack.c.bf16 %v2318, %v2318
        %v2321 = vld [vmem:[#allocation3 + $0xc] sm:$0xff]
        %v2322 = vld [vmem:[#allocation3 + $0x14] sm:$0xff]
        %v2323 = vld [vmem:[#allocation3 + $0x1c] sm:$0xff]
        %v2324 = vpack.c.bf16 %v2322, %v2321
        %v2325 = vpack.c.bf16 %v2323, %v2323
        %v2326 = vld [vmem:[#allocation3 + $0xd] sm:$0xff]
        %v2327 = vld [vmem:[#allocation3 + $0x15] sm:$0xff]
        %v2328 = vld [vmem:[#allocation3 + $0x1d] sm:$0xff]
        %v2329 = vpack.c.bf16 %v2327, %v2326
        %v2330 = vpack.c.bf16 %v2328, %v2328
        %v2331 = vld [vmem:[#allocation3 + $0xe] sm:$0xff]
        %v2332 = vld [vmem:[#allocation3 + $0x16] sm:$0xff]
        %v2333 = vld [vmem:[#allocation3 + $0x1e] sm:$0xff]
        %v2334 = vpack.c.bf16 %v2332, %v2331
        %v2335 = vpack.c.bf16 %v2333, %v2333
        %v2336 = vld [vmem:[%s7] sm:$0xff]
        %v2337 = vld [vmem:[%s7 + $0x8] sm:$0xff]
        %v2338 = vld [vmem:[%s7 + $0x10] sm:$0xff]
        %v2339 = vld [vmem:[%s7 + $0x18] sm:$0xff]
        %v2340 = vld [vmem:[%s7 + $0x20] sm:$0xff]
        %v2341 = vld [vmem:[%s7 + $0x28] sm:$0xff]
        %v2342 = vld [vmem:[%s7 + $0x30] sm:$0xff]
        %v2343 = vld [vmem:[%s7 + $0x38] sm:$0xff]
        %v2344 = vld [vmem:[%s7 + $0x40] sm:$0xff]
        %v2345 = vld [vmem:[%s7 + $0x48] sm:$0xff]
        %v2346 = vld [vmem:[%s7 + $0x50] sm:$0xff]
        %v2347 = vld [vmem:[%s7 + $0x58] sm:$0xff]
        %v2348 = vld [vmem:[%s7 + $0x60] sm:$0xff]
        %v2349 = vld [vmem:[%s7 + $0x68] sm:$0xff]
        %v2350 = vld [vmem:[%s7 + $0x70] sm:$0xff]
        %v2351 = vld [vmem:[%s7 + $0x78] sm:$0xff]
        %v2352 = vld [vmem:[%s7 + $0x80] sm:$0xff]
        %v2353 = vld [vmem:[%s7 + $0x88] sm:$0xff]
        %v2354 = vld [vmem:[%s7 + $0x90] sm:$0xff]
        %v2355 = vld [vmem:[%s7 + $0x98] sm:$0xff]
        %v2356 = vld [vmem:[%s7 + $0xa0] sm:$0xff]
        %v2357 = vld [vmem:[%s7 + $0xa8] sm:$0xff]
        %v2358 = vld [vmem:[%s7 + $0xb0] sm:$0xff]
        %v2359 = vld [vmem:[%s7 + $0xb8] sm:$0xff]
        %v2360 = vld [vmem:[%s7 + $0xc0] sm:$0xff]
        %v2361 = vld [vmem:[%s7 + $0xc8] sm:$0xff]
        %v2362 = vld [vmem:[%s7 + $0xd0] sm:$0xff]
        %v2363 = vld [vmem:[%s7 + $0xd8] sm:$0xff]
        %v2364 = vld [vmem:[%s7 + $0xe0] sm:$0xff]
        %v2365 = vld [vmem:[%s7 + $0xe8] sm:$0xff]
        %v2366 = vld [vmem:[%s7 + $0xf0] sm:$0xff]
        %v2367 = vld [vmem:[%s7 + $0xf8] sm:$0xff]
        %v2368 = vld [vmem:[%s7 + $0x100] sm:$0xff]
        %v2369 = vld [vmem:[%s7 + $0x108] sm:$0xff]
        %v2370 = vld [vmem:[%s7 + $0x110] sm:$0xff]
        %v2371 = vld [vmem:[%s7 + $0x118] sm:$0xff]
        %v2372 = vld [vmem:[%s7 + $0x120] sm:$0xff]
        %v2373 = vld [vmem:[%s7 + $0x128] sm:$0xff]
        %v2374 = vld [vmem:[%s7 + $0x130] sm:$0xff]
        %v2375 = vld [vmem:[%s7 + $0x138] sm:$0xff]
        %v2376 = vld [vmem:[%s7 + $0x140] sm:$0xff]
        %v2377 = vld [vmem:[%s7 + $0x148] sm:$0xff]
        %v2378 = vld [vmem:[%s7 + $0x150] sm:$0xff]
        %v2379 = vld [vmem:[%s7 + $0x158] sm:$0xff]
        %v2380 = vld [vmem:[%s7 + $0x160] sm:$0xff]
        %v2381 = vld [vmem:[%s7 + $0x168] sm:$0xff]
        %v2382 = vld [vmem:[%s7 + $0x170] sm:$0xff]
        %v2383 = vld [vmem:[%s7 + $0x178] sm:$0xff]
        %v2384 = vld [vmem:[%s7 + $0x180] sm:$0xff]
        %v2385 = vld [vmem:[%s7 + $0x188] sm:$0xff]
        %v2386 = vld [vmem:[%s7 + $0x190] sm:$0xff]
        %v2387 = vld [vmem:[%s7 + $0x198] sm:$0xff]
        %v2388 = vld [vmem:[%s7 + $0x1a0] sm:$0xff]
        %v2389 = vld [vmem:[%s7 + $0x1a8] sm:$0xff]
        %v2390 = vld [vmem:[%s7 + $0x1b0] sm:$0xff]
        %v2391 = vld [vmem:[%s7 + $0x1b8] sm:$0xff]
        %v2392 = vld [vmem:[%s7 + $0x1c0] sm:$0xff]
        %v2393 = vld [vmem:[%s7 + $0x1c8] sm:$0xff]
        %v2394 = vld [vmem:[%s7 + $0x1d0] sm:$0xff]
        %v2395 = vld [vmem:[%s7 + $0x1d8] sm:$0xff]
        %v2396 = vld [vmem:[%s7 + $0x1e0] sm:$0xff]
        %v2397 = vld [vmem:[%s7 + $0x1e8] sm:$0xff]
        %v2398 = vld [vmem:[%s7 + $0x1f0] sm:$0xff]
        %v2399 = vld [vmem:[%s7 + $0x1f8] sm:$0xff]
        %v2400 = vld [vmem:[%s7 + $0x200] sm:$0xff]
        %v2401 = vld [vmem:[%s7 + $0x208] sm:$0xff]
        %v2402 = vld [vmem:[%s7 + $0x210] sm:$0xff]
        %v2403 = vld [vmem:[%s7 + $0x218] sm:$0xff]
        %v2404 = vld [vmem:[%s7 + $0x220] sm:$0xff]
        %v2405 = vld [vmem:[%s7 + $0x228] sm:$0xff]
        %v2406 = vld [vmem:[%s7 + $0x230] sm:$0xff]
        %v2407 = vld [vmem:[%s7 + $0x238] sm:$0xff]
        %v2408 = vld [vmem:[%s7 + $0x240] sm:$0xff]
        %v2409 = vld [vmem:[%s7 + $0x248] sm:$0xff]
        %v2410 = vld [vmem:[%s7 + $0x250] sm:$0xff]
        %v2411 = vld [vmem:[%s7 + $0x258] sm:$0xff]
        %v2412 = vld [vmem:[%s7 + $0x260] sm:$0xff]
        %v2413 = vld [vmem:[%s7 + $0x268] sm:$0xff]
        %v2414 = vld [vmem:[%s7 + $0x270] sm:$0xff]
        %v2415 = vld [vmem:[%s7 + $0x278] sm:$0xff]
        %v2416 = vld [vmem:[%s7 + $0x280] sm:$0xff]
        %v2417 = vld [vmem:[%s7 + $0x288] sm:$0xff]
        %v2418 = vld [vmem:[%s7 + $0x290] sm:$0xff]
        %v2419 = vld [vmem:[%s7 + $0x298] sm:$0xff]
        %v2420 = vld [vmem:[%s7 + $0x2a0] sm:$0xff]
        %v2421 = vld [vmem:[%s7 + $0x2a8] sm:$0xff]
        %v2422 = vld [vmem:[%s7 + $0x2b0] sm:$0xff]
        %v2423 = vld [vmem:[%s7 + $0x2b8] sm:$0xff]
        %v2424 = vld [vmem:[%s7 + $0x2c0] sm:$0xff]
        %v2425 = vld [vmem:[%s7 + $0x2c8] sm:$0xff]
        %v2426 = vld [vmem:[%s7 + $0x2d0] sm:$0xff]
        %v2427 = vld [vmem:[%s7 + $0x2d8] sm:$0xff]
        %v2428 = vld [vmem:[%s7 + $0x2e0] sm:$0xff]
        %v2429 = vld [vmem:[%s7 + $0x2e8] sm:$0xff]
        %v2430 = vld [vmem:[%s7 + $0x2f0] sm:$0xff]
        %v2431 = vld [vmem:[%s7 + $0x2f8] sm:$0xff]
        %v2432 = vld [vmem:[%s7 + $0x300] sm:$0xff]
        %v2433 = vld [vmem:[%s7 + $0x308] sm:$0xff]
        %v2434 = vld [vmem:[%s7 + $0x310] sm:$0xff]
        %v2435 = vld [vmem:[%s7 + $0x318] sm:$0xff]
        %v2436 = vld [vmem:[%s7 + $0x320] sm:$0xff]
        %v2437 = vld [vmem:[%s7 + $0x328] sm:$0xff]
        %v2438 = vld [vmem:[%s7 + $0x330] sm:$0xff]
        %v2439 = vld [vmem:[%s7 + $0x338] sm:$0xff]
        %v2440 = vld [vmem:[%s7 + $0x340] sm:$0xff]
        %v2441 = vld [vmem:[%s7 + $0x348] sm:$0xff]
        %v2442 = vld [vmem:[%s7 + $0x350] sm:$0xff]
        %v2443 = vld [vmem:[%s7 + $0x358] sm:$0xff]
        %v2444 = vld [vmem:[%s7 + $0x360] sm:$0xff]
        %v2445 = vld [vmem:[%s7 + $0x368] sm:$0xff]
        %v2446 = vld [vmem:[%s7 + $0x370] sm:$0xff]
        %v2447 = vld [vmem:[%s7 + $0x378] sm:$0xff]
        %v2448 = vld [vmem:[%s7 + $0x380] sm:$0xff]
        %v2449 = vld [vmem:[%s7 + $0x388] sm:$0xff]
        %v2450 = vld [vmem:[%s7 + $0x390] sm:$0xff]
        %v2451 = vld [vmem:[%s7 + $0x398] sm:$0xff]
        %v2452 = vld [vmem:[%s7 + $0x3a0] sm:$0xff]
        %v2453 = vld [vmem:[%s7 + $0x3a8] sm:$0xff]
        %v2454 = vld [vmem:[%s7 + $0x3b0] sm:$0xff]
        %v2455 = vld [vmem:[%s7 + $0x3b8] sm:$0xff]
        %v2456 = vld [vmem:[%s7 + $0x3c0] sm:$0xff]
        %v2457 = vld [vmem:[%s7 + $0x3c8] sm:$0xff]
        %v2458 = vld [vmem:[%s7 + $0x3d0] sm:$0xff]
        %v2459 = vld [vmem:[%s7 + $0x3d8] sm:$0xff]
        %v2460 = vld [vmem:[%s7 + $0x3e0] sm:$0xff]
        %v2461 = vld [vmem:[%s7 + $0x3e8] sm:$0xff]
        %v2462 = vld [vmem:[%s7 + $0x3f0] sm:$0xff]
        %v2463 = vld [vmem:[%s7 + $0x3f8] sm:$0xff]
        %v2464 = vld [vmem:[%s7 + $0x400] sm:$0xff]
        %v2465 = vld [vmem:[%s7 + $0x408] sm:$0xff]
        %v2466 = vld [vmem:[%s7 + $0x410] sm:$0xff]
        %v2467 = vld [vmem:[%s7 + $0x418] sm:$0xff]
        %v2468 = vld [vmem:[%s7 + $0x420] sm:$0xff]
        %v2469 = vld [vmem:[%s7 + $0x428] sm:$0xff]
        %v2470 = vld [vmem:[%s7 + $0x430] sm:$0xff]
        %v2471 = vld [vmem:[%s7 + $0x438] sm:$0xff]
        %v2472 = vld [vmem:[%s7 + $0x440] sm:$0xff]
        %v2473 = vld [vmem:[%s7 + $0x448] sm:$0xff]
        %v2474 = vld [vmem:[%s7 + $0x450] sm:$0xff]
        %v2475 = vld [vmem:[%s7 + $0x458] sm:$0xff]
        %v2476 = vld [vmem:[%s7 + $0x460] sm:$0xff]
        %v2477 = vld [vmem:[%s7 + $0x468] sm:$0xff]
        %v2478 = vld [vmem:[%s7 + $0x470] sm:$0xff]
        %v2479 = vld [vmem:[%s7 + $0x478] sm:$0xff]
        %v2624 = vunpack.c.l.b16 %v2336
        %v2625 = vunpack.c.h.b16 %v2336
        %v2626 = vunpack.c.l.b16 %v2337
        %v2627 = vunpack.c.h.b16 %v2337
        %v2628 = vunpack.c.l.b16 %v2338
        %v2629 = vunpack.c.h.b16 %v2338
        %v2630 = vunpack.c.l.b16 %v2339
        %v2631 = vunpack.c.h.b16 %v2339
        %v2632 = vunpack.c.l.b16 %v2340
        %v2633 = vunpack.c.h.b16 %v2340
        %v2634 = vunpack.c.l.b16 %v2341
        %v2635 = vunpack.c.h.b16 %v2341
        %v2636 = vunpack.c.l.b16 %v2342
        %v2637 = vunpack.c.h.b16 %v2342
        %v2638 = vunpack.c.l.b16 %v2343
        %v2639 = vunpack.c.h.b16 %v2343
        %v2640 = vunpack.c.l.b16 %v2344
        %v2641 = vunpack.c.h.b16 %v2344
        %v2642 = vunpack.c.l.b16 %v2345
        %v2643 = vunpack.c.h.b16 %v2345
        %v2644 = vunpack.c.l.b16 %v2346
        %v2645 = vunpack.c.h.b16 %v2346
        %v2646 = vunpack.c.l.b16 %v2347
        %v2647 = vunpack.c.h.b16 %v2347
        %v2648 = vunpack.c.l.b16 %v2348
        %v2649 = vunpack.c.h.b16 %v2348
        %v2650 = vunpack.c.l.b16 %v2349
        %v2651 = vunpack.c.h.b16 %v2349
        %v2652 = vunpack.c.l.b16 %v2350
        %v2653 = vunpack.c.h.b16 %v2350
        %v2654 = vunpack.c.l.b16 %v2351
        %v2655 = vunpack.c.h.b16 %v2351
        %v2656 = vunpack.c.l.b16 %v2352
        %v2657 = vunpack.c.h.b16 %v2352
        %v2658 = vunpack.c.l.b16 %v2353
        %v2659 = vunpack.c.h.b16 %v2353
        %v2660 = vunpack.c.l.b16 %v2354
        %v2661 = vunpack.c.h.b16 %v2354
        %v2662 = vunpack.c.l.b16 %v2355
        %v2663 = vunpack.c.h.b16 %v2355
        %v2664 = vunpack.c.l.b16 %v2356
        %v2665 = vunpack.c.h.b16 %v2356
        %v2666 = vunpack.c.l.b16 %v2357
        %v2667 = vunpack.c.h.b16 %v2357
        %v2668 = vunpack.c.l.b16 %v2358
        %v2669 = vunpack.c.h.b16 %v2358
        %v2670 = vunpack.c.l.b16 %v2359
        %v2671 = vunpack.c.h.b16 %v2359
        %v2672 = vunpack.c.l.b16 %v2360
        %v2673 = vunpack.c.h.b16 %v2360
        %v2674 = vunpack.c.l.b16 %v2361
        %v2675 = vunpack.c.h.b16 %v2361
        %v2676 = vunpack.c.l.b16 %v2362
        %v2677 = vunpack.c.h.b16 %v2362
        %v2678 = vunpack.c.l.b16 %v2363
        %v2679 = vunpack.c.h.b16 %v2363
        %v2680 = vunpack.c.l.b16 %v2364
        %v2681 = vunpack.c.h.b16 %v2364
        %v2682 = vunpack.c.l.b16 %v2365
        %v2683 = vunpack.c.h.b16 %v2365
        %v2684 = vunpack.c.l.b16 %v2366
        %v2685 = vunpack.c.h.b16 %v2366
        %v2686 = vunpack.c.l.b16 %v2367
        %v2687 = vunpack.c.h.b16 %v2367
        %v2688 = vunpack.c.l.b16 %v2368
        %v2689 = vunpack.c.h.b16 %v2368
        %v2690 = vunpack.c.l.b16 %v2369
        %v2691 = vunpack.c.h.b16 %v2369
        %v2692 = vunpack.c.l.b16 %v2370
        %v2693 = vunpack.c.h.b16 %v2370
        %v2694 = vunpack.c.l.b16 %v2371
        %v2695 = vunpack.c.h.b16 %v2371
        %v2696 = vunpack.c.l.b16 %v2372
        %v2697 = vunpack.c.h.b16 %v2372
        %v2698 = vunpack.c.l.b16 %v2373
        %v2699 = vunpack.c.h.b16 %v2373
        %v2700 = vunpack.c.l.b16 %v2374
        %v2701 = vunpack.c.h.b16 %v2374
        %v2702 = vunpack.c.l.b16 %v2375
        %v2703 = vunpack.c.h.b16 %v2375
        %v2704 = vunpack.c.l.b16 %v2376
        %v2705 = vunpack.c.h.b16 %v2376
        %v2706 = vunpack.c.l.b16 %v2377
        %v2707 = vunpack.c.h.b16 %v2377
        %v2708 = vunpack.c.l.b16 %v2378
        %v2709 = vunpack.c.h.b16 %v2378
        %v2710 = vunpack.c.l.b16 %v2379
        %v2711 = vunpack.c.h.b16 %v2379
        %v2712 = vunpack.c.l.b16 %v2380
        %v2713 = vunpack.c.h.b16 %v2380
        %v2714 = vunpack.c.l.b16 %v2381
        %v2715 = vunpack.c.h.b16 %v2381
        %v2716 = vunpack.c.l.b16 %v2382
        %v2717 = vunpack.c.h.b16 %v2382
        %v2718 = vunpack.c.l.b16 %v2383
        %v2719 = vunpack.c.h.b16 %v2383
        %v2720 = vunpack.c.l.b16 %v2384
        %v2721 = vunpack.c.h.b16 %v2384
        %v2722 = vunpack.c.l.b16 %v2385
        %v2723 = vunpack.c.h.b16 %v2385
        %v2724 = vunpack.c.l.b16 %v2386
        %v2725 = vunpack.c.h.b16 %v2386
        %v2726 = vunpack.c.l.b16 %v2387
        %v2727 = vunpack.c.h.b16 %v2387
        %v2728 = vunpack.c.l.b16 %v2388
        %v2729 = vunpack.c.h.b16 %v2388
        %v2730 = vunpack.c.l.b16 %v2389
        %v2731 = vunpack.c.h.b16 %v2389
        %v2732 = vunpack.c.l.b16 %v2390
        %v2733 = vunpack.c.h.b16 %v2390
        %v2734 = vunpack.c.l.b16 %v2391
        %v2735 = vunpack.c.h.b16 %v2391
        %v2736 = vunpack.c.l.b16 %v2392
        %v2737 = vunpack.c.h.b16 %v2392
        %v2738 = vunpack.c.l.b16 %v2393
        %v2739 = vunpack.c.h.b16 %v2393
        %v2740 = vunpack.c.l.b16 %v2394
        %v2741 = vunpack.c.h.b16 %v2394
        %v2742 = vunpack.c.l.b16 %v2395
        %v2743 = vunpack.c.h.b16 %v2395
        %v2744 = vunpack.c.l.b16 %v2396
        %v2745 = vunpack.c.h.b16 %v2396
        %v2746 = vunpack.c.l.b16 %v2397
        %v2747 = vunpack.c.h.b16 %v2397
        %v2748 = vunpack.c.l.b16 %v2398
        %v2749 = vunpack.c.h.b16 %v2398
        %v2750 = vunpack.c.l.b16 %v2399
        %v2751 = vunpack.c.h.b16 %v2399
        %v2752 = vunpack.c.l.b16 %v2400
        %v2753 = vunpack.c.h.b16 %v2400
        %v2754 = vunpack.c.l.b16 %v2401
        %v2755 = vunpack.c.h.b16 %v2401
        %v2756 = vunpack.c.l.b16 %v2402
        %v2757 = vunpack.c.h.b16 %v2402
        %v2758 = vunpack.c.l.b16 %v2403
        %v2759 = vunpack.c.h.b16 %v2403
        %v2760 = vunpack.c.l.b16 %v2404
        %v2761 = vunpack.c.h.b16 %v2404
        %v2762 = vunpack.c.l.b16 %v2405
        %v2763 = vunpack.c.h.b16 %v2405
        %v2764 = vunpack.c.l.b16 %v2406
        %v2765 = vunpack.c.h.b16 %v2406
        %v2766 = vunpack.c.l.b16 %v2407
        %v2767 = vunpack.c.h.b16 %v2407
        %v2768 = vunpack.c.l.b16 %v2408
        %v2769 = vunpack.c.h.b16 %v2408
        %v2770 = vunpack.c.l.b16 %v2409
        %v2771 = vunpack.c.h.b16 %v2409
        %v2772 = vunpack.c.l.b16 %v2410
        %v2773 = vunpack.c.h.b16 %v2410
        %v2774 = vunpack.c.l.b16 %v2411
        %v2775 = vunpack.c.h.b16 %v2411
        %v2776 = vunpack.c.l.b16 %v2412
        %v2777 = vunpack.c.h.b16 %v2412
        %v2778 = vunpack.c.l.b16 %v2413
        %v2779 = vunpack.c.h.b16 %v2413
        %v2780 = vunpack.c.l.b16 %v2414
        %v2781 = vunpack.c.h.b16 %v2414
        %v2782 = vunpack.c.l.b16 %v2415
        %v2783 = vunpack.c.h.b16 %v2415
        %v2784 = vunpack.c.l.b16 %v2416
        %v2785 = vunpack.c.h.b16 %v2416
        %v2786 = vunpack.c.l.b16 %v2417
        %v2787 = vunpack.c.h.b16 %v2417
        %v2788 = vunpack.c.l.b16 %v2418
        %v2789 = vunpack.c.h.b16 %v2418
        %v2790 = vunpack.c.l.b16 %v2419
        %v2791 = vunpack.c.h.b16 %v2419
        %v2792 = vunpack.c.l.b16 %v2420
        %v2793 = vunpack.c.h.b16 %v2420
        %v2794 = vunpack.c.l.b16 %v2421
        %v2795 = vunpack.c.h.b16 %v2421
        %v2796 = vunpack.c.l.b16 %v2422
        %v2797 = vunpack.c.h.b16 %v2422
        %v2798 = vunpack.c.l.b16 %v2423
        %v2799 = vunpack.c.h.b16 %v2423
        %v2800 = vunpack.c.l.b16 %v2424
        %v2801 = vunpack.c.h.b16 %v2424
        %v2802 = vunpack.c.l.b16 %v2425
        %v2803 = vunpack.c.h.b16 %v2425
        %v2804 = vunpack.c.l.b16 %v2426
        %v2805 = vunpack.c.h.b16 %v2426
        %v2806 = vunpack.c.l.b16 %v2427
        %v2807 = vunpack.c.h.b16 %v2427
        %v2808 = vunpack.c.l.b16 %v2428
        %v2809 = vunpack.c.h.b16 %v2428
        %v2810 = vunpack.c.l.b16 %v2429
        %v2811 = vunpack.c.h.b16 %v2429
        %v2812 = vunpack.c.l.b16 %v2430
        %v2813 = vunpack.c.h.b16 %v2430
        %v2814 = vunpack.c.l.b16 %v2431
        %v2815 = vunpack.c.h.b16 %v2431
        %v2816 = vunpack.c.l.b16 %v2432
        %v2817 = vunpack.c.h.b16 %v2432
        %v2818 = vunpack.c.l.b16 %v2433
        %v2819 = vunpack.c.h.b16 %v2433
        %v2820 = vunpack.c.l.b16 %v2434
        %v2821 = vunpack.c.h.b16 %v2434
        %v2822 = vunpack.c.l.b16 %v2435
        %v2823 = vunpack.c.h.b16 %v2435
        %v2824 = vunpack.c.l.b16 %v2436
        %v2825 = vunpack.c.h.b16 %v2436
        %v2826 = vunpack.c.l.b16 %v2437
        %v2827 = vunpack.c.h.b16 %v2437
        %v2828 = vunpack.c.l.b16 %v2438
        %v2829 = vunpack.c.h.b16 %v2438
        %v2830 = vunpack.c.l.b16 %v2439
        %v2831 = vunpack.c.h.b16 %v2439
        %v2832 = vunpack.c.l.b16 %v2440
        %v2833 = vunpack.c.h.b16 %v2440
        %v2834 = vunpack.c.l.b16 %v2441
        %v2835 = vunpack.c.h.b16 %v2441
        %v2836 = vunpack.c.l.b16 %v2442
        %v2837 = vunpack.c.h.b16 %v2442
        %v2838 = vunpack.c.l.b16 %v2443
        %v2839 = vunpack.c.h.b16 %v2443
        %v2840 = vunpack.c.l.b16 %v2444
        %v2841 = vunpack.c.h.b16 %v2444
        %v2842 = vunpack.c.l.b16 %v2445
        %v2843 = vunpack.c.h.b16 %v2445
        %v2844 = vunpack.c.l.b16 %v2446
        %v2845 = vunpack.c.h.b16 %v2446
        %v2846 = vunpack.c.l.b16 %v2447
        %v2847 = vunpack.c.h.b16 %v2447
        %v2848 = vunpack.c.l.b16 %v2448
        %v2849 = vunpack.c.h.b16 %v2448
        %v2850 = vunpack.c.l.b16 %v2449
        %v2851 = vunpack.c.h.b16 %v2449
        %v2852 = vunpack.c.l.b16 %v2450
        %v2853 = vunpack.c.h.b16 %v2450
        %v2854 = vunpack.c.l.b16 %v2451
        %v2855 = vunpack.c.h.b16 %v2451
        %v2856 = vunpack.c.l.b16 %v2452
        %v2857 = vunpack.c.h.b16 %v2452
        %v2858 = vunpack.c.l.b16 %v2453
        %v2859 = vunpack.c.h.b16 %v2453
        %v2860 = vunpack.c.l.b16 %v2454
        %v2861 = vunpack.c.h.b16 %v2454
        %v2862 = vunpack.c.l.b16 %v2455
        %v2863 = vunpack.c.h.b16 %v2455
        %v2864 = vunpack.c.l.b16 %v2456
        %v2865 = vunpack.c.h.b16 %v2456
        %v2866 = vunpack.c.l.b16 %v2457
        %v2867 = vunpack.c.h.b16 %v2457
        %v2868 = vunpack.c.l.b16 %v2458
        %v2869 = vunpack.c.h.b16 %v2458
        %v2870 = vunpack.c.l.b16 %v2459
        %v2871 = vunpack.c.h.b16 %v2459
        %v2872 = vunpack.c.l.b16 %v2460
        %v2873 = vunpack.c.h.b16 %v2460
        %v2874 = vunpack.c.l.b16 %v2461
        %v2875 = vunpack.c.h.b16 %v2461
        %v2876 = vunpack.c.l.b16 %v2462
        %v2877 = vunpack.c.h.b16 %v2462
        %v2878 = vunpack.c.l.b16 %v2463
        %v2879 = vunpack.c.h.b16 %v2463
        %v2880 = vunpack.c.l.b16 %v2464
        %v2881 = vunpack.c.h.b16 %v2464
        %v2882 = vunpack.c.l.b16 %v2465
        %v2883 = vunpack.c.h.b16 %v2465
        %v2884 = vunpack.c.l.b16 %v2466
        %v2885 = vunpack.c.h.b16 %v2466
        %v2886 = vunpack.c.l.b16 %v2467
        %v2887 = vunpack.c.h.b16 %v2467
        %v2888 = vunpack.c.l.b16 %v2468
        %v2889 = vunpack.c.h.b16 %v2468
        %v2890 = vunpack.c.l.b16 %v2469
        %v2891 = vunpack.c.h.b16 %v2469
        %v2892 = vunpack.c.l.b16 %v2470
        %v2893 = vunpack.c.h.b16 %v2470
        %v2894 = vunpack.c.l.b16 %v2471
        %v2895 = vunpack.c.h.b16 %v2471
        %v2896 = vunpack.c.l.b16 %v2472
        %v2897 = vunpack.c.h.b16 %v2472
        %v2898 = vunpack.c.l.b16 %v2473
        %v2899 = vunpack.c.h.b16 %v2473
        %v2900 = vunpack.c.l.b16 %v2474
        %v2901 = vunpack.c.h.b16 %v2474
        %v2902 = vunpack.c.l.b16 %v2475
        %v2903 = vunpack.c.h.b16 %v2475
        %v2904 = vunpack.c.l.b16 %v2476
        %v2905 = vunpack.c.h.b16 %v2476
        %v2906 = vunpack.c.l.b16 %v2477
        %v2907 = vunpack.c.h.b16 %v2477
        %v2908 = vunpack.c.l.b16 %v2478
        %v2909 = vunpack.c.h.b16 %v2478
        %v2910 = vunpack.c.l.b16 %v2479
        %v2911 = vunpack.c.h.b16 %v2479
        %v2912 = vpack.c.b16 %v2626, %v2624
        %v2913 = vpack.c.b16 %v2627, %v2625
        %v2914 = vpack.c.b16 %v2630, %v2628
        %v2915 = vpack.c.b16 %v2631, %v2629
        %v2916 = vpack.c.b16 %v2634, %v2632
        %v2917 = vpack.c.b16 %v2635, %v2633
        %v2918 = vpack.c.b16 %v2638, %v2636
        %v2919 = vpack.c.b16 %v2639, %v2637
        %v2920 = vpack.c.b16 %v2642, %v2640
        %v2921 = vpack.c.b16 %v2643, %v2641
        %v2922 = vpack.c.b16 %v2646, %v2644
        %v2923 = vpack.c.b16 %v2647, %v2645
        %v2924 = vpack.c.b16 %v2650, %v2648
        %v2925 = vpack.c.b16 %v2651, %v2649
        %v2926 = vpack.c.b16 %v2654, %v2652
        %v2927 = vpack.c.b16 %v2655, %v2653
        %v2928 = vpack.c.b16 %v2658, %v2656
        %v2929 = vpack.c.b16 %v2659, %v2657
        %v2930 = vpack.c.b16 %v2662, %v2660
        %v2931 = vpack.c.b16 %v2663, %v2661
        %v2932 = vpack.c.b16 %v2666, %v2664
        %v2933 = vpack.c.b16 %v2667, %v2665
        %v2934 = vpack.c.b16 %v2670, %v2668
        %v2935 = vpack.c.b16 %v2671, %v2669
        %v2936 = vpack.c.b16 %v2674, %v2672
        %v2937 = vpack.c.b16 %v2675, %v2673
        %v2938 = vpack.c.b16 %v2678, %v2676
        %v2939 = vpack.c.b16 %v2679, %v2677
        %v2940 = vpack.c.b16 %v2682, %v2680
        %v2941 = vpack.c.b16 %v2683, %v2681
        %v2942 = vpack.c.b16 %v2686, %v2684
        %v2943 = vpack.c.b16 %v2687, %v2685
        %v2944 = vpack.c.b16 %v2690, %v2688
        %v2945 = vpack.c.b16 %v2691, %v2689
        %v2946 = vpack.c.b16 %v2694, %v2692
        %v2947 = vpack.c.b16 %v2695, %v2693
        %v2948 = vpack.c.b16 %v2698, %v2696
        %v2949 = vpack.c.b16 %v2699, %v2697
        %v2950 = vpack.c.b16 %v2702, %v2700
        %v2951 = vpack.c.b16 %v2703, %v2701
        %v2952 = vpack.c.b16 %v2706, %v2704
        %v2953 = vpack.c.b16 %v2707, %v2705
        %v2954 = vpack.c.b16 %v2710, %v2708
        %v2955 = vpack.c.b16 %v2711, %v2709
        %v2956 = vpack.c.b16 %v2714, %v2712
        %v2957 = vpack.c.b16 %v2715, %v2713
        %v2958 = vpack.c.b16 %v2718, %v2716
        %v2959 = vpack.c.b16 %v2719, %v2717
        %v2960 = vpack.c.b16 %v2722, %v2720
        %v2961 = vpack.c.b16 %v2723, %v2721
        %v2962 = vpack.c.b16 %v2726, %v2724
        %v2963 = vpack.c.b16 %v2727, %v2725
        %v2964 = vpack.c.b16 %v2730, %v2728
        %v2965 = vpack.c.b16 %v2731, %v2729
        %v2966 = vpack.c.b16 %v2734, %v2732
        %v2967 = vpack.c.b16 %v2735, %v2733
        %v2968 = vpack.c.b16 %v2738, %v2736
        %v2969 = vpack.c.b16 %v2739, %v2737
        %v2970 = vpack.c.b16 %v2742, %v2740
        %v2971 = vpack.c.b16 %v2743, %v2741
        %v2972 = vpack.c.b16 %v2746, %v2744
        %v2973 = vpack.c.b16 %v2747, %v2745
        %v2974 = vpack.c.b16 %v2750, %v2748
        %v2975 = vpack.c.b16 %v2751, %v2749
        %v2976 = vpack.c.b16 %v2754, %v2752
        %v2977 = vpack.c.b16 %v2755, %v2753
        %v2978 = vpack.c.b16 %v2758, %v2756
        %v2979 = vpack.c.b16 %v2759, %v2757
        %v2980 = vpack.c.b16 %v2762, %v2760
        %v2981 = vpack.c.b16 %v2763, %v2761
        %v2982 = vpack.c.b16 %v2766, %v2764
        %v2983 = vpack.c.b16 %v2767, %v2765
        %v2984 = vpack.c.b16 %v2770, %v2768
        %v2985 = vpack.c.b16 %v2771, %v2769
        %v2986 = vpack.c.b16 %v2774, %v2772
        %v2987 = vpack.c.b16 %v2775, %v2773
        %v2988 = vpack.c.b16 %v2778, %v2776
        %v2989 = vpack.c.b16 %v2779, %v2777
        %v2990 = vpack.c.b16 %v2782, %v2780
        %v2991 = vpack.c.b16 %v2783, %v2781
        %v2992 = vpack.c.b16 %v2786, %v2784
        %v2993 = vpack.c.b16 %v2787, %v2785
        %v2994 = vpack.c.b16 %v2790, %v2788
        %v2995 = vpack.c.b16 %v2791, %v2789
        %v2996 = vpack.c.b16 %v2794, %v2792
        %v2997 = vpack.c.b16 %v2795, %v2793
        %v2998 = vpack.c.b16 %v2798, %v2796
        %v2999 = vpack.c.b16 %v2799, %v2797
        %v3000 = vpack.c.b16 %v2802, %v2800
        %v3001 = vpack.c.b16 %v2803, %v2801
        %v3002 = vpack.c.b16 %v2806, %v2804
        %v3003 = vpack.c.b16 %v2807, %v2805
        %v3004 = vpack.c.b16 %v2810, %v2808
        %v3005 = vpack.c.b16 %v2811, %v2809
        %v3006 = vpack.c.b16 %v2814, %v2812
        %v3007 = vpack.c.b16 %v2815, %v2813
        %v3008 = vpack.c.b16 %v2818, %v2816
        %v3009 = vpack.c.b16 %v2819, %v2817
        %v3010 = vpack.c.b16 %v2822, %v2820
        %v3011 = vpack.c.b16 %v2823, %v2821
        %v3012 = vpack.c.b16 %v2826, %v2824
        %v3013 = vpack.c.b16 %v2827, %v2825
        %v3014 = vpack.c.b16 %v2830, %v2828
        %v3015 = vpack.c.b16 %v2831, %v2829
        %v3016 = vpack.c.b16 %v2834, %v2832
        %v3017 = vpack.c.b16 %v2835, %v2833
        %v3018 = vpack.c.b16 %v2838, %v2836
        %v3019 = vpack.c.b16 %v2839, %v2837
        %v3020 = vpack.c.b16 %v2842, %v2840
        %v3021 = vpack.c.b16 %v2843, %v2841
        %v3022 = vpack.c.b16 %v2846, %v2844
        %v3023 = vpack.c.b16 %v2847, %v2845
        %v3024 = vpack.c.b16 %v2850, %v2848
        %v3025 = vpack.c.b16 %v2851, %v2849
        %v3026 = vpack.c.b16 %v2854, %v2852
        %v3027 = vpack.c.b16 %v2855, %v2853
        %v3028 = vpack.c.b16 %v2858, %v2856
        %v3029 = vpack.c.b16 %v2859, %v2857
        %v3030 = vpack.c.b16 %v2862, %v2860
        %v3031 = vpack.c.b16 %v2863, %v2861
        %v3032 = vpack.c.b16 %v2866, %v2864
        %v3033 = vpack.c.b16 %v2867, %v2865
        %v3034 = vpack.c.b16 %v2870, %v2868
        %v3035 = vpack.c.b16 %v2871, %v2869
        %v3036 = vpack.c.b16 %v2874, %v2872
        %v3037 = vpack.c.b16 %v2875, %v2873
        %v3038 = vpack.c.b16 %v2878, %v2876
        %v3039 = vpack.c.b16 %v2879, %v2877
        %v3040 = vpack.c.b16 %v2882, %v2880
        %v3041 = vpack.c.b16 %v2883, %v2881
        %v3042 = vpack.c.b16 %v2886, %v2884
        %v3043 = vpack.c.b16 %v2887, %v2885
        %v3044 = vpack.c.b16 %v2890, %v2888
        %v3045 = vpack.c.b16 %v2891, %v2889
        %v3046 = vpack.c.b16 %v2894, %v2892
        %v3047 = vpack.c.b16 %v2895, %v2893
        %v3048 = vpack.c.b16 %v2898, %v2896
        %v3049 = vpack.c.b16 %v2899, %v2897
        %v3050 = vpack.c.b16 %v2902, %v2900
        %v3051 = vpack.c.b16 %v2903, %v2901
        %v3052 = vpack.c.b16 %v2906, %v2904
        %v3053 = vpack.c.b16 %v2907, %v2905
        %v3054 = vpack.c.b16 %v2910, %v2908
        %v3055 = vpack.c.b16 %v2911, %v2909
        %3200 = vmatprep.subr.bf16.mxu0 %v2913
        %3201 = vmatpush1.bf16.msra.mxu0 %v2912
        %3202 = vmatprep.subr.bf16.mxu0 %v2915
        %3203 = vmatpush1.bf16.msra.mxu0 %v2914
        %3204 = vmatprep.subr.bf16.mxu0 %v2917
        %3205 = vmatpush1.bf16.msra.mxu0 %v2916
        %3206 = vmatprep.subr.bf16.mxu0 %v2919
        %3207 = vmatpush1.bf16.msra.mxu0 %v2918
        %3208 = vmatprep.subr.bf16.mxu0 %v2921
        %3209 = vmatpush1.bf16.msra.mxu0 %v2920
        %3210 = vmatprep.subr.bf16.mxu0 %v2923
        %3211 = vmatpush1.bf16.msra.mxu0 %v2922
        %3212 = vmatprep.subr.bf16.mxu0 %v2925
        %3213 = vmatpush1.bf16.msra.mxu0 %v2924
        %3214 = vmatprep.subr.bf16.mxu0 %v2927
        %3215 = vmatpush1.bf16.msra.mxu0 %v2926
        %3216 = vmatprep.subr.bf16.mxu0 %v2929
        %3217 = vmatpush1.bf16.msra.mxu0 %v2928
        %3218 = vmatprep.subr.bf16.mxu0 %v2931
        %3219 = vmatpush1.bf16.msra.mxu0 %v2930
        %3220 = vmatprep.subr.bf16.mxu0 %v2933
        %3221 = vmatpush1.bf16.msra.mxu0 %v2932
        %3222 = vmatprep.subr.bf16.mxu0 %v2935
        %3223 = vmatpush1.bf16.msra.mxu0 %v2934
        %3224 = vmatprep.subr.bf16.mxu0 %v2937
        %3225 = vmatpush1.bf16.msra.mxu0 %v2936
        %3226 = vmatprep.subr.bf16.mxu0 %v2939
        %3227 = vmatpush1.bf16.msra.mxu0 %v2938
        %3228 = vmatprep.subr.bf16.mxu0 %v2941
        %3229 = vmatpush1.bf16.msra.mxu0 %v2940
        %3230 = vmatprep.subr.bf16.mxu0 %v2943
        %3231 = vmatpush1.bf16.msra.mxu0 %v2942
        %3232 = vmatprep.mubr.bf16.mxu0 %v2301
        %3233 = vmatmul.mubr.bf16.gmra.mrb[0].mxu0 %v2296
        %v3234 = vpop.f32.mrb[0].mxu0
        %v3235 = vadd.f32 0.0, %v3234
        %v3236 = vpop.f32.mrb[0].mxu0
        %v3237 = vadd.f32 0.0, %v3236
        %v3238 = vpop.f32.mrb[0].mxu0
        %v3239 = vadd.f32 0.0, %v3238
        %v3240 = vpop.f32.mrb[0].mxu0
        %v3241 = vadd.f32 0.0, %v3240
        %3242 = vmatprep.mubr.bf16.mxu0 %v2302
        %3243 = vmatmul.mubr.bf16.gmra.mrb[0].mxu0 %v2297
        %v3244 = vpop.f32.mrb[0].mxu0
        %v3245 = vadd.f32 0.0, %v3244
        %v3246 = vpop.f32.mrb[0].mxu0
        %v3247 = vadd.f32 0.0, %v3246
        %v3248 = vpop.f32.mrb[0].mxu0
        %v3249 = vpop.f32.mrb[0].mxu0
        %3250 = vdwg.mxu0
        %3251 = vmatprep.subr.bf16.mxu0 %v2945
        %3252 = vmatpush1.bf16.msra.mxu0 %v2944
        %3253 = vmatprep.subr.bf16.mxu0 %v2947
        %3254 = vmatpush1.bf16.msra.mxu0 %v2946
        %3255 = vmatprep.subr.bf16.mxu0 %v2949
        %3256 = vmatpush1.bf16.msra.mxu0 %v2948
        %3257 = vmatprep.subr.bf16.mxu0 %v2951
        %3258 = vmatpush1.bf16.msra.mxu0 %v2950
        %3259 = vmatprep.subr.bf16.mxu0 %v2953
        %3260 = vmatpush1.bf16.msra.mxu0 %v2952
        %3261 = vmatprep.subr.bf16.mxu0 %v2955
        %3262 = vmatpush1.bf16.msra.mxu0 %v2954
        %3263 = vmatprep.subr.bf16.mxu0 %v2957
        %3264 = vmatpush1.bf16.msra.mxu0 %v2956
        %3265 = vmatprep.subr.bf16.mxu0 %v2959
        %3266 = vmatpush1.bf16.msra.mxu0 %v2958
        %3267 = vmatprep.subr.bf16.mxu0 %v2961
        %3268 = vmatpush1.bf16.msra.mxu0 %v2960
        %3269 = vmatprep.subr.bf16.mxu0 %v2963
        %3270 = vmatpush1.bf16.msra.mxu0 %v2962
        %3271 = vmatprep.subr.bf16.mxu0 %v2965
        %3272 = vmatpush1.bf16.msra.mxu0 %v2964
        %3273 = vmatprep.subr.bf16.mxu0 %v2967
        %3274 = vmatpush1.bf16.msra.mxu0 %v2966
        %3275 = vmatprep.subr.bf16.mxu0 %v2969
        %3276 = vmatpush1.bf16.msra.mxu0 %v2968
        %3277 = vmatprep.subr.bf16.mxu0 %v2971
        %3278 = vmatpush1.bf16.msra.mxu0 %v2970
        %3279 = vmatprep.subr.bf16.mxu0 %v2973
        %3280 = vmatpush1.bf16.msra.mxu0 %v2972
        %3281 = vmatprep.subr.bf16.mxu0 %v2975
        %3282 = vmatpush1.bf16.msra.mxu0 %v2974
        %3283 = vmatprep.mubr.bf16.mxu0 %v2311
        %3284 = vmatmul.mubr.bf16.gmra.mrb[0].mxu0 %v2306
        %v3285 = vpop.f32.mrb[0].mxu0
        %v3286 = vadd.f32 %v3235, %v3285
        %v3287 = vpop.f32.mrb[0].mxu0
        %v3288 = vadd.f32 %v3237, %v3287
        %v3289 = vpop.f32.mrb[0].mxu0
        %v3290 = vadd.f32 %v3239, %v3289
        %v3291 = vpop.f32.mrb[0].mxu0
        %v3292 = vadd.f32 %v3241, %v3291
        %3293 = vmatprep.mubr.bf16.mxu0 %v2312
        %3294 = vmatmul.mubr.bf16.gmra.mrb[0].mxu0 %v2307
        %v3295 = vpop.f32.mrb[0].mxu0
        %v3296 = vadd.f32 %v3245, %v3295
        %v3297 = vpop.f32.mrb[0].mxu0
        %v3298 = vadd.f32 %v3247, %v3297
        %v3299 = vpop.f32.mrb[0].mxu0
        %v3300 = vpop.f32.mrb[0].mxu0
        %3301 = vdwg.mxu0
        %3302 = vmatprep.subr.bf16.mxu0 %v2977
        %3303 = vmatpush1.bf16.msra.mxu0 %v2976
        %3304 = vmatprep.subr.bf16.mxu0 %v2979
        %3305 = vmatpush1.bf16.msra.mxu0 %v2978
        %3306 = vmatprep.subr.bf16.mxu0 %v2981
        %3307 = vmatpush1.bf16.msra.mxu0 %v2980
        %3308 = vmatprep.subr.bf16.mxu0 %v2983
        %3309 = vmatpush1.bf16.msra.mxu0 %v2982
        %3310 = vmatprep.subr.bf16.mxu0 %v2985
        %3311 = vmatpush1.bf16.msra.mxu0 %v2984
        %3312 = vmatprep.subr.bf16.mxu0 %v2987
        %3313 = vmatpush1.bf16.msra.mxu0 %v2986
        %3314 = vmatprep.subr.bf16.mxu0 %v2989
        %3315 = vmatpush1.bf16.msra.mxu0 %v2988
        %3316 = vmatprep.subr.bf16.mxu0 %v2991
        %3317 = vmatpush1.bf16.msra.mxu0 %v2990
        %3318 = vmatprep.subr.bf16.mxu0 %v2993
        %3319 = vmatpush1.bf16.msra.mxu0 %v2992
        %3320 = vmatprep.subr.bf16.mxu0 %v2995
        %3321 = vmatpush1.bf16.msra.mxu0 %v2994
        %3322 = vmatprep.subr.bf16.mxu0 %v2997
        %3323 = vmatpush1.bf16.msra.mxu0 %v2996
        %3324 = vmatprep.subr.bf16.mxu0 %v2999
        %3325 = vmatpush1.bf16.msra.mxu0 %v2998
        %3326 = vmatprep.subr.bf16.mxu0 %v3001
        %3327 = vmatpush1.bf16.msra.mxu0 %v3000
        %3328 = vmatprep.subr.bf16.mxu0 %v3003
        %3329 = vmatpush1.bf16.msra.mxu0 %v3002
        %3330 = vmatprep.subr.bf16.mxu0 %v3005
        %3331 = vmatpush1.bf16.msra.mxu0 %v3004
        %3332 = vmatprep.subr.bf16.mxu0 %v3007
        %3333 = vmatpush1.bf16.msra.mxu0 %v3006
        %3334 = vmatprep.mubr.bf16.mxu0 %v2319
        %3335 = vmatmul.mubr.bf16.gmra.mrb[0].mxu0 %v2316
        %v3336 = vpop.f32.mrb[0].mxu0
        %v3337 = vadd.f32 %v3286, %v3336
        %v3338 = vpop.f32.mrb[0].mxu0
        %v3339 = vadd.f32 %v3288, %v3338
        %v3340 = vpop.f32.mrb[0].mxu0
        %v3341 = vadd.f32 %v3290, %v3340
        %v3342 = vpop.f32.mrb[0].mxu0
        %v3343 = vadd.f32 %v3292, %v3342
        %3344 = vmatprep.mubr.bf16.mxu0 %v2320
        %3345 = vmatmul.mubr.bf16.gmra.mrb[0].mxu0 %v2317
        %v3346 = vpop.f32.mrb[0].mxu0
        %v3347 = vadd.f32 %v3296, %v3346
        %v3348 = vpop.f32.mrb[0].mxu0
        %v3349 = vadd.f32 %v3298, %v3348
        %v3350 = vpop.f32.mrb[0].mxu0
        %v3351 = vpop.f32.mrb[0].mxu0
        %3352 = vdwg.mxu0
        %3353 = vmatprep.subr.bf16.mxu0 %v3009
        %3354 = vmatpush1.bf16.msra.mxu0 %v3008
        %3355 = vmatprep.subr.bf16.mxu0 %v3011
        %3356 = vmatpush1.bf16.msra.mxu0 %v3010
        %3357 = vmatprep.subr.bf16.mxu0 %v3013
        %3358 = vmatpush1.bf16.msra.mxu0 %v3012
        %3359 = vmatprep.subr.bf16.mxu0 %v3015
        %3360 = vmatpush1.bf16.msra.mxu0 %v3014
        %3361 = vmatprep.subr.bf16.mxu0 %v3017
        %3362 = vmatpush1.bf16.msra.mxu0 %v3016
        %3363 = vmatprep.subr.bf16.mxu0 %v3019
        %3364 = vmatpush1.bf16.msra.mxu0 %v3018
        %3365 = vmatprep.subr.bf16.mxu0 %v3021
        %3366 = vmatpush1.bf16.msra.mxu0 %v3020
        %3367 = vmatprep.subr.bf16.mxu0 %v3023
        %3368 = vmatpush1.bf16.msra.mxu0 %v3022
        %3369 = vmatprep.subr.bf16.mxu0 %v3025
        %3370 = vmatpush1.bf16.msra.mxu0 %v3024
        %3371 = vmatprep.subr.bf16.mxu0 %v3027
        %3372 = vmatpush1.bf16.msra.mxu0 %v3026
        %3373 = vmatprep.subr.bf16.mxu0 %v3029
        %3374 = vmatpush1.bf16.msra.mxu0 %v3028
        %3375 = vmatprep.subr.bf16.mxu0 %v3031
        %3376 = vmatpush1.bf16.msra.mxu0 %v3030
        %3377 = vmatprep.subr.bf16.mxu0 %v3033
        %3378 = vmatpush1.bf16.msra.mxu0 %v3032
        %3379 = vmatprep.subr.bf16.mxu0 %v3035
        %3380 = vmatpush1.bf16.msra.mxu0 %v3034
        %3381 = vmatprep.subr.bf16.mxu0 %v3037
        %3382 = vmatpush1.bf16.msra.mxu0 %v3036
        %3383 = vmatprep.subr.bf16.mxu0 %v3039
        %3384 = vmatpush1.bf16.msra.mxu0 %v3038
        %3385 = vmatprep.mubr.bf16.mxu0 %v2329
        %3386 = vmatmul.mubr.bf16.gmra.mrb[0].mxu0 %v2324
        %v3387 = vpop.f32.mrb[0].mxu0
        %v3388 = vadd.f32 %v3337, %v3387
        %v3389 = vpop.f32.mrb[0].mxu0
        %v3390 = vadd.f32 %v3339, %v3389
        %v3391 = vpop.f32.mrb[0].mxu0
        %v3392 = vadd.f32 %v3341, %v3391
        %v3393 = vpop.f32.mrb[0].mxu0
        %v3394 = vadd.f32 %v3343, %v3393
        %3395 = vmatprep.mubr.bf16.mxu0 %v2330
        %3396 = vmatmul.mubr.bf16.gmra.mrb[0].mxu0 %v2325
        %v3397 = vpop.f32.mrb[0].mxu0
        %v3398 = vadd.f32 %v3347, %v3397
        %v3399 = vpop.f32.mrb[0].mxu0
        %v3400 = vadd.f32 %v3349, %v3399
        %v3401 = vpop.f32.mrb[0].mxu0
        %v3402 = vpop.f32.mrb[0].mxu0
        %3403 = vdwg.mxu0
        %3404 = vmatprep.subr.bf16.mxu0 %v3041
        %3405 = vmatpush1.bf16.msra.mxu0 %v3040
        %3406 = vmatprep.subr.bf16.mxu0 %v3043
        %3407 = vmatpush1.bf16.msra.mxu0 %v3042
        %3408 = vmatprep.subr.bf16.mxu0 %v3045
        %3409 = vmatpush1.bf16.msra.mxu0 %v3044
        %3410 = vmatprep.subr.bf16.mxu0 %v3047
        %3411 = vmatpush1.bf16.msra.mxu0 %v3046
        %3412 = vmatprep.subr.bf16.mxu0 %v3049
        %3413 = vmatpush1.bf16.msra.mxu0 %v3048
        %3414 = vmatprep.subr.bf16.mxu0 %v3051
        %3415 = vmatpush1.bf16.msra.mxu0 %v3050
        %3416 = vmatprep.subr.bf16.mxu0 %v3053
        %3417 = vmatpush1.bf16.msra.mxu0 %v3052
        %3418 = vmatprep.subr.bf16.mxu0 %v3055
        %3419 = vmatpush1.bf16.msra.mxu0 %v3054
        %3420 = vmatprep.subr.bf16.mxu0 0
        %3421 = vmatpush1.bf16.msra.mxu0 0
        %3422 = vmatprep.subr.bf16.mxu0 0
        %3423 = vmatpush1.bf16.msra.mxu0 0
        %3424 = vmatprep.subr.bf16.mxu0 0
        %3425 = vmatpush1.bf16.msra.mxu0 0
        %3426 = vmatprep.subr.bf16.mxu0 0
        %3427 = vmatpush1.bf16.msra.mxu0 0
        %3428 = vmatprep.subr.bf16.mxu0 0
        %3429 = vmatpush1.bf16.msra.mxu0 0
        %3430 = vmatprep.subr.bf16.mxu0 0
        %3431 = vmatpush1.bf16.msra.mxu0 0
        %3432 = vmatprep.subr.bf16.mxu0 0
        %3433 = vmatpush1.bf16.msra.mxu0 0
        %3434 = vmatprep.subr.bf16.mxu0 0
        %3435 = vmatpush1.bf16.msra.mxu0 0
        %3436 = vmatprep.mubr.bf16.mxu0 0
        %3437 = vmatmul.mubr.bf16.gmra.mrb[0].mxu0 %v2334
        %v3438 = vpop.f32.mrb[0].mxu0
        %v3439 = vadd.f32 %v3388, %v3438
        %v3440 = vpop.f32.mrb[0].mxu0
        %v3441 = vadd.f32 %v3390, %v3440
        %v3442 = vpop.f32.mrb[0].mxu0
        %v3443 = vadd.f32 %v3392, %v3442
        %v3444 = vpop.f32.mrb[0].mxu0
        %v3445 = vadd.f32 %v3394, %v3444
        %3446 = vmatprep.mubr.bf16.mxu0 0
        %3447 = vmatmul.mubr.bf16.gmra.mrb[0].mxu0 %v2335
        %v3448 = vpop.f32.mrb[0].mxu0
        %v3449 = vadd.f32 %v3398, %v3448
        %v3450 = vpop.f32.mrb[0].mxu0
        %v3451 = vadd.f32 %v3400, %v3450
        %v3452 = vpop.f32.mrb[0].mxu0
        %v3453 = vpop.f32.mrb[0].mxu0
        %3454 = vdwg.mxu0
        %v3455 = vld [vmem:[%s8] sm:$0x3]
        %v3457 = vlaneseq
        %v3458 = vshrl.u32 %v3457, 7
        %v3459 = vsub.s32 0, %v3458
        %v3460 = vrot.slane %v3455, %v3459
        %v3461 = vlaneseq
        %v3462 = vshrl.u32 %v3461, 7
        %v3463 = vsub.s32 1, %v3462
        %v3464 = vrot.slane %v3455, %v3463
        %v3467 = vmul.f32 %v3439, %v3460
        %v3468 = vmul.f32 %v3441, %v3464
        %v3469 = vmul.f32 %v3443, %v3460
        %v3470 = vmul.f32 %v3445, %v3464
        %v3471 = vmul.f32 %v3449, %v3460
        %v3472 = vmul.f32 %v3451, %v3464
        %v3473 = vld [vmem:[%s9] sm:$0x3]
        %v3475 = vlaneseq
        %v3476 = vshrl.u32 %v3475, 7
        %v3477 = vsub.s32 0, %v3476
        %v3478 = vrot.slane %v3473, %v3477
        %v3479 = vlaneseq
        %v3480 = vshrl.u32 %v3479, 7
        %v3481 = vsub.s32 1, %v3480
        %v3482 = vrot.slane %v3473, %v3481
        %v3485 = vadd.f32 %v3467, %v3478
        %v3486 = vadd.f32 %v3468, %v3482
        %v3487 = vadd.f32 %v3469, %v3478
        %v3488 = vadd.f32 %v3470, %v3482
        %v3489 = vadd.f32 %v3471, %v3478
        %v3490 = vadd.f32 %v3472, %v3482
        %v3491 = vmax.f32 %v3485, 0.0
        %v3492 = vmax.f32 %v3486, 0.0
        %v3493 = vmax.f32 %v3487, 0.0
        %v3494 = vmax.f32 %v3488, 0.0
        %v3495 = vmax.f32 %v3489, 0.0
        %v3496 = vmax.f32 %v3490, 0.0
        %3497 = vst [vmem:[#allocation4] sm:$0xff] 0.0
        %3498 = vst [vmem:[#allocation4 + $0x8] sm:$0xff] 0.0
        %3499 = vst [vmem:[#allocation4 + $0x10] sm:$0xff] 0.0
        %3500 = vst [vmem:[#allocation4 + $0x18] sm:$0xff] 0.0
        %3501 = vst [vmem:[#allocation4 + $0x20] sm:$0x3] 0.0
        %3502 = vst [vmem:[#allocation4 + $0x28] sm:$0x3] 0.0
        %vm3507 = vcmask 1041408
        %v3508 = vrot.slane %v3491, 6
        %v3509 = vrot.slane %v3493, 6
        %v3510 = vsel %vm3507, %v3508, %v3509
        %v3511 = vrot.slane %v3492, 6
        %v3512 = vrot.slane %v3494, 6
        %v3513 = vsel %vm3507, %v3511, %v3512
        %v3516 = vmax.f32 %v3491, %v3510
        %v3517 = vmax.f32 %v3492, %v3513
        %v3520 = vrot.slane %v3516, 1
        %v3521 = vrot.slane %v3517, 1
        %v3524 = vmax.f32 %v3516, %v3520
        %v3525 = vmax.f32 %v3517, %v3521
        %v3528 = vcombine.low %v3524, %v3525
        %v3530 = vunpack.c.l.s4 1966171168
        %v3531 = vunpack.c.0.s8 %v3530
        %v3532 = vlaneseq
        %v3533 = vshrl.u32 %v3532, 7
        %v3534 = vsub.s32 %v3531, %v3533
        %v3535 = vrot.slane %v3528, %v3534
        %v3537 = vunpack.c.l.s4 1966171168
        %v3538 = vunpack.c.0.s8 %v3537
        %v3539 = vlaneseq
        %v3540 = vshrl.u32 %v3539, 7
        %v3541 = vsub.s32 %v3538, %v3540
        %v3542 = vrot.slane %v3535, %v3541
        %v3544 = vlaneseq
        %vm3545 = vcmp.ge.s32.totalorder %v3544, 0
        %vm3546 = vcmp.lt.s32.totalorder %v3544, 256
        %vm3547 = vmand %vm3545, %vm3546
        %s3548 = scalar_lea.vmem [#allocation4], 5
        %3549 = vst.msk [vmem:[%s3548] ss:$8 sm:$0x3] %vm3547, %v3542
        %3550 = vst.msk [vmem:[%s3548] ss:$8 sm:$0x0] %vm3547, %v3542
        %v3551 = vcombine.high %v3542, %v3542
        %s3553 = scalar_lea.vmem [#allocation4], 6
        %3554 = vst.msk [vmem:[%s3553] ss:$8 sm:$0x3] %vm3547, %v3551
        %3555 = vst.msk [vmem:[%s3553] ss:$8 sm:$0x0] %vm3547, %v3551
        %v3558 = vrot.slane %v3495, 6
        %v3559 = vrot.slane %v3496, 6
        %v3562 = vmax.f32 %v3493, %v3558
        %v3563 = vmax.f32 %v3494, %v3559
        %v3566 = vrot.slane %v3562, 1
        %v3567 = vrot.slane %v3563, 1
        %v3570 = vmax.f32 %v3562, %v3566
        %v3571 = vmax.f32 %v3563, %v3567
        %v3574 = vcombine.high %v3570, %v3571
        %v3576 = vunpack.c.l.s4 1966171168
        %v3577 = vunpack.c.0.s8 %v3576
        %v3578 = vlaneseq
        %v3579 = vshrl.u32 %v3578, 7
        %v3580 = vsub.s32 %v3577, %v3579
        %v3581 = vrot.slane %v3574, %v3580
        %v3583 = vunpack.c.l.s4 1966171168
        %v3584 = vunpack.c.0.s8 %v3583
        %v3585 = vlaneseq
        %v3586 = vshrl.u32 %v3585, 7
        %v3587 = vsub.s32 %v3584, %v3586
        %v3588 = vrot.slane %v3581, %v3587
        %s3590 = scalar_lea.vmem [#allocation4], 17
        %3591 = vst.msk [vmem:[%s3590] ss:$8 sm:$0x3] %vm3547, %v3588
        %3592 = vst.msk [vmem:[%s3590] ss:$8 sm:$0x0] %vm3547, %v3588
        %v3593 = vcombine.high %v3588, %v3588
        %s3595 = scalar_lea.vmem [#allocation4], 18
        %3596 = vst.msk [vmem:[%s3595] ss:$8 sm:$0x3] %vm3547, %v3593
        %3597 = vst.msk [vmem:[%s3595] ss:$8 sm:$0x0] %vm3547, %v3593
        %v3598 = vld [vmem:[#allocation4] sm:$0xff]
        %v3599 = vld [vmem:[#allocation4 + $0x8] sm:$0xff]
        %v3600 = vpack.c.bf16 %v3598, %v3598
        %v3601 = vpack.c.bf16 %v3599, %v3599
        %v3602 = vld [vmem:[#allocation4] sm:$0xfe]
        %v3603 = vld [vmem:[#allocation4 + $0x8] sm:$0xfe]
        %v3604 = vld [vmem:[#allocation4 + $0x10] sm:$0x1]
        %v3605 = vld [vmem:[#allocation4 + $0x18] sm:$0x1]
        %v3606 = vpack.c.bf16 %v3604, %v3602
        %v3607 = vpack.c.bf16 %v3605, %v3603
        %v3608 = vld [vmem:[#allocation4] sm:$0xfc]
        %v3609 = vld [vmem:[#allocation4 + $0x8] sm:$0xfc]
        %v3610 = vld [vmem:[#allocation4 + $0x10] sm:$0x3]
        %v3611 = vld [vmem:[#allocation4 + $0x18] sm:$0x3]
        %v3612 = vpack.c.bf16 %v3610, %v3608
        %v3613 = vpack.c.bf16 %v3611, %v3609
        %v3614 = vld [vmem:[#allocation4] sm:$0xf0]
        %v3615 = vld [vmem:[#allocation4 + $0x8] sm:$0xf0]
        %v3616 = vld [vmem:[#allocation4 + $0x10] sm:$0xf]
        %v3617 = vld [vmem:[#allocation4 + $0x18] sm:$0xf]
        %v3618 = vpack.c.bf16 %v3616, %v3614
        %v3619 = vpack.c.bf16 %v3617, %v3615
        %v3620 = vld [vmem:[#allocation4] sm:$0xe0]
        %v3621 = vld [vmem:[#allocation4 + $0x8] sm:$0xe0]
        %v3622 = vld [vmem:[#allocation4 + $0x10] sm:$0x1f]
        %v3623 = vld [vmem:[#allocation4 + $0x18] sm:$0x1f]
        %v3624 = vpack.c.bf16 %v3622, %v3620
        %v3625 = vpack.c.bf16 %v3623, %v3621
        %v3626 = vld [vmem:[#allocation4] sm:$0xc0]
        %v3627 = vld [vmem:[#allocation4 + $0x8] sm:$0xc0]
        %v3628 = vld [vmem:[#allocation4 + $0x10] sm:$0x3f]
        %v3629 = vld [vmem:[#allocation4 + $0x18] sm:$0x3f]
        %v3630 = vpack.c.bf16 %v3628, %v3626
        %v3631 = vpack.c.bf16 %v3629, %v3627
        %v3632 = vld [vmem:[#allocation4 + $0x10] sm:$0xff]
        %v3633 = vld [vmem:[#allocation4 + $0x18] sm:$0xff]
        %v3634 = vpack.c.bf16 %v3632, %v3632
        %v3635 = vpack.c.bf16 %v3633, %v3633
        %v3636 = vld [vmem:[#allocation4 + $0x10] sm:$0xfe]
        %v3637 = vld [vmem:[#allocation4 + $0x18] sm:$0xfe]
        %v3638 = vld [vmem:[#allocation4 + $0x20] sm:$0x1]
        %v3639 = vld [vmem:[#allocation4 + $0x28] sm:$0x1]
        %v3640 = vpack.c.bf16 %v3638, %v3636
        %v3641 = vpack.c.bf16 %v3639, %v3637
        %v3642 = vld [vmem:[#allocation4 + $0x10] sm:$0xfc]
        %v3643 = vld [vmem:[#allocation4 + $0x18] sm:$0xfc]
        %v3644 = vld [vmem:[#allocation4 + $0x20] sm:$0x3]
        %v3645 = vld [vmem:[#allocation4 + $0x28] sm:$0x3]
        %v3646 = vpack.c.bf16 %v3644, %v3642
        %v3647 = vpack.c.bf16 %v3645, %v3643
        %v3649 = vshrl.u32 %v3606, 16
        %v3651 = vshll.u32 %v3606, 16
        %v3653 = vrot.slane %v3651, 1
        %v3654 = vor.u32 %v3649, %v3653
        %v3656 = vshrl.u32 %v3607, 16
        %v3658 = vshll.u32 %v3607, 16
        %v3660 = vrot.slane %v3658, 1
        %v3661 = vor.u32 %v3656, %v3660
        %v3666 = vrot.slane %v3612, 1
        %v3667 = vrot.slane %v3613, 1
        %v3672 = vrot.slane %v3618, 2
        %v3673 = vrot.slane %v3619, 2
        %v3677 = vshrl.u32 %v3624, 16
        %v3679 = vrot.slane %v3677, 2
        %v3680 = vshll.u32 %v3624, 16
        %v3682 = vrot.slane %v3680, 3
        %v3683 = vor.u32 %v3679, %v3682
        %v3685 = vshrl.u32 %v3625, 16
        %v3687 = vrot.slane %v3685, 2
        %v3688 = vshll.u32 %v3625, 16
        %v3690 = vrot.slane %v3688, 3
        %v3691 = vor.u32 %v3687, %v3690
        %v3696 = vrot.slane %v3630, 3
        %v3697 = vrot.slane %v3631, 3
        %v3701 = vshrl.u32 %v3640, 16
        %v3703 = vshll.u32 %v3640, 16
        %v3705 = vrot.slane %v3703, 1
        %v3706 = vor.u32 %v3701, %v3705
        %v3708 = vshrl.u32 %v3641, 16
        %v3710 = vshll.u32 %v3641, 16
        %v3712 = vrot.slane %v3710, 1
        %v3713 = vor.u32 %v3708, %v3712
        %v3718 = vrot.slane %v3646, 1
        %v3719 = vrot.slane %v3647, 1
        %v3722 = vld [vmem:[%s10] sm:$0xff]
        %v3723 = vld [vmem:[%s10 + $0x8] sm:$0xff]
        %v3724 = vld [vmem:[%s10 + $0x10] sm:$0xff]
        %v3725 = vld [vmem:[%s10 + $0x18] sm:$0xff]
        %v3726 = vld [vmem:[%s10 + $0x20] sm:$0xff]
        %v3727 = vld [vmem:[%s10 + $0x28] sm:$0xff]
        %v3728 = vld [vmem:[%s10 + $0x30] sm:$0xff]
        %v3729 = vld [vmem:[%s10 + $0x38] sm:$0xff]
        %v3730 = vld [vmem:[%s10 + $0x40] sm:$0xff]
        %v3731 = vld [vmem:[%s10 + $0x48] sm:$0xff]
        %v3732 = vld [vmem:[%s10 + $0x50] sm:$0xff]
        %v3733 = vld [vmem:[%s10 + $0x58] sm:$0xff]
        %v3734 = vld [vmem:[%s10 + $0x60] sm:$0xff]
        %v3735 = vld [vmem:[%s10 + $0x68] sm:$0xff]
        %v3736 = vld [vmem:[%s10 + $0x70] sm:$0xff]
        %v3737 = vld [vmem:[%s10 + $0x78] sm:$0xff]
        %v3738 = vld [vmem:[%s10 + $0x80] sm:$0xff]
        %v3739 = vld [vmem:[%s10 + $0x88] sm:$0xff]
        %v3740 = vld [vmem:[%s10 + $0x90] sm:$0xff]
        %v3741 = vld [vmem:[%s10 + $0x98] sm:$0xff]
        %v3742 = vld [vmem:[%s10 + $0xa0] sm:$0xff]
        %v3743 = vld [vmem:[%s10 + $0xa8] sm:$0xff]
        %v3744 = vld [vmem:[%s10 + $0xb0] sm:$0xff]
        %v3745 = vld [vmem:[%s10 + $0xb8] sm:$0xff]
        %v3746 = vld [vmem:[%s10 + $0xc0] sm:$0xff]
        %v3747 = vld [vmem:[%s10 + $0xc8] sm:$0xff]
        %v3748 = vld [vmem:[%s10 + $0xd0] sm:$0xff]
        %v3749 = vld [vmem:[%s10 + $0xd8] sm:$0xff]
        %v3750 = vld [vmem:[%s10 + $0xe0] sm:$0xff]
        %v3751 = vld [vmem:[%s10 + $0xe8] sm:$0xff]
        %v3752 = vld [vmem:[%s10 + $0xf0] sm:$0xff]
        %v3753 = vld [vmem:[%s10 + $0xf8] sm:$0xff]
        %v3754 = vld [vmem:[%s10 + $0x100] sm:$0xff]
        %v3755 = vld [vmem:[%s10 + $0x108] sm:$0xff]
        %v3756 = vld [vmem:[%s10 + $0x110] sm:$0xff]
        %v3757 = vld [vmem:[%s10 + $0x118] sm:$0xff]
        %v3758 = vld [vmem:[%s10 + $0x120] sm:$0xff]
        %v3759 = vld [vmem:[%s10 + $0x128] sm:$0xff]
        %v3760 = vld [vmem:[%s10 + $0x130] sm:$0xff]
        %v3761 = vld [vmem:[%s10 + $0x138] sm:$0xff]
        %v3762 = vld [vmem:[%s10 + $0x140] sm:$0xff]
        %v3763 = vld [vmem:[%s10 + $0x148] sm:$0xff]
        %v3764 = vld [vmem:[%s10 + $0x150] sm:$0xff]
        %v3765 = vld [vmem:[%s10 + $0x158] sm:$0xff]
        %v3766 = vld [vmem:[%s10 + $0x160] sm:$0xff]
        %v3767 = vld [vmem:[%s10 + $0x168] sm:$0xff]
        %v3768 = vld [vmem:[%s10 + $0x170] sm:$0xff]
        %v3769 = vld [vmem:[%s10 + $0x178] sm:$0xff]
        %v3770 = vld [vmem:[%s10 + $0x180] sm:$0xff]
        %v3771 = vld [vmem:[%s10 + $0x188] sm:$0xff]
        %v3772 = vld [vmem:[%s10 + $0x190] sm:$0xff]
        %v3773 = vld [vmem:[%s10 + $0x198] sm:$0xff]
        %v3774 = vld [vmem:[%s10 + $0x1a0] sm:$0xff]
        %v3775 = vld [vmem:[%s10 + $0x1a8] sm:$0xff]
        %v3776 = vld [vmem:[%s10 + $0x1b0] sm:$0xff]
        %v3777 = vld [vmem:[%s10 + $0x1b8] sm:$0xff]
        %v3778 = vld [vmem:[%s10 + $0x1c0] sm:$0xff]
        %v3779 = vld [vmem:[%s10 + $0x1c8] sm:$0xff]
        %v3780 = vld [vmem:[%s10 + $0x1d0] sm:$0xff]
        %v3781 = vld [vmem:[%s10 + $0x1d8] sm:$0xff]
        %v3782 = vld [vmem:[%s10 + $0x1e0] sm:$0xff]
        %v3783 = vld [vmem:[%s10 + $0x1e8] sm:$0xff]
        %v3784 = vld [vmem:[%s10 + $0x1f0] sm:$0xff]
        %v3785 = vld [vmem:[%s10 + $0x1f8] sm:$0xff]
        %v3786 = vld [vmem:[%s10 + $0x200] sm:$0xff]
        %v3787 = vld [vmem:[%s10 + $0x208] sm:$0xff]
        %v3788 = vld [vmem:[%s10 + $0x210] sm:$0xff]
        %v3789 = vld [vmem:[%s10 + $0x218] sm:$0xff]
        %v3790 = vld [vmem:[%s10 + $0x220] sm:$0xff]
        %v3791 = vld [vmem:[%s10 + $0x228] sm:$0xff]
        %v3792 = vld [vmem:[%s10 + $0x230] sm:$0xff]
        %v3793 = vld [vmem:[%s10 + $0x238] sm:$0xff]
        %v3794 = vld [vmem:[%s10 + $0x240] sm:$0xff]
        %v3795 = vld [vmem:[%s10 + $0x248] sm:$0xff]
        %v3796 = vld [vmem:[%s10 + $0x250] sm:$0xff]
        %v3797 = vld [vmem:[%s10 + $0x258] sm:$0xff]
        %v3798 = vld [vmem:[%s10 + $0x260] sm:$0xff]
        %v3799 = vld [vmem:[%s10 + $0x268] sm:$0xff]
        %v3800 = vld [vmem:[%s10 + $0x270] sm:$0xff]
        %v3801 = vld [vmem:[%s10 + $0x278] sm:$0xff]
        %v3802 = vld [vmem:[%s10 + $0x280] sm:$0xff]
        %v3803 = vld [vmem:[%s10 + $0x288] sm:$0xff]
        %v3804 = vld [vmem:[%s10 + $0x290] sm:$0xff]
        %v3805 = vld [vmem:[%s10 + $0x298] sm:$0xff]
        %v3806 = vld [vmem:[%s10 + $0x2a0] sm:$0xff]
        %v3807 = vld [vmem:[%s10 + $0x2a8] sm:$0xff]
        %v3808 = vld [vmem:[%s10 + $0x2b0] sm:$0xff]
        %v3809 = vld [vmem:[%s10 + $0x2b8] sm:$0xff]
        %v3810 = vld [vmem:[%s10 + $0x2c0] sm:$0xff]
        %v3811 = vld [vmem:[%s10 + $0x2c8] sm:$0xff]
        %v3812 = vld [vmem:[%s10 + $0x2d0] sm:$0xff]
        %v3813 = vld [vmem:[%s10 + $0x2d8] sm:$0xff]
        %v3814 = vld [vmem:[%s10 + $0x2e0] sm:$0xff]
        %v3815 = vld [vmem:[%s10 + $0x2e8] sm:$0xff]
        %v3816 = vld [vmem:[%s10 + $0x2f0] sm:$0xff]
        %v3817 = vld [vmem:[%s10 + $0x2f8] sm:$0xff]
        %v3818 = vld [vmem:[%s10 + $0x300] sm:$0xff]
        %v3819 = vld [vmem:[%s10 + $0x308] sm:$0xff]
        %v3820 = vld [vmem:[%s10 + $0x310] sm:$0xff]
        %v3821 = vld [vmem:[%s10 + $0x318] sm:$0xff]
        %v3822 = vld [vmem:[%s10 + $0x320] sm:$0xff]
        %v3823 = vld [vmem:[%s10 + $0x328] sm:$0xff]
        %v3824 = vld [vmem:[%s10 + $0x330] sm:$0xff]
        %v3825 = vld [vmem:[%s10 + $0x338] sm:$0xff]
        %v3826 = vld [vmem:[%s10 + $0x340] sm:$0xff]
        %v3827 = vld [vmem:[%s10 + $0x348] sm:$0xff]
        %v3828 = vld [vmem:[%s10 + $0x350] sm:$0xff]
        %v3829 = vld [vmem:[%s10 + $0x358] sm:$0xff]
        %v3830 = vld [vmem:[%s10 + $0x360] sm:$0xff]
        %v3831 = vld [vmem:[%s10 + $0x368] sm:$0xff]
        %v3832 = vld [vmem:[%s10 + $0x370] sm:$0xff]
        %v3833 = vld [vmem:[%s10 + $0x378] sm:$0xff]
        %v3834 = vld [vmem:[%s10 + $0x380] sm:$0xff]
        %v3835 = vld [vmem:[%s10 + $0x388] sm:$0xff]
        %v3836 = vld [vmem:[%s10 + $0x390] sm:$0xff]
        %v3837 = vld [vmem:[%s10 + $0x398] sm:$0xff]
        %v3838 = vld [vmem:[%s10 + $0x3a0] sm:$0xff]
        %v3839 = vld [vmem:[%s10 + $0x3a8] sm:$0xff]
        %v3840 = vld [vmem:[%s10 + $0x3b0] sm:$0xff]
        %v3841 = vld [vmem:[%s10 + $0x3b8] sm:$0xff]
        %v3842 = vld [vmem:[%s10 + $0x3c0] sm:$0xff]
        %v3843 = vld [vmem:[%s10 + $0x3c8] sm:$0xff]
        %v3844 = vld [vmem:[%s10 + $0x3d0] sm:$0xff]
        %v3845 = vld [vmem:[%s10 + $0x3d8] sm:$0xff]
        %v3846 = vld [vmem:[%s10 + $0x3e0] sm:$0xff]
        %v3847 = vld [vmem:[%s10 + $0x3e8] sm:$0xff]
        %v3848 = vld [vmem:[%s10 + $0x3f0] sm:$0xff]
        %v3849 = vld [vmem:[%s10 + $0x3f8] sm:$0xff]
        %v3850 = vld [vmem:[%s10 + $0x400] sm:$0xff]
        %v3851 = vld [vmem:[%s10 + $0x408] sm:$0xff]
        %v3852 = vld [vmem:[%s10 + $0x410] sm:$0xff]
        %v3853 = vld [vmem:[%s10 + $0x418] sm:$0xff]
        %v3854 = vld [vmem:[%s10 + $0x420] sm:$0xff]
        %v3855 = vld [vmem:[%s10 + $0x428] sm:$0xff]
        %v3856 = vld [vmem:[%s10 + $0x430] sm:$0xff]
        %v3857 = vld [vmem:[%s10 + $0x438] sm:$0xff]
        %v3858 = vld [vmem:[%s10 + $0x440] sm:$0xff]
        %v3859 = vld [vmem:[%s10 + $0x448] sm:$0xff]
        %v3860 = vld [vmem:[%s10 + $0x450] sm:$0xff]
        %v3861 = vld [vmem:[%s10 + $0x458] sm:$0xff]
        %v3862 = vld [vmem:[%s10 + $0x460] sm:$0xff]
        %v3863 = vld [vmem:[%s10 + $0x468] sm:$0xff]
        %v3864 = vld [vmem:[%s10 + $0x470] sm:$0xff]
        %v3865 = vld [vmem:[%s10 + $0x478] sm:$0xff]
        %v3866 = vld [vmem:[%s10 + $0x480] sm:$0xff]
        %v3867 = vld [vmem:[%s10 + $0x488] sm:$0xff]
        %v3868 = vld [vmem:[%s10 + $0x490] sm:$0xff]
        %v3869 = vld [vmem:[%s10 + $0x498] sm:$0xff]
        %v3870 = vld [vmem:[%s10 + $0x4a0] sm:$0xff]
        %v3871 = vld [vmem:[%s10 + $0x4a8] sm:$0xff]
        %v3872 = vld [vmem:[%s10 + $0x4b0] sm:$0xff]
        %v3873 = vld [vmem:[%s10 + $0x4b8] sm:$0xff]
        %v3874 = vld [vmem:[%s10 + $0x4c0] sm:$0xff]
        %v3875 = vld [vmem:[%s10 + $0x4c8] sm:$0xff]
        %v3876 = vld [vmem:[%s10 + $0x4d0] sm:$0xff]
        %v3877 = vld [vmem:[%s10 + $0x4d8] sm:$0xff]
        %v3878 = vld [vmem:[%s10 + $0x4e0] sm:$0xff]
        %v3879 = vld [vmem:[%s10 + $0x4e8] sm:$0xff]
        %v3880 = vld [vmem:[%s10 + $0x4f0] sm:$0xff]
        %v3881 = vld [vmem:[%s10 + $0x4f8] sm:$0xff]
        %v3882 = vld [vmem:[%s10 + $0x500] sm:$0xff]
        %v3883 = vld [vmem:[%s10 + $0x508] sm:$0xff]
        %v3884 = vld [vmem:[%s10 + $0x510] sm:$0xff]
        %v3885 = vld [vmem:[%s10 + $0x518] sm:$0xff]
        %v3886 = vld [vmem:[%s10 + $0x520] sm:$0xff]
        %v3887 = vld [vmem:[%s10 + $0x528] sm:$0xff]
        %v3888 = vld [vmem:[%s10 + $0x530] sm:$0xff]
        %v3889 = vld [vmem:[%s10 + $0x538] sm:$0xff]
        %v3890 = vld [vmem:[%s10 + $0x540] sm:$0xff]
        %v3891 = vld [vmem:[%s10 + $0x548] sm:$0xff]
        %v3892 = vld [vmem:[%s10 + $0x550] sm:$0xff]
        %v3893 = vld [vmem:[%s10 + $0x558] sm:$0xff]
        %v3894 = vld [vmem:[%s10 + $0x560] sm:$0xff]
        %v3895 = vld [vmem:[%s10 + $0x568] sm:$0xff]
        %v3896 = vld [vmem:[%s10 + $0x570] sm:$0xff]
        %v3897 = vld [vmem:[%s10 + $0x578] sm:$0xff]
        %v3898 = vld [vmem:[%s10 + $0x580] sm:$0xff]
        %v3899 = vld [vmem:[%s10 + $0x588] sm:$0xff]
        %v3900 = vld [vmem:[%s10 + $0x590] sm:$0xff]
        %v3901 = vld [vmem:[%s10 + $0x598] sm:$0xff]
        %v3902 = vld [vmem:[%s10 + $0x5a0] sm:$0xff]
        %v3903 = vld [vmem:[%s10 + $0x5a8] sm:$0xff]
        %v3904 = vld [vmem:[%s10 + $0x5b0] sm:$0xff]
        %v3905 = vld [vmem:[%s10 + $0x5b8] sm:$0xff]
        %v3906 = vld [vmem:[%s10 + $0x5c0] sm:$0xff]
        %v3907 = vld [vmem:[%s10 + $0x5c8] sm:$0xff]
        %v3908 = vld [vmem:[%s10 + $0x5d0] sm:$0xff]
        %v3909 = vld [vmem:[%s10 + $0x5d8] sm:$0xff]
        %v3910 = vld [vmem:[%s10 + $0x5e0] sm:$0xff]
        %v3911 = vld [vmem:[%s10 + $0x5e8] sm:$0xff]
        %v3912 = vld [vmem:[%s10 + $0x5f0] sm:$0xff]
        %v3913 = vld [vmem:[%s10 + $0x5f8] sm:$0xff]
        %v3914 = vld [vmem:[%s10 + $0x600] sm:$0xff]
        %v3915 = vld [vmem:[%s10 + $0x608] sm:$0xff]
        %v3916 = vld [vmem:[%s10 + $0x610] sm:$0xff]
        %v3917 = vld [vmem:[%s10 + $0x618] sm:$0xff]
        %v3918 = vld [vmem:[%s10 + $0x620] sm:$0xff]
        %v3919 = vld [vmem:[%s10 + $0x628] sm:$0xff]
        %v3920 = vld [vmem:[%s10 + $0x630] sm:$0xff]
        %v3921 = vld [vmem:[%s10 + $0x638] sm:$0xff]
        %v3922 = vld [vmem:[%s10 + $0x640] sm:$0xff]
        %v3923 = vld [vmem:[%s10 + $0x648] sm:$0xff]
        %v3924 = vld [vmem:[%s10 + $0x650] sm:$0xff]
        %v3925 = vld [vmem:[%s10 + $0x658] sm:$0xff]
        %v3926 = vld [vmem:[%s10 + $0x660] sm:$0xff]
        %v3927 = vld [vmem:[%s10 + $0x668] sm:$0xff]
        %v3928 = vld [vmem:[%s10 + $0x670] sm:$0xff]
        %v3929 = vld [vmem:[%s10 + $0x678] sm:$0xff]
        %v3930 = vld [vmem:[%s10 + $0x680] sm:$0xff]
        %v3931 = vld [vmem:[%s10 + $0x688] sm:$0xff]
        %v3932 = vld [vmem:[%s10 + $0x690] sm:$0xff]
        %v3933 = vld [vmem:[%s10 + $0x698] sm:$0xff]
        %v3934 = vld [vmem:[%s10 + $0x6a0] sm:$0xff]
        %v3935 = vld [vmem:[%s10 + $0x6a8] sm:$0xff]
        %v3936 = vld [vmem:[%s10 + $0x6b0] sm:$0xff]
        %v3937 = vld [vmem:[%s10 + $0x6b8] sm:$0xff]
        %v3938 = vld [vmem:[%s10 + $0x6c0] sm:$0xff]
        %v3939 = vld [vmem:[%s10 + $0x6c8] sm:$0xff]
        %v3940 = vld [vmem:[%s10 + $0x6d0] sm:$0xff]
        %v3941 = vld [vmem:[%s10 + $0x6d8] sm:$0xff]
        %v3942 = vld [vmem:[%s10 + $0x6e0] sm:$0xff]
        %v3943 = vld [vmem:[%s10 + $0x6e8] sm:$0xff]
        %v3944 = vld [vmem:[%s10 + $0x6f0] sm:$0xff]
        %v3945 = vld [vmem:[%s10 + $0x6f8] sm:$0xff]
        %v3946 = vld [vmem:[%s10 + $0x700] sm:$0xff]
        %v3947 = vld [vmem:[%s10 + $0x708] sm:$0xff]
        %v3948 = vld [vmem:[%s10 + $0x710] sm:$0xff]
        %v3949 = vld [vmem:[%s10 + $0x718] sm:$0xff]
        %v3950 = vld [vmem:[%s10 + $0x720] sm:$0xff]
        %v3951 = vld [vmem:[%s10 + $0x728] sm:$0xff]
        %v3952 = vld [vmem:[%s10 + $0x730] sm:$0xff]
        %v3953 = vld [vmem:[%s10 + $0x738] sm:$0xff]
        %v3954 = vld [vmem:[%s10 + $0x740] sm:$0xff]
        %v3955 = vld [vmem:[%s10 + $0x748] sm:$0xff]
        %v3956 = vld [vmem:[%s10 + $0x750] sm:$0xff]
        %v3957 = vld [vmem:[%s10 + $0x758] sm:$0xff]
        %v3958 = vld [vmem:[%s10 + $0x760] sm:$0xff]
        %v3959 = vld [vmem:[%s10 + $0x768] sm:$0xff]
        %v3960 = vld [vmem:[%s10 + $0x770] sm:$0xff]
        %v3961 = vld [vmem:[%s10 + $0x778] sm:$0xff]
        %v3962 = vld [vmem:[%s10 + $0x780] sm:$0xff]
        %v3963 = vld [vmem:[%s10 + $0x788] sm:$0xff]
        %v3964 = vld [vmem:[%s10 + $0x790] sm:$0xff]
        %v3965 = vld [vmem:[%s10 + $0x798] sm:$0xff]
        %v3966 = vld [vmem:[%s10 + $0x7a0] sm:$0xff]
        %v3967 = vld [vmem:[%s10 + $0x7a8] sm:$0xff]
        %v3968 = vld [vmem:[%s10 + $0x7b0] sm:$0xff]
        %v3969 = vld [vmem:[%s10 + $0x7b8] sm:$0xff]
        %v3970 = vld [vmem:[%s10 + $0x7c0] sm:$0xff]
        %v3971 = vld [vmem:[%s10 + $0x7c8] sm:$0xff]
        %v3972 = vld [vmem:[%s10 + $0x7d0] sm:$0xff]
        %v3973 = vld [vmem:[%s10 + $0x7d8] sm:$0xff]
        %v3974 = vld [vmem:[%s10 + $0x7e0] sm:$0xff]
        %v3975 = vld [vmem:[%s10 + $0x7e8] sm:$0xff]
        %v3976 = vld [vmem:[%s10 + $0x7f0] sm:$0xff]
        %v3977 = vld [vmem:[%s10 + $0x7f8] sm:$0xff]
        %v3978 = vld [vmem:[%s10 + $0x800] sm:$0xff]
        %v3979 = vld [vmem:[%s10 + $0x808] sm:$0xff]
        %v3980 = vld [vmem:[%s10 + $0x810] sm:$0xff]
        %v3981 = vld [vmem:[%s10 + $0x818] sm:$0xff]
        %v3982 = vld [vmem:[%s10 + $0x820] sm:$0xff]
        %v3983 = vld [vmem:[%s10 + $0x828] sm:$0xff]
        %v3984 = vld [vmem:[%s10 + $0x830] sm:$0xff]
        %v3985 = vld [vmem:[%s10 + $0x838] sm:$0xff]
        %v3986 = vld [vmem:[%s10 + $0x840] sm:$0xff]
        %v3987 = vld [vmem:[%s10 + $0x848] sm:$0xff]
        %v3988 = vld [vmem:[%s10 + $0x850] sm:$0xff]
        %v3989 = vld [vmem:[%s10 + $0x858] sm:$0xff]
        %v3990 = vld [vmem:[%s10 + $0x860] sm:$0xff]
        %v3991 = vld [vmem:[%s10 + $0x868] sm:$0xff]
        %v3992 = vld [vmem:[%s10 + $0x870] sm:$0xff]
        %v3993 = vld [vmem:[%s10 + $0x878] sm:$0xff]
        %v3994 = vld [vmem:[%s10 + $0x880] sm:$0xff]
        %v3995 = vld [vmem:[%s10 + $0x888] sm:$0xff]
        %v3996 = vld [vmem:[%s10 + $0x890] sm:$0xff]
        %v3997 = vld [vmem:[%s10 + $0x898] sm:$0xff]
        %v3998 = vld [vmem:[%s10 + $0x8a0] sm:$0xff]
        %v3999 = vld [vmem:[%s10 + $0x8a8] sm:$0xff]
        %v4000 = vld [vmem:[%s10 + $0x8b0] sm:$0xff]
        %v4001 = vld [vmem:[%s10 + $0x8b8] sm:$0xff]
        %v4002 = vld [vmem:[%s10 + $0x8c0] sm:$0xff]
        %v4003 = vld [vmem:[%s10 + $0x8c8] sm:$0xff]
        %v4004 = vld [vmem:[%s10 + $0x8d0] sm:$0xff]
        %v4005 = vld [vmem:[%s10 + $0x8d8] sm:$0xff]
        %v4006 = vld [vmem:[%s10 + $0x8e0] sm:$0xff]
        %v4007 = vld [vmem:[%s10 + $0x8e8] sm:$0xff]
        %v4008 = vld [vmem:[%s10 + $0x8f0] sm:$0xff]
        %v4009 = vld [vmem:[%s10 + $0x8f8] sm:$0xff]
        %v4010 = vld [vmem:[%s10 + $0x900] sm:$0xff]
        %v4011 = vld [vmem:[%s10 + $0x908] sm:$0xff]
        %v4012 = vld [vmem:[%s10 + $0x910] sm:$0xff]
        %v4013 = vld [vmem:[%s10 + $0x918] sm:$0xff]
        %v4014 = vld [vmem:[%s10 + $0x920] sm:$0xff]
        %v4015 = vld [vmem:[%s10 + $0x928] sm:$0xff]
        %v4016 = vld [vmem:[%s10 + $0x930] sm:$0xff]
        %v4017 = vld [vmem:[%s10 + $0x938] sm:$0xff]
        %v4018 = vld [vmem:[%s10 + $0x940] sm:$0xff]
        %v4019 = vld [vmem:[%s10 + $0x948] sm:$0xff]
        %v4020 = vld [vmem:[%s10 + $0x950] sm:$0xff]
        %v4021 = vld [vmem:[%s10 + $0x958] sm:$0xff]
        %v4022 = vld [vmem:[%s10 + $0x960] sm:$0xff]
        %v4023 = vld [vmem:[%s10 + $0x968] sm:$0xff]
        %v4024 = vld [vmem:[%s10 + $0x970] sm:$0xff]
        %v4025 = vld [vmem:[%s10 + $0x978] sm:$0xff]
        %v4026 = vld [vmem:[%s10 + $0x980] sm:$0xff]
        %v4027 = vld [vmem:[%s10 + $0x988] sm:$0xff]
        %v4028 = vld [vmem:[%s10 + $0x990] sm:$0xff]
        %v4029 = vld [vmem:[%s10 + $0x998] sm:$0xff]
        %v4030 = vld [vmem:[%s10 + $0x9a0] sm:$0xff]
        %v4031 = vld [vmem:[%s10 + $0x9a8] sm:$0xff]
        %v4032 = vld [vmem:[%s10 + $0x9b0] sm:$0xff]
        %v4033 = vld [vmem:[%s10 + $0x9b8] sm:$0xff]
        %v4034 = vld [vmem:[%s10 + $0x9c0] sm:$0xff]
        %v4035 = vld [vmem:[%s10 + $0x9c8] sm:$0xff]
        %v4036 = vld [vmem:[%s10 + $0x9d0] sm:$0xff]
        %v4037 = vld [vmem:[%s10 + $0x9d8] sm:$0xff]
        %v4038 = vld [vmem:[%s10 + $0x9e0] sm:$0xff]
        %v4039 = vld [vmem:[%s10 + $0x9e8] sm:$0xff]
        %v4040 = vld [vmem:[%s10 + $0x9f0] sm:$0xff]
        %v4041 = vld [vmem:[%s10 + $0x9f8] sm:$0xff]
        %v4042 = vld [vmem:[%s10 + $0xa00] sm:$0xff]
        %v4043 = vld [vmem:[%s10 + $0xa08] sm:$0xff]
        %v4044 = vld [vmem:[%s10 + $0xa10] sm:$0xff]
        %v4045 = vld [vmem:[%s10 + $0xa18] sm:$0xff]
        %v4046 = vld [vmem:[%s10 + $0xa20] sm:$0xff]
        %v4047 = vld [vmem:[%s10 + $0xa28] sm:$0xff]
        %v4048 = vld [vmem:[%s10 + $0xa30] sm:$0xff]
        %v4049 = vld [vmem:[%s10 + $0xa38] sm:$0xff]
        %v4050 = vld [vmem:[%s10 + $0xa40] sm:$0xff]
        %v4051 = vld [vmem:[%s10 + $0xa48] sm:$0xff]
        %v4052 = vld [vmem:[%s10 + $0xa50] sm:$0xff]
        %v4053 = vld [vmem:[%s10 + $0xa58] sm:$0xff]
        %v4054 = vld [vmem:[%s10 + $0xa60] sm:$0xff]
        %v4055 = vld [vmem:[%s10 + $0xa68] sm:$0xff]
        %v4056 = vld [vmem:[%s10 + $0xa70] sm:$0xff]
        %v4057 = vld [vmem:[%s10 + $0xa78] sm:$0xff]
        %v4058 = vld [vmem:[%s10 + $0xa80] sm:$0xff]
        %v4059 = vld [vmem:[%s10 + $0xa88] sm:$0xff]
        %v4060 = vld [vmem:[%s10 + $0xa90] sm:$0xff]
        %v4061 = vld [vmem:[%s10 + $0xa98] sm:$0xff]
        %v4062 = vld [vmem:[%s10 + $0xaa0] sm:$0xff]
        %v4063 = vld [vmem:[%s10 + $0xaa8] sm:$0xff]
        %v4064 = vld [vmem:[%s10 + $0xab0] sm:$0xff]
        %v4065 = vld [vmem:[%s10 + $0xab8] sm:$0xff]
        %v4066 = vld [vmem:[%s10 + $0xac0] sm:$0xff]
        %v4067 = vld [vmem:[%s10 + $0xac8] sm:$0xff]
        %v4068 = vld [vmem:[%s10 + $0xad0] sm:$0xff]
        %v4069 = vld [vmem:[%s10 + $0xad8] sm:$0xff]
        %v4070 = vld [vmem:[%s10 + $0xae0] sm:$0xff]
        %v4071 = vld [vmem:[%s10 + $0xae8] sm:$0xff]
        %v4072 = vld [vmem:[%s10 + $0xaf0] sm:$0xff]
        %v4073 = vld [vmem:[%s10 + $0xaf8] sm:$0xff]
        %v4074 = vld [vmem:[%s10 + $0xb00] sm:$0xff]
        %v4075 = vld [vmem:[%s10 + $0xb08] sm:$0xff]
        %v4076 = vld [vmem:[%s10 + $0xb10] sm:$0xff]
        %v4077 = vld [vmem:[%s10 + $0xb18] sm:$0xff]
        %v4078 = vld [vmem:[%s10 + $0xb20] sm:$0xff]
        %v4079 = vld [vmem:[%s10 + $0xb28] sm:$0xff]
        %v4080 = vld [vmem:[%s10 + $0xb30] sm:$0xff]
        %v4081 = vld [vmem:[%s10 + $0xb38] sm:$0xff]
        %v4082 = vld [vmem:[%s10 + $0xb40] sm:$0xff]
        %v4083 = vld [vmem:[%s10 + $0xb48] sm:$0xff]
        %v4084 = vld [vmem:[%s10 + $0xb50] sm:$0xff]
        %v4085 = vld [vmem:[%s10 + $0xb58] sm:$0xff]
        %v4086 = vld [vmem:[%s10 + $0xb60] sm:$0xff]
        %v4087 = vld [vmem:[%s10 + $0xb68] sm:$0xff]
        %v4088 = vld [vmem:[%s10 + $0xb70] sm:$0xff]
        %v4089 = vld [vmem:[%s10 + $0xb78] sm:$0xff]
        %v4090 = vld [vmem:[%s10 + $0xb80] sm:$0xff]
        %v4091 = vld [vmem:[%s10 + $0xb88] sm:$0xff]
        %v4092 = vld [vmem:[%s10 + $0xb90] sm:$0xff]
        %v4093 = vld [vmem:[%s10 + $0xb98] sm:$0xff]
        %v4094 = vld [vmem:[%s10 + $0xba0] sm:$0xff]
        %v4095 = vld [vmem:[%s10 + $0xba8] sm:$0xff]
        %v4096 = vld [vmem:[%s10 + $0xbb0] sm:$0xff]
        %v4097 = vld [vmem:[%s10 + $0xbb8] sm:$0xff]
        %v4098 = vld [vmem:[%s10 + $0xbc0] sm:$0xff]
        %v4099 = vld [vmem:[%s10 + $0xbc8] sm:$0xff]
        %v4100 = vld [vmem:[%s10 + $0xbd0] sm:$0xff]
        %v4101 = vld [vmem:[%s10 + $0xbd8] sm:$0xff]
        %v4102 = vld [vmem:[%s10 + $0xbe0] sm:$0xff]
        %v4103 = vld [vmem:[%s10 + $0xbe8] sm:$0xff]
        %v4104 = vld [vmem:[%s10 + $0xbf0] sm:$0xff]
        %v4105 = vld [vmem:[%s10 + $0xbf8] sm:$0xff]
        %v4106 = vld [vmem:[%s10 + $0xc00] sm:$0xff]
        %v4107 = vld [vmem:[%s10 + $0xc08] sm:$0xff]
        %v4108 = vld [vmem:[%s10 + $0xc10] sm:$0xff]
        %v4109 = vld [vmem:[%s10 + $0xc18] sm:$0xff]
        %v4110 = vld [vmem:[%s10 + $0xc20] sm:$0xff]
        %v4111 = vld [vmem:[%s10 + $0xc28] sm:$0xff]
        %v4112 = vld [vmem:[%s10 + $0xc30] sm:$0xff]
        %v4113 = vld [vmem:[%s10 + $0xc38] sm:$0xff]
        %v4114 = vld [vmem:[%s10 + $0xc40] sm:$0xff]
        %v4115 = vld [vmem:[%s10 + $0xc48] sm:$0xff]
        %v4116 = vld [vmem:[%s10 + $0xc50] sm:$0xff]
        %v4117 = vld [vmem:[%s10 + $0xc58] sm:$0xff]
        %v4118 = vld [vmem:[%s10 + $0xc60] sm:$0xff]
        %v4119 = vld [vmem:[%s10 + $0xc68] sm:$0xff]
        %v4120 = vld [vmem:[%s10 + $0xc70] sm:$0xff]
        %v4121 = vld [vmem:[%s10 + $0xc78] sm:$0xff]
        %v4122 = vld [vmem:[%s10 + $0xc80] sm:$0xff]
        %v4123 = vld [vmem:[%s10 + $0xc88] sm:$0xff]
        %v4124 = vld [vmem:[%s10 + $0xc90] sm:$0xff]
        %v4125 = vld [vmem:[%s10 + $0xc98] sm:$0xff]
        %v4126 = vld [vmem:[%s10 + $0xca0] sm:$0xff]
        %v4127 = vld [vmem:[%s10 + $0xca8] sm:$0xff]
        %v4128 = vld [vmem:[%s10 + $0xcb0] sm:$0xff]
        %v4129 = vld [vmem:[%s10 + $0xcb8] sm:$0xff]
        %v4130 = vld [vmem:[%s10 + $0xcc0] sm:$0xff]
        %v4131 = vld [vmem:[%s10 + $0xcc8] sm:$0xff]
        %v4132 = vld [vmem:[%s10 + $0xcd0] sm:$0xff]
        %v4133 = vld [vmem:[%s10 + $0xcd8] sm:$0xff]
        %v4134 = vld [vmem:[%s10 + $0xce0] sm:$0xff]
        %v4135 = vld [vmem:[%s10 + $0xce8] sm:$0xff]
        %v4136 = vld [vmem:[%s10 + $0xcf0] sm:$0xff]
        %v4137 = vld [vmem:[%s10 + $0xcf8] sm:$0xff]
        %v4138 = vld [vmem:[%s10 + $0xd00] sm:$0xff]
        %v4139 = vld [vmem:[%s10 + $0xd08] sm:$0xff]
        %v4140 = vld [vmem:[%s10 + $0xd10] sm:$0xff]
        %v4141 = vld [vmem:[%s10 + $0xd18] sm:$0xff]
        %v4142 = vld [vmem:[%s10 + $0xd20] sm:$0xff]
        %v4143 = vld [vmem:[%s10 + $0xd28] sm:$0xff]
        %v4144 = vld [vmem:[%s10 + $0xd30] sm:$0xff]
        %v4145 = vld [vmem:[%s10 + $0xd38] sm:$0xff]
        %v4146 = vld [vmem:[%s10 + $0xd40] sm:$0xff]
        %v4147 = vld [vmem:[%s10 + $0xd48] sm:$0xff]
        %v4148 = vld [vmem:[%s10 + $0xd50] sm:$0xff]
        %v4149 = vld [vmem:[%s10 + $0xd58] sm:$0xff]
        %v4150 = vld [vmem:[%s10 + $0xd60] sm:$0xff]
        %v4151 = vld [vmem:[%s10 + $0xd68] sm:$0xff]
        %v4152 = vld [vmem:[%s10 + $0xd70] sm:$0xff]
        %v4153 = vld [vmem:[%s10 + $0xd78] sm:$0xff]
        %v4154 = vld [vmem:[%s10 + $0xd80] sm:$0xff]
        %v4155 = vld [vmem:[%s10 + $0xd88] sm:$0xff]
        %v4156 = vld [vmem:[%s10 + $0xd90] sm:$0xff]
        %v4157 = vld [vmem:[%s10 + $0xd98] sm:$0xff]
        %v4158 = vld [vmem:[%s10 + $0xda0] sm:$0xff]
        %v4159 = vld [vmem:[%s10 + $0xda8] sm:$0xff]
        %v4160 = vld [vmem:[%s10 + $0xdb0] sm:$0xff]
        %v4161 = vld [vmem:[%s10 + $0xdb8] sm:$0xff]
        %v4162 = vld [vmem:[%s10 + $0xdc0] sm:$0xff]
        %v4163 = vld [vmem:[%s10 + $0xdc8] sm:$0xff]
        %v4164 = vld [vmem:[%s10 + $0xdd0] sm:$0xff]
        %v4165 = vld [vmem:[%s10 + $0xdd8] sm:$0xff]
        %v4166 = vld [vmem:[%s10 + $0xde0] sm:$0xff]
        %v4167 = vld [vmem:[%s10 + $0xde8] sm:$0xff]
        %v4168 = vld [vmem:[%s10 + $0xdf0] sm:$0xff]
        %v4169 = vld [vmem:[%s10 + $0xdf8] sm:$0xff]
        %v4170 = vld [vmem:[%s10 + $0xe00] sm:$0xff]
        %v4171 = vld [vmem:[%s10 + $0xe08] sm:$0xff]
        %v4172 = vld [vmem:[%s10 + $0xe10] sm:$0xff]
        %v4173 = vld [vmem:[%s10 + $0xe18] sm:$0xff]
        %v4174 = vld [vmem:[%s10 + $0xe20] sm:$0xff]
        %v4175 = vld [vmem:[%s10 + $0xe28] sm:$0xff]
        %v4176 = vld [vmem:[%s10 + $0xe30] sm:$0xff]
        %v4177 = vld [vmem:[%s10 + $0xe38] sm:$0xff]
        %v4178 = vld [vmem:[%s10 + $0xe40] sm:$0xff]
        %v4179 = vld [vmem:[%s10 + $0xe48] sm:$0xff]
        %v4180 = vld [vmem:[%s10 + $0xe50] sm:$0xff]
        %v4181 = vld [vmem:[%s10 + $0xe58] sm:$0xff]
        %v4182 = vld [vmem:[%s10 + $0xe60] sm:$0xff]
        %v4183 = vld [vmem:[%s10 + $0xe68] sm:$0xff]
        %v4184 = vld [vmem:[%s10 + $0xe70] sm:$0xff]
        %v4185 = vld [vmem:[%s10 + $0xe78] sm:$0xff]
        %v4186 = vld [vmem:[%s10 + $0xe80] sm:$0xff]
        %v4187 = vld [vmem:[%s10 + $0xe88] sm:$0xff]
        %v4188 = vld [vmem:[%s10 + $0xe90] sm:$0xff]
        %v4189 = vld [vmem:[%s10 + $0xe98] sm:$0xff]
        %v4190 = vld [vmem:[%s10 + $0xea0] sm:$0xff]
        %v4191 = vld [vmem:[%s10 + $0xea8] sm:$0xff]
        %v4192 = vld [vmem:[%s10 + $0xeb0] sm:$0xff]
        %v4193 = vld [vmem:[%s10 + $0xeb8] sm:$0xff]
        %v4194 = vld [vmem:[%s10 + $0xec0] sm:$0xff]
        %v4195 = vld [vmem:[%s10 + $0xec8] sm:$0xff]
        %v4196 = vld [vmem:[%s10 + $0xed0] sm:$0xff]
        %v4197 = vld [vmem:[%s10 + $0xed8] sm:$0xff]
        %v4198 = vld [vmem:[%s10 + $0xee0] sm:$0xff]
        %v4199 = vld [vmem:[%s10 + $0xee8] sm:$0xff]
        %v4200 = vld [vmem:[%s10 + $0xef0] sm:$0xff]
        %v4201 = vld [vmem:[%s10 + $0xef8] sm:$0xff]
        %v4202 = vld [vmem:[%s10 + $0xf00] sm:$0xff]
        %v4203 = vld [vmem:[%s10 + $0xf08] sm:$0xff]
        %v4204 = vld [vmem:[%s10 + $0xf10] sm:$0xff]
        %v4205 = vld [vmem:[%s10 + $0xf18] sm:$0xff]
        %v4206 = vld [vmem:[%s10 + $0xf20] sm:$0xff]
        %v4207 = vld [vmem:[%s10 + $0xf28] sm:$0xff]
        %v4208 = vld [vmem:[%s10 + $0xf30] sm:$0xff]
        %v4209 = vld [vmem:[%s10 + $0xf38] sm:$0xff]
        %v4210 = vld [vmem:[%s10 + $0xf40] sm:$0xff]
        %v4211 = vld [vmem:[%s10 + $0xf48] sm:$0xff]
        %v4212 = vld [vmem:[%s10 + $0xf50] sm:$0xff]
        %v4213 = vld [vmem:[%s10 + $0xf58] sm:$0xff]
        %v4214 = vld [vmem:[%s10 + $0xf60] sm:$0xff]
        %v4215 = vld [vmem:[%s10 + $0xf68] sm:$0xff]
        %v4216 = vld [vmem:[%s10 + $0xf70] sm:$0xff]
        %v4217 = vld [vmem:[%s10 + $0xf78] sm:$0xff]
        %v4218 = vld [vmem:[%s10 + $0xf80] sm:$0xff]
        %v4219 = vld [vmem:[%s10 + $0xf88] sm:$0xff]
        %v4220 = vld [vmem:[%s10 + $0xf90] sm:$0xff]
        %v4221 = vld [vmem:[%s10 + $0xf98] sm:$0xff]
        %v4222 = vld [vmem:[%s10 + $0xfa0] sm:$0xff]
        %v4223 = vld [vmem:[%s10 + $0xfa8] sm:$0xff]
        %v4224 = vld [vmem:[%s10 + $0xfb0] sm:$0xff]
        %v4225 = vld [vmem:[%s10 + $0xfb8] sm:$0xff]
        %v4226 = vld [vmem:[%s10 + $0xfc0] sm:$0xff]
        %v4227 = vld [vmem:[%s10 + $0xfc8] sm:$0xff]
        %v4228 = vld [vmem:[%s10 + $0xfd0] sm:$0xff]
        %v4229 = vld [vmem:[%s10 + $0xfd8] sm:$0xff]
        %v4230 = vld [vmem:[%s10 + $0xfe0] sm:$0xff]
        %v4231 = vld [vmem:[%s10 + $0xfe8] sm:$0xff]
        %v4232 = vld [vmem:[%s10 + $0xff0] sm:$0xff]
        %v4233 = vld [vmem:[%s10 + $0xff8] sm:$0xff]
        %v4234 = vld [vmem:[%s10 + $0x1000] sm:$0xff]
        %v4235 = vld [vmem:[%s10 + $0x1008] sm:$0xff]
        %v4236 = vld [vmem:[%s10 + $0x1010] sm:$0xff]
        %v4237 = vld [vmem:[%s10 + $0x1018] sm:$0xff]
        %v4238 = vld [vmem:[%s10 + $0x1020] sm:$0xff]
        %v4239 = vld [vmem:[%s10 + $0x1028] sm:$0xff]
        %v4240 = vld [vmem:[%s10 + $0x1030] sm:$0xff]
        %v4241 = vld [vmem:[%s10 + $0x1038] sm:$0xff]
        %v4242 = vld [vmem:[%s10 + $0x1040] sm:$0xff]
        %v4243 = vld [vmem:[%s10 + $0x1048] sm:$0xff]
        %v4244 = vld [vmem:[%s10 + $0x1050] sm:$0xff]
        %v4245 = vld [vmem:[%s10 + $0x1058] sm:$0xff]
        %v4246 = vld [vmem:[%s10 + $0x1060] sm:$0xff]
        %v4247 = vld [vmem:[%s10 + $0x1068] sm:$0xff]
        %v4248 = vld [vmem:[%s10 + $0x1070] sm:$0xff]
        %v4249 = vld [vmem:[%s10 + $0x1078] sm:$0xff]
        %v4250 = vld [vmem:[%s10 + $0x1080] sm:$0xff]
        %v4251 = vld [vmem:[%s10 + $0x1088] sm:$0xff]
        %v4252 = vld [vmem:[%s10 + $0x1090] sm:$0xff]
        %v4253 = vld [vmem:[%s10 + $0x1098] sm:$0xff]
        %v4254 = vld [vmem:[%s10 + $0x10a0] sm:$0xff]
        %v4255 = vld [vmem:[%s10 + $0x10a8] sm:$0xff]
        %v4256 = vld [vmem:[%s10 + $0x10b0] sm:$0xff]
        %v4257 = vld [vmem:[%s10 + $0x10b8] sm:$0xff]
        %v4258 = vld [vmem:[%s10 + $0x10c0] sm:$0xff]
        %v4259 = vld [vmem:[%s10 + $0x10c8] sm:$0xff]
        %v4260 = vld [vmem:[%s10 + $0x10d0] sm:$0xff]
        %v4261 = vld [vmem:[%s10 + $0x10d8] sm:$0xff]
        %v4262 = vld [vmem:[%s10 + $0x10e0] sm:$0xff]
        %v4263 = vld [vmem:[%s10 + $0x10e8] sm:$0xff]
        %v4264 = vld [vmem:[%s10 + $0x10f0] sm:$0xff]
        %v4265 = vld [vmem:[%s10 + $0x10f8] sm:$0xff]
        %v4266 = vld [vmem:[%s10 + $0x1100] sm:$0xff]
        %v4267 = vld [vmem:[%s10 + $0x1108] sm:$0xff]
        %v4268 = vld [vmem:[%s10 + $0x1110] sm:$0xff]
        %v4269 = vld [vmem:[%s10 + $0x1118] sm:$0xff]
        %v4270 = vld [vmem:[%s10 + $0x1120] sm:$0xff]
        %v4271 = vld [vmem:[%s10 + $0x1128] sm:$0xff]
        %v4272 = vld [vmem:[%s10 + $0x1130] sm:$0xff]
        %v4273 = vld [vmem:[%s10 + $0x1138] sm:$0xff]
        %v4274 = vld [vmem:[%s10 + $0x1140] sm:$0xff]
        %v4275 = vld [vmem:[%s10 + $0x1148] sm:$0xff]
        %v4276 = vld [vmem:[%s10 + $0x1150] sm:$0xff]
        %v4277 = vld [vmem:[%s10 + $0x1158] sm:$0xff]
        %v4278 = vld [vmem:[%s10 + $0x1160] sm:$0xff]
        %v4279 = vld [vmem:[%s10 + $0x1168] sm:$0xff]
        %v4280 = vld [vmem:[%s10 + $0x1170] sm:$0xff]
        %v4281 = vld [vmem:[%s10 + $0x1178] sm:$0xff]
        %v4282 = vld [vmem:[%s10 + $0x1180] sm:$0xff]
        %v4283 = vld [vmem:[%s10 + $0x1188] sm:$0xff]
        %v4284 = vld [vmem:[%s10 + $0x1190] sm:$0xff]
        %v4285 = vld [vmem:[%s10 + $0x1198] sm:$0xff]
        %v4286 = vld [vmem:[%s10 + $0x11a0] sm:$0xff]
        %v4287 = vld [vmem:[%s10 + $0x11a8] sm:$0xff]
        %v4288 = vld [vmem:[%s10 + $0x11b0] sm:$0xff]
        %v4289 = vld [vmem:[%s10 + $0x11b8] sm:$0xff]
        %v4290 = vld [vmem:[%s10 + $0x11c0] sm:$0xff]
        %v4291 = vld [vmem:[%s10 + $0x11c8] sm:$0xff]
        %v4292 = vld [vmem:[%s10 + $0x11d0] sm:$0xff]
        %v4293 = vld [vmem:[%s10 + $0x11d8] sm:$0xff]
        %v4294 = vld [vmem:[%s10 + $0x11e0] sm:$0xff]
        %v4295 = vld [vmem:[%s10 + $0x11e8] sm:$0xff]
        %v4296 = vld [vmem:[%s10 + $0x11f0] sm:$0xff]
        %v4297 = vld [vmem:[%s10 + $0x11f8] sm:$0xff]
        %v4874 = vunpack.c.l.b16 %v3722
        %v4875 = vunpack.c.h.b16 %v3722
        %v4876 = vunpack.c.l.b16 %v3723
        %v4877 = vunpack.c.h.b16 %v3723
        %v4878 = vunpack.c.l.b16 %v3724
        %v4879 = vunpack.c.h.b16 %v3724
        %v4880 = vunpack.c.l.b16 %v3725
        %v4881 = vunpack.c.h.b16 %v3725
        %v4882 = vunpack.c.l.b16 %v3726
        %v4883 = vunpack.c.h.b16 %v3726
        %v4884 = vunpack.c.l.b16 %v3727
        %v4885 = vunpack.c.h.b16 %v3727
        %v4886 = vunpack.c.l.b16 %v3728
        %v4887 = vunpack.c.h.b16 %v3728
        %v4888 = vunpack.c.l.b16 %v3729
        %v4889 = vunpack.c.h.b16 %v3729
        %v4890 = vunpack.c.l.b16 %v3730
        %v4891 = vunpack.c.h.b16 %v3730
        %v4892 = vunpack.c.l.b16 %v3731
        %v4893 = vunpack.c.h.b16 %v3731
        %v4894 = vunpack.c.l.b16 %v3732
        %v4895 = vunpack.c.h.b16 %v3732
        %v4896 = vunpack.c.l.b16 %v3733
        %v4897 = vunpack.c.h.b16 %v3733
        %v4898 = vunpack.c.l.b16 %v3734
        %v4899 = vunpack.c.h.b16 %v3734
        %v4900 = vunpack.c.l.b16 %v3735
        %v4901 = vunpack.c.h.b16 %v3735
        %v4902 = vunpack.c.l.b16 %v3736
        %v4903 = vunpack.c.h.b16 %v3736
        %v4904 = vunpack.c.l.b16 %v3737
        %v4905 = vunpack.c.h.b16 %v3737
        %v4906 = vunpack.c.l.b16 %v3738
        %v4907 = vunpack.c.h.b16 %v3738
        %v4908 = vunpack.c.l.b16 %v3739
        %v4909 = vunpack.c.h.b16 %v3739
        %v4910 = vunpack.c.l.b16 %v3740
        %v4911 = vunpack.c.h.b16 %v3740
        %v4912 = vunpack.c.l.b16 %v3741
        %v4913 = vunpack.c.h.b16 %v3741
        %v4914 = vunpack.c.l.b16 %v3742
        %v4915 = vunpack.c.h.b16 %v3742
        %v4916 = vunpack.c.l.b16 %v3743
        %v4917 = vunpack.c.h.b16 %v3743
        %v4918 = vunpack.c.l.b16 %v3744
        %v4919 = vunpack.c.h.b16 %v3744
        %v4920 = vunpack.c.l.b16 %v3745
        %v4921 = vunpack.c.h.b16 %v3745
        %v4922 = vunpack.c.l.b16 %v3746
        %v4923 = vunpack.c.h.b16 %v3746
        %v4924 = vunpack.c.l.b16 %v3747
        %v4925 = vunpack.c.h.b16 %v3747
        %v4926 = vunpack.c.l.b16 %v3748
        %v4927 = vunpack.c.h.b16 %v3748
        %v4928 = vunpack.c.l.b16 %v3749
        %v4929 = vunpack.c.h.b16 %v3749
        %v4930 = vunpack.c.l.b16 %v3750
        %v4931 = vunpack.c.h.b16 %v3750
        %v4932 = vunpack.c.l.b16 %v3751
        %v4933 = vunpack.c.h.b16 %v3751
        %v4934 = vunpack.c.l.b16 %v3752
        %v4935 = vunpack.c.h.b16 %v3752
        %v4936 = vunpack.c.l.b16 %v3753
        %v4937 = vunpack.c.h.b16 %v3753
        %v4938 = vunpack.c.l.b16 %v3754
        %v4939 = vunpack.c.h.b16 %v3754
        %v4940 = vunpack.c.l.b16 %v3755
        %v4941 = vunpack.c.h.b16 %v3755
        %v4942 = vunpack.c.l.b16 %v3756
        %v4943 = vunpack.c.h.b16 %v3756
        %v4944 = vunpack.c.l.b16 %v3757
        %v4945 = vunpack.c.h.b16 %v3757
        %v4946 = vunpack.c.l.b16 %v3758
        %v4947 = vunpack.c.h.b16 %v3758
        %v4948 = vunpack.c.l.b16 %v3759
        %v4949 = vunpack.c.h.b16 %v3759
        %v4950 = vunpack.c.l.b16 %v3760
        %v4951 = vunpack.c.h.b16 %v3760
        %v4952 = vunpack.c.l.b16 %v3761
        %v4953 = vunpack.c.h.b16 %v3761
        %v4954 = vunpack.c.l.b16 %v3762
        %v4955 = vunpack.c.h.b16 %v3762
        %v4956 = vunpack.c.l.b16 %v3763
        %v4957 = vunpack.c.h.b16 %v3763
        %v4958 = vunpack.c.l.b16 %v3764
        %v4959 = vunpack.c.h.b16 %v3764
        %v4960 = vunpack.c.l.b16 %v3765
        %v4961 = vunpack.c.h.b16 %v3765
        %v4962 = vunpack.c.l.b16 %v3766
        %v4963 = vunpack.c.h.b16 %v3766
        %v4964 = vunpack.c.l.b16 %v3767
        %v4965 = vunpack.c.h.b16 %v3767
        %v4966 = vunpack.c.l.b16 %v3768
        %v4967 = vunpack.c.h.b16 %v3768
        %v4968 = vunpack.c.l.b16 %v3769
        %v4969 = vunpack.c.h.b16 %v3769
        %v4970 = vunpack.c.l.b16 %v3770
        %v4971 = vunpack.c.h.b16 %v3770
        %v4972 = vunpack.c.l.b16 %v3771
        %v4973 = vunpack.c.h.b16 %v3771
        %v4974 = vunpack.c.l.b16 %v3772
        %v4975 = vunpack.c.h.b16 %v3772
        %v4976 = vunpack.c.l.b16 %v3773
        %v4977 = vunpack.c.h.b16 %v3773
        %v4978 = vunpack.c.l.b16 %v3774
        %v4979 = vunpack.c.h.b16 %v3774
        %v4980 = vunpack.c.l.b16 %v3775
        %v4981 = vunpack.c.h.b16 %v3775
        %v4982 = vunpack.c.l.b16 %v3776
        %v4983 = vunpack.c.h.b16 %v3776
        %v4984 = vunpack.c.l.b16 %v3777
        %v4985 = vunpack.c.h.b16 %v3777
        %v4986 = vunpack.c.l.b16 %v3778
        %v4987 = vunpack.c.h.b16 %v3778
        %v4988 = vunpack.c.l.b16 %v3779
        %v4989 = vunpack.c.h.b16 %v3779
        %v4990 = vunpack.c.l.b16 %v3780
        %v4991 = vunpack.c.h.b16 %v3780
        %v4992 = vunpack.c.l.b16 %v3781
        %v4993 = vunpack.c.h.b16 %v3781
        %v4994 = vunpack.c.l.b16 %v3782
        %v4995 = vunpack.c.h.b16 %v3782
        %v4996 = vunpack.c.l.b16 %v3783
        %v4997 = vunpack.c.h.b16 %v3783
        %v4998 = vunpack.c.l.b16 %v3784
        %v4999 = vunpack.c.h.b16 %v3784
        %v5000 = vunpack.c.l.b16 %v3785
        %v5001 = vunpack.c.h.b16 %v3785
        %v5002 = vunpack.c.l.b16 %v3786
        %v5003 = vunpack.c.h.b16 %v3786
        %v5004 = vunpack.c.l.b16 %v3787
        %v5005 = vunpack.c.h.b16 %v3787
        %v5006 = vunpack.c.l.b16 %v3788
        %v5007 = vunpack.c.h.b16 %v3788
        %v5008 = vunpack.c.l.b16 %v3789
        %v5009 = vunpack.c.h.b16 %v3789
        %v5010 = vunpack.c.l.b16 %v3790
        %v5011 = vunpack.c.h.b16 %v3790
        %v5012 = vunpack.c.l.b16 %v3791
        %v5013 = vunpack.c.h.b16 %v3791
        %v5014 = vunpack.c.l.b16 %v3792
        %v5015 = vunpack.c.h.b16 %v3792
        %v5016 = vunpack.c.l.b16 %v3793
        %v5017 = vunpack.c.h.b16 %v3793
        %v5018 = vunpack.c.l.b16 %v3794
        %v5019 = vunpack.c.h.b16 %v3794
        %v5020 = vunpack.c.l.b16 %v3795
        %v5021 = vunpack.c.h.b16 %v3795
        %v5022 = vunpack.c.l.b16 %v3796
        %v5023 = vunpack.c.h.b16 %v3796
        %v5024 = vunpack.c.l.b16 %v3797
        %v5025 = vunpack.c.h.b16 %v3797
        %v5026 = vunpack.c.l.b16 %v3798
        %v5027 = vunpack.c.h.b16 %v3798
        %v5028 = vunpack.c.l.b16 %v3799
        %v5029 = vunpack.c.h.b16 %v3799
        %v5030 = vunpack.c.l.b16 %v3800
        %v5031 = vunpack.c.h.b16 %v3800
        %v5032 = vunpack.c.l.b16 %v3801
        %v5033 = vunpack.c.h.b16 %v3801
        %v5034 = vunpack.c.l.b16 %v3802
        %v5035 = vunpack.c.h.b16 %v3802
        %v5036 = vunpack.c.l.b16 %v3803
        %v5037 = vunpack.c.h.b16 %v3803
        %v5038 = vunpack.c.l.b16 %v3804
        %v5039 = vunpack.c.h.b16 %v3804
        %v5040 = vunpack.c.l.b16 %v3805
        %v5041 = vunpack.c.h.b16 %v3805
        %v5042 = vunpack.c.l.b16 %v3806
        %v5043 = vunpack.c.h.b16 %v3806
        %v5044 = vunpack.c.l.b16 %v3807
        %v5045 = vunpack.c.h.b16 %v3807
        %v5046 = vunpack.c.l.b16 %v3808
        %v5047 = vunpack.c.h.b16 %v3808
        %v5048 = vunpack.c.l.b16 %v3809
        %v5049 = vunpack.c.h.b16 %v3809
        %v5050 = vunpack.c.l.b16 %v3810
        %v5051 = vunpack.c.h.b16 %v3810
        %v5052 = vunpack.c.l.b16 %v3811
        %v5053 = vunpack.c.h.b16 %v3811
        %v5054 = vunpack.c.l.b16 %v3812
        %v5055 = vunpack.c.h.b16 %v3812
        %v5056 = vunpack.c.l.b16 %v3813
        %v5057 = vunpack.c.h.b16 %v3813
        %v5058 = vunpack.c.l.b16 %v3814
        %v5059 = vunpack.c.h.b16 %v3814
        %v5060 = vunpack.c.l.b16 %v3815
        %v5061 = vunpack.c.h.b16 %v3815
        %v5062 = vunpack.c.l.b16 %v3816
        %v5063 = vunpack.c.h.b16 %v3816
        %v5064 = vunpack.c.l.b16 %v3817
        %v5065 = vunpack.c.h.b16 %v3817
        %v5066 = vunpack.c.l.b16 %v3818
        %v5067 = vunpack.c.h.b16 %v3818
        %v5068 = vunpack.c.l.b16 %v3819
        %v5069 = vunpack.c.h.b16 %v3819
        %v5070 = vunpack.c.l.b16 %v3820
        %v5071 = vunpack.c.h.b16 %v3820
        %v5072 = vunpack.c.l.b16 %v3821
        %v5073 = vunpack.c.h.b16 %v3821
        %v5074 = vunpack.c.l.b16 %v3822
        %v5075 = vunpack.c.h.b16 %v3822
        %v5076 = vunpack.c.l.b16 %v3823
        %v5077 = vunpack.c.h.b16 %v3823
        %v5078 = vunpack.c.l.b16 %v3824
        %v5079 = vunpack.c.h.b16 %v3824
        %v5080 = vunpack.c.l.b16 %v3825
        %v5081 = vunpack.c.h.b16 %v3825
        %v5082 = vunpack.c.l.b16 %v3826
        %v5083 = vunpack.c.h.b16 %v3826
        %v5084 = vunpack.c.l.b16 %v3827
        %v5085 = vunpack.c.h.b16 %v3827
        %v5086 = vunpack.c.l.b16 %v3828
        %v5087 = vunpack.c.h.b16 %v3828
        %v5088 = vunpack.c.l.b16 %v3829
        %v5089 = vunpack.c.h.b16 %v3829
        %v5090 = vunpack.c.l.b16 %v3830
        %v5091 = vunpack.c.h.b16 %v3830
        %v5092 = vunpack.c.l.b16 %v3831
        %v5093 = vunpack.c.h.b16 %v3831
        %v5094 = vunpack.c.l.b16 %v3832
        %v5095 = vunpack.c.h.b16 %v3832
        %v5096 = vunpack.c.l.b16 %v3833
        %v5097 = vunpack.c.h.b16 %v3833
        %v5098 = vunpack.c.l.b16 %v3834
        %v5099 = vunpack.c.h.b16 %v3834
        %v5100 = vunpack.c.l.b16 %v3835
        %v5101 = vunpack.c.h.b16 %v3835
        %v5102 = vunpack.c.l.b16 %v3836
        %v5103 = vunpack.c.h.b16 %v3836
        %v5104 = vunpack.c.l.b16 %v3837
        %v5105 = vunpack.c.h.b16 %v3837
        %v5106 = vunpack.c.l.b16 %v3838
        %v5107 = vunpack.c.h.b16 %v3838
        %v5108 = vunpack.c.l.b16 %v3839
        %v5109 = vunpack.c.h.b16 %v3839
        %v5110 = vunpack.c.l.b16 %v3840
        %v5111 = vunpack.c.h.b16 %v3840
        %v5112 = vunpack.c.l.b16 %v3841
        %v5113 = vunpack.c.h.b16 %v3841
        %v5114 = vunpack.c.l.b16 %v3842
        %v5115 = vunpack.c.h.b16 %v3842
        %v5116 = vunpack.c.l.b16 %v3843
        %v5117 = vunpack.c.h.b16 %v3843
        %v5118 = vunpack.c.l.b16 %v3844
        %v5119 = vunpack.c.h.b16 %v3844
        %v5120 = vunpack.c.l.b16 %v3845
        %v5121 = vunpack.c.h.b16 %v3845
        %v5122 = vunpack.c.l.b16 %v3846
        %v5123 = vunpack.c.h.b16 %v3846
        %v5124 = vunpack.c.l.b16 %v3847
        %v5125 = vunpack.c.h.b16 %v3847
        %v5126 = vunpack.c.l.b16 %v3848
        %v5127 = vunpack.c.h.b16 %v3848
        %v5128 = vunpack.c.l.b16 %v3849
        %v5129 = vunpack.c.h.b16 %v3849
        %v5130 = vunpack.c.l.b16 %v3850
        %v5131 = vunpack.c.h.b16 %v3850
        %v5132 = vunpack.c.l.b16 %v3851
        %v5133 = vunpack.c.h.b16 %v3851
        %v5134 = vunpack.c.l.b16 %v3852
        %v5135 = vunpack.c.h.b16 %v3852
        %v5136 = vunpack.c.l.b16 %v3853
        %v5137 = vunpack.c.h.b16 %v3853
        %v5138 = vunpack.c.l.b16 %v3854
        %v5139 = vunpack.c.h.b16 %v3854
        %v5140 = vunpack.c.l.b16 %v3855
        %v5141 = vunpack.c.h.b16 %v3855
        %v5142 = vunpack.c.l.b16 %v3856
        %v5143 = vunpack.c.h.b16 %v3856
        %v5144 = vunpack.c.l.b16 %v3857
        %v5145 = vunpack.c.h.b16 %v3857
        %v5146 = vunpack.c.l.b16 %v3858
        %v5147 = vunpack.c.h.b16 %v3858
        %v5148 = vunpack.c.l.b16 %v3859
        %v5149 = vunpack.c.h.b16 %v3859
        %v5150 = vunpack.c.l.b16 %v3860
        %v5151 = vunpack.c.h.b16 %v3860
        %v5152 = vunpack.c.l.b16 %v3861
        %v5153 = vunpack.c.h.b16 %v3861
        %v5154 = vunpack.c.l.b16 %v3862
        %v5155 = vunpack.c.h.b16 %v3862
        %v5156 = vunpack.c.l.b16 %v3863
        %v5157 = vunpack.c.h.b16 %v3863
        %v5158 = vunpack.c.l.b16 %v3864
        %v5159 = vunpack.c.h.b16 %v3864
        %v5160 = vunpack.c.l.b16 %v3865
        %v5161 = vunpack.c.h.b16 %v3865
        %v5162 = vunpack.c.l.b16 %v3866
        %v5163 = vunpack.c.h.b16 %v3866
        %v5164 = vunpack.c.l.b16 %v3867
        %v5165 = vunpack.c.h.b16 %v3867
        %v5166 = vunpack.c.l.b16 %v3868
        %v5167 = vunpack.c.h.b16 %v3868
        %v5168 = vunpack.c.l.b16 %v3869
        %v5169 = vunpack.c.h.b16 %v3869
        %v5170 = vunpack.c.l.b16 %v3870
        %v5171 = vunpack.c.h.b16 %v3870
        %v5172 = vunpack.c.l.b16 %v3871
        %v5173 = vunpack.c.h.b16 %v3871
        %v5174 = vunpack.c.l.b16 %v3872
        %v5175 = vunpack.c.h.b16 %v3872
        %v5176 = vunpack.c.l.b16 %v3873
        %v5177 = vunpack.c.h.b16 %v3873
        %v5178 = vunpack.c.l.b16 %v3874
        %v5179 = vunpack.c.h.b16 %v3874
        %v5180 = vunpack.c.l.b16 %v3875
        %v5181 = vunpack.c.h.b16 %v3875
        %v5182 = vunpack.c.l.b16 %v3876
        %v5183 = vunpack.c.h.b16 %v3876
        %v5184 = vunpack.c.l.b16 %v3877
        %v5185 = vunpack.c.h.b16 %v3877
        %v5186 = vunpack.c.l.b16 %v3878
        %v5187 = vunpack.c.h.b16 %v3878
        %v5188 = vunpack.c.l.b16 %v3879
        %v5189 = vunpack.c.h.b16 %v3879
        %v5190 = vunpack.c.l.b16 %v3880
        %v5191 = vunpack.c.h.b16 %v3880
        %v5192 = vunpack.c.l.b16 %v3881
        %v5193 = vunpack.c.h.b16 %v3881
        %v5194 = vunpack.c.l.b16 %v3882
        %v5195 = vunpack.c.h.b16 %v3882
        %v5196 = vunpack.c.l.b16 %v3883
        %v5197 = vunpack.c.h.b16 %v3883
        %v5198 = vunpack.c.l.b16 %v3884
        %v5199 = vunpack.c.h.b16 %v3884
        %v5200 = vunpack.c.l.b16 %v3885
        %v5201 = vunpack.c.h.b16 %v3885
        %v5202 = vunpack.c.l.b16 %v3886
        %v5203 = vunpack.c.h.b16 %v3886
        %v5204 = vunpack.c.l.b16 %v3887
        %v5205 = vunpack.c.h.b16 %v3887
        %v5206 = vunpack.c.l.b16 %v3888
        %v5207 = vunpack.c.h.b16 %v3888
        %v5208 = vunpack.c.l.b16 %v3889
        %v5209 = vunpack.c.h.b16 %v3889
        %v5210 = vunpack.c.l.b16 %v3890
        %v5211 = vunpack.c.h.b16 %v3890
        %v5212 = vunpack.c.l.b16 %v3891
        %v5213 = vunpack.c.h.b16 %v3891
        %v5214 = vunpack.c.l.b16 %v3892
        %v5215 = vunpack.c.h.b16 %v3892
        %v5216 = vunpack.c.l.b16 %v3893
        %v5217 = vunpack.c.h.b16 %v3893
        %v5218 = vunpack.c.l.b16 %v3894
        %v5219 = vunpack.c.h.b16 %v3894
        %v5220 = vunpack.c.l.b16 %v3895
        %v5221 = vunpack.c.h.b16 %v3895
        %v5222 = vunpack.c.l.b16 %v3896
        %v5223 = vunpack.c.h.b16 %v3896
        %v5224 = vunpack.c.l.b16 %v3897
        %v5225 = vunpack.c.h.b16 %v3897
        %v5226 = vunpack.c.l.b16 %v3898
        %v5227 = vunpack.c.h.b16 %v3898
        %v5228 = vunpack.c.l.b16 %v3899
        %v5229 = vunpack.c.h.b16 %v3899
        %v5230 = vunpack.c.l.b16 %v3900
        %v5231 = vunpack.c.h.b16 %v3900
        %v5232 = vunpack.c.l.b16 %v3901
        %v5233 = vunpack.c.h.b16 %v3901
        %v5234 = vunpack.c.l.b16 %v3902
        %v5235 = vunpack.c.h.b16 %v3902
        %v5236 = vunpack.c.l.b16 %v3903
        %v5237 = vunpack.c.h.b16 %v3903
        %v5238 = vunpack.c.l.b16 %v3904
        %v5239 = vunpack.c.h.b16 %v3904
        %v5240 = vunpack.c.l.b16 %v3905
        %v5241 = vunpack.c.h.b16 %v3905
        %v5242 = vunpack.c.l.b16 %v3906
        %v5243 = vunpack.c.h.b16 %v3906
        %v5244 = vunpack.c.l.b16 %v3907
        %v5245 = vunpack.c.h.b16 %v3907
        %v5246 = vunpack.c.l.b16 %v3908
        %v5247 = vunpack.c.h.b16 %v3908
        %v5248 = vunpack.c.l.b16 %v3909
        %v5249 = vunpack.c.h.b16 %v3909
        %v5250 = vunpack.c.l.b16 %v3910
        %v5251 = vunpack.c.h.b16 %v3910
        %v5252 = vunpack.c.l.b16 %v3911
        %v5253 = vunpack.c.h.b16 %v3911
        %v5254 = vunpack.c.l.b16 %v3912
        %v5255 = vunpack.c.h.b16 %v3912
        %v5256 = vunpack.c.l.b16 %v3913
        %v5257 = vunpack.c.h.b16 %v3913
        %v5258 = vunpack.c.l.b16 %v3914
        %v5259 = vunpack.c.h.b16 %v3914
        %v5260 = vunpack.c.l.b16 %v3915
        %v5261 = vunpack.c.h.b16 %v3915
        %v5262 = vunpack.c.l.b16 %v3916
        %v5263 = vunpack.c.h.b16 %v3916
        %v5264 = vunpack.c.l.b16 %v3917
        %v5265 = vunpack.c.h.b16 %v3917
        %v5266 = vunpack.c.l.b16 %v3918
        %v5267 = vunpack.c.h.b16 %v3918
        %v5268 = vunpack.c.l.b16 %v3919
        %v5269 = vunpack.c.h.b16 %v3919
        %v5270 = vunpack.c.l.b16 %v3920
        %v5271 = vunpack.c.h.b16 %v3920
        %v5272 = vunpack.c.l.b16 %v3921
        %v5273 = vunpack.c.h.b16 %v3921
        %v5274 = vunpack.c.l.b16 %v3922
        %v5275 = vunpack.c.h.b16 %v3922
        %v5276 = vunpack.c.l.b16 %v3923
        %v5277 = vunpack.c.h.b16 %v3923
        %v5278 = vunpack.c.l.b16 %v3924
        %v5279 = vunpack.c.h.b16 %v3924
        %v5280 = vunpack.c.l.b16 %v3925
        %v5281 = vunpack.c.h.b16 %v3925
        %v5282 = vunpack.c.l.b16 %v3926
        %v5283 = vunpack.c.h.b16 %v3926
        %v5284 = vunpack.c.l.b16 %v3927
        %v5285 = vunpack.c.h.b16 %v3927
        %v5286 = vunpack.c.l.b16 %v3928
        %v5287 = vunpack.c.h.b16 %v3928
        %v5288 = vunpack.c.l.b16 %v3929
        %v5289 = vunpack.c.h.b16 %v3929
        %v5290 = vunpack.c.l.b16 %v3930
        %v5291 = vunpack.c.h.b16 %v3930
        %v5292 = vunpack.c.l.b16 %v3931
        %v5293 = vunpack.c.h.b16 %v3931
        %v5294 = vunpack.c.l.b16 %v3932
        %v5295 = vunpack.c.h.b16 %v3932
        %v5296 = vunpack.c.l.b16 %v3933
        %v5297 = vunpack.c.h.b16 %v3933
        %v5298 = vunpack.c.l.b16 %v3934
        %v5299 = vunpack.c.h.b16 %v3934
        %v5300 = vunpack.c.l.b16 %v3935
        %v5301 = vunpack.c.h.b16 %v3935
        %v5302 = vunpack.c.l.b16 %v3936
        %v5303 = vunpack.c.h.b16 %v3936
        %v5304 = vunpack.c.l.b16 %v3937
        %v5305 = vunpack.c.h.b16 %v3937
        %v5306 = vunpack.c.l.b16 %v3938
        %v5307 = vunpack.c.h.b16 %v3938
        %v5308 = vunpack.c.l.b16 %v3939
        %v5309 = vunpack.c.h.b16 %v3939
        %v5310 = vunpack.c.l.b16 %v3940
        %v5311 = vunpack.c.h.b16 %v3940
        %v5312 = vunpack.c.l.b16 %v3941
        %v5313 = vunpack.c.h.b16 %v3941
        %v5314 = vunpack.c.l.b16 %v3942
        %v5315 = vunpack.c.h.b16 %v3942
        %v5316 = vunpack.c.l.b16 %v3943
        %v5317 = vunpack.c.h.b16 %v3943
        %v5318 = vunpack.c.l.b16 %v3944
        %v5319 = vunpack.c.h.b16 %v3944
        %v5320 = vunpack.c.l.b16 %v3945
        %v5321 = vunpack.c.h.b16 %v3945
        %v5322 = vunpack.c.l.b16 %v3946
        %v5323 = vunpack.c.h.b16 %v3946
        %v5324 = vunpack.c.l.b16 %v3947
        %v5325 = vunpack.c.h.b16 %v3947
        %v5326 = vunpack.c.l.b16 %v3948
        %v5327 = vunpack.c.h.b16 %v3948
        %v5328 = vunpack.c.l.b16 %v3949
        %v5329 = vunpack.c.h.b16 %v3949
        %v5330 = vunpack.c.l.b16 %v3950
        %v5331 = vunpack.c.h.b16 %v3950
        %v5332 = vunpack.c.l.b16 %v3951
        %v5333 = vunpack.c.h.b16 %v3951
        %v5334 = vunpack.c.l.b16 %v3952
        %v5335 = vunpack.c.h.b16 %v3952
        %v5336 = vunpack.c.l.b16 %v3953
        %v5337 = vunpack.c.h.b16 %v3953
        %v5338 = vunpack.c.l.b16 %v3954
        %v5339 = vunpack.c.h.b16 %v3954
        %v5340 = vunpack.c.l.b16 %v3955
        %v5341 = vunpack.c.h.b16 %v3955
        %v5342 = vunpack.c.l.b16 %v3956
        %v5343 = vunpack.c.h.b16 %v3956
        %v5344 = vunpack.c.l.b16 %v3957
        %v5345 = vunpack.c.h.b16 %v3957
        %v5346 = vunpack.c.l.b16 %v3958
        %v5347 = vunpack.c.h.b16 %v3958
        %v5348 = vunpack.c.l.b16 %v3959
        %v5349 = vunpack.c.h.b16 %v3959
        %v5350 = vunpack.c.l.b16 %v3960
        %v5351 = vunpack.c.h.b16 %v3960
        %v5352 = vunpack.c.l.b16 %v3961
        %v5353 = vunpack.c.h.b16 %v3961
        %v5354 = vunpack.c.l.b16 %v3962
        %v5355 = vunpack.c.h.b16 %v3962
        %v5356 = vunpack.c.l.b16 %v3963
        %v5357 = vunpack.c.h.b16 %v3963
        %v5358 = vunpack.c.l.b16 %v3964
        %v5359 = vunpack.c.h.b16 %v3964
        %v5360 = vunpack.c.l.b16 %v3965
        %v5361 = vunpack.c.h.b16 %v3965
        %v5362 = vunpack.c.l.b16 %v3966
        %v5363 = vunpack.c.h.b16 %v3966
        %v5364 = vunpack.c.l.b16 %v3967
        %v5365 = vunpack.c.h.b16 %v3967
        %v5366 = vunpack.c.l.b16 %v3968
        %v5367 = vunpack.c.h.b16 %v3968
        %v5368 = vunpack.c.l.b16 %v3969
        %v5369 = vunpack.c.h.b16 %v3969
        %v5370 = vunpack.c.l.b16 %v3970
        %v5371 = vunpack.c.h.b16 %v3970
        %v5372 = vunpack.c.l.b16 %v3971
        %v5373 = vunpack.c.h.b16 %v3971
        %v5374 = vunpack.c.l.b16 %v3972
        %v5375 = vunpack.c.h.b16 %v3972
        %v5376 = vunpack.c.l.b16 %v3973
        %v5377 = vunpack.c.h.b16 %v3973
        %v5378 = vunpack.c.l.b16 %v3974
        %v5379 = vunpack.c.h.b16 %v3974
        %v5380 = vunpack.c.l.b16 %v3975
        %v5381 = vunpack.c.h.b16 %v3975
        %v5382 = vunpack.c.l.b16 %v3976
        %v5383 = vunpack.c.h.b16 %v3976
        %v5384 = vunpack.c.l.b16 %v3977
        %v5385 = vunpack.c.h.b16 %v3977
        %v5386 = vunpack.c.l.b16 %v3978
        %v5387 = vunpack.c.h.b16 %v3978
        %v5388 = vunpack.c.l.b16 %v3979
        %v5389 = vunpack.c.h.b16 %v3979
        %v5390 = vunpack.c.l.b16 %v3980
        %v5391 = vunpack.c.h.b16 %v3980
        %v5392 = vunpack.c.l.b16 %v3981
        %v5393 = vunpack.c.h.b16 %v3981
        %v5394 = vunpack.c.l.b16 %v3982
        %v5395 = vunpack.c.h.b16 %v3982
        %v5396 = vunpack.c.l.b16 %v3983
        %v5397 = vunpack.c.h.b16 %v3983
        %v5398 = vunpack.c.l.b16 %v3984
        %v5399 = vunpack.c.h.b16 %v3984
        %v5400 = vunpack.c.l.b16 %v3985
        %v5401 = vunpack.c.h.b16 %v3985
        %v5402 = vunpack.c.l.b16 %v3986
        %v5403 = vunpack.c.h.b16 %v3986
        %v5404 = vunpack.c.l.b16 %v3987
        %v5405 = vunpack.c.h.b16 %v3987
        %v5406 = vunpack.c.l.b16 %v3988
        %v5407 = vunpack.c.h.b16 %v3988
        %v5408 = vunpack.c.l.b16 %v3989
        %v5409 = vunpack.c.h.b16 %v3989
        %v5410 = vunpack.c.l.b16 %v3990
        %v5411 = vunpack.c.h.b16 %v3990
        %v5412 = vunpack.c.l.b16 %v3991
        %v5413 = vunpack.c.h.b16 %v3991
        %v5414 = vunpack.c.l.b16 %v3992
        %v5415 = vunpack.c.h.b16 %v3992
        %v5416 = vunpack.c.l.b16 %v3993
        %v5417 = vunpack.c.h.b16 %v3993
        %v5418 = vunpack.c.l.b16 %v3994
        %v5419 = vunpack.c.h.b16 %v3994
        %v5420 = vunpack.c.l.b16 %v3995
        %v5421 = vunpack.c.h.b16 %v3995
        %v5422 = vunpack.c.l.b16 %v3996
        %v5423 = vunpack.c.h.b16 %v3996
        %v5424 = vunpack.c.l.b16 %v3997
        %v5425 = vunpack.c.h.b16 %v3997
        %v5426 = vunpack.c.l.b16 %v3998
        %v5427 = vunpack.c.h.b16 %v3998
        %v5428 = vunpack.c.l.b16 %v3999
        %v5429 = vunpack.c.h.b16 %v3999
        %v5430 = vunpack.c.l.b16 %v4000
        %v5431 = vunpack.c.h.b16 %v4000
        %v5432 = vunpack.c.l.b16 %v4001
        %v5433 = vunpack.c.h.b16 %v4001
        %v5434 = vunpack.c.l.b16 %v4002
        %v5435 = vunpack.c.h.b16 %v4002
        %v5436 = vunpack.c.l.b16 %v4003
        %v5437 = vunpack.c.h.b16 %v4003
        %v5438 = vunpack.c.l.b16 %v4004
        %v5439 = vunpack.c.h.b16 %v4004
        %v5440 = vunpack.c.l.b16 %v4005
        %v5441 = vunpack.c.h.b16 %v4005
        %v5442 = vunpack.c.l.b16 %v4006
        %v5443 = vunpack.c.h.b16 %v4006
        %v5444 = vunpack.c.l.b16 %v4007
        %v5445 = vunpack.c.h.b16 %v4007
        %v5446 = vunpack.c.l.b16 %v4008
        %v5447 = vunpack.c.h.b16 %v4008
        %v5448 = vunpack.c.l.b16 %v4009
        %v5449 = vunpack.c.h.b16 %v4009
        %v5450 = vunpack.c.l.b16 %v4010
        %v5451 = vunpack.c.h.b16 %v4010
        %v5452 = vunpack.c.l.b16 %v4011
        %v5453 = vunpack.c.h.b16 %v4011
        %v5454 = vunpack.c.l.b16 %v4012
        %v5455 = vunpack.c.h.b16 %v4012
        %v5456 = vunpack.c.l.b16 %v4013
        %v5457 = vunpack.c.h.b16 %v4013
        %v5458 = vunpack.c.l.b16 %v4014
        %v5459 = vunpack.c.h.b16 %v4014
        %v5460 = vunpack.c.l.b16 %v4015
        %v5461 = vunpack.c.h.b16 %v4015
        %v5462 = vunpack.c.l.b16 %v4016
        %v5463 = vunpack.c.h.b16 %v4016
        %v5464 = vunpack.c.l.b16 %v4017
        %v5465 = vunpack.c.h.b16 %v4017
        %v5466 = vunpack.c.l.b16 %v4018
        %v5467 = vunpack.c.h.b16 %v4018
        %v5468 = vunpack.c.l.b16 %v4019
        %v5469 = vunpack.c.h.b16 %v4019
        %v5470 = vunpack.c.l.b16 %v4020
        %v5471 = vunpack.c.h.b16 %v4020
        %v5472 = vunpack.c.l.b16 %v4021
        %v5473 = vunpack.c.h.b16 %v4021
        %v5474 = vunpack.c.l.b16 %v4022
        %v5475 = vunpack.c.h.b16 %v4022
        %v5476 = vunpack.c.l.b16 %v4023
        %v5477 = vunpack.c.h.b16 %v4023
        %v5478 = vunpack.c.l.b16 %v4024
        %v5479 = vunpack.c.h.b16 %v4024
        %v5480 = vunpack.c.l.b16 %v4025
        %v5481 = vunpack.c.h.b16 %v4025
        %v5482 = vunpack.c.l.b16 %v4026
        %v5483 = vunpack.c.h.b16 %v4026
        %v5484 = vunpack.c.l.b16 %v4027
        %v5485 = vunpack.c.h.b16 %v4027
        %v5486 = vunpack.c.l.b16 %v4028
        %v5487 = vunpack.c.h.b16 %v4028
        %v5488 = vunpack.c.l.b16 %v4029
        %v5489 = vunpack.c.h.b16 %v4029
        %v5490 = vunpack.c.l.b16 %v4030
        %v5491 = vunpack.c.h.b16 %v4030
        %v5492 = vunpack.c.l.b16 %v4031
        %v5493 = vunpack.c.h.b16 %v4031
        %v5494 = vunpack.c.l.b16 %v4032
        %v5495 = vunpack.c.h.b16 %v4032
        %v5496 = vunpack.c.l.b16 %v4033
        %v5497 = vunpack.c.h.b16 %v4033
        %v5498 = vunpack.c.l.b16 %v4034
        %v5499 = vunpack.c.h.b16 %v4034
        %v5500 = vunpack.c.l.b16 %v4035
        %v5501 = vunpack.c.h.b16 %v4035
        %v5502 = vunpack.c.l.b16 %v4036
        %v5503 = vunpack.c.h.b16 %v4036
        %v5504 = vunpack.c.l.b16 %v4037
        %v5505 = vunpack.c.h.b16 %v4037
        %v5506 = vunpack.c.l.b16 %v4038
        %v5507 = vunpack.c.h.b16 %v4038
        %v5508 = vunpack.c.l.b16 %v4039
        %v5509 = vunpack.c.h.b16 %v4039
        %v5510 = vunpack.c.l.b16 %v4040
        %v5511 = vunpack.c.h.b16 %v4040
        %v5512 = vunpack.c.l.b16 %v4041
        %v5513 = vunpack.c.h.b16 %v4041
        %v5514 = vunpack.c.l.b16 %v4042
        %v5515 = vunpack.c.h.b16 %v4042
        %v5516 = vunpack.c.l.b16 %v4043
        %v5517 = vunpack.c.h.b16 %v4043
        %v5518 = vunpack.c.l.b16 %v4044
        %v5519 = vunpack.c.h.b16 %v4044
        %v5520 = vunpack.c.l.b16 %v4045
        %v5521 = vunpack.c.h.b16 %v4045
        %v5522 = vunpack.c.l.b16 %v4046
        %v5523 = vunpack.c.h.b16 %v4046
        %v5524 = vunpack.c.l.b16 %v4047
        %v5525 = vunpack.c.h.b16 %v4047
        %v5526 = vunpack.c.l.b16 %v4048
        %v5527 = vunpack.c.h.b16 %v4048
        %v5528 = vunpack.c.l.b16 %v4049
        %v5529 = vunpack.c.h.b16 %v4049
        %v5530 = vunpack.c.l.b16 %v4050
        %v5531 = vunpack.c.h.b16 %v4050
        %v5532 = vunpack.c.l.b16 %v4051
        %v5533 = vunpack.c.h.b16 %v4051
        %v5534 = vunpack.c.l.b16 %v4052
        %v5535 = vunpack.c.h.b16 %v4052
        %v5536 = vunpack.c.l.b16 %v4053
        %v5537 = vunpack.c.h.b16 %v4053
        %v5538 = vunpack.c.l.b16 %v4054
        %v5539 = vunpack.c.h.b16 %v4054
        %v5540 = vunpack.c.l.b16 %v4055
        %v5541 = vunpack.c.h.b16 %v4055
        %v5542 = vunpack.c.l.b16 %v4056
        %v5543 = vunpack.c.h.b16 %v4056
        %v5544 = vunpack.c.l.b16 %v4057
        %v5545 = vunpack.c.h.b16 %v4057
        %v5546 = vunpack.c.l.b16 %v4058
        %v5547 = vunpack.c.h.b16 %v4058
        %v5548 = vunpack.c.l.b16 %v4059
        %v5549 = vunpack.c.h.b16 %v4059
        %v5550 = vunpack.c.l.b16 %v4060
        %v5551 = vunpack.c.h.b16 %v4060
        %v5552 = vunpack.c.l.b16 %v4061
        %v5553 = vunpack.c.h.b16 %v4061
        %v5554 = vunpack.c.l.b16 %v4062
        %v5555 = vunpack.c.h.b16 %v4062
        %v5556 = vunpack.c.l.b16 %v4063
        %v5557 = vunpack.c.h.b16 %v4063
        %v5558 = vunpack.c.l.b16 %v4064
        %v5559 = vunpack.c.h.b16 %v4064
        %v5560 = vunpack.c.l.b16 %v4065
        %v5561 = vunpack.c.h.b16 %v4065
        %v5562 = vunpack.c.l.b16 %v4066
        %v5563 = vunpack.c.h.b16 %v4066
        %v5564 = vunpack.c.l.b16 %v4067
        %v5565 = vunpack.c.h.b16 %v4067
        %v5566 = vunpack.c.l.b16 %v4068
        %v5567 = vunpack.c.h.b16 %v4068
        %v5568 = vunpack.c.l.b16 %v4069
        %v5569 = vunpack.c.h.b16 %v4069
        %v5570 = vunpack.c.l.b16 %v4070
        %v5571 = vunpack.c.h.b16 %v4070
        %v5572 = vunpack.c.l.b16 %v4071
        %v5573 = vunpack.c.h.b16 %v4071
        %v5574 = vunpack.c.l.b16 %v4072
        %v5575 = vunpack.c.h.b16 %v4072
        %v5576 = vunpack.c.l.b16 %v4073
        %v5577 = vunpack.c.h.b16 %v4073
        %v5578 = vunpack.c.l.b16 %v4074
        %v5579 = vunpack.c.h.b16 %v4074
        %v5580 = vunpack.c.l.b16 %v4075
        %v5581 = vunpack.c.h.b16 %v4075
        %v5582 = vunpack.c.l.b16 %v4076
        %v5583 = vunpack.c.h.b16 %v4076
        %v5584 = vunpack.c.l.b16 %v4077
        %v5585 = vunpack.c.h.b16 %v4077
        %v5586 = vunpack.c.l.b16 %v4078
        %v5587 = vunpack.c.h.b16 %v4078
        %v5588 = vunpack.c.l.b16 %v4079
        %v5589 = vunpack.c.h.b16 %v4079
        %v5590 = vunpack.c.l.b16 %v4080
        %v5591 = vunpack.c.h.b16 %v4080
        %v5592 = vunpack.c.l.b16 %v4081
        %v5593 = vunpack.c.h.b16 %v4081
        %v5594 = vunpack.c.l.b16 %v4082
        %v5595 = vunpack.c.h.b16 %v4082
        %v5596 = vunpack.c.l.b16 %v4083
        %v5597 = vunpack.c.h.b16 %v4083
        %v5598 = vunpack.c.l.b16 %v4084
        %v5599 = vunpack.c.h.b16 %v4084
        %v5600 = vunpack.c.l.b16 %v4085
        %v5601 = vunpack.c.h.b16 %v4085
        %v5602 = vunpack.c.l.b16 %v4086
        %v5603 = vunpack.c.h.b16 %v4086
        %v5604 = vunpack.c.l.b16 %v4087
        %v5605 = vunpack.c.h.b16 %v4087
        %v5606 = vunpack.c.l.b16 %v4088
        %v5607 = vunpack.c.h.b16 %v4088
        %v5608 = vunpack.c.l.b16 %v4089
        %v5609 = vunpack.c.h.b16 %v4089
        %v5610 = vunpack.c.l.b16 %v4090
        %v5611 = vunpack.c.h.b16 %v4090
        %v5612 = vunpack.c.l.b16 %v4091
        %v5613 = vunpack.c.h.b16 %v4091
        %v5614 = vunpack.c.l.b16 %v4092
        %v5615 = vunpack.c.h.b16 %v4092
        %v5616 = vunpack.c.l.b16 %v4093
        %v5617 = vunpack.c.h.b16 %v4093
        %v5618 = vunpack.c.l.b16 %v4094
        %v5619 = vunpack.c.h.b16 %v4094
        %v5620 = vunpack.c.l.b16 %v4095
        %v5621 = vunpack.c.h.b16 %v4095
        %v5622 = vunpack.c.l.b16 %v4096
        %v5623 = vunpack.c.h.b16 %v4096
        %v5624 = vunpack.c.l.b16 %v4097
        %v5625 = vunpack.c.h.b16 %v4097
        %v5626 = vunpack.c.l.b16 %v4098
        %v5627 = vunpack.c.h.b16 %v4098
        %v5628 = vunpack.c.l.b16 %v4099
        %v5629 = vunpack.c.h.b16 %v4099
        %v5630 = vunpack.c.l.b16 %v4100
        %v5631 = vunpack.c.h.b16 %v4100
        %v5632 = vunpack.c.l.b16 %v4101
        %v5633 = vunpack.c.h.b16 %v4101
        %v5634 = vunpack.c.l.b16 %v4102
        %v5635 = vunpack.c.h.b16 %v4102
        %v5636 = vunpack.c.l.b16 %v4103
        %v5637 = vunpack.c.h.b16 %v4103
        %v5638 = vunpack.c.l.b16 %v4104
        %v5639 = vunpack.c.h.b16 %v4104
        %v5640 = vunpack.c.l.b16 %v4105
        %v5641 = vunpack.c.h.b16 %v4105
        %v5642 = vunpack.c.l.b16 %v4106
        %v5643 = vunpack.c.h.b16 %v4106
        %v5644 = vunpack.c.l.b16 %v4107
        %v5645 = vunpack.c.h.b16 %v4107
        %v5646 = vunpack.c.l.b16 %v4108
        %v5647 = vunpack.c.h.b16 %v4108
        %v5648 = vunpack.c.l.b16 %v4109
        %v5649 = vunpack.c.h.b16 %v4109
        %v5650 = vunpack.c.l.b16 %v4110
        %v5651 = vunpack.c.h.b16 %v4110
        %v5652 = vunpack.c.l.b16 %v4111
        %v5653 = vunpack.c.h.b16 %v4111
        %v5654 = vunpack.c.l.b16 %v4112
        %v5655 = vunpack.c.h.b16 %v4112
        %v5656 = vunpack.c.l.b16 %v4113
        %v5657 = vunpack.c.h.b16 %v4113
        %v5658 = vunpack.c.l.b16 %v4114
        %v5659 = vunpack.c.h.b16 %v4114
        %v5660 = vunpack.c.l.b16 %v4115
        %v5661 = vunpack.c.h.b16 %v4115
        %v5662 = vunpack.c.l.b16 %v4116
        %v5663 = vunpack.c.h.b16 %v4116
        %v5664 = vunpack.c.l.b16 %v4117
        %v5665 = vunpack.c.h.b16 %v4117
        %v5666 = vunpack.c.l.b16 %v4118
        %v5667 = vunpack.c.h.b16 %v4118
        %v5668 = vunpack.c.l.b16 %v4119
        %v5669 = vunpack.c.h.b16 %v4119
        %v5670 = vunpack.c.l.b16 %v4120
        %v5671 = vunpack.c.h.b16 %v4120
        %v5672 = vunpack.c.l.b16 %v4121
        %v5673 = vunpack.c.h.b16 %v4121
        %v5674 = vunpack.c.l.b16 %v4122
        %v5675 = vunpack.c.h.b16 %v4122
        %v5676 = vunpack.c.l.b16 %v4123
        %v5677 = vunpack.c.h.b16 %v4123
        %v5678 = vunpack.c.l.b16 %v4124
        %v5679 = vunpack.c.h.b16 %v4124
        %v5680 = vunpack.c.l.b16 %v4125
        %v5681 = vunpack.c.h.b16 %v4125
        %v5682 = vunpack.c.l.b16 %v4126
        %v5683 = vunpack.c.h.b16 %v4126
        %v5684 = vunpack.c.l.b16 %v4127
        %v5685 = vunpack.c.h.b16 %v4127
        %v5686 = vunpack.c.l.b16 %v4128
        %v5687 = vunpack.c.h.b16 %v4128
        %v5688 = vunpack.c.l.b16 %v4129
        %v5689 = vunpack.c.h.b16 %v4129
        %v5690 = vunpack.c.l.b16 %v4130
        %v5691 = vunpack.c.h.b16 %v4130
        %v5692 = vunpack.c.l.b16 %v4131
        %v5693 = vunpack.c.h.b16 %v4131
        %v5694 = vunpack.c.l.b16 %v4132
        %v5695 = vunpack.c.h.b16 %v4132
        %v5696 = vunpack.c.l.b16 %v4133
        %v5697 = vunpack.c.h.b16 %v4133
        %v5698 = vunpack.c.l.b16 %v4134
        %v5699 = vunpack.c.h.b16 %v4134
        %v5700 = vunpack.c.l.b16 %v4135
        %v5701 = vunpack.c.h.b16 %v4135
        %v5702 = vunpack.c.l.b16 %v4136
        %v5703 = vunpack.c.h.b16 %v4136
        %v5704 = vunpack.c.l.b16 %v4137
        %v5705 = vunpack.c.h.b16 %v4137
        %v5706 = vunpack.c.l.b16 %v4138
        %v5707 = vunpack.c.h.b16 %v4138
        %v5708 = vunpack.c.l.b16 %v4139
        %v5709 = vunpack.c.h.b16 %v4139
        %v5710 = vunpack.c.l.b16 %v4140
        %v5711 = vunpack.c.h.b16 %v4140
        %v5712 = vunpack.c.l.b16 %v4141
        %v5713 = vunpack.c.h.b16 %v4141
        %v5714 = vunpack.c.l.b16 %v4142
        %v5715 = vunpack.c.h.b16 %v4142
        %v5716 = vunpack.c.l.b16 %v4143
        %v5717 = vunpack.c.h.b16 %v4143
        %v5718 = vunpack.c.l.b16 %v4144
        %v5719 = vunpack.c.h.b16 %v4144
        %v5720 = vunpack.c.l.b16 %v4145
        %v5721 = vunpack.c.h.b16 %v4145
        %v5722 = vunpack.c.l.b16 %v4146
        %v5723 = vunpack.c.h.b16 %v4146
        %v5724 = vunpack.c.l.b16 %v4147
        %v5725 = vunpack.c.h.b16 %v4147
        %v5726 = vunpack.c.l.b16 %v4148
        %v5727 = vunpack.c.h.b16 %v4148
        %v5728 = vunpack.c.l.b16 %v4149
        %v5729 = vunpack.c.h.b16 %v4149
        %v5730 = vunpack.c.l.b16 %v4150
        %v5731 = vunpack.c.h.b16 %v4150
        %v5732 = vunpack.c.l.b16 %v4151
        %v5733 = vunpack.c.h.b16 %v4151
        %v5734 = vunpack.c.l.b16 %v4152
        %v5735 = vunpack.c.h.b16 %v4152
        %v5736 = vunpack.c.l.b16 %v4153
        %v5737 = vunpack.c.h.b16 %v4153
        %v5738 = vunpack.c.l.b16 %v4154
        %v5739 = vunpack.c.h.b16 %v4154
        %v5740 = vunpack.c.l.b16 %v4155
        %v5741 = vunpack.c.h.b16 %v4155
        %v5742 = vunpack.c.l.b16 %v4156
        %v5743 = vunpack.c.h.b16 %v4156
        %v5744 = vunpack.c.l.b16 %v4157
        %v5745 = vunpack.c.h.b16 %v4157
        %v5746 = vunpack.c.l.b16 %v4158
        %v5747 = vunpack.c.h.b16 %v4158
        %v5748 = vunpack.c.l.b16 %v4159
        %v5749 = vunpack.c.h.b16 %v4159
        %v5750 = vunpack.c.l.b16 %v4160
        %v5751 = vunpack.c.h.b16 %v4160
        %v5752 = vunpack.c.l.b16 %v4161
        %v5753 = vunpack.c.h.b16 %v4161
        %v5754 = vunpack.c.l.b16 %v4162
        %v5755 = vunpack.c.h.b16 %v4162
        %v5756 = vunpack.c.l.b16 %v4163
        %v5757 = vunpack.c.h.b16 %v4163
        %v5758 = vunpack.c.l.b16 %v4164
        %v5759 = vunpack.c.h.b16 %v4164
        %v5760 = vunpack.c.l.b16 %v4165
        %v5761 = vunpack.c.h.b16 %v4165
        %v5762 = vunpack.c.l.b16 %v4166
        %v5763 = vunpack.c.h.b16 %v4166
        %v5764 = vunpack.c.l.b16 %v4167
        %v5765 = vunpack.c.h.b16 %v4167
        %v5766 = vunpack.c.l.b16 %v4168
        %v5767 = vunpack.c.h.b16 %v4168
        %v5768 = vunpack.c.l.b16 %v4169
        %v5769 = vunpack.c.h.b16 %v4169
        %v5770 = vunpack.c.l.b16 %v4170
        %v5771 = vunpack.c.h.b16 %v4170
        %v5772 = vunpack.c.l.b16 %v4171
        %v5773 = vunpack.c.h.b16 %v4171
        %v5774 = vunpack.c.l.b16 %v4172
        %v5775 = vunpack.c.h.b16 %v4172
        %v5776 = vunpack.c.l.b16 %v4173
        %v5777 = vunpack.c.h.b16 %v4173
        %v5778 = vunpack.c.l.b16 %v4174
        %v5779 = vunpack.c.h.b16 %v4174
        %v5780 = vunpack.c.l.b16 %v4175
        %v5781 = vunpack.c.h.b16 %v4175
        %v5782 = vunpack.c.l.b16 %v4176
        %v5783 = vunpack.c.h.b16 %v4176
        %v5784 = vunpack.c.l.b16 %v4177
        %v5785 = vunpack.c.h.b16 %v4177
        %v5786 = vunpack.c.l.b16 %v4178
        %v5787 = vunpack.c.h.b16 %v4178
        %v5788 = vunpack.c.l.b16 %v4179
        %v5789 = vunpack.c.h.b16 %v4179
        %v5790 = vunpack.c.l.b16 %v4180
        %v5791 = vunpack.c.h.b16 %v4180
        %v5792 = vunpack.c.l.b16 %v4181
        %v5793 = vunpack.c.h.b16 %v4181
        %v5794 = vunpack.c.l.b16 %v4182
        %v5795 = vunpack.c.h.b16 %v4182
        %v5796 = vunpack.c.l.b16 %v4183
        %v5797 = vunpack.c.h.b16 %v4183
        %v5798 = vunpack.c.l.b16 %v4184
        %v5799 = vunpack.c.h.b16 %v4184
        %v5800 = vunpack.c.l.b16 %v4185
        %v5801 = vunpack.c.h.b16 %v4185
        %v5802 = vunpack.c.l.b16 %v4186
        %v5803 = vunpack.c.h.b16 %v4186
        %v5804 = vunpack.c.l.b16 %v4187
        %v5805 = vunpack.c.h.b16 %v4187
        %v5806 = vunpack.c.l.b16 %v4188
        %v5807 = vunpack.c.h.b16 %v4188
        %v5808 = vunpack.c.l.b16 %v4189
        %v5809 = vunpack.c.h.b16 %v4189
        %v5810 = vunpack.c.l.b16 %v4190
        %v5811 = vunpack.c.h.b16 %v4190
        %v5812 = vunpack.c.l.b16 %v4191
        %v5813 = vunpack.c.h.b16 %v4191
        %v5814 = vunpack.c.l.b16 %v4192
        %v5815 = vunpack.c.h.b16 %v4192
        %v5816 = vunpack.c.l.b16 %v4193
        %v5817 = vunpack.c.h.b16 %v4193
        %v5818 = vunpack.c.l.b16 %v4194
        %v5819 = vunpack.c.h.b16 %v4194
        %v5820 = vunpack.c.l.b16 %v4195
        %v5821 = vunpack.c.h.b16 %v4195
        %v5822 = vunpack.c.l.b16 %v4196
        %v5823 = vunpack.c.h.b16 %v4196
        %v5824 = vunpack.c.l.b16 %v4197
        %v5825 = vunpack.c.h.b16 %v4197
        %v5826 = vunpack.c.l.b16 %v4198
        %v5827 = vunpack.c.h.b16 %v4198
        %v5828 = vunpack.c.l.b16 %v4199
        %v5829 = vunpack.c.h.b16 %v4199
        %v5830 = vunpack.c.l.b16 %v4200
        %v5831 = vunpack.c.h.b16 %v4200
        %v5832 = vunpack.c.l.b16 %v4201
        %v5833 = vunpack.c.h.b16 %v4201
        %v5834 = vunpack.c.l.b16 %v4202
        %v5835 = vunpack.c.h.b16 %v4202
        %v5836 = vunpack.c.l.b16 %v4203
        %v5837 = vunpack.c.h.b16 %v4203
        %v5838 = vunpack.c.l.b16 %v4204
        %v5839 = vunpack.c.h.b16 %v4204
        %v5840 = vunpack.c.l.b16 %v4205
        %v5841 = vunpack.c.h.b16 %v4205
        %v5842 = vunpack.c.l.b16 %v4206
        %v5843 = vunpack.c.h.b16 %v4206
        %v5844 = vunpack.c.l.b16 %v4207
        %v5845 = vunpack.c.h.b16 %v4207
        %v5846 = vunpack.c.l.b16 %v4208
        %v5847 = vunpack.c.h.b16 %v4208
        %v5848 = vunpack.c.l.b16 %v4209
        %v5849 = vunpack.c.h.b16 %v4209
        %v5850 = vunpack.c.l.b16 %v4210
        %v5851 = vunpack.c.h.b16 %v4210
        %v5852 = vunpack.c.l.b16 %v4211
        %v5853 = vunpack.c.h.b16 %v4211
        %v5854 = vunpack.c.l.b16 %v4212
        %v5855 = vunpack.c.h.b16 %v4212
        %v5856 = vunpack.c.l.b16 %v4213
        %v5857 = vunpack.c.h.b16 %v4213
        %v5858 = vunpack.c.l.b16 %v4214
        %v5859 = vunpack.c.h.b16 %v4214
        %v5860 = vunpack.c.l.b16 %v4215
        %v5861 = vunpack.c.h.b16 %v4215
        %v5862 = vunpack.c.l.b16 %v4216
        %v5863 = vunpack.c.h.b16 %v4216
        %v5864 = vunpack.c.l.b16 %v4217
        %v5865 = vunpack.c.h.b16 %v4217
        %v5866 = vunpack.c.l.b16 %v4218
        %v5867 = vunpack.c.h.b16 %v4218
        %v5868 = vunpack.c.l.b16 %v4219
        %v5869 = vunpack.c.h.b16 %v4219
        %v5870 = vunpack.c.l.b16 %v4220
        %v5871 = vunpack.c.h.b16 %v4220
        %v5872 = vunpack.c.l.b16 %v4221
        %v5873 = vunpack.c.h.b16 %v4221
        %v5874 = vunpack.c.l.b16 %v4222
        %v5875 = vunpack.c.h.b16 %v4222
        %v5876 = vunpack.c.l.b16 %v4223
        %v5877 = vunpack.c.h.b16 %v4223
        %v5878 = vunpack.c.l.b16 %v4224
        %v5879 = vunpack.c.h.b16 %v4224
        %v5880 = vunpack.c.l.b16 %v4225
        %v5881 = vunpack.c.h.b16 %v4225
        %v5882 = vunpack.c.l.b16 %v4226
        %v5883 = vunpack.c.h.b16 %v4226
        %v5884 = vunpack.c.l.b16 %v4227
        %v5885 = vunpack.c.h.b16 %v4227
        %v5886 = vunpack.c.l.b16 %v4228
        %v5887 = vunpack.c.h.b16 %v4228
        %v5888 = vunpack.c.l.b16 %v4229
        %v5889 = vunpack.c.h.b16 %v4229
        %v5890 = vunpack.c.l.b16 %v4230
        %v5891 = vunpack.c.h.b16 %v4230
        %v5892 = vunpack.c.l.b16 %v4231
        %v5893 = vunpack.c.h.b16 %v4231
        %v5894 = vunpack.c.l.b16 %v4232
        %v5895 = vunpack.c.h.b16 %v4232
        %v5896 = vunpack.c.l.b16 %v4233
        %v5897 = vunpack.c.h.b16 %v4233
        %v5898 = vunpack.c.l.b16 %v4234
        %v5899 = vunpack.c.h.b16 %v4234
        %v5900 = vunpack.c.l.b16 %v4235
        %v5901 = vunpack.c.h.b16 %v4235
        %v5902 = vunpack.c.l.b16 %v4236
        %v5903 = vunpack.c.h.b16 %v4236
        %v5904 = vunpack.c.l.b16 %v4237
        %v5905 = vunpack.c.h.b16 %v4237
        %v5906 = vunpack.c.l.b16 %v4238
        %v5907 = vunpack.c.h.b16 %v4238
        %v5908 = vunpack.c.l.b16 %v4239
        %v5909 = vunpack.c.h.b16 %v4239
        %v5910 = vunpack.c.l.b16 %v4240
        %v5911 = vunpack.c.h.b16 %v4240
        %v5912 = vunpack.c.l.b16 %v4241
        %v5913 = vunpack.c.h.b16 %v4241
        %v5914 = vunpack.c.l.b16 %v4242
        %v5915 = vunpack.c.h.b16 %v4242
        %v5916 = vunpack.c.l.b16 %v4243
        %v5917 = vunpack.c.h.b16 %v4243
        %v5918 = vunpack.c.l.b16 %v4244
        %v5919 = vunpack.c.h.b16 %v4244
        %v5920 = vunpack.c.l.b16 %v4245
        %v5921 = vunpack.c.h.b16 %v4245
        %v5922 = vunpack.c.l.b16 %v4246
        %v5923 = vunpack.c.h.b16 %v4246
        %v5924 = vunpack.c.l.b16 %v4247
        %v5925 = vunpack.c.h.b16 %v4247
        %v5926 = vunpack.c.l.b16 %v4248
        %v5927 = vunpack.c.h.b16 %v4248
        %v5928 = vunpack.c.l.b16 %v4249
        %v5929 = vunpack.c.h.b16 %v4249
        %v5930 = vunpack.c.l.b16 %v4250
        %v5931 = vunpack.c.h.b16 %v4250
        %v5932 = vunpack.c.l.b16 %v4251
        %v5933 = vunpack.c.h.b16 %v4251
        %v5934 = vunpack.c.l.b16 %v4252
        %v5935 = vunpack.c.h.b16 %v4252
        %v5936 = vunpack.c.l.b16 %v4253
        %v5937 = vunpack.c.h.b16 %v4253
        %v5938 = vunpack.c.l.b16 %v4254
        %v5939 = vunpack.c.h.b16 %v4254
        %v5940 = vunpack.c.l.b16 %v4255
        %v5941 = vunpack.c.h.b16 %v4255
        %v5942 = vunpack.c.l.b16 %v4256
        %v5943 = vunpack.c.h.b16 %v4256
        %v5944 = vunpack.c.l.b16 %v4257
        %v5945 = vunpack.c.h.b16 %v4257
        %v5946 = vunpack.c.l.b16 %v4258
        %v5947 = vunpack.c.h.b16 %v4258
        %v5948 = vunpack.c.l.b16 %v4259
        %v5949 = vunpack.c.h.b16 %v4259
        %v5950 = vunpack.c.l.b16 %v4260
        %v5951 = vunpack.c.h.b16 %v4260
        %v5952 = vunpack.c.l.b16 %v4261
        %v5953 = vunpack.c.h.b16 %v4261
        %v5954 = vunpack.c.l.b16 %v4262
        %v5955 = vunpack.c.h.b16 %v4262
        %v5956 = vunpack.c.l.b16 %v4263
        %v5957 = vunpack.c.h.b16 %v4263
        %v5958 = vunpack.c.l.b16 %v4264
        %v5959 = vunpack.c.h.b16 %v4264
        %v5960 = vunpack.c.l.b16 %v4265
        %v5961 = vunpack.c.h.b16 %v4265
        %v5962 = vunpack.c.l.b16 %v4266
        %v5963 = vunpack.c.h.b16 %v4266
        %v5964 = vunpack.c.l.b16 %v4267
        %v5965 = vunpack.c.h.b16 %v4267
        %v5966 = vunpack.c.l.b16 %v4268
        %v5967 = vunpack.c.h.b16 %v4268
        %v5968 = vunpack.c.l.b16 %v4269
        %v5969 = vunpack.c.h.b16 %v4269
        %v5970 = vunpack.c.l.b16 %v4270
        %v5971 = vunpack.c.h.b16 %v4270
        %v5972 = vunpack.c.l.b16 %v4271
        %v5973 = vunpack.c.h.b16 %v4271
        %v5974 = vunpack.c.l.b16 %v4272
        %v5975 = vunpack.c.h.b16 %v4272
        %v5976 = vunpack.c.l.b16 %v4273
        %v5977 = vunpack.c.h.b16 %v4273
        %v5978 = vunpack.c.l.b16 %v4274
        %v5979 = vunpack.c.h.b16 %v4274
        %v5980 = vunpack.c.l.b16 %v4275
        %v5981 = vunpack.c.h.b16 %v4275
        %v5982 = vunpack.c.l.b16 %v4276
        %v5983 = vunpack.c.h.b16 %v4276
        %v5984 = vunpack.c.l.b16 %v4277
        %v5985 = vunpack.c.h.b16 %v4277
        %v5986 = vunpack.c.l.b16 %v4278
        %v5987 = vunpack.c.h.b16 %v4278
        %v5988 = vunpack.c.l.b16 %v4279
        %v5989 = vunpack.c.h.b16 %v4279
        %v5990 = vunpack.c.l.b16 %v4280
        %v5991 = vunpack.c.h.b16 %v4280
        %v5992 = vunpack.c.l.b16 %v4281
        %v5993 = vunpack.c.h.b16 %v4281
        %v5994 = vunpack.c.l.b16 %v4282
        %v5995 = vunpack.c.h.b16 %v4282
        %v5996 = vunpack.c.l.b16 %v4283
        %v5997 = vunpack.c.h.b16 %v4283
        %v5998 = vunpack.c.l.b16 %v4284
        %v5999 = vunpack.c.h.b16 %v4284
        %v6000 = vunpack.c.l.b16 %v4285
        %v6001 = vunpack.c.h.b16 %v4285
        %v6002 = vunpack.c.l.b16 %v4286
        %v6003 = vunpack.c.h.b16 %v4286
        %v6004 = vunpack.c.l.b16 %v4287
        %v6005 = vunpack.c.h.b16 %v4287
        %v6006 = vunpack.c.l.b16 %v4288
        %v6007 = vunpack.c.h.b16 %v4288
        %v6008 = vunpack.c.l.b16 %v4289
        %v6009 = vunpack.c.h.b16 %v4289
        %v6010 = vunpack.c.l.b16 %v4290
        %v6011 = vunpack.c.h.b16 %v4290
        %v6012 = vunpack.c.l.b16 %v4291
        %v6013 = vunpack.c.h.b16 %v4291
        %v6014 = vunpack.c.l.b16 %v4292
        %v6015 = vunpack.c.h.b16 %v4292
        %v6016 = vunpack.c.l.b16 %v4293
        %v6017 = vunpack.c.h.b16 %v4293
        %v6018 = vunpack.c.l.b16 %v4294
        %v6019 = vunpack.c.h.b16 %v4294
        %v6020 = vunpack.c.l.b16 %v4295
        %v6021 = vunpack.c.h.b16 %v4295
        %v6022 = vunpack.c.l.b16 %v4296
        %v6023 = vunpack.c.h.b16 %v4296
        %v6024 = vunpack.c.l.b16 %v4297
        %v6025 = vunpack.c.h.b16 %v4297
        %v6026 = vpack.c.b16 %v4878, %v4874
        %v6027 = vpack.c.b16 %v4879, %v4875
        %v6028 = vpack.c.b16 %v4880, %v4876
        %v6029 = vpack.c.b16 %v4881, %v4877
        %v6030 = vpack.c.b16 %v4886, %v4882
        %v6031 = vpack.c.b16 %v4887, %v4883
        %v6032 = vpack.c.b16 %v4888, %v4884
        %v6033 = vpack.c.b16 %v4889, %v4885
        %v6034 = vpack.c.b16 %v4894, %v4890
        %v6035 = vpack.c.b16 %v4895, %v4891
        %v6036 = vpack.c.b16 %v4896, %v4892
        %v6037 = vpack.c.b16 %v4897, %v4893
        %v6038 = vpack.c.b16 %v4902, %v4898
        %v6039 = vpack.c.b16 %v4903, %v4899
        %v6040 = vpack.c.b16 %v4904, %v4900
        %v6041 = vpack.c.b16 %v4905, %v4901
        %v6042 = vpack.c.b16 %v4910, %v4906
        %v6043 = vpack.c.b16 %v4911, %v4907
        %v6044 = vpack.c.b16 %v4912, %v4908
        %v6045 = vpack.c.b16 %v4913, %v4909
        %v6046 = vpack.c.b16 %v4918, %v4914
        %v6047 = vpack.c.b16 %v4919, %v4915
        %v6048 = vpack.c.b16 %v4920, %v4916
        %v6049 = vpack.c.b16 %v4921, %v4917
        %v6050 = vpack.c.b16 %v4926, %v4922
        %v6051 = vpack.c.b16 %v4927, %v4923
        %v6052 = vpack.c.b16 %v4928, %v4924
        %v6053 = vpack.c.b16 %v4929, %v4925
        %v6054 = vpack.c.b16 %v4934, %v4930
        %v6055 = vpack.c.b16 %v4935, %v4931
        %v6056 = vpack.c.b16 %v4936, %v4932
        %v6057 = vpack.c.b16 %v4937, %v4933
        %v6058 = vpack.c.b16 %v4942, %v4938
        %v6059 = vpack.c.b16 %v4943, %v4939
        %v6060 = vpack.c.b16 %v4944, %v4940
        %v6061 = vpack.c.b16 %v4945, %v4941
        %v6062 = vpack.c.b16 %v4950, %v4946
        %v6063 = vpack.c.b16 %v4951, %v4947
        %v6064 = vpack.c.b16 %v4952, %v4948
        %v6065 = vpack.c.b16 %v4953, %v4949
        %v6066 = vpack.c.b16 %v4958, %v4954
        %v6067 = vpack.c.b16 %v4959, %v4955
        %v6068 = vpack.c.b16 %v4960, %v4956
        %v6069 = vpack.c.b16 %v4961, %v4957
        %v6070 = vpack.c.b16 %v4966, %v4962
        %v6071 = vpack.c.b16 %v4967, %v4963
        %v6072 = vpack.c.b16 %v4968, %v4964
        %v6073 = vpack.c.b16 %v4969, %v4965
        %v6074 = vpack.c.b16 %v4974, %v4970
        %v6075 = vpack.c.b16 %v4975, %v4971
        %v6076 = vpack.c.b16 %v4976, %v4972
        %v6077 = vpack.c.b16 %v4977, %v4973
        %v6078 = vpack.c.b16 %v4982, %v4978
        %v6079 = vpack.c.b16 %v4983, %v4979
        %v6080 = vpack.c.b16 %v4984, %v4980
        %v6081 = vpack.c.b16 %v4985, %v4981
        %v6082 = vpack.c.b16 %v4990, %v4986
        %v6083 = vpack.c.b16 %v4991, %v4987
        %v6084 = vpack.c.b16 %v4992, %v4988
        %v6085 = vpack.c.b16 %v4993, %v4989
        %v6086 = vpack.c.b16 %v4998, %v4994
        %v6087 = vpack.c.b16 %v4999, %v4995
        %v6088 = vpack.c.b16 %v5000, %v4996
        %v6089 = vpack.c.b16 %v5001, %v4997
        %v6090 = vpack.c.b16 %v5006, %v5002
        %v6091 = vpack.c.b16 %v5007, %v5003
        %v6092 = vpack.c.b16 %v5008, %v5004
        %v6093 = vpack.c.b16 %v5009, %v5005
        %v6094 = vpack.c.b16 %v5014, %v5010
        %v6095 = vpack.c.b16 %v5015, %v5011
        %v6096 = vpack.c.b16 %v5016, %v5012
        %v6097 = vpack.c.b16 %v5017, %v5013
        %v6098 = vpack.c.b16 %v5022, %v5018
        %v6099 = vpack.c.b16 %v5023, %v5019
        %v6100 = vpack.c.b16 %v5024, %v5020
        %v6101 = vpack.c.b16 %v5025, %v5021
        %v6102 = vpack.c.b16 %v5030, %v5026
        %v6103 = vpack.c.b16 %v5031, %v5027
        %v6104 = vpack.c.b16 %v5032, %v5028
        %v6105 = vpack.c.b16 %v5033, %v5029
        %v6106 = vpack.c.b16 %v5038, %v5034
        %v6107 = vpack.c.b16 %v5039, %v5035
        %v6108 = vpack.c.b16 %v5040, %v5036
        %v6109 = vpack.c.b16 %v5041, %v5037
        %v6110 = vpack.c.b16 %v5046, %v5042
        %v6111 = vpack.c.b16 %v5047, %v5043
        %v6112 = vpack.c.b16 %v5048, %v5044
        %v6113 = vpack.c.b16 %v5049, %v5045
        %v6114 = vpack.c.b16 %v5054, %v5050
        %v6115 = vpack.c.b16 %v5055, %v5051
        %v6116 = vpack.c.b16 %v5056, %v5052
        %v6117 = vpack.c.b16 %v5057, %v5053
        %v6118 = vpack.c.b16 %v5062, %v5058
        %v6119 = vpack.c.b16 %v5063, %v5059
        %v6120 = vpack.c.b16 %v5064, %v5060
        %v6121 = vpack.c.b16 %v5065, %v5061
        %v6122 = vpack.c.b16 %v5070, %v5066
        %v6123 = vpack.c.b16 %v5071, %v5067
        %v6124 = vpack.c.b16 %v5072, %v5068
        %v6125 = vpack.c.b16 %v5073, %v5069
        %v6126 = vpack.c.b16 %v5078, %v5074
        %v6127 = vpack.c.b16 %v5079, %v5075
        %v6128 = vpack.c.b16 %v5080, %v5076
        %v6129 = vpack.c.b16 %v5081, %v5077
        %v6130 = vpack.c.b16 %v5086, %v5082
        %v6131 = vpack.c.b16 %v5087, %v5083
        %v6132 = vpack.c.b16 %v5088, %v5084
        %v6133 = vpack.c.b16 %v5089, %v5085
        %v6134 = vpack.c.b16 %v5094, %v5090
        %v6135 = vpack.c.b16 %v5095, %v5091
        %v6136 = vpack.c.b16 %v5096, %v5092
        %v6137 = vpack.c.b16 %v5097, %v5093
        %v6138 = vpack.c.b16 %v5102, %v5098
        %v6139 = vpack.c.b16 %v5103, %v5099
        %v6140 = vpack.c.b16 %v5104, %v5100
        %v6141 = vpack.c.b16 %v5105, %v5101
        %v6142 = vpack.c.b16 %v5110, %v5106
        %v6143 = vpack.c.b16 %v5111, %v5107
        %v6144 = vpack.c.b16 %v5112, %v5108
        %v6145 = vpack.c.b16 %v5113, %v5109
        %v6146 = vpack.c.b16 %v5118, %v5114
        %v6147 = vpack.c.b16 %v5119, %v5115
        %v6148 = vpack.c.b16 %v5120, %v5116
        %v6149 = vpack.c.b16 %v5121, %v5117
        %v6150 = vpack.c.b16 %v5126, %v5122
        %v6151 = vpack.c.b16 %v5127, %v5123
        %v6152 = vpack.c.b16 %v5128, %v5124
        %v6153 = vpack.c.b16 %v5129, %v5125
        %v6154 = vpack.c.b16 %v5134, %v5130
        %v6155 = vpack.c.b16 %v5135, %v5131
        %v6156 = vpack.c.b16 %v5136, %v5132
        %v6157 = vpack.c.b16 %v5137, %v5133
        %v6158 = vpack.c.b16 %v5142, %v5138
        %v6159 = vpack.c.b16 %v5143, %v5139
        %v6160 = vpack.c.b16 %v5144, %v5140
        %v6161 = vpack.c.b16 %v5145, %v5141
        %v6162 = vpack.c.b16 %v5150, %v5146
        %v6163 = vpack.c.b16 %v5151, %v5147
        %v6164 = vpack.c.b16 %v5152, %v5148
        %v6165 = vpack.c.b16 %v5153, %v5149
        %v6166 = vpack.c.b16 %v5158, %v5154
        %v6167 = vpack.c.b16 %v5159, %v5155
        %v6168 = vpack.c.b16 %v5160, %v5156
        %v6169 = vpack.c.b16 %v5161, %v5157
        %v6170 = vpack.c.b16 %v5166, %v5162
        %v6171 = vpack.c.b16 %v5167, %v5163
        %v6172 = vpack.c.b16 %v5168, %v5164
        %v6173 = vpack.c.b16 %v5169, %v5165
        %v6174 = vpack.c.b16 %v5174, %v5170
        %v6175 = vpack.c.b16 %v5175, %v5171
        %v6176 = vpack.c.b16 %v5176, %v5172
        %v6177 = vpack.c.b16 %v5177, %v5173
        %v6178 = vpack.c.b16 %v5182, %v5178
        %v6179 = vpack.c.b16 %v5183, %v5179
        %v6180 = vpack.c.b16 %v5184, %v5180
        %v6181 = vpack.c.b16 %v5185, %v5181
        %v6182 = vpack.c.b16 %v5190, %v5186
        %v6183 = vpack.c.b16 %v5191, %v5187
        %v6184 = vpack.c.b16 %v5192, %v5188
        %v6185 = vpack.c.b16 %v5193, %v5189
        %v6186 = vpack.c.b16 %v5198, %v5194
        %v6187 = vpack.c.b16 %v5199, %v5195
        %v6188 = vpack.c.b16 %v5200, %v5196
        %v6189 = vpack.c.b16 %v5201, %v5197
        %v6190 = vpack.c.b16 %v5206, %v5202
        %v6191 = vpack.c.b16 %v5207, %v5203
        %v6192 = vpack.c.b16 %v5208, %v5204
        %v6193 = vpack.c.b16 %v5209, %v5205
        %v6194 = vpack.c.b16 %v5214, %v5210
        %v6195 = vpack.c.b16 %v5215, %v5211
        %v6196 = vpack.c.b16 %v5216, %v5212
        %v6197 = vpack.c.b16 %v5217, %v5213
        %v6198 = vpack.c.b16 %v5222, %v5218
        %v6199 = vpack.c.b16 %v5223, %v5219
        %v6200 = vpack.c.b16 %v5224, %v5220
        %v6201 = vpack.c.b16 %v5225, %v5221
        %v6202 = vpack.c.b16 %v5230, %v5226
        %v6203 = vpack.c.b16 %v5231, %v5227
        %v6204 = vpack.c.b16 %v5232, %v5228
        %v6205 = vpack.c.b16 %v5233, %v5229
        %v6206 = vpack.c.b16 %v5238, %v5234
        %v6207 = vpack.c.b16 %v5239, %v5235
        %v6208 = vpack.c.b16 %v5240, %v5236
        %v6209 = vpack.c.b16 %v5241, %v5237
        %v6210 = vpack.c.b16 %v5246, %v5242
        %v6211 = vpack.c.b16 %v5247, %v5243
        %v6212 = vpack.c.b16 %v5248, %v5244
        %v6213 = vpack.c.b16 %v5249, %v5245
        %v6214 = vpack.c.b16 %v5254, %v5250
        %v6215 = vpack.c.b16 %v5255, %v5251
        %v6216 = vpack.c.b16 %v5256, %v5252
        %v6217 = vpack.c.b16 %v5257, %v5253
        %v6218 = vpack.c.b16 %v5262, %v5258
        %v6219 = vpack.c.b16 %v5263, %v5259
        %v6220 = vpack.c.b16 %v5264, %v5260
        %v6221 = vpack.c.b16 %v5265, %v5261
        %v6222 = vpack.c.b16 %v5270, %v5266
        %v6223 = vpack.c.b16 %v5271, %v5267
        %v6224 = vpack.c.b16 %v5272, %v5268
        %v6225 = vpack.c.b16 %v5273, %v5269
        %v6226 = vpack.c.b16 %v5278, %v5274
        %v6227 = vpack.c.b16 %v5279, %v5275
        %v6228 = vpack.c.b16 %v5280, %v5276
        %v6229 = vpack.c.b16 %v5281, %v5277
        %v6230 = vpack.c.b16 %v5286, %v5282
        %v6231 = vpack.c.b16 %v5287, %v5283
        %v6232 = vpack.c.b16 %v5288, %v5284
        %v6233 = vpack.c.b16 %v5289, %v5285
        %v6234 = vpack.c.b16 %v5294, %v5290
        %v6235 = vpack.c.b16 %v5295, %v5291
        %v6236 = vpack.c.b16 %v5296, %v5292
        %v6237 = vpack.c.b16 %v5297, %v5293
        %v6238 = vpack.c.b16 %v5302, %v5298
        %v6239 = vpack.c.b16 %v5303, %v5299
        %v6240 = vpack.c.b16 %v5304, %v5300
        %v6241 = vpack.c.b16 %v5305, %v5301
        %v6242 = vpack.c.b16 %v5310, %v5306
        %v6243 = vpack.c.b16 %v5311, %v5307
        %v6244 = vpack.c.b16 %v5312, %v5308
        %v6245 = vpack.c.b16 %v5313, %v5309
        %v6246 = vpack.c.b16 %v5318, %v5314
        %v6247 = vpack.c.b16 %v5319, %v5315
        %v6248 = vpack.c.b16 %v5320, %v5316
        %v6249 = vpack.c.b16 %v5321, %v5317
        %v6250 = vpack.c.b16 %v5326, %v5322
        %v6251 = vpack.c.b16 %v5327, %v5323
        %v6252 = vpack.c.b16 %v5328, %v5324
        %v6253 = vpack.c.b16 %v5329, %v5325
        %v6254 = vpack.c.b16 %v5334, %v5330
        %v6255 = vpack.c.b16 %v5335, %v5331
        %v6256 = vpack.c.b16 %v5336, %v5332
        %v6257 = vpack.c.b16 %v5337, %v5333
        %v6258 = vpack.c.b16 %v5342, %v5338
        %v6259 = vpack.c.b16 %v5343, %v5339
        %v6260 = vpack.c.b16 %v5344, %v5340
        %v6261 = vpack.c.b16 %v5345, %v5341
        %v6262 = vpack.c.b16 %v5350, %v5346
        %v6263 = vpack.c.b16 %v5351, %v5347
        %v6264 = vpack.c.b16 %v5352, %v5348
        %v6265 = vpack.c.b16 %v5353, %v5349
        %v6266 = vpack.c.b16 %v5358, %v5354
        %v6267 = vpack.c.b16 %v5359, %v5355
        %v6268 = vpack.c.b16 %v5360, %v5356
        %v6269 = vpack.c.b16 %v5361, %v5357
        %v6270 = vpack.c.b16 %v5366, %v5362
        %v6271 = vpack.c.b16 %v5367, %v5363
        %v6272 = vpack.c.b16 %v5368, %v5364
        %v6273 = vpack.c.b16 %v5369, %v5365
        %v6274 = vpack.c.b16 %v5374, %v5370
        %v6275 = vpack.c.b16 %v5375, %v5371
        %v6276 = vpack.c.b16 %v5376, %v5372
        %v6277 = vpack.c.b16 %v5377, %v5373
        %v6278 = vpack.c.b16 %v5382, %v5378
        %v6279 = vpack.c.b16 %v5383, %v5379
        %v6280 = vpack.c.b16 %v5384, %v5380
        %v6281 = vpack.c.b16 %v5385, %v5381
        %v6282 = vpack.c.b16 %v5390, %v5386
        %v6283 = vpack.c.b16 %v5391, %v5387
        %v6284 = vpack.c.b16 %v5392, %v5388
        %v6285 = vpack.c.b16 %v5393, %v5389
        %v6286 = vpack.c.b16 %v5398, %v5394
        %v6287 = vpack.c.b16 %v5399, %v5395
        %v6288 = vpack.c.b16 %v5400, %v5396
        %v6289 = vpack.c.b16 %v5401, %v5397
        %v6290 = vpack.c.b16 %v5406, %v5402
        %v6291 = vpack.c.b16 %v5407, %v5403
        %v6292 = vpack.c.b16 %v5408, %v5404
        %v6293 = vpack.c.b16 %v5409, %v5405
        %v6294 = vpack.c.b16 %v5414, %v5410
        %v6295 = vpack.c.b16 %v5415, %v5411
        %v6296 = vpack.c.b16 %v5416, %v5412
        %v6297 = vpack.c.b16 %v5417, %v5413
        %v6298 = vpack.c.b16 %v5422, %v5418
        %v6299 = vpack.c.b16 %v5423, %v5419
        %v6300 = vpack.c.b16 %v5424, %v5420
        %v6301 = vpack.c.b16 %v5425, %v5421
        %v6302 = vpack.c.b16 %v5430, %v5426
        %v6303 = vpack.c.b16 %v5431, %v5427
        %v6304 = vpack.c.b16 %v5432, %v5428
        %v6305 = vpack.c.b16 %v5433, %v5429
        %v6306 = vpack.c.b16 %v5438, %v5434
        %v6307 = vpack.c.b16 %v5439, %v5435
        %v6308 = vpack.c.b16 %v5440, %v5436
        %v6309 = vpack.c.b16 %v5441, %v5437
        %v6310 = vpack.c.b16 %v5446, %v5442
        %v6311 = vpack.c.b16 %v5447, %v5443
        %v6312 = vpack.c.b16 %v5448, %v5444
        %v6313 = vpack.c.b16 %v5449, %v5445
        %v6314 = vpack.c.b16 %v5454, %v5450
        %v6315 = vpack.c.b16 %v5455, %v5451
        %v6316 = vpack.c.b16 %v5456, %v5452
        %v6317 = vpack.c.b16 %v5457, %v5453
        %v6318 = vpack.c.b16 %v5462, %v5458
        %v6319 = vpack.c.b16 %v5463, %v5459
        %v6320 = vpack.c.b16 %v5464, %v5460
        %v6321 = vpack.c.b16 %v5465, %v5461
        %v6322 = vpack.c.b16 %v5470, %v5466
        %v6323 = vpack.c.b16 %v5471, %v5467
        %v6324 = vpack.c.b16 %v5472, %v5468
        %v6325 = vpack.c.b16 %v5473, %v5469
        %v6326 = vpack.c.b16 %v5478, %v5474
        %v6327 = vpack.c.b16 %v5479, %v5475
        %v6328 = vpack.c.b16 %v5480, %v5476
        %v6329 = vpack.c.b16 %v5481, %v5477
        %v6330 = vpack.c.b16 %v5486, %v5482
        %v6331 = vpack.c.b16 %v5487, %v5483
        %v6332 = vpack.c.b16 %v5488, %v5484
        %v6333 = vpack.c.b16 %v5489, %v5485
        %v6334 = vpack.c.b16 %v5494, %v5490
        %v6335 = vpack.c.b16 %v5495, %v5491
        %v6336 = vpack.c.b16 %v5496, %v5492
        %v6337 = vpack.c.b16 %v5497, %v5493
        %v6338 = vpack.c.b16 %v5502, %v5498
        %v6339 = vpack.c.b16 %v5503, %v5499
        %v6340 = vpack.c.b16 %v5504, %v5500
        %v6341 = vpack.c.b16 %v5505, %v5501
        %v6342 = vpack.c.b16 %v5510, %v5506
        %v6343 = vpack.c.b16 %v5511, %v5507
        %v6344 = vpack.c.b16 %v5512, %v5508
        %v6345 = vpack.c.b16 %v5513, %v5509
        %v6346 = vpack.c.b16 %v5518, %v5514
        %v6347 = vpack.c.b16 %v5519, %v5515
        %v6348 = vpack.c.b16 %v5520, %v5516
        %v6349 = vpack.c.b16 %v5521, %v5517
        %v6350 = vpack.c.b16 %v5526, %v5522
        %v6351 = vpack.c.b16 %v5527, %v5523
        %v6352 = vpack.c.b16 %v5528, %v5524
        %v6353 = vpack.c.b16 %v5529, %v5525
        %v6354 = vpack.c.b16 %v5534, %v5530
        %v6355 = vpack.c.b16 %v5535, %v5531
        %v6356 = vpack.c.b16 %v5536, %v5532
        %v6357 = vpack.c.b16 %v5537, %v5533
        %v6358 = vpack.c.b16 %v5542, %v5538
        %v6359 = vpack.c.b16 %v5543, %v5539
        %v6360 = vpack.c.b16 %v5544, %v5540
        %v6361 = vpack.c.b16 %v5545, %v5541
        %v6362 = vpack.c.b16 %v5550, %v5546
        %v6363 = vpack.c.b16 %v5551, %v5547
        %v6364 = vpack.c.b16 %v5552, %v5548
        %v6365 = vpack.c.b16 %v5553, %v5549
        %v6366 = vpack.c.b16 %v5558, %v5554
        %v6367 = vpack.c.b16 %v5559, %v5555
        %v6368 = vpack.c.b16 %v5560, %v5556
        %v6369 = vpack.c.b16 %v5561, %v5557
        %v6370 = vpack.c.b16 %v5566, %v5562
        %v6371 = vpack.c.b16 %v5567, %v5563
        %v6372 = vpack.c.b16 %v5568, %v5564
        %v6373 = vpack.c.b16 %v5569, %v5565
        %v6374 = vpack.c.b16 %v5574, %v5570
        %v6375 = vpack.c.b16 %v5575, %v5571
        %v6376 = vpack.c.b16 %v5576, %v5572
        %v6377 = vpack.c.b16 %v5577, %v5573
        %v6378 = vpack.c.b16 %v5582, %v5578
        %v6379 = vpack.c.b16 %v5583, %v5579
        %v6380 = vpack.c.b16 %v5584, %v5580
        %v6381 = vpack.c.b16 %v5585, %v5581
        %v6382 = vpack.c.b16 %v5590, %v5586
        %v6383 = vpack.c.b16 %v5591, %v5587
        %v6384 = vpack.c.b16 %v5592, %v5588
        %v6385 = vpack.c.b16 %v5593, %v5589
        %v6386 = vpack.c.b16 %v5598, %v5594
        %v6387 = vpack.c.b16 %v5599, %v5595
        %v6388 = vpack.c.b16 %v5600, %v5596
        %v6389 = vpack.c.b16 %v5601, %v5597
        %v6390 = vpack.c.b16 %v5606, %v5602
        %v6391 = vpack.c.b16 %v5607, %v5603
        %v6392 = vpack.c.b16 %v5608, %v5604
        %v6393 = vpack.c.b16 %v5609, %v5605
        %v6394 = vpack.c.b16 %v5614, %v5610
        %v6395 = vpack.c.b16 %v5615, %v5611
        %v6396 = vpack.c.b16 %v5616, %v5612
        %v6397 = vpack.c.b16 %v5617, %v5613
        %v6398 = vpack.c.b16 %v5622, %v5618
        %v6399 = vpack.c.b16 %v5623, %v5619
        %v6400 = vpack.c.b16 %v5624, %v5620
        %v6401 = vpack.c.b16 %v5625, %v5621
        %v6402 = vpack.c.b16 %v5630, %v5626
        %v6403 = vpack.c.b16 %v5631, %v5627
        %v6404 = vpack.c.b16 %v5632, %v5628
        %v6405 = vpack.c.b16 %v5633, %v5629
        %v6406 = vpack.c.b16 %v5638, %v5634
        %v6407 = vpack.c.b16 %v5639, %v5635
        %v6408 = vpack.c.b16 %v5640, %v5636
        %v6409 = vpack.c.b16 %v5641, %v5637
        %v6410 = vpack.c.b16 %v5646, %v5642
        %v6411 = vpack.c.b16 %v5647, %v5643
        %v6412 = vpack.c.b16 %v5648, %v5644
        %v6413 = vpack.c.b16 %v5649, %v5645
        %v6414 = vpack.c.b16 %v5654, %v5650
        %v6415 = vpack.c.b16 %v5655, %v5651
        %v6416 = vpack.c.b16 %v5656, %v5652
        %v6417 = vpack.c.b16 %v5657, %v5653
        %v6418 = vpack.c.b16 %v5662, %v5658
        %v6419 = vpack.c.b16 %v5663, %v5659
        %v6420 = vpack.c.b16 %v5664, %v5660
        %v6421 = vpack.c.b16 %v5665, %v5661
        %v6422 = vpack.c.b16 %v5670, %v5666
        %v6423 = vpack.c.b16 %v5671, %v5667
        %v6424 = vpack.c.b16 %v5672, %v5668
        %v6425 = vpack.c.b16 %v5673, %v5669
        %v6426 = vpack.c.b16 %v5678, %v5674
        %v6427 = vpack.c.b16 %v5679, %v5675
        %v6428 = vpack.c.b16 %v5680, %v5676
        %v6429 = vpack.c.b16 %v5681, %v5677
        %v6430 = vpack.c.b16 %v5686, %v5682
        %v6431 = vpack.c.b16 %v5687, %v5683
        %v6432 = vpack.c.b16 %v5688, %v5684
        %v6433 = vpack.c.b16 %v5689, %v5685
        %v6434 = vpack.c.b16 %v5694, %v5690
        %v6435 = vpack.c.b16 %v5695, %v5691
        %v6436 = vpack.c.b16 %v5696, %v5692
        %v6437 = vpack.c.b16 %v5697, %v5693
        %v6438 = vpack.c.b16 %v5702, %v5698
        %v6439 = vpack.c.b16 %v5703, %v5699
        %v6440 = vpack.c.b16 %v5704, %v5700
        %v6441 = vpack.c.b16 %v5705, %v5701
        %v6442 = vpack.c.b16 %v5710, %v5706
        %v6443 = vpack.c.b16 %v5711, %v5707
        %v6444 = vpack.c.b16 %v5712, %v5708
        %v6445 = vpack.c.b16 %v5713, %v5709
        %v6446 = vpack.c.b16 %v5718, %v5714
        %v6447 = vpack.c.b16 %v5719, %v5715
        %v6448 = vpack.c.b16 %v5720, %v5716
        %v6449 = vpack.c.b16 %v5721, %v5717
        %v6450 = vpack.c.b16 %v5726, %v5722
        %v6451 = vpack.c.b16 %v5727, %v5723
        %v6452 = vpack.c.b16 %v5728, %v5724
        %v6453 = vpack.c.b16 %v5729, %v5725
        %v6454 = vpack.c.b16 %v5734, %v5730
        %v6455 = vpack.c.b16 %v5735, %v5731
        %v6456 = vpack.c.b16 %v5736, %v5732
        %v6457 = vpack.c.b16 %v5737, %v5733
        %v6458 = vpack.c.b16 %v5742, %v5738
        %v6459 = vpack.c.b16 %v5743, %v5739
        %v6460 = vpack.c.b16 %v5744, %v5740
        %v6461 = vpack.c.b16 %v5745, %v5741
        %v6462 = vpack.c.b16 %v5750, %v5746
        %v6463 = vpack.c.b16 %v5751, %v5747
        %v6464 = vpack.c.b16 %v5752, %v5748
        %v6465 = vpack.c.b16 %v5753, %v5749
        %v6466 = vpack.c.b16 %v5758, %v5754
        %v6467 = vpack.c.b16 %v5759, %v5755
        %v6468 = vpack.c.b16 %v5760, %v5756
        %v6469 = vpack.c.b16 %v5761, %v5757
        %v6470 = vpack.c.b16 %v5766, %v5762
        %v6471 = vpack.c.b16 %v5767, %v5763
        %v6472 = vpack.c.b16 %v5768, %v5764
        %v6473 = vpack.c.b16 %v5769, %v5765
        %v6474 = vpack.c.b16 %v5774, %v5770
        %v6475 = vpack.c.b16 %v5775, %v5771
        %v6476 = vpack.c.b16 %v5776, %v5772
        %v6477 = vpack.c.b16 %v5777, %v5773
        %v6478 = vpack.c.b16 %v5782, %v5778
        %v6479 = vpack.c.b16 %v5783, %v5779
        %v6480 = vpack.c.b16 %v5784, %v5780
        %v6481 = vpack.c.b16 %v5785, %v5781
        %v6482 = vpack.c.b16 %v5790, %v5786
        %v6483 = vpack.c.b16 %v5791, %v5787
        %v6484 = vpack.c.b16 %v5792, %v5788
        %v6485 = vpack.c.b16 %v5793, %v5789
        %v6486 = vpack.c.b16 %v5798, %v5794
        %v6487 = vpack.c.b16 %v5799, %v5795
        %v6488 = vpack.c.b16 %v5800, %v5796
        %v6489 = vpack.c.b16 %v5801, %v5797
        %v6490 = vpack.c.b16 %v5806, %v5802
        %v6491 = vpack.c.b16 %v5807, %v5803
        %v6492 = vpack.c.b16 %v5808, %v5804
        %v6493 = vpack.c.b16 %v5809, %v5805
        %v6494 = vpack.c.b16 %v5814, %v5810
        %v6495 = vpack.c.b16 %v5815, %v5811
        %v6496 = vpack.c.b16 %v5816, %v5812
        %v6497 = vpack.c.b16 %v5817, %v5813
        %v6498 = vpack.c.b16 %v5822, %v5818
        %v6499 = vpack.c.b16 %v5823, %v5819
        %v6500 = vpack.c.b16 %v5824, %v5820
        %v6501 = vpack.c.b16 %v5825, %v5821
        %v6502 = vpack.c.b16 %v5830, %v5826
        %v6503 = vpack.c.b16 %v5831, %v5827
        %v6504 = vpack.c.b16 %v5832, %v5828
        %v6505 = vpack.c.b16 %v5833, %v5829
        %v6506 = vpack.c.b16 %v5838, %v5834
        %v6507 = vpack.c.b16 %v5839, %v5835
        %v6508 = vpack.c.b16 %v5840, %v5836
        %v6509 = vpack.c.b16 %v5841, %v5837
        %v6510 = vpack.c.b16 %v5846, %v5842
        %v6511 = vpack.c.b16 %v5847, %v5843
        %v6512 = vpack.c.b16 %v5848, %v5844
        %v6513 = vpack.c.b16 %v5849, %v5845
        %v6514 = vpack.c.b16 %v5854, %v5850
        %v6515 = vpack.c.b16 %v5855, %v5851
        %v6516 = vpack.c.b16 %v5856, %v5852
        %v6517 = vpack.c.b16 %v5857, %v5853
        %v6518 = vpack.c.b16 %v5862, %v5858
        %v6519 = vpack.c.b16 %v5863, %v5859
        %v6520 = vpack.c.b16 %v5864, %v5860
        %v6521 = vpack.c.b16 %v5865, %v5861
        %v6522 = vpack.c.b16 %v5870, %v5866
        %v6523 = vpack.c.b16 %v5871, %v5867
        %v6524 = vpack.c.b16 %v5872, %v5868
        %v6525 = vpack.c.b16 %v5873, %v5869
        %v6526 = vpack.c.b16 %v5878, %v5874
        %v6527 = vpack.c.b16 %v5879, %v5875
        %v6528 = vpack.c.b16 %v5880, %v5876
        %v6529 = vpack.c.b16 %v5881, %v5877
        %v6530 = vpack.c.b16 %v5886, %v5882
        %v6531 = vpack.c.b16 %v5887, %v5883
        %v6532 = vpack.c.b16 %v5888, %v5884
        %v6533 = vpack.c.b16 %v5889, %v5885
        %v6534 = vpack.c.b16 %v5894, %v5890
        %v6535 = vpack.c.b16 %v5895, %v5891
        %v6536 = vpack.c.b16 %v5896, %v5892
        %v6537 = vpack.c.b16 %v5897, %v5893
        %v6538 = vpack.c.b16 %v5902, %v5898
        %v6539 = vpack.c.b16 %v5903, %v5899
        %v6540 = vpack.c.b16 %v5904, %v5900
        %v6541 = vpack.c.b16 %v5905, %v5901
        %v6542 = vpack.c.b16 %v5910, %v5906
        %v6543 = vpack.c.b16 %v5911, %v5907
        %v6544 = vpack.c.b16 %v5912, %v5908
        %v6545 = vpack.c.b16 %v5913, %v5909
        %v6546 = vpack.c.b16 %v5918, %v5914
        %v6547 = vpack.c.b16 %v5919, %v5915
        %v6548 = vpack.c.b16 %v5920, %v5916
        %v6549 = vpack.c.b16 %v5921, %v5917
        %v6550 = vpack.c.b16 %v5926, %v5922
        %v6551 = vpack.c.b16 %v5927, %v5923
        %v6552 = vpack.c.b16 %v5928, %v5924
        %v6553 = vpack.c.b16 %v5929, %v5925
        %v6554 = vpack.c.b16 %v5934, %v5930
        %v6555 = vpack.c.b16 %v5935, %v5931
        %v6556 = vpack.c.b16 %v5936, %v5932
        %v6557 = vpack.c.b16 %v5937, %v5933
        %v6558 = vpack.c.b16 %v5942, %v5938
        %v6559 = vpack.c.b16 %v5943, %v5939
        %v6560 = vpack.c.b16 %v5944, %v5940
        %v6561 = vpack.c.b16 %v5945, %v5941
        %v6562 = vpack.c.b16 %v5950, %v5946
        %v6563 = vpack.c.b16 %v5951, %v5947
        %v6564 = vpack.c.b16 %v5952, %v5948
        %v6565 = vpack.c.b16 %v5953, %v5949
        %v6566 = vpack.c.b16 %v5958, %v5954
        %v6567 = vpack.c.b16 %v5959, %v5955
        %v6568 = vpack.c.b16 %v5960, %v5956
        %v6569 = vpack.c.b16 %v5961, %v5957
        %v6570 = vpack.c.b16 %v5966, %v5962
        %v6571 = vpack.c.b16 %v5967, %v5963
        %v6572 = vpack.c.b16 %v5968, %v5964
        %v6573 = vpack.c.b16 %v5969, %v5965
        %v6574 = vpack.c.b16 %v5974, %v5970
        %v6575 = vpack.c.b16 %v5975, %v5971
        %v6576 = vpack.c.b16 %v5976, %v5972
        %v6577 = vpack.c.b16 %v5977, %v5973
        %v6578 = vpack.c.b16 %v5982, %v5978
        %v6579 = vpack.c.b16 %v5983, %v5979
        %v6580 = vpack.c.b16 %v5984, %v5980
        %v6581 = vpack.c.b16 %v5985, %v5981
        %v6582 = vpack.c.b16 %v5990, %v5986
        %v6583 = vpack.c.b16 %v5991, %v5987
        %v6584 = vpack.c.b16 %v5992, %v5988
        %v6585 = vpack.c.b16 %v5993, %v5989
        %v6586 = vpack.c.b16 %v5998, %v5994
        %v6587 = vpack.c.b16 %v5999, %v5995
        %v6588 = vpack.c.b16 %v6000, %v5996
        %v6589 = vpack.c.b16 %v6001, %v5997
        %v6590 = vpack.c.b16 %v6006, %v6002
        %v6591 = vpack.c.b16 %v6007, %v6003
        %v6592 = vpack.c.b16 %v6008, %v6004
        %v6593 = vpack.c.b16 %v6009, %v6005
        %v6594 = vpack.c.b16 %v6014, %v6010
        %v6595 = vpack.c.b16 %v6015, %v6011
        %v6596 = vpack.c.b16 %v6016, %v6012
        %v6597 = vpack.c.b16 %v6017, %v6013
        %v6598 = vpack.c.b16 %v6022, %v6018
        %v6599 = vpack.c.b16 %v6023, %v6019
        %v6600 = vpack.c.b16 %v6024, %v6020
        %v6601 = vpack.c.b16 %v6025, %v6021
        %7178 = vmatprep.subr.bf16.mxu0 %v6027
        %7179 = vmatpush1.bf16.msra.mxu0 %v6026
        %7180 = vmatprep.subr.bf16.mxu0 %v6031
        %7181 = vmatpush1.bf16.msra.mxu0 %v6030
        %7182 = vmatprep.subr.bf16.mxu0 %v6035
        %7183 = vmatpush1.bf16.msra.mxu0 %v6034
        %7184 = vmatprep.subr.bf16.mxu0 %v6039
        %7185 = vmatpush1.bf16.msra.mxu0 %v6038
        %7186 = vmatprep.subr.bf16.mxu0 %v6043
        %7187 = vmatpush1.bf16.msra.mxu0 %v6042
        %7188 = vmatprep.subr.bf16.mxu0 %v6047
        %7189 = vmatpush1.bf16.msra.mxu0 %v6046
        %7190 = vmatprep.subr.bf16.mxu0 %v6051
        %7191 = vmatpush1.bf16.msra.mxu0 %v6050
        %7192 = vmatprep.subr.bf16.mxu0 %v6055
        %7193 = vmatpush1.bf16.msra.mxu0 %v6054
        %7194 = vmatprep.subr.bf16.mxu0 %v6059
        %7195 = vmatpush1.bf16.msra.mxu0 %v6058
        %7196 = vmatprep.subr.bf16.mxu0 %v6063
        %7197 = vmatpush1.bf16.msra.mxu0 %v6062
        %7198 = vmatprep.subr.bf16.mxu0 %v6067
        %7199 = vmatpush1.bf16.msra.mxu0 %v6066
        %7200 = vmatprep.subr.bf16.mxu0 %v6071
        %7201 = vmatpush1.bf16.msra.mxu0 %v6070
        %7202 = vmatprep.subr.bf16.mxu0 %v6075
        %7203 = vmatpush1.bf16.msra.mxu0 %v6074
        %7204 = vmatprep.subr.bf16.mxu0 %v6079
        %7205 = vmatpush1.bf16.msra.mxu0 %v6078
        %7206 = vmatprep.subr.bf16.mxu0 %v6083
        %7207 = vmatpush1.bf16.msra.mxu0 %v6082
        %7208 = vmatprep.subr.bf16.mxu0 %v6087
        %7209 = vmatpush1.bf16.msra.mxu0 %v6086
        %7210 = vmatprep.mubr.bf16.mxu0 %v3601
        %7211 = vmatmul.mubr.bf16.gmra.mrb[0].mxu0 %v3600
        %v7212 = vpop.f32.mrb[0].mxu0
        %v7213 = vadd.f32 0.0, %v7212
        %v7214 = vpop.f32.mrb[0].mxu0
        %v7215 = vadd.f32 0.0, %v7214
        %v7216 = vpop.f32.mrb[0].mxu0
        %v7217 = vpop.f32.mrb[0].mxu0
        %7218 = vdwg.mxu0
        %7219 = vmatprep.subr.bf16.mxu0 %v6091
        %7220 = vmatpush1.bf16.msra.mxu0 %v6090
        %7221 = vmatprep.subr.bf16.mxu0 %v6095
        %7222 = vmatpush1.bf16.msra.mxu0 %v6094
        %7223 = vmatprep.subr.bf16.mxu0 %v6099
        %7224 = vmatpush1.bf16.msra.mxu0 %v6098
        %7225 = vmatprep.subr.bf16.mxu0 %v6103
        %7226 = vmatpush1.bf16.msra.mxu0 %v6102
        %7227 = vmatprep.subr.bf16.mxu0 %v6107
        %7228 = vmatpush1.bf16.msra.mxu0 %v6106
        %7229 = vmatprep.subr.bf16.mxu0 %v6111
        %7230 = vmatpush1.bf16.msra.mxu0 %v6110
        %7231 = vmatprep.subr.bf16.mxu0 %v6115
        %7232 = vmatpush1.bf16.msra.mxu0 %v6114
        %7233 = vmatprep.subr.bf16.mxu0 %v6119
        %7234 = vmatpush1.bf16.msra.mxu0 %v6118
        %7235 = vmatprep.subr.bf16.mxu0 %v6123
        %7236 = vmatpush1.bf16.msra.mxu0 %v6122
        %7237 = vmatprep.subr.bf16.mxu0 %v6127
        %7238 = vmatpush1.bf16.msra.mxu0 %v6126
        %7239 = vmatprep.subr.bf16.mxu0 %v6131
        %7240 = vmatpush1.bf16.msra.mxu0 %v6130
        %7241 = vmatprep.subr.bf16.mxu0 %v6135
        %7242 = vmatpush1.bf16.msra.mxu0 %v6134
        %7243 = vmatprep.subr.bf16.mxu0 %v6139
        %7244 = vmatpush1.bf16.msra.mxu0 %v6138
        %7245 = vmatprep.subr.bf16.mxu0 %v6143
        %7246 = vmatpush1.bf16.msra.mxu0 %v6142
        %7247 = vmatprep.subr.bf16.mxu0 %v6147
        %7248 = vmatpush1.bf16.msra.mxu0 %v6146
        %7249 = vmatprep.subr.bf16.mxu0 %v6151
        %7250 = vmatpush1.bf16.msra.mxu0 %v6150
        %7251 = vmatprep.mubr.bf16.mxu0 %v3661
        %7252 = vmatmul.mubr.bf16.gmra.mrb[0].mxu0 %v3654
        %v7253 = vpop.f32.mrb[0].mxu0
        %v7254 = vadd.f32 %v7213, %v7253
        %v7255 = vpop.f32.mrb[0].mxu0
        %v7256 = vadd.f32 %v7215, %v7255
        %v7257 = vpop.f32.mrb[0].mxu0
        %v7258 = vpop.f32.mrb[0].mxu0
        %7259 = vdwg.mxu0
        %7260 = vmatprep.subr.bf16.mxu0 %v6155
        %7261 = vmatpush1.bf16.msra.mxu0 %v6154
        %7262 = vmatprep.subr.bf16.mxu0 %v6159
        %7263 = vmatpush1.bf16.msra.mxu0 %v6158
        %7264 = vmatprep.subr.bf16.mxu0 %v6163
        %7265 = vmatpush1.bf16.msra.mxu0 %v6162
        %7266 = vmatprep.subr.bf16.mxu0 %v6167
        %7267 = vmatpush1.bf16.msra.mxu0 %v6166
        %7268 = vmatprep.subr.bf16.mxu0 %v6171
        %7269 = vmatpush1.bf16.msra.mxu0 %v6170
        %7270 = vmatprep.subr.bf16.mxu0 %v6175
        %7271 = vmatpush1.bf16.msra.mxu0 %v6174
        %7272 = vmatprep.subr.bf16.mxu0 %v6179
        %7273 = vmatpush1.bf16.msra.mxu0 %v6178
        %7274 = vmatprep.subr.bf16.mxu0 %v6183
        %7275 = vmatpush1.bf16.msra.mxu0 %v6182
        %7276 = vmatprep.subr.bf16.mxu0 %v6187
        %7277 = vmatpush1.bf16.msra.mxu0 %v6186
        %7278 = vmatprep.subr.bf16.mxu0 %v6191
        %7279 = vmatpush1.bf16.msra.mxu0 %v6190
        %7280 = vmatprep.subr.bf16.mxu0 %v6195
        %7281 = vmatpush1.bf16.msra.mxu0 %v6194
        %7282 = vmatprep.subr.bf16.mxu0 %v6199
        %7283 = vmatpush1.bf16.msra.mxu0 %v6198
        %7284 = vmatprep.subr.bf16.mxu0 %v6203
        %7285 = vmatpush1.bf16.msra.mxu0 %v6202
        %7286 = vmatprep.subr.bf16.mxu0 %v6207
        %7287 = vmatpush1.bf16.msra.mxu0 %v6206
        %7288 = vmatprep.subr.bf16.mxu0 %v6211
        %7289 = vmatpush1.bf16.msra.mxu0 %v6210
        %7290 = vmatprep.subr.bf16.mxu0 %v6215
        %7291 = vmatpush1.bf16.msra.mxu0 %v6214
        %7292 = vmatprep.mubr.bf16.mxu0 %v3667
        %7293 = vmatmul.mubr.bf16.gmra.mrb[0].mxu0 %v3666
        %v7294 = vpop.f32.mrb[0].mxu0
        %v7295 = vadd.f32 %v7254, %v7294
        %v7296 = vpop.f32.mrb[0].mxu0
        %v7297 = vadd.f32 %v7256, %v7296
        %v7298 = vpop.f32.mrb[0].mxu0
        %v7299 = vpop.f32.mrb[0].mxu0
        %7300 = vdwg.mxu0
        %7301 = vmatprep.subr.bf16.mxu0 %v6219
        %7302 = vmatpush1.bf16.msra.mxu0 %v6218
        %7303 = vmatprep.subr.bf16.mxu0 %v6223
        %7304 = vmatpush1.bf16.msra.mxu0 %v6222
        %7305 = vmatprep.subr.bf16.mxu0 %v6227
        %7306 = vmatpush1.bf16.msra.mxu0 %v6226
        %7307 = vmatprep.subr.bf16.mxu0 %v6231
        %7308 = vmatpush1.bf16.msra.mxu0 %v6230
        %7309 = vmatprep.subr.bf16.mxu0 %v6235
        %7310 = vmatpush1.bf16.msra.mxu0 %v6234
        %7311 = vmatprep.subr.bf16.mxu0 %v6239
        %7312 = vmatpush1.bf16.msra.mxu0 %v6238
        %7313 = vmatprep.subr.bf16.mxu0 %v6243
        %7314 = vmatpush1.bf16.msra.mxu0 %v6242
        %7315 = vmatprep.subr.bf16.mxu0 %v6247
        %7316 = vmatpush1.bf16.msra.mxu0 %v6246
        %7317 = vmatprep.subr.bf16.mxu0 %v6251
        %7318 = vmatpush1.bf16.msra.mxu0 %v6250
        %7319 = vmatprep.subr.bf16.mxu0 %v6255
        %7320 = vmatpush1.bf16.msra.mxu0 %v6254
        %7321 = vmatprep.subr.bf16.mxu0 %v6259
        %7322 = vmatpush1.bf16.msra.mxu0 %v6258
        %7323 = vmatprep.subr.bf16.mxu0 %v6263
        %7324 = vmatpush1.bf16.msra.mxu0 %v6262
        %7325 = vmatprep.subr.bf16.mxu0 %v6267
        %7326 = vmatpush1.bf16.msra.mxu0 %v6266
        %7327 = vmatprep.subr.bf16.mxu0 %v6271
        %7328 = vmatpush1.bf16.msra.mxu0 %v6270
        %7329 = vmatprep.subr.bf16.mxu0 %v6275
        %7330 = vmatpush1.bf16.msra.mxu0 %v6274
        %7331 = vmatprep.subr.bf16.mxu0 %v6279
        %7332 = vmatpush1.bf16.msra.mxu0 %v6278
        %7333 = vmatprep.mubr.bf16.mxu0 %v3673
        %7334 = vmatmul.mubr.bf16.gmra.mrb[0].mxu0 %v3672
        %v7335 = vpop.f32.mrb[0].mxu0
        %v7336 = vadd.f32 %v7295, %v7335
        %v7337 = vpop.f32.mrb[0].mxu0
        %v7338 = vadd.f32 %v7297, %v7337
        %v7339 = vpop.f32.mrb[0].mxu0
        %v7340 = vpop.f32.mrb[0].mxu0
        %7341 = vdwg.mxu0
        %7342 = vmatprep.subr.bf16.mxu0 %v6283
        %7343 = vmatpush1.bf16.msra.mxu0 %v6282
        %7344 = vmatprep.subr.bf16.mxu0 %v6287
        %7345 = vmatpush1.bf16.msra.mxu0 %v6286
        %7346 = vmatprep.subr.bf16.mxu0 %v6291
        %7347 = vmatpush1.bf16.msra.mxu0 %v6290
        %7348 = vmatprep.subr.bf16.mxu0 %v6295
        %7349 = vmatpush1.bf16.msra.mxu0 %v6294
        %7350 = vmatprep.subr.bf16.mxu0 %v6299
        %7351 = vmatpush1.bf16.msra.mxu0 %v6298
        %7352 = vmatprep.subr.bf16.mxu0 %v6303
        %7353 = vmatpush1.bf16.msra.mxu0 %v6302
        %7354 = vmatprep.subr.bf16.mxu0 %v6307
        %7355 = vmatpush1.bf16.msra.mxu0 %v6306
        %7356 = vmatprep.subr.bf16.mxu0 %v6311
        %7357 = vmatpush1.bf16.msra.mxu0 %v6310
        %7358 = vmatprep.subr.bf16.mxu0 %v6315
        %7359 = vmatpush1.bf16.msra.mxu0 %v6314
        %7360 = vmatprep.subr.bf16.mxu0 %v6319
        %7361 = vmatpush1.bf16.msra.mxu0 %v6318
        %7362 = vmatprep.subr.bf16.mxu0 %v6323
        %7363 = vmatpush1.bf16.msra.mxu0 %v6322
        %7364 = vmatprep.subr.bf16.mxu0 %v6327
        %7365 = vmatpush1.bf16.msra.mxu0 %v6326
        %7366 = vmatprep.subr.bf16.mxu0 %v6331
        %7367 = vmatpush1.bf16.msra.mxu0 %v6330
        %7368 = vmatprep.subr.bf16.mxu0 %v6335
        %7369 = vmatpush1.bf16.msra.mxu0 %v6334
        %7370 = vmatprep.subr.bf16.mxu0 %v6339
        %7371 = vmatpush1.bf16.msra.mxu0 %v6338
        %7372 = vmatprep.subr.bf16.mxu0 %v6343
        %7373 = vmatpush1.bf16.msra.mxu0 %v6342
        %7374 = vmatprep.mubr.bf16.mxu0 %v3691
        %7375 = vmatmul.mubr.bf16.gmra.mrb[0].mxu0 %v3683
        %v7376 = vpop.f32.mrb[0].mxu0
        %v7377 = vadd.f32 %v7336, %v7376
        %v7378 = vpop.f32.mrb[0].mxu0
        %v7379 = vadd.f32 %v7338, %v7378
        %v7380 = vpop.f32.mrb[0].mxu0
        %v7381 = vpop.f32.mrb[0].mxu0
        %7382 = vdwg.mxu0
        %7383 = vmatprep.subr.bf16.mxu0 %v6347
        %7384 = vmatpush1.bf16.msra.mxu0 %v6346
        %7385 = vmatprep.subr.bf16.mxu0 %v6351
        %7386 = vmatpush1.bf16.msra.mxu0 %v6350
        %7387 = vmatprep.subr.bf16.mxu0 %v6355
        %7388 = vmatpush1.bf16.msra.mxu0 %v6354
        %7389 = vmatprep.subr.bf16.mxu0 %v6359
        %7390 = vmatpush1.bf16.msra.mxu0 %v6358
        %7391 = vmatprep.subr.bf16.mxu0 %v6363
        %7392 = vmatpush1.bf16.msra.mxu0 %v6362
        %7393 = vmatprep.subr.bf16.mxu0 %v6367
        %7394 = vmatpush1.bf16.msra.mxu0 %v6366
        %7395 = vmatprep.subr.bf16.mxu0 %v6371
        %7396 = vmatpush1.bf16.msra.mxu0 %v6370
        %7397 = vmatprep.subr.bf16.mxu0 %v6375
        %7398 = vmatpush1.bf16.msra.mxu0 %v6374
        %7399 = vmatprep.subr.bf16.mxu0 %v6379
        %7400 = vmatpush1.bf16.msra.mxu0 %v6378
        %7401 = vmatprep.subr.bf16.mxu0 %v6383
        %7402 = vmatpush1.bf16.msra.mxu0 %v6382
        %7403 = vmatprep.subr.bf16.mxu0 %v6387
        %7404 = vmatpush1.bf16.msra.mxu0 %v6386
        %7405 = vmatprep.subr.bf16.mxu0 %v6391
        %7406 = vmatpush1.bf16.msra.mxu0 %v6390
        %7407 = vmatprep.subr.bf16.mxu0 %v6395
        %7408 = vmatpush1.bf16.msra.mxu0 %v6394
        %7409 = vmatprep.subr.bf16.mxu0 %v6399
        %7410 = vmatpush1.bf16.msra.mxu0 %v6398
        %7411 = vmatprep.subr.bf16.mxu0 %v6403
        %7412 = vmatpush1.bf16.msra.mxu0 %v6402
        %7413 = vmatprep.subr.bf16.mxu0 %v6407
        %7414 = vmatpush1.bf16.msra.mxu0 %v6406
        %7415 = vmatprep.mubr.bf16.mxu0 %v3697
        %7416 = vmatmul.mubr.bf16.gmra.mrb[0].mxu0 %v3696
        %v7417 = vpop.f32.mrb[0].mxu0
        %v7418 = vadd.f32 %v7377, %v7417
        %v7419 = vpop.f32.mrb[0].mxu0
        %v7420 = vadd.f32 %v7379, %v7419
        %v7421 = vpop.f32.mrb[0].mxu0
        %v7422 = vpop.f32.mrb[0].mxu0
        %7423 = vdwg.mxu0
        %7424 = vmatprep.subr.bf16.mxu0 %v6411
        %7425 = vmatpush1.bf16.msra.mxu0 %v6410
        %7426 = vmatprep.subr.bf16.mxu0 %v6415
        %7427 = vmatpush1.bf16.msra.mxu0 %v6414
        %7428 = vmatprep.subr.bf16.mxu0 %v6419
        %7429 = vmatpush1.bf16.msra.mxu0 %v6418
        %7430 = vmatprep.subr.bf16.mxu0 %v6423
        %7431 = vmatpush1.bf16.msra.mxu0 %v6422
        %7432 = vmatprep.subr.bf16.mxu0 %v6427
        %7433 = vmatpush1.bf16.msra.mxu0 %v6426
        %7434 = vmatprep.subr.bf16.mxu0 %v6431
        %7435 = vmatpush1.bf16.msra.mxu0 %v6430
        %7436 = vmatprep.subr.bf16.mxu0 %v6435
        %7437 = vmatpush1.bf16.msra.mxu0 %v6434
        %7438 = vmatprep.subr.bf16.mxu0 %v6439
        %7439 = vmatpush1.bf16.msra.mxu0 %v6438
        %7440 = vmatprep.subr.bf16.mxu0 %v6443
        %7441 = vmatpush1.bf16.msra.mxu0 %v6442
        %7442 = vmatprep.subr.bf16.mxu0 %v6447
        %7443 = vmatpush1.bf16.msra.mxu0 %v6446
        %7444 = vmatprep.subr.bf16.mxu0 %v6451
        %7445 = vmatpush1.bf16.msra.mxu0 %v6450
        %7446 = vmatprep.subr.bf16.mxu0 %v6455
        %7447 = vmatpush1.bf16.msra.mxu0 %v6454
        %7448 = vmatprep.subr.bf16.mxu0 %v6459
        %7449 = vmatpush1.bf16.msra.mxu0 %v6458
        %7450 = vmatprep.subr.bf16.mxu0 %v6463
        %7451 = vmatpush1.bf16.msra.mxu0 %v6462
        %7452 = vmatprep.subr.bf16.mxu0 %v6467
        %7453 = vmatpush1.bf16.msra.mxu0 %v6466
        %7454 = vmatprep.subr.bf16.mxu0 %v6471
        %7455 = vmatpush1.bf16.msra.mxu0 %v6470
        %7456 = vmatprep.mubr.bf16.mxu0 %v3635
        %7457 = vmatmul.mubr.bf16.gmra.mrb[0].mxu0 %v3634
        %v7458 = vpop.f32.mrb[0].mxu0
        %v7459 = vadd.f32 %v7418, %v7458
        %v7460 = vpop.f32.mrb[0].mxu0
        %v7461 = vadd.f32 %v7420, %v7460
        %v7462 = vpop.f32.mrb[0].mxu0
        %v7463 = vpop.f32.mrb[0].mxu0
        %7464 = vdwg.mxu0
        %7465 = vmatprep.subr.bf16.mxu0 %v6475
        %7466 = vmatpush1.bf16.msra.mxu0 %v6474
        %7467 = vmatprep.subr.bf16.mxu0 %v6479
        %7468 = vmatpush1.bf16.msra.mxu0 %v6478
        %7469 = vmatprep.subr.bf16.mxu0 %v6483
        %7470 = vmatpush1.bf16.msra.mxu0 %v6482
        %7471 = vmatprep.subr.bf16.mxu0 %v6487
        %7472 = vmatpush1.bf16.msra.mxu0 %v6486
        %7473 = vmatprep.subr.bf16.mxu0 %v6491
        %7474 = vmatpush1.bf16.msra.mxu0 %v6490
        %7475 = vmatprep.subr.bf16.mxu0 %v6495
        %7476 = vmatpush1.bf16.msra.mxu0 %v6494
        %7477 = vmatprep.subr.bf16.mxu0 %v6499
        %7478 = vmatpush1.bf16.msra.mxu0 %v6498
        %7479 = vmatprep.subr.bf16.mxu0 %v6503
        %7480 = vmatpush1.bf16.msra.mxu0 %v6502
        %7481 = vmatprep.subr.bf16.mxu0 %v6507
        %7482 = vmatpush1.bf16.msra.mxu0 %v6506
        %7483 = vmatprep.subr.bf16.mxu0 %v6511
        %7484 = vmatpush1.bf16.msra.mxu0 %v6510
        %7485 = vmatprep.subr.bf16.mxu0 %v6515
        %7486 = vmatpush1.bf16.msra.mxu0 %v6514
        %7487 = vmatprep.subr.bf16.mxu0 %v6519
        %7488 = vmatpush1.bf16.msra.mxu0 %v6518
        %7489 = vmatprep.subr.bf16.mxu0 %v6523
        %7490 = vmatpush1.bf16.msra.mxu0 %v6522
        %7491 = vmatprep.subr.bf16.mxu0 %v6527
        %7492 = vmatpush1.bf16.msra.mxu0 %v6526
        %7493 = vmatprep.subr.bf16.mxu0 %v6531
        %7494 = vmatpush1.bf16.msra.mxu0 %v6530
        %7495 = vmatprep.subr.bf16.mxu0 %v6535
        %7496 = vmatpush1.bf16.msra.mxu0 %v6534
        %7497 = vmatprep.mubr.bf16.mxu0 %v3713
        %7498 = vmatmul.mubr.bf16.gmra.mrb[0].mxu0 %v3706
        %v7499 = vpop.f32.mrb[0].mxu0
        %v7500 = vadd.f32 %v7459, %v7499
        %v7501 = vpop.f32.mrb[0].mxu0
        %v7502 = vadd.f32 %v7461, %v7501
        %v7503 = vpop.f32.mrb[0].mxu0
        %v7504 = vpop.f32.mrb[0].mxu0
        %7505 = vdwg.mxu0
        %7506 = vmatprep.subr.bf16.mxu0 %v6539
        %7507 = vmatpush1.bf16.msra.mxu0 %v6538
        %7508 = vmatprep.subr.bf16.mxu0 %v6543
        %7509 = vmatpush1.bf16.msra.mxu0 %v6542
        %7510 = vmatprep.subr.bf16.mxu0 %v6547
        %7511 = vmatpush1.bf16.msra.mxu0 %v6546
        %7512 = vmatprep.subr.bf16.mxu0 %v6551
        %7513 = vmatpush1.bf16.msra.mxu0 %v6550
        %7514 = vmatprep.subr.bf16.mxu0 %v6555
        %7515 = vmatpush1.bf16.msra.mxu0 %v6554
        %7516 = vmatprep.subr.bf16.mxu0 %v6559
        %7517 = vmatpush1.bf16.msra.mxu0 %v6558
        %7518 = vmatprep.subr.bf16.mxu0 %v6563
        %7519 = vmatpush1.bf16.msra.mxu0 %v6562
        %7520 = vmatprep.subr.bf16.mxu0 %v6567
        %7521 = vmatpush1.bf16.msra.mxu0 %v6566
        %7522 = vmatprep.subr.bf16.mxu0 %v6571
        %7523 = vmatpush1.bf16.msra.mxu0 %v6570
        %7524 = vmatprep.subr.bf16.mxu0 %v6575
        %7525 = vmatpush1.bf16.msra.mxu0 %v6574
        %7526 = vmatprep.subr.bf16.mxu0 %v6579
        %7527 = vmatpush1.bf16.msra.mxu0 %v6578
        %7528 = vmatprep.subr.bf16.mxu0 %v6583
        %7529 = vmatpush1.bf16.msra.mxu0 %v6582
        %7530 = vmatprep.subr.bf16.mxu0 %v6587
        %7531 = vmatpush1.bf16.msra.mxu0 %v6586
        %7532 = vmatprep.subr.bf16.mxu0 %v6591
        %7533 = vmatpush1.bf16.msra.mxu0 %v6590
        %7534 = vmatprep.subr.bf16.mxu0 %v6595
        %7535 = vmatpush1.bf16.msra.mxu0 %v6594
        %7536 = vmatprep.subr.bf16.mxu0 %v6599
        %7537 = vmatpush1.bf16.msra.mxu0 %v6598
        %7538 = vmatprep.mubr.bf16.mxu0 %v3719
        %7539 = vmatmul.mubr.bf16.gmra.mrb[0].mxu0 %v3718
        %v7540 = vpop.f32.mrb[0].mxu0
        %v7541 = vadd.f32 %v7500, %v7540
        %v7542 = vpop.f32.mrb[0].mxu0
        %v7543 = vadd.f32 %v7502, %v7542
        %v7544 = vpop.f32.mrb[0].mxu0
        %v7545 = vpop.f32.mrb[0].mxu0
        %7546 = vdwg.mxu0
        %7547 = vmatprep.subr.bf16.mxu0 %v6029
        %7548 = vmatpush1.bf16.msra.mxu0 %v6028
        %7549 = vmatprep.subr.bf16.mxu0 %v6033
        %7550 = vmatpush1.bf16.msra.mxu0 %v6032
        %7551 = vmatprep.subr.bf16.mxu0 %v6037
        %7552 = vmatpush1.bf16.msra.mxu0 %v6036
        %7553 = vmatprep.subr.bf16.mxu0 %v6041
        %7554 = vmatpush1.bf16.msra.mxu0 %v6040
        %7555 = vmatprep.subr.bf16.mxu0 %v6045
        %7556 = vmatpush1.bf16.msra.mxu0 %v6044
        %7557 = vmatprep.subr.bf16.mxu0 %v6049
        %7558 = vmatpush1.bf16.msra.mxu0 %v6048
        %7559 = vmatprep.subr.bf16.mxu0 %v6053
        %7560 = vmatpush1.bf16.msra.mxu0 %v6052
        %7561 = vmatprep.subr.bf16.mxu0 %v6057
        %7562 = vmatpush1.bf16.msra.mxu0 %v6056
        %7563 = vmatprep.subr.bf16.mxu0 %v6061
        %7564 = vmatpush1.bf16.msra.mxu0 %v6060
        %7565 = vmatprep.subr.bf16.mxu0 %v6065
        %7566 = vmatpush1.bf16.msra.mxu0 %v6064
        %7567 = vmatprep.subr.bf16.mxu0 %v6069
        %7568 = vmatpush1.bf16.msra.mxu0 %v6068
        %7569 = vmatprep.subr.bf16.mxu0 %v6073
        %7570 = vmatpush1.bf16.msra.mxu0 %v6072
        %7571 = vmatprep.subr.bf16.mxu0 %v6077
        %7572 = vmatpush1.bf16.msra.mxu0 %v6076
        %7573 = vmatprep.subr.bf16.mxu0 %v6081
        %7574 = vmatpush1.bf16.msra.mxu0 %v6080
        %7575 = vmatprep.subr.bf16.mxu0 %v6085
        %7576 = vmatpush1.bf16.msra.mxu0 %v6084
        %7577 = vmatprep.subr.bf16.mxu0 %v6089
        %7578 = vmatpush1.bf16.msra.mxu0 %v6088
        %7579 = vmatprep.mubr.bf16.mxu0 %v3601
        %7580 = vmatmul.mubr.bf16.gmra.mrb[0].mxu0 %v3600
        %v7581 = vpop.f32.mrb[0].mxu0
        %v7582 = vadd.f32 0.0, %v7581
        %v7583 = vpop.f32.mrb[0].mxu0
        %v7584 = vadd.f32 0.0, %v7583
        %v7585 = vpop.f32.mrb[0].mxu0
        %v7586 = vpop.f32.mrb[0].mxu0
        %7587 = vdwg.mxu0
        %7588 = vmatprep.subr.bf16.mxu0 %v6093
        %7589 = vmatpush1.bf16.msra.mxu0 %v6092
        %7590 = vmatprep.subr.bf16.mxu0 %v6097
        %7591 = vmatpush1.bf16.msra.mxu0 %v6096
        %7592 = vmatprep.subr.bf16.mxu0 %v6101
        %7593 = vmatpush1.bf16.msra.mxu0 %v6100
        %7594 = vmatprep.subr.bf16.mxu0 %v6105
        %7595 = vmatpush1.bf16.msra.mxu0 %v6104
        %7596 = vmatprep.subr.bf16.mxu0 %v6109
        %7597 = vmatpush1.bf16.msra.mxu0 %v6108
        %7598 = vmatprep.subr.bf16.mxu0 %v6113
        %7599 = vmatpush1.bf16.msra.mxu0 %v6112
        %7600 = vmatprep.subr.bf16.mxu0 %v6117
        %7601 = vmatpush1.bf16.msra.mxu0 %v6116
        %7602 = vmatprep.subr.bf16.mxu0 %v6121
        %7603 = vmatpush1.bf16.msra.mxu0 %v6120
        %7604 = vmatprep.subr.bf16.mxu0 %v6125
        %7605 = vmatpush1.bf16.msra.mxu0 %v6124
        %7606 = vmatprep.subr.bf16.mxu0 %v6129
        %7607 = vmatpush1.bf16.msra.mxu0 %v6128
        %7608 = vmatprep.subr.bf16.mxu0 %v6133
        %7609 = vmatpush1.bf16.msra.mxu0 %v6132
        %7610 = vmatprep.subr.bf16.mxu0 %v6137
        %7611 = vmatpush1.bf16.msra.mxu0 %v6136
        %7612 = vmatprep.subr.bf16.mxu0 %v6141
        %7613 = vmatpush1.bf16.msra.mxu0 %v6140
        %7614 = vmatprep.subr.bf16.mxu0 %v6145
        %7615 = vmatpush1.bf16.msra.mxu0 %v6144
        %7616 = vmatprep.subr.bf16.mxu0 %v6149
        %7617 = vmatpush1.bf16.msra.mxu0 %v6148
        %7618 = vmatprep.subr.bf16.mxu0 %v6153
        %7619 = vmatpush1.bf16.msra.mxu0 %v6152
        %7620 = vmatprep.mubr.bf16.mxu0 %v3661
        %7621 = vmatmul.mubr.bf16.gmra.mrb[0].mxu0 %v3654
        %v7622 = vpop.f32.mrb[0].mxu0
        %v7623 = vadd.f32 %v7582, %v7622
        %v7624 = vpop.f32.mrb[0].mxu0
        %v7625 = vadd.f32 %v7584, %v7624
        %v7626 = vpop.f32.mrb[0].mxu0
        %v7627 = vpop.f32.mrb[0].mxu0
        %7628 = vdwg.mxu0
        %7629 = vmatprep.subr.bf16.mxu0 %v6157
        %7630 = vmatpush1.bf16.msra.mxu0 %v6156
        %7631 = vmatprep.subr.bf16.mxu0 %v6161
        %7632 = vmatpush1.bf16.msra.mxu0 %v6160
        %7633 = vmatprep.subr.bf16.mxu0 %v6165
        %7634 = vmatpush1.bf16.msra.mxu0 %v6164
        %7635 = vmatprep.subr.bf16.mxu0 %v6169
        %7636 = vmatpush1.bf16.msra.mxu0 %v6168
        %7637 = vmatprep.subr.bf16.mxu0 %v6173
        %7638 = vmatpush1.bf16.msra.mxu0 %v6172
        %7639 = vmatprep.subr.bf16.mxu0 %v6177
        %7640 = vmatpush1.bf16.msra.mxu0 %v6176
        %7641 = vmatprep.subr.bf16.mxu0 %v6181
        %7642 = vmatpush1.bf16.msra.mxu0 %v6180
        %7643 = vmatprep.subr.bf16.mxu0 %v6185
        %7644 = vmatpush1.bf16.msra.mxu0 %v6184
        %7645 = vmatprep.subr.bf16.mxu0 %v6189
        %7646 = vmatpush1.bf16.msra.mxu0 %v6188
        %7647 = vmatprep.subr.bf16.mxu0 %v6193
        %7648 = vmatpush1.bf16.msra.mxu0 %v6192
        %7649 = vmatprep.subr.bf16.mxu0 %v6197
        %7650 = vmatpush1.bf16.msra.mxu0 %v6196
        %7651 = vmatprep.subr.bf16.mxu0 %v6201
        %7652 = vmatpush1.bf16.msra.mxu0 %v6200
        %7653 = vmatprep.subr.bf16.mxu0 %v6205
        %7654 = vmatpush1.bf16.msra.mxu0 %v6204
        %7655 = vmatprep.subr.bf16.mxu0 %v6209
        %7656 = vmatpush1.bf16.msra.mxu0 %v6208
        %7657 = vmatprep.subr.bf16.mxu0 %v6213
        %7658 = vmatpush1.bf16.msra.mxu0 %v6212
        %7659 = vmatprep.subr.bf16.mxu0 %v6217
        %7660 = vmatpush1.bf16.msra.mxu0 %v6216
        %7661 = vmatprep.mubr.bf16.mxu0 %v3667
        %7662 = vmatmul.mubr.bf16.gmra.mrb[0].mxu0 %v3666
        %v7663 = vpop.f32.mrb[0].mxu0
        %v7664 = vadd.f32 %v7623, %v7663
        %v7665 = vpop.f32.mrb[0].mxu0
        %v7666 = vadd.f32 %v7625, %v7665
        %v7667 = vpop.f32.mrb[0].mxu0
        %v7668 = vpop.f32.mrb[0].mxu0
        %7669 = vdwg.mxu0
        %7670 = vmatprep.subr.bf16.mxu0 %v6221
        %7671 = vmatpush1.bf16.msra.mxu0 %v6220
        %7672 = vmatprep.subr.bf16.mxu0 %v6225
        %7673 = vmatpush1.bf16.msra.mxu0 %v6224
        %7674 = vmatprep.subr.bf16.mxu0 %v6229
        %7675 = vmatpush1.bf16.msra.mxu0 %v6228
        %7676 = vmatprep.subr.bf16.mxu0 %v6233
        %7677 = vmatpush1.bf16.msra.mxu0 %v6232
        %7678 = vmatprep.subr.bf16.mxu0 %v6237
        %7679 = vmatpush1.bf16.msra.mxu0 %v6236
        %7680 = vmatprep.subr.bf16.mxu0 %v6241
        %7681 = vmatpush1.bf16.msra.mxu0 %v6240
        %7682 = vmatprep.subr.bf16.mxu0 %v6245
        %7683 = vmatpush1.bf16.msra.mxu0 %v6244
        %7684 = vmatprep.subr.bf16.mxu0 %v6249
        %7685 = vmatpush1.bf16.msra.mxu0 %v6248
        %7686 = vmatprep.subr.bf16.mxu0 %v6253
        %7687 = vmatpush1.bf16.msra.mxu0 %v6252
        %7688 = vmatprep.subr.bf16.mxu0 %v6257
        %7689 = vmatpush1.bf16.msra.mxu0 %v6256
        %7690 = vmatprep.subr.bf16.mxu0 %v6261
        %7691 = vmatpush1.bf16.msra.mxu0 %v6260
        %7692 = vmatprep.subr.bf16.mxu0 %v6265
        %7693 = vmatpush1.bf16.msra.mxu0 %v6264
        %7694 = vmatprep.subr.bf16.mxu0 %v6269
        %7695 = vmatpush1.bf16.msra.mxu0 %v6268
        %7696 = vmatprep.subr.bf16.mxu0 %v6273
        %7697 = vmatpush1.bf16.msra.mxu0 %v6272
        %7698 = vmatprep.subr.bf16.mxu0 %v6277
        %7699 = vmatpush1.bf16.msra.mxu0 %v6276
        %7700 = vmatprep.subr.bf16.mxu0 %v6281
        %7701 = vmatpush1.bf16.msra.mxu0 %v6280
        %7702 = vmatprep.mubr.bf16.mxu0 %v3673
        %7703 = vmatmul.mubr.bf16.gmra.mrb[0].mxu0 %v3672
        %v7704 = vpop.f32.mrb[0].mxu0
        %v7705 = vadd.f32 %v7664, %v7704
        %v7706 = vpop.f32.mrb[0].mxu0
        %v7707 = vadd.f32 %v7666, %v7706
        %v7708 = vpop.f32.mrb[0].mxu0
        %v7709 = vpop.f32.mrb[0].mxu0
        %7710 = vdwg.mxu0
        %7711 = vmatprep.subr.bf16.mxu0 %v6285
        %7712 = vmatpush1.bf16.msra.mxu0 %v6284
        %7713 = vmatprep.subr.bf16.mxu0 %v6289
        %7714 = vmatpush1.bf16.msra.mxu0 %v6288
        %7715 = vmatprep.subr.bf16.mxu0 %v6293
        %7716 = vmatpush1.bf16.msra.mxu0 %v6292
        %7717 = vmatprep.subr.bf16.mxu0 %v6297
        %7718 = vmatpush1.bf16.msra.mxu0 %v6296
        %7719 = vmatprep.subr.bf16.mxu0 %v6301
        %7720 = vmatpush1.bf16.msra.mxu0 %v6300
        %7721 = vmatprep.subr.bf16.mxu0 %v6305
        %7722 = vmatpush1.bf16.msra.mxu0 %v6304
        %7723 = vmatprep.subr.bf16.mxu0 %v6309
        %7724 = vmatpush1.bf16.msra.mxu0 %v6308
        %7725 = vmatprep.subr.bf16.mxu0 %v6313
        %7726 = vmatpush1.bf16.msra.mxu0 %v6312
        %7727 = vmatprep.subr.bf16.mxu0 %v6317
        %7728 = vmatpush1.bf16.msra.mxu0 %v6316
        %7729 = vmatprep.subr.bf16.mxu0 %v6321
        %7730 = vmatpush1.bf16.msra.mxu0 %v6320
        %7731 = vmatprep.subr.bf16.mxu0 %v6325
        %7732 = vmatpush1.bf16.msra.mxu0 %v6324
        %7733 = vmatprep.subr.bf16.mxu0 %v6329
        %7734 = vmatpush1.bf16.msra.mxu0 %v6328
        %7735 = vmatprep.subr.bf16.mxu0 %v6333
        %7736 = vmatpush1.bf16.msra.mxu0 %v6332
        %7737 = vmatprep.subr.bf16.mxu0 %v6337
        %7738 = vmatpush1.bf16.msra.mxu0 %v6336
        %7739 = vmatprep.subr.bf16.mxu0 %v6341
        %7740 = vmatpush1.bf16.msra.mxu0 %v6340
        %7741 = vmatprep.subr.bf16.mxu0 %v6345
        %7742 = vmatpush1.bf16.msra.mxu0 %v6344
        %7743 = vmatprep.mubr.bf16.mxu0 %v3691
        %7744 = vmatmul.mubr.bf16.gmra.mrb[0].mxu0 %v3683
        %v7745 = vpop.f32.mrb[0].mxu0
        %v7746 = vadd.f32 %v7705, %v7745
        %v7747 = vpop.f32.mrb[0].mxu0
        %v7748 = vadd.f32 %v7707, %v7747
        %v7749 = vpop.f32.mrb[0].mxu0
        %v7750 = vpop.f32.mrb[0].mxu0
        %7751 = vdwg.mxu0
        %7752 = vmatprep.subr.bf16.mxu0 %v6349
        %7753 = vmatpush1.bf16.msra.mxu0 %v6348
        %7754 = vmatprep.subr.bf16.mxu0 %v6353
        %7755 = vmatpush1.bf16.msra.mxu0 %v6352
        %7756 = vmatprep.subr.bf16.mxu0 %v6357
        %7757 = vmatpush1.bf16.msra.mxu0 %v6356
        %7758 = vmatprep.subr.bf16.mxu0 %v6361
        %7759 = vmatpush1.bf16.msra.mxu0 %v6360
        %7760 = vmatprep.subr.bf16.mxu0 %v6365
        %7761 = vmatpush1.bf16.msra.mxu0 %v6364
        %7762 = vmatprep.subr.bf16.mxu0 %v6369
        %7763 = vmatpush1.bf16.msra.mxu0 %v6368
        %7764 = vmatprep.subr.bf16.mxu0 %v6373
        %7765 = vmatpush1.bf16.msra.mxu0 %v6372
        %7766 = vmatprep.subr.bf16.mxu0 %v6377
        %7767 = vmatpush1.bf16.msra.mxu0 %v6376
        %7768 = vmatprep.subr.bf16.mxu0 %v6381
        %7769 = vmatpush1.bf16.msra.mxu0 %v6380
        %7770 = vmatprep.subr.bf16.mxu0 %v6385
        %7771 = vmatpush1.bf16.msra.mxu0 %v6384
        %7772 = vmatprep.subr.bf16.mxu0 %v6389
        %7773 = vmatpush1.bf16.msra.mxu0 %v6388
        %7774 = vmatprep.subr.bf16.mxu0 %v6393
        %7775 = vmatpush1.bf16.msra.mxu0 %v6392
        %7776 = vmatprep.subr.bf16.mxu0 %v6397
        %7777 = vmatpush1.bf16.msra.mxu0 %v6396
        %7778 = vmatprep.subr.bf16.mxu0 %v6401
        %7779 = vmatpush1.bf16.msra.mxu0 %v6400
        %7780 = vmatprep.subr.bf16.mxu0 %v6405
        %7781 = vmatpush1.bf16.msra.mxu0 %v6404
        %7782 = vmatprep.subr.bf16.mxu0 %v6409
        %7783 = vmatpush1.bf16.msra.mxu0 %v6408
        %7784 = vmatprep.mubr.bf16.mxu0 %v3697
        %7785 = vmatmul.mubr.bf16.gmra.mrb[0].mxu0 %v3696
        %v7786 = vpop.f32.mrb[0].mxu0
        %v7787 = vadd.f32 %v7746, %v7786
        %v7788 = vpop.f32.mrb[0].mxu0
        %v7789 = vadd.f32 %v7748, %v7788
        %v7790 = vpop.f32.mrb[0].mxu0
        %v7791 = vpop.f32.mrb[0].mxu0
        %7792 = vdwg.mxu0
        %7793 = vmatprep.subr.bf16.mxu0 %v6413
        %7794 = vmatpush1.bf16.msra.mxu0 %v6412
        %7795 = vmatprep.subr.bf16.mxu0 %v6417
        %7796 = vmatpush1.bf16.msra.mxu0 %v6416
        %7797 = vmatprep.subr.bf16.mxu0 %v6421
        %7798 = vmatpush1.bf16.msra.mxu0 %v6420
        %7799 = vmatprep.subr.bf16.mxu0 %v6425
        %7800 = vmatpush1.bf16.msra.mxu0 %v6424
        %7801 = vmatprep.subr.bf16.mxu0 %v6429
        %7802 = vmatpush1.bf16.msra.mxu0 %v6428
        %7803 = vmatprep.subr.bf16.mxu0 %v6433
        %7804 = vmatpush1.bf16.msra.mxu0 %v6432
        %7805 = vmatprep.subr.bf16.mxu0 %v6437
        %7806 = vmatpush1.bf16.msra.mxu0 %v6436
        %7807 = vmatprep.subr.bf16.mxu0 %v6441
        %7808 = vmatpush1.bf16.msra.mxu0 %v6440
        %7809 = vmatprep.subr.bf16.mxu0 %v6445
        %7810 = vmatpush1.bf16.msra.mxu0 %v6444
        %7811 = vmatprep.subr.bf16.mxu0 %v6449
        %7812 = vmatpush1.bf16.msra.mxu0 %v6448
        %7813 = vmatprep.subr.bf16.mxu0 %v6453
        %7814 = vmatpush1.bf16.msra.mxu0 %v6452
        %7815 = vmatprep.subr.bf16.mxu0 %v6457
        %7816 = vmatpush1.bf16.msra.mxu0 %v6456
        %7817 = vmatprep.subr.bf16.mxu0 %v6461
        %7818 = vmatpush1.bf16.msra.mxu0 %v6460
        %7819 = vmatprep.subr.bf16.mxu0 %v6465
        %7820 = vmatpush1.bf16.msra.mxu0 %v6464
        %7821 = vmatprep.subr.bf16.mxu0 %v6469
        %7822 = vmatpush1.bf16.msra.mxu0 %v6468
        %7823 = vmatprep.subr.bf16.mxu0 %v6473
        %7824 = vmatpush1.bf16.msra.mxu0 %v6472
        %7825 = vmatprep.mubr.bf16.mxu0 %v3635
        %7826 = vmatmul.mubr.bf16.gmra.mrb[0].mxu0 %v3634
        %v7827 = vpop.f32.mrb[0].mxu0
        %v7828 = vadd.f32 %v7787, %v7827
        %v7829 = vpop.f32.mrb[0].mxu0
        %v7830 = vadd.f32 %v7789, %v7829
        %v7831 = vpop.f32.mrb[0].mxu0
        %v7832 = vpop.f32.mrb[0].mxu0
        %7833 = vdwg.mxu0
        %7834 = vmatprep.subr.bf16.mxu0 %v6477
        %7835 = vmatpush1.bf16.msra.mxu0 %v6476
        %7836 = vmatprep.subr.bf16.mxu0 %v6481
        %7837 = vmatpush1.bf16.msra.mxu0 %v6480
        %7838 = vmatprep.subr.bf16.mxu0 %v6485
        %7839 = vmatpush1.bf16.msra.mxu0 %v6484
        %7840 = vmatprep.subr.bf16.mxu0 %v6489
        %7841 = vmatpush1.bf16.msra.mxu0 %v6488
        %7842 = vmatprep.subr.bf16.mxu0 %v6493
        %7843 = vmatpush1.bf16.msra.mxu0 %v6492
        %7844 = vmatprep.subr.bf16.mxu0 %v6497
        %7845 = vmatpush1.bf16.msra.mxu0 %v6496
        %7846 = vmatprep.subr.bf16.mxu0 %v6501
        %7847 = vmatpush1.bf16.msra.mxu0 %v6500
        %7848 = vmatprep.subr.bf16.mxu0 %v6505
        %7849 = vmatpush1.bf16.msra.mxu0 %v6504
        %7850 = vmatprep.subr.bf16.mxu0 %v6509
        %7851 = vmatpush1.bf16.msra.mxu0 %v6508
        %7852 = vmatprep.subr.bf16.mxu0 %v6513
        %7853 = vmatpush1.bf16.msra.mxu0 %v6512
        %7854 = vmatprep.subr.bf16.mxu0 %v6517
        %7855 = vmatpush1.bf16.msra.mxu0 %v6516
        %7856 = vmatprep.subr.bf16.mxu0 %v6521
        %7857 = vmatpush1.bf16.msra.mxu0 %v6520
        %7858 = vmatprep.subr.bf16.mxu0 %v6525
        %7859 = vmatpush1.bf16.msra.mxu0 %v6524
        %7860 = vmatprep.subr.bf16.mxu0 %v6529
        %7861 = vmatpush1.bf16.msra.mxu0 %v6528
        %7862 = vmatprep.subr.bf16.mxu0 %v6533
        %7863 = vmatpush1.bf16.msra.mxu0 %v6532
        %7864 = vmatprep.subr.bf16.mxu0 %v6537
        %7865 = vmatpush1.bf16.msra.mxu0 %v6536
        %7866 = vmatprep.mubr.bf16.mxu0 %v3713
        %7867 = vmatmul.mubr.bf16.gmra.mrb[0].mxu0 %v3706
        %v7868 = vpop.f32.mrb[0].mxu0
        %v7869 = vadd.f32 %v7828, %v7868
        %v7870 = vpop.f32.mrb[0].mxu0
        %v7871 = vadd.f32 %v7830, %v7870
        %v7872 = vpop.f32.mrb[0].mxu0
        %v7873 = vpop.f32.mrb[0].mxu0
        %7874 = vdwg.mxu0
        %7875 = vmatprep.subr.bf16.mxu0 %v6541
        %7876 = vmatpush1.bf16.msra.mxu0 %v6540
        %7877 = vmatprep.subr.bf16.mxu0 %v6545
        %7878 = vmatpush1.bf16.msra.mxu0 %v6544
        %7879 = vmatprep.subr.bf16.mxu0 %v6549
        %7880 = vmatpush1.bf16.msra.mxu0 %v6548
        %7881 = vmatprep.subr.bf16.mxu0 %v6553
        %7882 = vmatpush1.bf16.msra.mxu0 %v6552
        %7883 = vmatprep.subr.bf16.mxu0 %v6557
        %7884 = vmatpush1.bf16.msra.mxu0 %v6556
        %7885 = vmatprep.subr.bf16.mxu0 %v6561
        %7886 = vmatpush1.bf16.msra.mxu0 %v6560
        %7887 = vmatprep.subr.bf16.mxu0 %v6565
        %7888 = vmatpush1.bf16.msra.mxu0 %v6564
        %7889 = vmatprep.subr.bf16.mxu0 %v6569
        %7890 = vmatpush1.bf16.msra.mxu0 %v6568
        %7891 = vmatprep.subr.bf16.mxu0 %v6573
        %7892 = vmatpush1.bf16.msra.mxu0 %v6572
        %7893 = vmatprep.subr.bf16.mxu0 %v6577
        %7894 = vmatpush1.bf16.msra.mxu0 %v6576
        %7895 = vmatprep.subr.bf16.mxu0 %v6581
        %7896 = vmatpush1.bf16.msra.mxu0 %v6580
        %7897 = vmatprep.subr.bf16.mxu0 %v6585
        %7898 = vmatpush1.bf16.msra.mxu0 %v6584
        %7899 = vmatprep.subr.bf16.mxu0 %v6589
        %7900 = vmatpush1.bf16.msra.mxu0 %v6588
        %7901 = vmatprep.subr.bf16.mxu0 %v6593
        %7902 = vmatpush1.bf16.msra.mxu0 %v6592
        %7903 = vmatprep.subr.bf16.mxu0 %v6597
        %7904 = vmatpush1.bf16.msra.mxu0 %v6596
        %7905 = vmatprep.subr.bf16.mxu0 %v6601
        %7906 = vmatpush1.bf16.msra.mxu0 %v6600
        %7907 = vmatprep.mubr.bf16.mxu0 %v3719
        %7908 = vmatmul.mubr.bf16.gmra.mrb[0].mxu0 %v3718
        %v7909 = vpop.f32.mrb[0].mxu0
        %v7910 = vadd.f32 %v7869, %v7909
        %v7911 = vpop.f32.mrb[0].mxu0
        %v7912 = vadd.f32 %v7871, %v7911
        %v7913 = vpop.f32.mrb[0].mxu0
        %v7914 = vpop.f32.mrb[0].mxu0
        %7915 = vdwg.mxu0
        %v7916 = vld [vmem:[%s11] sm:$0xf]
        %v7918 = vlaneseq
        %v7919 = vshrl.u32 %v7918, 7
        %v7920 = vsub.s32 0, %v7919
        %v7921 = vrot.slane %v7916, %v7920
        %v7922 = vlaneseq
        %v7923 = vshrl.u32 %v7922, 7
        %v7924 = vsub.s32 1, %v7923
        %v7925 = vrot.slane %v7916, %v7924
        %v7926 = vlaneseq
        %v7927 = vshrl.u32 %v7926, 7
        %v7928 = vsub.s32 2, %v7927
        %v7929 = vrot.slane %v7916, %v7928
        %v7930 = vlaneseq
        %v7931 = vshrl.u32 %v7930, 7
        %v7932 = vsub.s32 3, %v7931
        %v7933 = vrot.slane %v7916, %v7932
        %v7938 = vmul.f32 %v7541, %v7921
        %v7939 = vmul.f32 %v7543, %v7925
        %v7940 = vmul.f32 %v7910, %v7929
        %v7941 = vmul.f32 %v7912, %v7933
        %v7942 = vld [vmem:[%s12] sm:$0xf]
        %v7944 = vlaneseq
        %v7945 = vshrl.u32 %v7944, 7
        %v7946 = vsub.s32 0, %v7945
        %v7947 = vrot.slane %v7942, %v7946
        %v7948 = vlaneseq
        %v7949 = vshrl.u32 %v7948, 7
        %v7950 = vsub.s32 1, %v7949
        %v7951 = vrot.slane %v7942, %v7950
        %v7952 = vlaneseq
        %v7953 = vshrl.u32 %v7952, 7
        %v7954 = vsub.s32 2, %v7953
        %v7955 = vrot.slane %v7942, %v7954
        %v7956 = vlaneseq
        %v7957 = vshrl.u32 %v7956, 7
        %v7958 = vsub.s32 3, %v7957
        %v7959 = vrot.slane %v7942, %v7958
        %v7964 = vadd.f32 %v7938, %v7947
        %v7965 = vadd.f32 %v7939, %v7951
        %v7966 = vadd.f32 %v7940, %v7955
        %v7967 = vadd.f32 %v7941, %v7959
        %v7968 = vmax.f32 %v7964, 0.0
        %v7969 = vmax.f32 %v7965, 0.0
        %v7970 = vmax.f32 %v7966, 0.0
        %v7971 = vmax.f32 %v7967, 0.0
        %v7976 = vrot.slane %v7968, 4
        %v7977 = vrot.slane %v7969, 4
        %v7978 = vrot.slane %v7970, 4
        %v7979 = vrot.slane %v7971, 4
        %v7984 = vmax.f32 %v7968, %v7976
        %v7985 = vmax.f32 %v7969, %v7977
        %v7986 = vmax.f32 %v7970, %v7978
        %v7987 = vmax.f32 %v7971, %v7979
        %v7992 = vrot.slane %v7984, 1
        %v7993 = vrot.slane %v7985, 1
        %v7994 = vrot.slane %v7986, 1
        %v7995 = vrot.slane %v7987, 1
        %v8000 = vmax.f32 %v7984, %v7992
        %v8001 = vmax.f32 %v7985, %v7993
        %v8002 = vmax.f32 %v7986, %v7994
        %v8003 = vmax.f32 %v7987, %v7995
        %v8004 = vld [vmem:[%s13] sm:$0xff]
        %v8005 = vld [vmem:[%s13 + $0x8] sm:$0xff]
        %v8006 = vld [vmem:[%s13 + $0x10] sm:$0xff]
        %v8007 = vld [vmem:[%s13 + $0x18] sm:$0xff]
        %v8008 = vld [vmem:[%s13 + $0x20] sm:$0xff]
        %v8009 = vld [vmem:[%s13 + $0x28] sm:$0xff]
        %v8010 = vld [vmem:[%s13 + $0x30] sm:$0xff]
        %v8011 = vld [vmem:[%s13 + $0x38] sm:$0xff]
        %v8012 = vld [vmem:[%s13 + $0x40] sm:$0xff]
        %v8013 = vld [vmem:[%s13 + $0x48] sm:$0xff]
        %v8014 = vld [vmem:[%s13 + $0x50] sm:$0xff]
        %v8015 = vld [vmem:[%s13 + $0x58] sm:$0xff]
        %v8016 = vld [vmem:[%s13 + $0x60] sm:$0xff]
        %v8017 = vld [vmem:[%s13 + $0x68] sm:$0xff]
        %v8018 = vld [vmem:[%s13 + $0x70] sm:$0xff]
        %v8019 = vld [vmem:[%s13 + $0x78] sm:$0xff]
        %v8020 = vld [vmem:[%s13 + $0x80] sm:$0xff]
        %v8021 = vld [vmem:[%s13 + $0x88] sm:$0xff]
        %v8022 = vld [vmem:[%s13 + $0x90] sm:$0xff]
        %v8023 = vld [vmem:[%s13 + $0x98] sm:$0xff]
        %v8024 = vld [vmem:[%s13 + $0xa0] sm:$0xff]
        %v8025 = vld [vmem:[%s13 + $0xa8] sm:$0xff]
        %v8026 = vld [vmem:[%s13 + $0xb0] sm:$0xff]
        %v8027 = vld [vmem:[%s13 + $0xb8] sm:$0xff]
        %v8028 = vld [vmem:[%s13 + $0xc0] sm:$0xff]
        %v8029 = vld [vmem:[%s13 + $0xc8] sm:$0xff]
        %v8030 = vld [vmem:[%s13 + $0xd0] sm:$0xff]
        %v8031 = vld [vmem:[%s13 + $0xd8] sm:$0xff]
        %v8032 = vld [vmem:[%s13 + $0xe0] sm:$0xff]
        %v8033 = vld [vmem:[%s13 + $0xe8] sm:$0xff]
        %v8034 = vld [vmem:[%s13 + $0xf0] sm:$0xff]
        %v8035 = vld [vmem:[%s13 + $0xf8] sm:$0xff]
        %v8036 = vld [vmem:[%s13 + $0x100] sm:$0xff]
        %v8037 = vld [vmem:[%s13 + $0x108] sm:$0xff]
        %v8038 = vld [vmem:[%s13 + $0x110] sm:$0xff]
        %v8039 = vld [vmem:[%s13 + $0x118] sm:$0xff]
        %v8040 = vld [vmem:[%s13 + $0x120] sm:$0xff]
        %v8041 = vld [vmem:[%s13 + $0x128] sm:$0xff]
        %v8042 = vld [vmem:[%s13 + $0x130] sm:$0xff]
        %v8043 = vld [vmem:[%s13 + $0x138] sm:$0xff]
        %v8044 = vld [vmem:[%s13 + $0x140] sm:$0xff]
        %v8045 = vld [vmem:[%s13 + $0x148] sm:$0xff]
        %v8046 = vld [vmem:[%s13 + $0x150] sm:$0xff]
        %v8047 = vld [vmem:[%s13 + $0x158] sm:$0xff]
        %v8048 = vld [vmem:[%s13 + $0x160] sm:$0xff]
        %v8049 = vld [vmem:[%s13 + $0x168] sm:$0xff]
        %v8050 = vld [vmem:[%s13 + $0x170] sm:$0xff]
        %v8051 = vld [vmem:[%s13 + $0x178] sm:$0xff]
        %v8052 = vld [vmem:[%s13 + $0x180] sm:$0xff]
        %v8053 = vld [vmem:[%s13 + $0x188] sm:$0xff]
        %v8054 = vld [vmem:[%s13 + $0x190] sm:$0xff]
        %v8055 = vld [vmem:[%s13 + $0x198] sm:$0xff]
        %v8056 = vld [vmem:[%s13 + $0x1a0] sm:$0xff]
        %v8057 = vld [vmem:[%s13 + $0x1a8] sm:$0xff]
        %v8058 = vld [vmem:[%s13 + $0x1b0] sm:$0xff]
        %v8059 = vld [vmem:[%s13 + $0x1b8] sm:$0xff]
        %v8060 = vld [vmem:[%s13 + $0x1c0] sm:$0xff]
        %v8061 = vld [vmem:[%s13 + $0x1c8] sm:$0xff]
        %v8062 = vld [vmem:[%s13 + $0x1d0] sm:$0xff]
        %v8063 = vld [vmem:[%s13 + $0x1d8] sm:$0xff]
        %v8064 = vld [vmem:[%s13 + $0x1e0] sm:$0xff]
        %v8065 = vld [vmem:[%s13 + $0x1e8] sm:$0xff]
        %v8066 = vld [vmem:[%s13 + $0x1f0] sm:$0xff]
        %v8067 = vld [vmem:[%s13 + $0x1f8] sm:$0xff]
        %v8068 = vld [vmem:[%s14] sm:$0x1]
        %8069 = vmatprep.subr.mxu0 0.0
        %8070 = vmatpush1.msra.mxu0 %v8004
        %8071 = vmatprep.subr.mxu0 0.0
        %8072 = vmatpush1.msra.mxu0 %v8005
        %8073 = vmatprep.subr.mxu0 0.0
        %8074 = vmatpush1.msra.mxu0 %v8006
        %8075 = vmatprep.subr.mxu0 0.0
        %8076 = vmatpush1.msra.mxu0 %v8007
        %8077 = vmatprep.subr.mxu0 0.0
        %8078 = vmatpush1.msra.mxu0 %v8008
        %8079 = vmatprep.subr.mxu0 0.0
        %8080 = vmatpush1.msra.mxu0 %v8009
        %8081 = vmatprep.subr.mxu0 0.0
        %8082 = vmatpush1.msra.mxu0 %v8010
        %8083 = vmatprep.subr.mxu0 0.0
        %8084 = vmatpush1.msra.mxu0 %v8011
        %8085 = vmatprep.subr.mxu0 0.0
        %8086 = vmatpush1.msra.mxu0 %v8012
        %8087 = vmatprep.subr.mxu0 0.0
        %8088 = vmatpush1.msra.mxu0 %v8013
        %8089 = vmatprep.subr.mxu0 0.0
        %8090 = vmatpush1.msra.mxu0 %v8014
        %8091 = vmatprep.subr.mxu0 0.0
        %8092 = vmatpush1.msra.mxu0 %v8015
        %8093 = vmatprep.subr.mxu0 0.0
        %8094 = vmatpush1.msra.mxu0 %v8016
        %8095 = vmatprep.subr.mxu0 0.0
        %8096 = vmatpush1.msra.mxu0 %v8017
        %8097 = vmatprep.subr.mxu0 0.0
        %8098 = vmatpush1.msra.mxu0 %v8018
        %8099 = vmatprep.subr.mxu0 0.0
        %8100 = vmatpush1.msra.mxu0 %v8019
        %8101 = vmatprep.subr.mxu0 0.0
        %8102 = vmatpush1.msra.mxu0 %v8020
        %8103 = vmatprep.subr.mxu0 0.0
        %8104 = vmatpush1.msra.mxu0 %v8021
        %8105 = vmatprep.subr.mxu0 0.0
        %8106 = vmatpush1.msra.mxu0 %v8022
        %8107 = vmatprep.subr.mxu0 0.0
        %8108 = vmatpush1.msra.mxu0 %v8023
        %8109 = vmatprep.subr.mxu0 0.0
        %8110 = vmatpush1.msra.mxu0 %v8024
        %8111 = vmatprep.subr.mxu0 0.0
        %8112 = vmatpush1.msra.mxu0 %v8025
        %8113 = vmatprep.subr.mxu0 0.0
        %8114 = vmatpush1.msra.mxu0 %v8026
        %8115 = vmatprep.subr.mxu0 0.0
        %8116 = vmatpush1.msra.mxu0 %v8027
        %8117 = vmatprep.subr.mxu0 0.0
        %8118 = vmatpush1.msra.mxu0 %v8028
        %8119 = vmatprep.subr.mxu0 0.0
        %8120 = vmatpush1.msra.mxu0 %v8029
        %8121 = vmatprep.subr.mxu0 0.0
        %8122 = vmatpush1.msra.mxu0 %v8030
        %8123 = vmatprep.subr.mxu0 0.0
        %8124 = vmatpush1.msra.mxu0 %v8031
        %8125 = vmatprep.subr.mxu0 0.0
        %8126 = vmatpush1.msra.mxu0 %v8032
        %8127 = vmatprep.subr.mxu0 0.0
        %8128 = vmatpush1.msra.mxu0 %v8033
        %8129 = vmatprep.subr.mxu0 0.0
        %8130 = vmatpush1.msra.mxu0 %v8034
        %8131 = vmatprep.subr.mxu0 0.0
        %8132 = vmatpush1.msra.mxu0 %v8035
        %8133 = vmatprep.mubr.f32.mxu0 %v8001
        %8134 = vmatmul.mubr.f32.gmra.mrb[0].mxu0 %v8000
        %v8135 = vpop.f32.mrb[0].mxu0
        %v8136 = vadd.f32 %v8068, %v8135
        %v8137 = vpop.f32.mrb[0].mxu0
        %8138 = vdwg.mxu0
        %8139 = vmatprep.subr.mxu0 0.0
        %8140 = vmatpush1.msra.mxu0 %v8036
        %8141 = vmatprep.subr.mxu0 0.0
        %8142 = vmatpush1.msra.mxu0 %v8037
        %8143 = vmatprep.subr.mxu0 0.0
        %8144 = vmatpush1.msra.mxu0 %v8038
        %8145 = vmatprep.subr.mxu0 0.0
        %8146 = vmatpush1.msra.mxu0 %v8039
        %8147 = vmatprep.subr.mxu0 0.0
        %8148 = vmatpush1.msra.mxu0 %v8040
        %8149 = vmatprep.subr.mxu0 0.0
        %8150 = vmatpush1.msra.mxu0 %v8041
        %8151 = vmatprep.subr.mxu0 0.0
        %8152 = vmatpush1.msra.mxu0 %v8042
        %8153 = vmatprep.subr.mxu0 0.0
        %8154 = vmatpush1.msra.mxu0 %v8043
        %8155 = vmatprep.subr.mxu0 0.0
        %8156 = vmatpush1.msra.mxu0 %v8044
        %8157 = vmatprep.subr.mxu0 0.0
        %8158 = vmatpush1.msra.mxu0 %v8045
        %8159 = vmatprep.subr.mxu0 0.0
        %8160 = vmatpush1.msra.mxu0 %v8046
        %8161 = vmatprep.subr.mxu0 0.0
        %8162 = vmatpush1.msra.mxu0 %v8047
        %8163 = vmatprep.subr.mxu0 0.0
        %8164 = vmatpush1.msra.mxu0 %v8048
        %8165 = vmatprep.subr.mxu0 0.0
        %8166 = vmatpush1.msra.mxu0 %v8049
        %8167 = vmatprep.subr.mxu0 0.0
        %8168 = vmatpush1.msra.mxu0 %v8050
        %8169 = vmatprep.subr.mxu0 0.0
        %8170 = vmatpush1.msra.mxu0 %v8051
        %8171 = vmatprep.subr.mxu0 0.0
        %8172 = vmatpush1.msra.mxu0 %v8052
        %8173 = vmatprep.subr.mxu0 0.0
        %8174 = vmatpush1.msra.mxu0 %v8053
        %8175 = vmatprep.subr.mxu0 0.0
        %8176 = vmatpush1.msra.mxu0 %v8054
        %8177 = vmatprep.subr.mxu0 0.0
        %8178 = vmatpush1.msra.mxu0 %v8055
        %8179 = vmatprep.subr.mxu0 0.0
        %8180 = vmatpush1.msra.mxu0 %v8056
        %8181 = vmatprep.subr.mxu0 0.0
        %8182 = vmatpush1.msra.mxu0 %v8057
        %8183 = vmatprep.subr.mxu0 0.0
        %8184 = vmatpush1.msra.mxu0 %v8058
        %8185 = vmatprep.subr.mxu0 0.0
        %8186 = vmatpush1.msra.mxu0 %v8059
        %8187 = vmatprep.subr.mxu0 0.0
        %8188 = vmatpush1.msra.mxu0 %v8060
        %8189 = vmatprep.subr.mxu0 0.0
        %8190 = vmatpush1.msra.mxu0 %v8061
        %8191 = vmatprep.subr.mxu0 0.0
        %8192 = vmatpush1.msra.mxu0 %v8062
        %8193 = vmatprep.subr.mxu0 0.0
        %8194 = vmatpush1.msra.mxu0 %v8063
        %8195 = vmatprep.subr.mxu0 0.0
        %8196 = vmatpush1.msra.mxu0 %v8064
        %8197 = vmatprep.subr.mxu0 0.0
        %8198 = vmatpush1.msra.mxu0 %v8065
        %8199 = vmatprep.subr.mxu0 0.0
        %8200 = vmatpush1.msra.mxu0 %v8066
        %8201 = vmatprep.subr.mxu0 0.0
        %8202 = vmatpush1.msra.mxu0 %v8067
        %8203 = vmatprep.mubr.f32.mxu0 %v8003
        %8204 = vmatmul.mubr.f32.gmra.mrb[0].mxu0 %v8002
        %v8205 = vpop.f32.mrb[0].mxu0
        %v8206 = vadd.f32 %v8136, %v8205
        %v8207 = vpop.f32.mrb[0].mxu0
        %8208 = vdwg.mxu0
        %vm8209 = vcmask 73728
        %8210 = vst.msk [vmem:[%s486] sm:$0x1] %vm8209, %v8206
        %s8211 = sand.u32 %s357, 1
        %s8212 = scalar_lea.sflag [#allocation6], %s8211
        %s8213 = sand.u32 %s357, 1
        %s8214 = scalar_lea.vmem [#allocation5], %s8213
        // Predicated region
        $region81: #{cnn_forward.1} parent=79 // pred_check
          %p8215 = pneg %p367
        $region82: #{cnn_forward.1} parent=79 // pred_check_branch
          %8217 = sbr.rel (%p8215) target = $region84
        $region83: #{cnn_forward.1} parent=79 // pred_region
          %s8219 = ssub.s32 16, 16
          %8220 = vsyncadd %s8212, %s8219
          %s8221 = smul.addr %s29, 16
          %s8222 = scalar_lea.hbm %s15, %s8221
          %s8224 = sshll.u32 %s8214, 4
          %s8225 = int_to_ptr.vmem [resolvable:$true] %s8224
          %8227 = dma.vmem_to_hbm [thread:$0]  %s8225, 16, %s8222, %s8212
        $region84: #{cnn_forward.1} parent=79 // pred_fallthru
          _
      $region80: #{cnn_forward.1} parent=5 // pred_fallthru
        _
      %p8228 = scmp.le.s32.totalorder 2, %s24
      // Predicated region
      $region85: #{cnn_forward.1} parent=5 // pred_check
        %p8229 = pneg %p8228
      $region86: #{cnn_forward.1} parent=5 // pred_check_branch
        %8231 = sbr.rel (%p8229) target = $region88
      $region87: #{cnn_forward.1} parent=5 // pred_region
        %s8232 = ssub.s32 %s24, 2
        // Predicated region
        $region89: #{cnn_forward.1} parent=87 // pred_check
          %p8233 = pneg %p373
        $region90: #{cnn_forward.1} parent=87 // pred_check_branch
          %8235 = sbr.rel (%p8233) target = $region92
        $region91: #{cnn_forward.1} parent=87 // pred_region
          %s8236 = sand.u32 %s358, 1
          %s8237 = scalar_lea.sflag [#allocation6], %s8236
          %s8238 = sand.u32 %s358, 1
          %s8239 = scalar_lea.vmem [#allocation5], %s8238
          %8240 = dma.done %s8237, 16
        $region92: #{cnn_forward.1} parent=87 // pred_fallthru
          _
      $region88: #{cnn_forward.1} parent=5 // pred_fallthru
        _
    $region6: #{cnn_forward.1} parent=1 // loop_footer
      %s28 = sadd.s32 1, %s24
    $region7: #{cnn_forward.1} parent=1 // loop_footer_branch
      %23 = sbr.rel target = $region3
    $region8: #{cnn_forward.1} parent=1 // loop_exit
      _
    %8241 = vsyncpa [#allocation6], 1
    %s8242 = scalar_lea.sflag [#allocation6], 1
    %8243 = vsyncpa %s8242, 1

</llo_original>
